<compile_context>
chip_gen: v7x
topology: tpu7x:2x2x1
jax: 0.10.0
libtpu: 0.0.40
codegen_flags: <defaults>
</compile_context>

<pallas_src>
import functools

import jax
import jax.numpy as jnp
from jax.experimental import pallas as pl
from jax.experimental.pallas import tpu as pltpu


def _relative_bias(table, seq_len, num_heads):
    """(2S-1, H) table -> (H, S, S) bias, bias[h, i, j] = table[i - j + S - 1, h].

    Mirrors the PyTorch gather via `relative_index` (whose repeat(1, 8)
    hardcodes 8 columns; identical semantics when num_heads == 8)."""
    i = jnp.arange(seq_len)[:, None]
    j = jnp.arange(seq_len)[None, :]
    idx = i - j + seq_len - 1                                   # (S, S)
    bias = jnp.take(table[:, :num_heads], idx, axis=0)          # (S, S, H)
    return jnp.transpose(bias, (2, 0, 1)).astype(jnp.float32)   # (H, S, S)


def _attn_kernel(x_ref, w_ref, bias_ref, g_ref, b_ref, o_ref, *,
                 num_heads, head_dim, emb, eps, exact_softmax):
    bt, s, e = x_ref.shape
    h_, d_ = num_heads, head_dim

    # ---- fused, pre-transposed, pre-scaled QKV projection: one MXU pass ----
    x2 = x_ref[...].reshape(bt * s, e)                      # merge majors: free
    qkv = jnp.dot(x2, w_ref[...],
                  preferred_element_type=jnp.float32)       # (bt*s, 3E) f32 acc
    qkv = qkv.astype(x2.dtype)                              # MXU compute dtype

    # ---- split q/k/v (E-wide lane slices, lane-aligned when E % 128 == 0) and
    # gather heads ONCE into a single leading batch axis of size H*bt so both
    # attention matmuls below run as one head-batched dot_general each. ----
    def to_heads(m2):                                       # (bt*s, E)->(H*bt, s, D)
        m3 = m2.reshape(bt, s, e)
        return jnp.concatenate(
            [m3[:, :, h * d_:(h + 1) * d_] for h in range(h_)], axis=0)

    q = to_heads(qkv[:, :emb])          # 1/sqrt(E) already folded into W_q
    k = to_heads(qkv[:, emb:2 * emb])
    v = to_heads(qkv[:, 2 * emb:])

    # logits[g, i, j] = sum_d q[g, i, d] * k[g, j, d],  g = h*bt + b
    logits = jax.lax.dot_general(
        q, k, (((2,), (2,)), ((0,), (0,))),
        preferred_element_type=jnp.float32)                 # (H*bt, s, s) f32

    # numerically stable softmax over keys (f32 statistics)
    logits = logits - jnp.max(logits, axis=-1, keepdims=True)
    p = jnp.exp(logits)
    denom = jnp.sum(p, axis=-1, keepdims=True)
    if exact_softmax:
        p = p / denom                                       # bit-tight f32 path
    else:
        p = p * pl.reciprocal(denom, approx=True)           # EUP slot (bf16 path)

    # Relative positional bias is added AFTER softmax (faithful to the module).
    # Leading-dim reshapes are free, so the bias stays (H, S, S) in VMEM.
    p = (p.reshape(h_, bt, s, s) + bias_ref[...][:, None]).reshape(h_ * bt, s, s)

    # out[g, i, d] = sum_j p[g, i, j] * v[g, j, d]
    # (bf16 path quantizes the post-softmax probabilities to bf16 here.)
    o = jax.lax.dot_general(
        p.astype(v.dtype), v, (((2,), (1,)), ((0,), (0,))),
        preferred_element_type=jnp.float32)                 # (H*bt, s, D) f32

    # Merge heads back to (bt, s, E): one lane-axis concat of leading-indexed
    # per-head blocks (no sublane<->major transpose needed inside the kernel).
    o = o.reshape(h_, bt, s, d_)
    out = jnp.concatenate([o[h] for h in range(h_)], axis=-1)   # (bt, s, E) f32

    # LayerNorm over the embedding dim (f32 statistics, biased variance).
    mean = jnp.mean(out, axis=-1, keepdims=True)
    centered = out - mean
    var = jnp.mean(centered * centered, axis=-1, keepdims=True)
    y = centered * jax.lax.rsqrt(var + eps)
    y = y * g_ref[...] + b_ref[...]                         # (1, 1, E) broadcast

    # Unpadded full-block store (lane-dense automatically when E % 128 == 0).
    o_ref[...] = y.astype(o_ref.dtype)


def _default_vmem_limit_bytes():
    """~3/4 of physical VMEM: big tiles on v5e/v6e (128 MiB), safe on v7x (64 MiB)."""
    try:
        cap = int(pltpu.get_tpu_info().vmem_capacity_bytes)
        return min((cap * 3) // 4, 100 * 1024 * 1024)
    except Exception:
        return 32 * 1024 * 1024          # conservative fallback, ample for demo


def _pick_batch_tile(batch, seq_len, max_rows=1024):
    """Largest divisor of `batch` such that
       * the grid has >= 2 steps when batch > 1 (v7x megacore + pipelining), and
       * M = bt * seq_len stays bounded (per-step working set)."""
    upper = batch if batch == 1 else batch // 2
    for cand in range(upper, 0, -1):
        if batch % cand == 0 and cand * seq_len <= max_rows:
            return cand
    return 1


def attention_forward(x, wq, wk, wv, rel_table, gamma, beta, *,
                      num_heads, eps=1e-5, compute_dtype=jnp.bfloat16,
                      batch_tile=None, vmem_limit_bytes=None):
    B, S, E = x.shape
    assert E % num_heads == 0
    D = E // num_heads
    scale = float(E) ** (-0.5)

    # ---- one-time host/XLA-side prep (kept out of the kernel) ----
    # Fused, pre-transposed (E, 3E) weight with columns in [q|k|v] x [head] x [d]
    # order (the order the PyTorch reshape implies); 1/sqrt(E) folded into Q.
    wqkv = jnp.concatenate([wq.T * scale, wk.T, wv.T], axis=1).astype(compute_dtype)
    bias = _relative_bias(rel_table, S, num_heads)              # (H, S, S) f32
    gamma3 = gamma.reshape(1, 1, E).astype(jnp.float32)
    beta3 = beta.reshape(1, 1, E).astype(jnp.float32)
    x_c = x.astype(compute_dtype)

    bt = _pick_batch_tile(B, S) if batch_tile is None else batch_tile
    assert B % bt == 0
    grid = (B // bt,)

    if vmem_limit_bytes is None:
        vmem_limit_bytes = _default_vmem_limit_bytes()

    exact_softmax = jnp.dtype(compute_dtype) == jnp.dtype(jnp.float32)
    kernel = functools.partial(
        _attn_kernel, num_heads=num_heads, head_dim=D, emb=E, eps=eps,
        exact_softmax=exact_softmax)

    itemsize = jnp.dtype(compute_dtype).itemsize
    flops = 6 * B * S * E * E + 4 * B * S * S * E
    # Constant-index-map operands (weights / bias / gamma / beta) are DMA'd once.
    bytes_accessed = (B * S * E * itemsize            # x
                      + E * 3 * E * itemsize          # fused weights (once)
                      + num_heads * S * S * 4         # relative bias (once)
                      + 2 * E * 4                     # gamma, beta (once)
                      + B * S * E * 4)                # output (f32)
    cost = pl.CostEstimate(flops=flops,
                           transcendentals=B * num_heads * S * S,
                           bytes_accessed=bytes_accessed)

    # TODO(synk): for long sequences (S >= ~512) add a query-tile grid axis so
    # the (H, S, S) bias and (H*bt, S, S) logits are tiled rather than fully
    # resident (matters for v7x's 64 MiB VMEM); unnecessary at these sizes.
    # (Constant index maps below mean W/bias/gamma/beta are fetched only once;
    #  pl.Buffered(1) on those specs would additionally halve their VMEM copy.)
    return pl.pallas_call(
        kernel,
        out_shape=jax.ShapeDtypeStruct((B, S, E), jnp.float32),
        grid_spec=pltpu.PrefetchScalarGridSpec(
            num_scalar_prefetch=0,
            grid=grid,
            in_specs=[
                pl.BlockSpec((bt, S, E), lambda b: (b, 0, 0)),          # x
                pl.BlockSpec((E, 3 * E), lambda b: (0, 0)),             # fused W_qkv
                pl.BlockSpec((num_heads, S, S), lambda b: (0, 0, 0)),   # rel bias
                pl.BlockSpec((1, 1, E), lambda b: (0, 0, 0)),           # gamma
                pl.BlockSpec((1, 1, E), lambda b: (0, 0, 0)),           # beta
            ],
            out_specs=pl.BlockSpec((bt, S, E), lambda b: (b, 0, 0)),
        ),
        compiler_params=pltpu.CompilerParams(
            dimension_semantics=("parallel",),
            vmem_limit_bytes=vmem_limit_bytes),
        cost_estimate=cost,
    )(x_c, wqkv, bias, gamma3, beta3)


def attention_reference(x, wq, wk, wv, rel_table, gamma, beta, *,
                        num_heads, eps=1e-5):
    """Plain-JAX mirror of the PyTorch forward (incl. post-softmax rel bias)."""
    B, S, E = x.shape
    D = E // num_heads
    scale = float(E) ** (-0.5)
    q = (x @ wq.T).reshape(B, S, num_heads, D).transpose(0, 2, 1, 3)   # (B,H,S,D)
    k = (x @ wk.T).reshape(B, S, num_heads, D).transpose(0, 2, 3, 1)   # (B,H,D,S)
    v = (x @ wv.T).reshape(B, S, num_heads, D).transpose(0, 2, 1, 3)   # (B,H,S,D)
    attn = jax.nn.softmax(jnp.matmul(q, k) * scale, axis=-1)           # (B,H,S,S)
    attn = attn + _relative_bias(rel_table, S, num_heads)[None]        # post-softmax
    out = jnp.matmul(attn, v).transpose(0, 2, 1, 3).reshape(B, S, E)
    mean = out.mean(-1, keepdims=True)
    var = ((out - mean) ** 2).mean(-1, keepdims=True)
    return (out - mean) / jnp.sqrt(var + eps) * gamma + beta


if __name__ == "__main__":
    # Full-precision matmuls on both sides so the f32 check is meaningful.
    jax.config.update("jax_default_matmul_precision", "highest")

    # (batch, seq_len, emb_size); num_heads=8 matches the PyTorch module's
    # hardcoded 8-column gather exactly.
    B, S, E, H = 2, 8, 32, 8

    key = jax.random.PRNGKey(0)
    kx, kq, kk, kv, kt = jax.random.split(key, 5)

    x = jax.random.normal(kx, (B, S, E), dtype=jnp.float32)
    # nn.Linear weights: (out_features, in_features)
    wq = jax.random.normal(kq, (E, E), dtype=jnp.float32) * (E ** -0.5)
    wk = jax.random.normal(kk, (E, E), dtype=jnp.float32) * (E ** -0.5)
    wv = jax.random.normal(kv, (E, E), dtype=jnp.float32) * (E ** -0.5)
    # relative_bias_table is a trainable parameter (zeros at init); use small
    # random values so the bias path is actually exercised.
    rel_table = jax.random.normal(kt, (2 * S - 1, H), dtype=jnp.float32) * 0.1
    # LayerNorm params: default init gamma=1, beta=0
    gamma = jnp.ones((E,), dtype=jnp.float32)
    beta = jnp.zeros((E,), dtype=jnp.float32)

    ref = attention_reference(x, wq, wk, wv, rel_table, gamma, beta, num_heads=H)

    # f32 matmul path (exact softmax division -> tight check).
    out_f32 = attention_forward(x, wq, wk, wv, rel_table, gamma, beta,
                                num_heads=H, compute_dtype=jnp.float32)
    out_f32 = jax.block_until_ready(out_f32)
    assert out_f32.shape == (B, S, E)
    assert jnp.allclose(out_f32, ref, atol=5e-3, rtol=5e-3), \
        f"f32 max abs diff {jnp.max(jnp.abs(out_f32 - ref))}"

    # bf16 matmul path (default; full-rate MXU on v6e/v7x); loose tolerance.
    out_bf16 = attention_forward(x, wq, wk, wv, rel_table, gamma, beta,
                                 num_heads=H)
    out_bf16 = jax.block_until_ready(out_bf16)
    assert out_bf16.shape == (B, S, E)
    assert jnp.allclose(out_bf16, ref, atol=0.25), \
        f"bf16 max abs diff {jnp.max(jnp.abs(out_bf16 - ref))}"

    print("KERNEL_OK")
</pallas_src>

<mosaic_0001>
module attributes {stable_mosaic.version = 11 : i64} {
  func.func @_attn_kernel(%arg0: i32, %arg1: memref<1x8x32xf32, #tpu.memory_space<vmem>>, %arg2: memref<32x96xf32, #tpu.memory_space<vmem>>, %arg3: memref<8x8x8xf32, #tpu.memory_space<vmem>>, %arg4: memref<1x1x32xf32, #tpu.memory_space<vmem>>, %arg5: memref<1x1x32xf32, #tpu.memory_space<vmem>>, %arg6: memref<1x8x32xf32, #tpu.memory_space<vmem>>) attributes {dimension_semantics = [#tpu.dimension_semantics<parallel>], iteration_bounds = array<i64: 2>, scalar_prefetch = 0 : i64, scratch_operands = 0 : i64, tpu.core_type = #tpu.core_type<tc>, window_params = [{transform_indices = @transform_0, window_bounds = array<i64: 1, 8, 32>}, {pipeline_mode = #tpu.pipeline_mode<synchronous>, transform_indices = @transform_1, window_bounds = array<i64: 32, 96>}, {pipeline_mode = #tpu.pipeline_mode<synchronous>, transform_indices = @transform_2, window_bounds = array<i64: 8, 8, 8>}, {pipeline_mode = #tpu.pipeline_mode<synchronous>, transform_indices = @transform_3, window_bounds = array<i64: 1, 1, 32>}, {pipeline_mode = #tpu.pipeline_mode<synchronous>, transform_indices = @transform_4, window_bounds = array<i64: 1, 1, 32>}, {transform_indices = @transform_5, window_bounds = array<i64: 1, 8, 32>}]} {
    %c0 = arith.constant 0 : index
    %c0_0 = arith.constant 0 : index
    %c0_1 = arith.constant 0 : index
    %0 = vector.load %arg1[%c0, %c0_0, %c0_1] : memref<1x8x32xf32, #tpu.memory_space<vmem>>, vector<1x8x32xf32>
    %1 = vector.shape_cast %0 : vector<1x8x32xf32> to vector<8x32xf32>
    %c0_2 = arith.constant 0 : index
    %c0_3 = arith.constant 0 : index
    %2 = vector.load %arg2[%c0_2, %c0_3] : memref<32x96xf32, #tpu.memory_space<vmem>>, vector<32x96xf32>
    %cst = arith.constant dense<0.000000e+00> : vector<8x96xf32>
    %3 = tpu.matmul %1, %2, %cst {dimension_numbers = #tpu.dot_dimension_numbers<[1], [0], [0], [1], [0, 0, 1, 1], [], []>, precision = #tpu.contract_precision<fp32>} : vector<8x32xf32>, vector<32x96xf32>, vector<8x96xf32> -> vector<8x96xf32>
    %4 = vector.extract_strided_slice %3 {offsets = [0, 0], sizes = [8, 32], strides = [1, 1]} : vector<8x96xf32> to vector<8x32xf32>
    %5 = vector.shape_cast %4 : vector<8x32xf32> to vector<1x8x32xf32>
    %6 = vector.extract_strided_slice %5 {offsets = [0, 0, 0], sizes = [1, 8, 4], strides = [1, 1, 1]} : vector<1x8x32xf32> to vector<1x8x4xf32>
    %7 = vector.extract_strided_slice %5 {offsets = [0, 0, 4], sizes = [1, 8, 4], strides = [1, 1, 1]} : vector<1x8x32xf32> to vector<1x8x4xf32>
    %8 = vector.extract_strided_slice %5 {offsets = [0, 0, 8], sizes = [1, 8, 4], strides = [1, 1, 1]} : vector<1x8x32xf32> to vector<1x8x4xf32>
    %9 = vector.extract_strided_slice %5 {offsets = [0, 0, 12], sizes = [1, 8, 4], strides = [1, 1, 1]} : vector<1x8x32xf32> to vector<1x8x4xf32>
    %10 = vector.extract_strided_slice %5 {offsets = [0, 0, 16], sizes = [1, 8, 4], strides = [1, 1, 1]} : vector<1x8x32xf32> to vector<1x8x4xf32>
    %11 = vector.extract_strided_slice %5 {offsets = [0, 0, 20], sizes = [1, 8, 4], strides = [1, 1, 1]} : vector<1x8x32xf32> to vector<1x8x4xf32>
    %12 = vector.extract_strided_slice %5 {offsets = [0, 0, 24], sizes = [1, 8, 4], strides = [1, 1, 1]} : vector<1x8x32xf32> to vector<1x8x4xf32>
    %13 = vector.extract_strided_slice %5 {offsets = [0, 0, 28], sizes = [1, 8, 4], strides = [1, 1, 1]} : vector<1x8x32xf32> to vector<1x8x4xf32>
    %14 = tpu.concatenate %6, %7, %8, %9, %10, %11, %12, %13 in 0 : vector<1x8x4xf32>, vector<1x8x4xf32>, vector<1x8x4xf32>, vector<1x8x4xf32>, vector<1x8x4xf32>, vector<1x8x4xf32>, vector<1x8x4xf32>, vector<1x8x4xf32> -> vector<8x8x4xf32>
    %15 = vector.extract_strided_slice %3 {offsets = [0, 32], sizes = [8, 32], strides = [1, 1]} : vector<8x96xf32> to vector<8x32xf32>
    %16 = vector.shape_cast %15 : vector<8x32xf32> to vector<1x8x32xf32>
    %17 = vector.extract_strided_slice %16 {offsets = [0, 0, 0], sizes = [1, 8, 4], strides = [1, 1, 1]} : vector<1x8x32xf32> to vector<1x8x4xf32>
    %18 = vector.extract_strided_slice %16 {offsets = [0, 0, 4], sizes = [1, 8, 4], strides = [1, 1, 1]} : vector<1x8x32xf32> to vector<1x8x4xf32>
    %19 = vector.extract_strided_slice %16 {offsets = [0, 0, 8], sizes = [1, 8, 4], strides = [1, 1, 1]} : vector<1x8x32xf32> to vector<1x8x4xf32>
    %20 = vector.extract_strided_slice %16 {offsets = [0, 0, 12], sizes = [1, 8, 4], strides = [1, 1, 1]} : vector<1x8x32xf32> to vector<1x8x4xf32>
    %21 = vector.extract_strided_slice %16 {offsets = [0, 0, 16], sizes = [1, 8, 4], strides = [1, 1, 1]} : vector<1x8x32xf32> to vector<1x8x4xf32>
    %22 = vector.extract_strided_slice %16 {offsets = [0, 0, 20], sizes = [1, 8, 4], strides = [1, 1, 1]} : vector<1x8x32xf32> to vector<1x8x4xf32>
    %23 = vector.extract_strided_slice %16 {offsets = [0, 0, 24], sizes = [1, 8, 4], strides = [1, 1, 1]} : vector<1x8x32xf32> to vector<1x8x4xf32>
    %24 = vector.extract_strided_slice %16 {offsets = [0, 0, 28], sizes = [1, 8, 4], strides = [1, 1, 1]} : vector<1x8x32xf32> to vector<1x8x4xf32>
    %25 = tpu.concatenate %17, %18, %19, %20, %21, %22, %23, %24 in 0 : vector<1x8x4xf32>, vector<1x8x4xf32>, vector<1x8x4xf32>, vector<1x8x4xf32>, vector<1x8x4xf32>, vector<1x8x4xf32>, vector<1x8x4xf32>, vector<1x8x4xf32> -> vector<8x8x4xf32>
    %26 = vector.extract_strided_slice %3 {offsets = [0, 64], sizes = [8, 32], strides = [1, 1]} : vector<8x96xf32> to vector<8x32xf32>
    %27 = vector.shape_cast %26 : vector<8x32xf32> to vector<1x8x32xf32>
    %28 = vector.extract_strided_slice %27 {offsets = [0, 0, 0], sizes = [1, 8, 4], strides = [1, 1, 1]} : vector<1x8x32xf32> to vector<1x8x4xf32>
    %29 = vector.extract_strided_slice %27 {offsets = [0, 0, 4], sizes = [1, 8, 4], strides = [1, 1, 1]} : vector<1x8x32xf32> to vector<1x8x4xf32>
    %30 = vector.extract_strided_slice %27 {offsets = [0, 0, 8], sizes = [1, 8, 4], strides = [1, 1, 1]} : vector<1x8x32xf32> to vector<1x8x4xf32>
    %31 = vector.extract_strided_slice %27 {offsets = [0, 0, 12], sizes = [1, 8, 4], strides = [1, 1, 1]} : vector<1x8x32xf32> to vector<1x8x4xf32>
    %32 = vector.extract_strided_slice %27 {offsets = [0, 0, 16], sizes = [1, 8, 4], strides = [1, 1, 1]} : vector<1x8x32xf32> to vector<1x8x4xf32>
    %33 = vector.extract_strided_slice %27 {offsets = [0, 0, 20], sizes = [1, 8, 4], strides = [1, 1, 1]} : vector<1x8x32xf32> to vector<1x8x4xf32>
    %34 = vector.extract_strided_slice %27 {offsets = [0, 0, 24], sizes = [1, 8, 4], strides = [1, 1, 1]} : vector<1x8x32xf32> to vector<1x8x4xf32>
    %35 = vector.extract_strided_slice %27 {offsets = [0, 0, 28], sizes = [1, 8, 4], strides = [1, 1, 1]} : vector<1x8x32xf32> to vector<1x8x4xf32>
    %36 = tpu.concatenate %28, %29, %30, %31, %32, %33, %34, %35 in 0 : vector<1x8x4xf32>, vector<1x8x4xf32>, vector<1x8x4xf32>, vector<1x8x4xf32>, vector<1x8x4xf32>, vector<1x8x4xf32>, vector<1x8x4xf32>, vector<1x8x4xf32> -> vector<8x8x4xf32>
    %cst_4 = arith.constant dense<0.000000e+00> : vector<8x8x8xf32>
    %37 = tpu.matmul %14, %25, %cst_4 {dimension_numbers = #tpu.dot_dimension_numbers<[2], [2], [1], [1], [0, 0, 0, 1, 1, 1], [0], [0]>, precision = #tpu.contract_precision<fp32>} : vector<8x8x4xf32>, vector<8x8x4xf32>, vector<8x8x8xf32> -> vector<8x8x8xf32>
    %cst_5 = arith.constant dense<0xFF800000> : vector<8x8xf32>
    %38 = vector.multi_reduction <maximumf>, %37, %cst_5 [2] : vector<8x8x8xf32> to vector<8x8xf32>
    %39 = vector.shape_cast %38 : vector<8x8xf32> to vector<8x8x1xf32>
    %40 = vector.broadcast %39 : vector<8x8x1xf32> to vector<8x8x8xf32>
    %41 = arith.subf %37, %40 : vector<8x8x8xf32>
    %42 = math.exp %41 : vector<8x8x8xf32>
    %cst_6 = arith.constant dense<0.000000e+00> : vector<8x8xf32>
    %43 = vector.multi_reduction <add>, %42, %cst_6 [2] : vector<8x8x8xf32> to vector<8x8xf32>
    %44 = vector.shape_cast %43 : vector<8x8xf32> to vector<8x8x1xf32>
    %45 = vector.broadcast %44 : vector<8x8x1xf32> to vector<8x8x8xf32>
    %46 = arith.divf %42, %45 : vector<8x8x8xf32>
    %47 = vector.shape_cast %46 : vector<8x8x8xf32> to vector<8x1x8x8xf32>
    %c0_7 = arith.constant 0 : index
    %c0_8 = arith.constant 0 : index
    %c0_9 = arith.constant 0 : index
    %48 = vector.load %arg3[%c0_7, %c0_8, %c0_9] : memref<8x8x8xf32, #tpu.memory_space<vmem>>, vector<8x8x8xf32>
    %49 = vector.shape_cast %48 : vector<8x8x8xf32> to vector<8x1x8x8xf32>
    %50 = arith.addf %47, %49 : vector<8x1x8x8xf32>
    %51 = vector.shape_cast %50 : vector<8x1x8x8xf32> to vector<8x8x8xf32>
    %cst_10 = arith.constant dense<0.000000e+00> : vector<8x8x4xf32>
    %52 = tpu.matmul %51, %36, %cst_10 {dimension_numbers = #tpu.dot_dimension_numbers<[2], [1], [1], [2], [0, 0, 0, 1, 1, 2], [0], [0]>, precision = #tpu.contract_precision<fp32>} : vector<8x8x8xf32>, vector<8x8x4xf32>, vector<8x8x4xf32> -> vector<8x8x4xf32>
    %53 = vector.shape_cast %52 : vector<8x8x4xf32> to vector<8x1x8x4xf32>
    %54 = vector.extract_strided_slice %53 {offsets = [0, 0, 0, 0], sizes = [1, 1, 8, 4], strides = [1, 1, 1, 1]} : vector<8x1x8x4xf32> to vector<1x1x8x4xf32>
    %55 = vector.shape_cast %54 : vector<1x1x8x4xf32> to vector<1x8x4xf32>
    %56 = vector.extract_strided_slice %53 {offsets = [1, 0, 0, 0], sizes = [1, 1, 8, 4], strides = [1, 1, 1, 1]} : vector<8x1x8x4xf32> to vector<1x1x8x4xf32>
    %57 = vector.shape_cast %56 : vector<1x1x8x4xf32> to vector<1x8x4xf32>
    %58 = vector.extract_strided_slice %53 {offsets = [2, 0, 0, 0], sizes = [1, 1, 8, 4], strides = [1, 1, 1, 1]} : vector<8x1x8x4xf32> to vector<1x1x8x4xf32>
    %59 = vector.shape_cast %58 : vector<1x1x8x4xf32> to vector<1x8x4xf32>
    %60 = vector.extract_strided_slice %53 {offsets = [3, 0, 0, 0], sizes = [1, 1, 8, 4], strides = [1, 1, 1, 1]} : vector<8x1x8x4xf32> to vector<1x1x8x4xf32>
    %61 = vector.shape_cast %60 : vector<1x1x8x4xf32> to vector<1x8x4xf32>
    %62 = vector.extract_strided_slice %53 {offsets = [4, 0, 0, 0], sizes = [1, 1, 8, 4], strides = [1, 1, 1, 1]} : vector<8x1x8x4xf32> to vector<1x1x8x4xf32>
    %63 = vector.shape_cast %62 : vector<1x1x8x4xf32> to vector<1x8x4xf32>
    %64 = vector.extract_strided_slice %53 {offsets = [5, 0, 0, 0], sizes = [1, 1, 8, 4], strides = [1, 1, 1, 1]} : vector<8x1x8x4xf32> to vector<1x1x8x4xf32>
    %65 = vector.shape_cast %64 : vector<1x1x8x4xf32> to vector<1x8x4xf32>
    %66 = vector.extract_strided_slice %53 {offsets = [6, 0, 0, 0], sizes = [1, 1, 8, 4], strides = [1, 1, 1, 1]} : vector<8x1x8x4xf32> to vector<1x1x8x4xf32>
    %67 = vector.shape_cast %66 : vector<1x1x8x4xf32> to vector<1x8x4xf32>
    %68 = vector.extract_strided_slice %53 {offsets = [7, 0, 0, 0], sizes = [1, 1, 8, 4], strides = [1, 1, 1, 1]} : vector<8x1x8x4xf32> to vector<1x1x8x4xf32>
    %69 = vector.shape_cast %68 : vector<1x1x8x4xf32> to vector<1x8x4xf32>
    %70 = tpu.concatenate %55, %57, %59, %61, %63, %65, %67, %69 in 2 : vector<1x8x4xf32>, vector<1x8x4xf32>, vector<1x8x4xf32>, vector<1x8x4xf32>, vector<1x8x4xf32>, vector<1x8x4xf32>, vector<1x8x4xf32>, vector<1x8x4xf32> -> vector<1x8x32xf32>
    %cst_11 = arith.constant dense<0.000000e+00> : vector<1x8xf32>
    %71 = vector.multi_reduction <add>, %70, %cst_11 [2] : vector<1x8x32xf32> to vector<1x8xf32>
    %72 = vector.shape_cast %71 : vector<1x8xf32> to vector<1x8x1xf32>
    %cst_12 = arith.constant 3.200000e+01 : f32
    %73 = vector.broadcast %cst_12 : f32 to vector<1x8x1xf32>
    %74 = arith.divf %72, %73 : vector<1x8x1xf32>
    %75 = vector.broadcast %74 : vector<1x8x1xf32> to vector<1x8x32xf32>
    %76 = arith.subf %70, %75 : vector<1x8x32xf32>
    %77 = arith.mulf %76, %76 : vector<1x8x32xf32>
    %cst_13 = arith.constant dense<0.000000e+00> : vector<1x8xf32>
    %78 = vector.multi_reduction <add>, %77, %cst_13 [2] : vector<1x8x32xf32> to vector<1x8xf32>
    %79 = vector.shape_cast %78 : vector<1x8xf32> to vector<1x8x1xf32>
    %cst_14 = arith.constant 3.200000e+01 : f32
    %80 = vector.broadcast %cst_14 : f32 to vector<1x8x1xf32>
    %81 = arith.divf %79, %80 : vector<1x8x1xf32>
    %cst_15 = arith.constant 9.99999974E-6 : f32
    %82 = vector.broadcast %cst_15 : f32 to vector<1x8x1xf32>
    %83 = arith.addf %81, %82 : vector<1x8x1xf32>
    %84 = math.rsqrt %83 : vector<1x8x1xf32>
    %85 = vector.broadcast %84 : vector<1x8x1xf32> to vector<1x8x32xf32>
    %86 = arith.mulf %76, %85 : vector<1x8x32xf32>
    %c0_16 = arith.constant 0 : index
    %c0_17 = arith.constant 0 : index
    %c0_18 = arith.constant 0 : index
    %87 = vector.load %arg4[%c0_16, %c0_17, %c0_18] : memref<1x1x32xf32, #tpu.memory_space<vmem>>, vector<1x1x32xf32>
    %88 = vector.broadcast %87 : vector<1x1x32xf32> to vector<1x8x32xf32>
    %89 = arith.mulf %86, %88 : vector<1x8x32xf32>
    %c0_19 = arith.constant 0 : index
    %c0_20 = arith.constant 0 : index
    %c0_21 = arith.constant 0 : index
    %90 = vector.load %arg5[%c0_19, %c0_20, %c0_21] : memref<1x1x32xf32, #tpu.memory_space<vmem>>, vector<1x1x32xf32>
    %91 = vector.broadcast %90 : vector<1x1x32xf32> to vector<1x8x32xf32>
    %92 = arith.addf %89, %91 : vector<1x8x32xf32>
    %c0_22 = arith.constant 0 : index
    %c0_23 = arith.constant 0 : index
    %c0_24 = arith.constant 0 : index
    %93 = vector.load %arg6[%c0_22, %c0_23, %c0_24] : memref<1x8x32xf32, #tpu.memory_space<vmem>>, vector<1x8x32xf32>
    tpu.vector_store %arg6[%c0_22, %c0_23, %c0_24], %92 {strides = array<i32>} : memref<1x8x32xf32, #tpu.memory_space<vmem>>, vector<1x8x32xf32>,
    return
  }
  func.func @transform_0(%arg0: i32) -> (i32, i32, i32) {
    %c0_i32 = arith.constant 0 : i32
    %c0_i32_0 = arith.constant 0 : i32
    %c0_i32_1 = arith.constant 0 : i32
    return %arg0, %c0_i32, %c0_i32_0 : i32, i32, i32
  }
  func.func @transform_1(%arg0: i32) -> (i32, i32) {
    %c0_i32 = arith.constant 0 : i32
    %c0_i32_0 = arith.constant 0 : i32
    %c0_i32_1 = arith.constant 0 : i32
    return %c0_i32, %c0_i32_0 : i32, i32
  }
  func.func @transform_2(%arg0: i32) -> (i32, i32, i32) {
    %c0_i32 = arith.constant 0 : i32
    %c0_i32_0 = arith.constant 0 : i32
    %c0_i32_1 = arith.constant 0 : i32
    %c0_i32_2 = arith.constant 0 : i32
    return %c0_i32, %c0_i32_0, %c0_i32_1 : i32, i32, i32
  }
  func.func @transform_3(%arg0: i32) -> (i32, i32, i32) {
    %c0_i32 = arith.constant 0 : i32
    %c0_i32_0 = arith.constant 0 : i32
    %c0_i32_1 = arith.constant 0 : i32
    %c0_i32_2 = arith.constant 0 : i32
    return %c0_i32, %c0_i32_0, %c0_i32_1 : i32, i32, i32
  }
  func.func @transform_4(%arg0: i32) -> (i32, i32, i32) {
    %c0_i32 = arith.constant 0 : i32
    %c0_i32_0 = arith.constant 0 : i32
    %c0_i32_1 = arith.constant 0 : i32
    %c0_i32_2 = arith.constant 0 : i32
    return %c0_i32, %c0_i32_0, %c0_i32_1 : i32, i32, i32
  }
  func.func @transform_5(%arg0: i32) -> (i32, i32, i32) {
    %c0_i32 = arith.constant 0 : i32
    %c0_i32_0 = arith.constant 0 : i32
    %c0_i32_1 = arith.constant 0 : i32
    return %arg0, %c0_i32, %c0_i32_0 : i32, i32, i32
  }
}

</mosaic_0001>

<llo_original>
// kernel: tpu_custom_call.1
$region0: #{tpu_custom_call.1}
  #allocation0 [shape = 'u32[]', space=smem, size = 0x4, offset = 0x4, fixed_abs, tag = 'smem constant byte address 0x4 - core index']
  #allocation1 [shape = 'u32[144,128]{1,0:T(1,128)}', space=vmem, size = 0x12000, scoped, tag = 'internal scratch']
  %s0 = inlined_call_operand.hbm [shape: f32[2,8,32], index: 0, kind: input, shape index: {}]
  %s1 = inlined_call_operand.hbm [shape: f32[32,96], index: 1, kind: input, shape index: {}]
  %s2 = inlined_call_operand.hbm [shape: f32[8,8,8], index: 2, kind: input, shape index: {}]
  %s3 = inlined_call_operand.vmem [shape: f32[1,1,32], index: 3, kind: input, shape index: {}]
  %s4 = inlined_call_operand.vmem [shape: f32[1,1,32], index: 4, kind: input, shape index: {}]
  %s5 = inlined_call_operand.hbm [shape: f32[2,8,32], index: 5, kind: output, shape index: {}]
  %s6 = sld [smem:[#allocation0]]
  $region65: #{tpu_custom_call.1} parent=0
    _
  %s8 = ssub.s32 1, %s6
  %s9 = scalar_select 0, %s8, %s6
  $region1: #{tpu_custom_call.1} parent=0
    #allocation2 [shape = 'u8[8192]{0}', space=vmem, size = 0x2000, scoped, tag = 'input window, operand 0']
    #allocation3 [shape = 's32[2]{0}', space=sflag, size = 0x8, scoped, tag = 'scoped memory for tpu_custom_call.1']
    #allocation4 [shape = 's32[2]{0}', space=sflag, size = 0x8, scoped, tag = 'scoped memory for tpu_custom_call.1']
    #allocation5 [shape = 'u8[16384]{0}', space=vmem, size = 0x4000, scoped, tag = 'input window, operand 1, single buffered']
    #allocation6 [shape = 's32[1]{0}', space=sflag, size = 0x4, scoped, tag = 'scoped memory for tpu_custom_call.1']
    #allocation7 [shape = 'u8[32768]{0}', space=vmem, size = 0x8000, scoped, tag = 'input window, operand 2, single buffered']
    #allocation8 [shape = 'u8[8192]{0}', space=vmem, size = 0x2000, scoped, tag = 'output window, operand 0']
    %10 = vsyncpa [#allocation3], 0
    %s11 = scalar_lea.sflag [#allocation3], 1
    %12 = vsyncpa %s11, 0
    %13 = vsyncpa [#allocation6], 0
    %14 = vsyncpa [#allocation4], 0
    %s15 = scalar_lea.sflag [#allocation4], 1
    %16 = vsyncpa %s15, 0
    loop: start=0, step=1, limit=4
    $region2: #{tpu_custom_call.1} parent=1 // loop_pre_header
      _
    $region3: #{tpu_custom_call.1} parent=1 // loop_header
      %s18 = sphi 0, %s22
      %p19 = scmp.ge.s32.totalorder %s18, 4
      %s28 = sphi 0, %s30
      %s31 = sphi 0, %s28
      %s32 = sphi 0, %s31
      %s48 = sphi 0, %s32
      %s52 = sphi 0, %s52
      %s54 = sphi 0, %s52
      %s55 = sphi 0, %s54
      %s69 = sphi 0, %s55
      %s73 = sphi 0, %s73
      %s75 = sphi 0, %s73
      %s76 = sphi 0, %s75
      %s90 = sphi 0, %s76
      %s94 = sphi 0, %s94
      %s96 = sphi 0, %s94
      %s97 = sphi 0, %s96
      %s111 = sphi 0, %s97
      %s115 = sphi 0, %s115
      %s117 = sphi 0, %s115
      %s118 = sphi 0, %s117
      %s132 = sphi 0, %s118
      %s138 = sphi 0, %s140
      %s141 = sphi 0, %s138
      %s142 = sphi 0, %s141
      %s158 = sphi 0, %s142
    $region4: #{tpu_custom_call.1} parent=1 // loop_header_branch
      %21 = sbr.rel (%p19) target = $region8
    $region5: #{tpu_custom_call.1} parent=1 // loop_body
      %s23 = ssub.s32 %s18, 1
      %s24 = ssub.s32 %s18, 2
      %s25 = sadd.s32 %s18, 1
      %s26 = ssub.s32 %s18, %s25
      %p27 = scmp.eq.s32.totalorder %s26, 0
      %s29 = sadd.s32 %s28, 1
      %s30 = scalar_select %p27, %s28, %s29
      %p33 = pneg %p27
      %p34 = scmp.eq.s32.totalorder %s18, 1
      %p35 = por %p33, %p34
      %p36 = scmp.ne.s32.totalorder %s28, %s31
      %p37 = scmp.eq.s32.totalorder %s18, 0
      %p38 = por %p36, %p37
      %p39 = scmp.ne.s32.totalorder %s28, %s31
      %p40 = scmp.eq.s32.totalorder %s23, 1
      %p41 = por %p39, %p40
      %p42 = scmp.ne.s32.totalorder %s31, %s32
      %p43 = scmp.eq.s32.totalorder %s23, 0
      %p44 = por %p42, %p43
      %p45 = scmp.ne.s32.totalorder %s31, %s32
      %p46 = scmp.eq.s32.totalorder %s24, 1
      %p47 = por %p45, %p46
      %p49 = scmp.ne.s32.totalorder %s32, %s48
      %p50 = scmp.eq.s32.totalorder %s24, 0
      %p51 = por %p49, %p50
      %s53 = sadd.s32 %s52, 1
      %p56 = scmp.eq.s32.totalorder %s18, 1
      %p57 = scmp.ne.s32.totalorder %s52, %s54
      %p58 = scmp.eq.s32.totalorder %s18, 0
      %p59 = por %p57, %p58
      %p60 = scmp.ne.s32.totalorder %s52, %s54
      %p61 = scmp.eq.s32.totalorder %s23, 1
      %p62 = por %p60, %p61
      %p63 = scmp.ne.s32.totalorder %s54, %s55
      %p64 = scmp.eq.s32.totalorder %s23, 0
      %p65 = por %p63, %p64
      %p66 = scmp.ne.s32.totalorder %s54, %s55
      %p67 = scmp.eq.s32.totalorder %s24, 1
      %p68 = por %p66, %p67
      %p70 = scmp.ne.s32.totalorder %s55, %s69
      %p71 = scmp.eq.s32.totalorder %s24, 0
      %p72 = por %p70, %p71
      %s74 = sadd.s32 %s73, 1
      %p77 = scmp.eq.s32.totalorder %s18, 1
      %p78 = scmp.ne.s32.totalorder %s73, %s75
      %p79 = scmp.eq.s32.totalorder %s18, 0
      %p80 = por %p78, %p79
      %p81 = scmp.ne.s32.totalorder %s73, %s75
      %p82 = scmp.eq.s32.totalorder %s23, 1
      %p83 = por %p81, %p82
      %p84 = scmp.ne.s32.totalorder %s75, %s76
      %p85 = scmp.eq.s32.totalorder %s23, 0
      %p86 = por %p84, %p85
      %p87 = scmp.ne.s32.totalorder %s75, %s76
      %p88 = scmp.eq.s32.totalorder %s24, 1
      %p89 = por %p87, %p88
      %p91 = scmp.ne.s32.totalorder %s76, %s90
      %p92 = scmp.eq.s32.totalorder %s24, 0
      %p93 = por %p91, %p92
      %s95 = sadd.s32 %s94, 1
      %p98 = scmp.eq.s32.totalorder %s18, 1
      %p99 = scmp.ne.s32.totalorder %s94, %s96
      %p100 = scmp.eq.s32.totalorder %s18, 0
      %p101 = por %p99, %p100
      %p102 = scmp.ne.s32.totalorder %s94, %s96
      %p103 = scmp.eq.s32.totalorder %s23, 1
      %p104 = por %p102, %p103
      %p105 = scmp.ne.s32.totalorder %s96, %s97
      %p106 = scmp.eq.s32.totalorder %s23, 0
      %p107 = por %p105, %p106
      %p108 = scmp.ne.s32.totalorder %s96, %s97
      %p109 = scmp.eq.s32.totalorder %s24, 1
      %p110 = por %p108, %p109
      %p112 = scmp.ne.s32.totalorder %s97, %s111
      %p113 = scmp.eq.s32.totalorder %s24, 0
      %p114 = por %p112, %p113
      %s116 = sadd.s32 %s115, 1
      %p119 = scmp.eq.s32.totalorder %s18, 1
      %p120 = scmp.ne.s32.totalorder %s115, %s117
      %p121 = scmp.eq.s32.totalorder %s18, 0
      %p122 = por %p120, %p121
      %p123 = scmp.ne.s32.totalorder %s115, %s117
      %p124 = scmp.eq.s32.totalorder %s23, 1
      %p125 = por %p123, %p124
      %p126 = scmp.ne.s32.totalorder %s117, %s118
      %p127 = scmp.eq.s32.totalorder %s23, 0
      %p128 = por %p126, %p127
      %p129 = scmp.ne.s32.totalorder %s117, %s118
      %p130 = scmp.eq.s32.totalorder %s24, 1
      %p131 = por %p129, %p130
      %p133 = scmp.ne.s32.totalorder %s118, %s132
      %p134 = scmp.eq.s32.totalorder %s24, 0
      %p135 = por %p133, %p134
      %s136 = ssub.s32 %s18, %s25
      %p137 = scmp.eq.s32.totalorder %s136, 0
      %s139 = sadd.s32 %s138, 1
      %s140 = scalar_select %p137, %s138, %s139
      %p143 = pneg %p137
      %p144 = scmp.eq.s32.totalorder %s18, 1
      %p145 = por %p143, %p144
      %p146 = scmp.ne.s32.totalorder %s138, %s141
      %p147 = scmp.eq.s32.totalorder %s18, 0
      %p148 = por %p146, %p147
      %p149 = scmp.ne.s32.totalorder %s138, %s141
      %p150 = scmp.eq.s32.totalorder %s23, 1
      %p151 = por %p149, %p150
      %p152 = scmp.ne.s32.totalorder %s141, %s142
      %p153 = scmp.eq.s32.totalorder %s23, 0
      %p154 = por %p152, %p153
      %p155 = scmp.ne.s32.totalorder %s141, %s142
      %p156 = scmp.eq.s32.totalorder %s24, 1
      %p157 = por %p155, %p156
      %p159 = scmp.ne.s32.totalorder %s142, %s158
      %p160 = scmp.eq.s32.totalorder %s24, 0
      %p161 = por %p159, %p160
      %p162 = scmp.le.s32.totalorder 1, %s18
      %p163 = scmp.lt.s32.totalorder %s18, 3
      %p164 = pnand %p162, %p163
      %p165 = pneg %p164
      // Predicated region
      $region9: #{tpu_custom_call.1} parent=5 // pred_check
        _
      $region10: #{tpu_custom_call.1} parent=5 // pred_check_branch
        %167 = sbr.rel (%p164) target = $region12
      $region11: #{tpu_custom_call.1} parent=5 // pred_region
        %s168 = ssub.s32 %s18, 1
        // Predicated region
        $region13: #{tpu_custom_call.1} parent=11 // pred_check
          %p169 = pneg %p65
        $region14: #{tpu_custom_call.1} parent=11 // pred_check_branch
          %171 = sbr.rel (%p169) target = $region16
        $region15: #{tpu_custom_call.1} parent=11 // pred_region
          %s173 = ssub.s32 512, 512
          %174 = vsyncadd [#allocation6], %s173
          %s175 = sshll.u32 [#allocation5], 4
          %s176 = int_to_ptr.vmem [resolvable:$true] %s175
          %181 = dma.hbm_to_vmem [thread:$0]  %s1, 512, %s176, [#allocation6], 128, 128, 8
        $region16: #{tpu_custom_call.1} parent=11 // pred_fallthru
          _
        // Predicated region
        $region17: #{tpu_custom_call.1} parent=11 // pred_check
          %p182 = pneg %p86
        $region18: #{tpu_custom_call.1} parent=11 // pred_check_branch
          %184 = sbr.rel (%p182) target = $region20
        $region19: #{tpu_custom_call.1} parent=11 // pred_region
          %s186 = ssub.s32 1024, 1024
          %187 = vsyncadd [#allocation6], %s186
          %s188 = sshll.u32 [#allocation7], 4
          %s189 = int_to_ptr.vmem [resolvable:$true] %s188
          %194 = dma.hbm_to_vmem [thread:$0]  %s2, 1024, %s189, [#allocation6], 128, 128, 8
        $region20: #{tpu_custom_call.1} parent=11 // pred_fallthru
          _
        // Predicated region
        $region21: #{tpu_custom_call.1} parent=11 // pred_check
          %p195 = pneg %p107
        $region22: #{tpu_custom_call.1} parent=11 // pred_check_branch
          %197 = sbr.rel (%p195) target = $region24
        $region23: #{tpu_custom_call.1} parent=11 // pred_region
          _
        $region24: #{tpu_custom_call.1} parent=11 // pred_fallthru
          _
        // Predicated region
        $region25: #{tpu_custom_call.1} parent=11 // pred_check
          %p198 = pneg %p128
        $region26: #{tpu_custom_call.1} parent=11 // pred_check_branch
          %200 = sbr.rel (%p198) target = $region28
        $region27: #{tpu_custom_call.1} parent=11 // pred_region
          _
        $region28: #{tpu_custom_call.1} parent=11 // pred_fallthru
          _
      $region12: #{tpu_custom_call.1} parent=5 // pred_fallthru
        _
      %p201 = scmp.lt.s32.totalorder %s18, 2
      // Predicated region
      $region29: #{tpu_custom_call.1} parent=5 // pred_check
        %p202 = pneg %p201
      $region30: #{tpu_custom_call.1} parent=5 // pred_check_branch
        %204 = sbr.rel (%p202) target = $region32
      $region31: #{tpu_custom_call.1} parent=5 // pred_region
        // Predicated region
        $region33: #{tpu_custom_call.1} parent=31 // pred_check
          %p205 = pneg %p38
        $region34: #{tpu_custom_call.1} parent=31 // pred_check_branch
          %207 = sbr.rel (%p205) target = $region36
        $region35: #{tpu_custom_call.1} parent=31 // pred_region
          %s208 = sand.u32 %s28, 1
          %s209 = scalar_lea.sflag [#allocation3], %s208
          %s210 = sand.u32 %s28, 1
          %s211 = smul.addr %s210, 8
          %s212 = scalar_lea.vmem [#allocation2], %s211
          %s214 = ssub.s32 128, 128
          %215 = vsyncadd %s209, %s214
          %s216 = smul.addr %s18, 128
          %s217 = scalar_lea.hbm %s0, %s216
          %s219 = sshll.u32 %s212, 4
          %s220 = int_to_ptr.vmem [resolvable:$true] %s219
          %222 = dma.hbm_to_vmem [thread:$0]  %s217, 128, %s220, %s209
        $region36: #{tpu_custom_call.1} parent=31 // pred_fallthru
          _
      $region32: #{tpu_custom_call.1} parent=5 // pred_fallthru
        _
      %p223 = scmp.le.s32.totalorder 1, %s18
      %p224 = scmp.lt.s32.totalorder %s18, 3
      %p225 = pnand %p223, %p224
      %p226 = pneg %p225
      // Predicated region
      $region37: #{tpu_custom_call.1} parent=5 // pred_check
        _
      $region38: #{tpu_custom_call.1} parent=5 // pred_check_branch
        %228 = sbr.rel (%p225) target = $region40
      $region39: #{tpu_custom_call.1} parent=5 // pred_region
        %s229 = ssub.s32 %s18, 1
        %s230 = sand.u32 %s31, 1
        %s231 = scalar_lea.sflag [#allocation3], %s230
        %s232 = sand.u32 %s31, 1
        %s233 = smul.addr %s232, 8
        %s234 = scalar_lea.vmem [#allocation2], %s233
        // Predicated region
        $region41: #{tpu_custom_call.1} parent=39 // pred_check
          %p235 = pneg %p44
        $region42: #{tpu_custom_call.1} parent=39 // pred_check_branch
          %237 = sbr.rel (%p235) target = $region44
        $region43: #{tpu_custom_call.1} parent=39 // pred_region
          %238 = dma.done %s231, 128
        $region44: #{tpu_custom_call.1} parent=39 // pred_fallthru
          _
        // Predicated region
        $region45: #{tpu_custom_call.1} parent=39 // pred_check
          %p239 = pneg %p65
        $region46: #{tpu_custom_call.1} parent=39 // pred_check_branch
          %241 = sbr.rel (%p239) target = $region48
        $region47: #{tpu_custom_call.1} parent=39 // pred_region
          %242 = dma.done [#allocation6], 512
        $region48: #{tpu_custom_call.1} parent=39 // pred_fallthru
          _
        // Predicated region
        $region49: #{tpu_custom_call.1} parent=39 // pred_check
          %p243 = pneg %p86
        $region50: #{tpu_custom_call.1} parent=39 // pred_check_branch
          %245 = sbr.rel (%p243) target = $region52
        $region51: #{tpu_custom_call.1} parent=39 // pred_region
          %246 = dma.done [#allocation6], 1024
        $region52: #{tpu_custom_call.1} parent=39 // pred_fallthru
          _
        %s247 = sand.u32 %s31, 1
        %s248 = scalar_lea.sflag [#allocation3], %s247
        %s249 = sand.u32 %s31, 1
        %s250 = smul.addr %s249, 8
        %s251 = scalar_lea.vmem [#allocation2], %s250
        %p252 = pneg %p44
        %p253 = pneg %p41
        %p254 = pneg %p65
        %p255 = pneg %p62
        %p256 = pneg %p86
        %p257 = pneg %p83
        %p258 = pneg %p107
        %p259 = pneg %p104
        %p260 = pneg %p128
        %p261 = pneg %p125
        %p262 = pneg %p154
        %p263 = pneg %p151
        %s264 = sand.u32 %s141, 1
        %s265 = scalar_lea.sflag [#allocation4], %s264
        %s266 = sand.u32 %s141, 1
        %s267 = smul.addr %s266, 8
        %s268 = scalar_lea.vmem [#allocation8], %s267
        %v269 = vld [vmem:[%s234] sm:$0xff]
        %v270 = vld [vmem:[#allocation5] sm:$0xff]
        %v271 = vld [vmem:[#allocation5 + $0x8] sm:$0xff]
        %v272 = vld [vmem:[#allocation5 + $0x10] sm:$0xff]
        %v273 = vld [vmem:[#allocation5 + $0x18] sm:$0xff]
        %vm274 = vcmask 261120
        %v276 = vsel %vm274, %v269, 0
        %278 = vmatprep.subr.mxu0 0.0
        %v279 = vand.u32 %v270, 4294901760
        %280 = vmatpush1.msra.mxu0 %v279
        %281 = vmatprep.subr.mxu0 0.0
        %v282 = vand.u32 %v271, 4294901760
        %283 = vmatpush1.msra.mxu0 %v282
        %284 = vmatprep.subr.mxu0 0.0
        %v285 = vand.u32 %v272, 4294901760
        %286 = vmatpush1.msra.mxu0 %v285
        %287 = vmatprep.subr.mxu0 0.0
        %v288 = vand.u32 %v273, 4294901760
        %289 = vmatpush1.msra.mxu0 %v288
        %290 = vmatprep.subr.mxu0 0.0
        %291 = vmatpush1.msra.mxu0 0.0
        %292 = vmatprep.subr.mxu0 0.0
        %293 = vmatpush1.msra.mxu0 0.0
        %294 = vmatprep.subr.mxu0 0.0
        %295 = vmatpush1.msra.mxu0 0.0
        %296 = vmatprep.subr.mxu0 0.0
        %297 = vmatpush1.msra.mxu0 0.0
        %298 = vmatprep.subr.mxu0 0.0
        %299 = vmatpush1.msra.mxu0 0.0
        %300 = vmatprep.subr.mxu0 0.0
        %301 = vmatpush1.msra.mxu0 0.0
        %302 = vmatprep.subr.mxu0 0.0
        %303 = vmatpush1.msra.mxu0 0.0
        %304 = vmatprep.subr.mxu0 0.0
        %305 = vmatpush1.msra.mxu0 0.0
        %306 = vmatprep.subr.mxu0 0.0
        %307 = vmatpush1.msra.mxu0 0.0
        %308 = vmatprep.subr.mxu0 0.0
        %309 = vmatpush1.msra.mxu0 0.0
        %310 = vmatprep.subr.mxu0 0.0
        %311 = vmatpush1.msra.mxu0 0.0
        %312 = vmatprep.subr.mxu0 0.0
        %313 = vmatpush1.msra.mxu0 0.0
        %314 = vmatprep.subr.mxu0 0.0
        %315 = vmatpush1.msra.mxu0 0.0
        %316 = vmatprep.subr.mxu0 0.0
        %317 = vmatpush1.msra.mxu0 0.0
        %318 = vmatprep.subr.mxu0 0.0
        %319 = vmatpush1.msra.mxu0 0.0
        %320 = vmatprep.subr.mxu0 0.0
        %321 = vmatpush1.msra.mxu0 0.0
        %322 = vmatprep.subr.mxu0 0.0
        %323 = vmatpush1.msra.mxu0 0.0
        %324 = vmatprep.subr.mxu0 0.0
        %325 = vmatpush1.msra.mxu0 0.0
        %326 = vmatprep.subr.mxu0 0.0
        %327 = vmatpush1.msra.mxu0 0.0
        %328 = vmatprep.subr.mxu0 0.0
        %329 = vmatpush1.msra.mxu0 0.0
        %330 = vmatprep.subr.mxu0 0.0
        %331 = vmatpush1.msra.mxu0 0.0
        %332 = vmatprep.subr.mxu0 0.0
        %333 = vmatpush1.msra.mxu0 0.0
        %334 = vmatprep.subr.mxu0 0.0
        %335 = vmatpush1.msra.mxu0 0.0
        %336 = vmatprep.subr.mxu0 0.0
        %337 = vmatpush1.msra.mxu0 0.0
        %338 = vmatprep.subr.mxu0 0.0
        %339 = vmatpush1.msra.mxu0 0.0
        %340 = vmatprep.subr.mxu0 0.0
        %341 = vmatpush1.msra.mxu0 0.0
        %342 = vmatprep.subr.mxu0 0.0
        %343 = vmatpush1.msra.mxu0 0.0
        %344 = vmatprep.subr.mxu0 0.0
        %345 = vmatpush1.msra.mxu0 0.0
        %346 = vmatprep.mubr.f32.mxu0 0.0
        %v347 = vand.u32 %v276, 4294901760
        %v348 = vsub.f32 %v276, %v347
        %v349 = vand.u32 %v348, 4294901760
        %v350 = vsub.f32 %v348, %v349
        %v351 = vand.u32 %v350, 4294901760
        %352 = vmatmul.mubr.f32.gmra.mrb[0].mxu0 %v351
        %v353 = vpop.f32.mrb[0].mxu0
        %v354 = vadd.f32 0.0, %v353
        %v355 = vpop.f32.mrb[0].mxu0
        %356 = vdwg.mxu0
        %357 = vmatprep.subr.mxu0 0.0
        %v358 = vand.u32 %v270, 4294901760
        %v359 = vsub.f32 %v270, %v358
        %v360 = vand.u32 %v359, 4294901760
        %v361 = vsub.f32 %v359, %v360
        %v362 = vand.u32 %v361, 4294901760
        %363 = vmatpush1.msra.mxu0 %v362
        %364 = vmatprep.subr.mxu0 0.0
        %v365 = vand.u32 %v271, 4294901760
        %v366 = vsub.f32 %v271, %v365
        %v367 = vand.u32 %v366, 4294901760
        %v368 = vsub.f32 %v366, %v367
        %v369 = vand.u32 %v368, 4294901760
        %370 = vmatpush1.msra.mxu0 %v369
        %371 = vmatprep.subr.mxu0 0.0
        %v372 = vand.u32 %v272, 4294901760
        %v373 = vsub.f32 %v272, %v372
        %v374 = vand.u32 %v373, 4294901760
        %v375 = vsub.f32 %v373, %v374
        %v376 = vand.u32 %v375, 4294901760
        %377 = vmatpush1.msra.mxu0 %v376
        %378 = vmatprep.subr.mxu0 0.0
        %v379 = vand.u32 %v273, 4294901760
        %v380 = vsub.f32 %v273, %v379
        %v381 = vand.u32 %v380, 4294901760
        %v382 = vsub.f32 %v380, %v381
        %v383 = vand.u32 %v382, 4294901760
        %384 = vmatpush1.msra.mxu0 %v383
        %385 = vmatprep.subr.mxu0 0.0
        %386 = vmatpush1.msra.mxu0 0.0
        %387 = vmatprep.subr.mxu0 0.0
        %388 = vmatpush1.msra.mxu0 0.0
        %389 = vmatprep.subr.mxu0 0.0
        %390 = vmatpush1.msra.mxu0 0.0
        %391 = vmatprep.subr.mxu0 0.0
        %392 = vmatpush1.msra.mxu0 0.0
        %393 = vmatprep.subr.mxu0 0.0
        %394 = vmatpush1.msra.mxu0 0.0
        %395 = vmatprep.subr.mxu0 0.0
        %396 = vmatpush1.msra.mxu0 0.0
        %397 = vmatprep.subr.mxu0 0.0
        %398 = vmatpush1.msra.mxu0 0.0
        %399 = vmatprep.subr.mxu0 0.0
        %400 = vmatpush1.msra.mxu0 0.0
        %401 = vmatprep.subr.mxu0 0.0
        %402 = vmatpush1.msra.mxu0 0.0
        %403 = vmatprep.subr.mxu0 0.0
        %404 = vmatpush1.msra.mxu0 0.0
        %405 = vmatprep.subr.mxu0 0.0
        %406 = vmatpush1.msra.mxu0 0.0
        %407 = vmatprep.subr.mxu0 0.0
        %408 = vmatpush1.msra.mxu0 0.0
        %409 = vmatprep.subr.mxu0 0.0
        %410 = vmatpush1.msra.mxu0 0.0
        %411 = vmatprep.subr.mxu0 0.0
        %412 = vmatpush1.msra.mxu0 0.0
        %413 = vmatprep.subr.mxu0 0.0
        %414 = vmatpush1.msra.mxu0 0.0
        %415 = vmatprep.subr.mxu0 0.0
        %416 = vmatpush1.msra.mxu0 0.0
        %417 = vmatprep.subr.mxu0 0.0
        %418 = vmatpush1.msra.mxu0 0.0
        %419 = vmatprep.subr.mxu0 0.0
        %420 = vmatpush1.msra.mxu0 0.0
        %421 = vmatprep.subr.mxu0 0.0
        %422 = vmatpush1.msra.mxu0 0.0
        %423 = vmatprep.subr.mxu0 0.0
        %424 = vmatpush1.msra.mxu0 0.0
        %425 = vmatprep.subr.mxu0 0.0
        %426 = vmatpush1.msra.mxu0 0.0
        %427 = vmatprep.subr.mxu0 0.0
        %428 = vmatpush1.msra.mxu0 0.0
        %429 = vmatprep.subr.mxu0 0.0
        %430 = vmatpush1.msra.mxu0 0.0
        %431 = vmatprep.subr.mxu0 0.0
        %432 = vmatpush1.msra.mxu0 0.0
        %433 = vmatprep.subr.mxu0 0.0
        %434 = vmatpush1.msra.mxu0 0.0
        %435 = vmatprep.subr.mxu0 0.0
        %436 = vmatpush1.msra.mxu0 0.0
        %437 = vmatprep.subr.mxu0 0.0
        %438 = vmatpush1.msra.mxu0 0.0
        %439 = vmatprep.subr.mxu0 0.0
        %440 = vmatpush1.msra.mxu0 0.0
        %441 = vmatprep.mubr.f32.mxu0 0.0
        %v442 = vand.u32 %v276, 4294901760
        %443 = vmatmul.mubr.f32.gmra.mrb[0].mxu0 %v442
        %v444 = vpop.f32.mrb[0].mxu0
        %v445 = vadd.f32 %v354, %v444
        %v446 = vpop.f32.mrb[0].mxu0
        %447 = vdwg.mxu0
        %448 = vmatprep.subr.mxu0 0.0
        %v449 = vand.u32 %v270, 4294901760
        %v450 = vsub.f32 %v270, %v449
        %451 = vmatpush1.msra.mxu0 %v450
        %452 = vmatprep.subr.mxu0 0.0
        %v453 = vand.u32 %v271, 4294901760
        %v454 = vsub.f32 %v271, %v453
        %455 = vmatpush1.msra.mxu0 %v454
        %456 = vmatprep.subr.mxu0 0.0
        %v457 = vand.u32 %v272, 4294901760
        %v458 = vsub.f32 %v272, %v457
        %459 = vmatpush1.msra.mxu0 %v458
        %460 = vmatprep.subr.mxu0 0.0
        %v461 = vand.u32 %v273, 4294901760
        %v462 = vsub.f32 %v273, %v461
        %463 = vmatpush1.msra.mxu0 %v462
        %464 = vmatprep.subr.mxu0 0.0
        %465 = vmatpush1.msra.mxu0 0.0
        %466 = vmatprep.subr.mxu0 0.0
        %467 = vmatpush1.msra.mxu0 0.0
        %468 = vmatprep.subr.mxu0 0.0
        %469 = vmatpush1.msra.mxu0 0.0
        %470 = vmatprep.subr.mxu0 0.0
        %471 = vmatpush1.msra.mxu0 0.0
        %472 = vmatprep.subr.mxu0 0.0
        %473 = vmatpush1.msra.mxu0 0.0
        %474 = vmatprep.subr.mxu0 0.0
        %475 = vmatpush1.msra.mxu0 0.0
        %476 = vmatprep.subr.mxu0 0.0
        %477 = vmatpush1.msra.mxu0 0.0
        %478 = vmatprep.subr.mxu0 0.0
        %479 = vmatpush1.msra.mxu0 0.0
        %480 = vmatprep.subr.mxu0 0.0
        %481 = vmatpush1.msra.mxu0 0.0
        %482 = vmatprep.subr.mxu0 0.0
        %483 = vmatpush1.msra.mxu0 0.0
        %484 = vmatprep.subr.mxu0 0.0
        %485 = vmatpush1.msra.mxu0 0.0
        %486 = vmatprep.subr.mxu0 0.0
        %487 = vmatpush1.msra.mxu0 0.0
        %488 = vmatprep.subr.mxu0 0.0
        %489 = vmatpush1.msra.mxu0 0.0
        %490 = vmatprep.subr.mxu0 0.0
        %491 = vmatpush1.msra.mxu0 0.0
        %492 = vmatprep.subr.mxu0 0.0
        %493 = vmatpush1.msra.mxu0 0.0
        %494 = vmatprep.subr.mxu0 0.0
        %495 = vmatpush1.msra.mxu0 0.0
        %496 = vmatprep.subr.mxu0 0.0
        %497 = vmatpush1.msra.mxu0 0.0
        %498 = vmatprep.subr.mxu0 0.0
        %499 = vmatpush1.msra.mxu0 0.0
        %500 = vmatprep.subr.mxu0 0.0
        %501 = vmatpush1.msra.mxu0 0.0
        %502 = vmatprep.subr.mxu0 0.0
        %503 = vmatpush1.msra.mxu0 0.0
        %504 = vmatprep.subr.mxu0 0.0
        %505 = vmatpush1.msra.mxu0 0.0
        %506 = vmatprep.subr.mxu0 0.0
        %507 = vmatpush1.msra.mxu0 0.0
        %508 = vmatprep.subr.mxu0 0.0
        %509 = vmatpush1.msra.mxu0 0.0
        %510 = vmatprep.subr.mxu0 0.0
        %511 = vmatpush1.msra.mxu0 0.0
        %512 = vmatprep.subr.mxu0 0.0
        %513 = vmatpush1.msra.mxu0 0.0
        %514 = vmatprep.subr.mxu0 0.0
        %515 = vmatpush1.msra.mxu0 0.0
        %516 = vmatprep.subr.mxu0 0.0
        %517 = vmatpush1.msra.mxu0 0.0
        %518 = vmatprep.subr.mxu0 0.0
        %519 = vmatpush1.msra.mxu0 0.0
        %520 = vmatprep.mubr.f32.mxu0 0.0
        %v521 = vand.u32 %v276, 4294901760
        %v522 = vsub.f32 %v276, %v521
        %523 = vmatmul.mubr.f32.gmra.mrb[0].mxu0 %v522
        %v524 = vpop.f32.mrb[0].mxu0
        %v525 = vadd.f32 %v445, %v524
        %v526 = vpop.f32.mrb[0].mxu0
        %527 = vdwg.mxu0
        %528 = vmatprep.subr.mxu0 0.0
        %v529 = vand.u32 %v270, 4294901760
        %530 = vmatpush1.msra.mxu0 %v529
        %531 = vmatprep.subr.mxu0 0.0
        %v532 = vand.u32 %v271, 4294901760
        %533 = vmatpush1.msra.mxu0 %v532
        %534 = vmatprep.subr.mxu0 0.0
        %v535 = vand.u32 %v272, 4294901760
        %536 = vmatpush1.msra.mxu0 %v535
        %537 = vmatprep.subr.mxu0 0.0
        %v538 = vand.u32 %v273, 4294901760
        %539 = vmatpush1.msra.mxu0 %v538
        %540 = vmatprep.subr.mxu0 0.0
        %541 = vmatpush1.msra.mxu0 0.0
        %542 = vmatprep.subr.mxu0 0.0
        %543 = vmatpush1.msra.mxu0 0.0
        %544 = vmatprep.subr.mxu0 0.0
        %545 = vmatpush1.msra.mxu0 0.0
        %546 = vmatprep.subr.mxu0 0.0
        %547 = vmatpush1.msra.mxu0 0.0
        %548 = vmatprep.subr.mxu0 0.0
        %549 = vmatpush1.msra.mxu0 0.0
        %550 = vmatprep.subr.mxu0 0.0
        %551 = vmatpush1.msra.mxu0 0.0
        %552 = vmatprep.subr.mxu0 0.0
        %553 = vmatpush1.msra.mxu0 0.0
        %554 = vmatprep.subr.mxu0 0.0
        %555 = vmatpush1.msra.mxu0 0.0
        %556 = vmatprep.subr.mxu0 0.0
        %557 = vmatpush1.msra.mxu0 0.0
        %558 = vmatprep.subr.mxu0 0.0
        %559 = vmatpush1.msra.mxu0 0.0
        %560 = vmatprep.subr.mxu0 0.0
        %561 = vmatpush1.msra.mxu0 0.0
        %562 = vmatprep.subr.mxu0 0.0
        %563 = vmatpush1.msra.mxu0 0.0
        %564 = vmatprep.subr.mxu0 0.0
        %565 = vmatpush1.msra.mxu0 0.0
        %566 = vmatprep.subr.mxu0 0.0
        %567 = vmatpush1.msra.mxu0 0.0
        %568 = vmatprep.subr.mxu0 0.0
        %569 = vmatpush1.msra.mxu0 0.0
        %570 = vmatprep.subr.mxu0 0.0
        %571 = vmatpush1.msra.mxu0 0.0
        %572 = vmatprep.subr.mxu0 0.0
        %573 = vmatpush1.msra.mxu0 0.0
        %574 = vmatprep.subr.mxu0 0.0
        %575 = vmatpush1.msra.mxu0 0.0
        %576 = vmatprep.subr.mxu0 0.0
        %577 = vmatpush1.msra.mxu0 0.0
        %578 = vmatprep.subr.mxu0 0.0
        %579 = vmatpush1.msra.mxu0 0.0
        %580 = vmatprep.subr.mxu0 0.0
        %581 = vmatpush1.msra.mxu0 0.0
        %582 = vmatprep.subr.mxu0 0.0
        %583 = vmatpush1.msra.mxu0 0.0
        %584 = vmatprep.subr.mxu0 0.0
        %585 = vmatpush1.msra.mxu0 0.0
        %586 = vmatprep.subr.mxu0 0.0
        %587 = vmatpush1.msra.mxu0 0.0
        %588 = vmatprep.subr.mxu0 0.0
        %589 = vmatpush1.msra.mxu0 0.0
        %590 = vmatprep.subr.mxu0 0.0
        %591 = vmatpush1.msra.mxu0 0.0
        %592 = vmatprep.subr.mxu0 0.0
        %593 = vmatpush1.msra.mxu0 0.0
        %594 = vmatprep.subr.mxu0 0.0
        %595 = vmatpush1.msra.mxu0 0.0
        %596 = vmatprep.mubr.f32.mxu0 0.0
        %v597 = vand.u32 %v276, 4294901760
        %v598 = vsub.f32 %v276, %v597
        %v599 = vand.u32 %v598, 4294901760
        %600 = vmatmul.mubr.f32.gmra.mrb[0].mxu0 %v599
        %v601 = vpop.f32.mrb[0].mxu0
        %v602 = vadd.f32 %v525, %v601
        %v603 = vpop.f32.mrb[0].mxu0
        %604 = vdwg.mxu0
        %605 = vmatprep.subr.mxu0 0.0
        %v606 = vand.u32 %v270, 4294901760
        %v607 = vsub.f32 %v270, %v606
        %v608 = vand.u32 %v607, 4294901760
        %609 = vmatpush1.msra.mxu0 %v608
        %610 = vmatprep.subr.mxu0 0.0
        %v611 = vand.u32 %v271, 4294901760
        %v612 = vsub.f32 %v271, %v611
        %v613 = vand.u32 %v612, 4294901760
        %614 = vmatpush1.msra.mxu0 %v613
        %615 = vmatprep.subr.mxu0 0.0
        %v616 = vand.u32 %v272, 4294901760
        %v617 = vsub.f32 %v272, %v616
        %v618 = vand.u32 %v617, 4294901760
        %619 = vmatpush1.msra.mxu0 %v618
        %620 = vmatprep.subr.mxu0 0.0
        %v621 = vand.u32 %v273, 4294901760
        %v622 = vsub.f32 %v273, %v621
        %v623 = vand.u32 %v622, 4294901760
        %624 = vmatpush1.msra.mxu0 %v623
        %625 = vmatprep.subr.mxu0 0.0
        %626 = vmatpush1.msra.mxu0 0.0
        %627 = vmatprep.subr.mxu0 0.0
        %628 = vmatpush1.msra.mxu0 0.0
        %629 = vmatprep.subr.mxu0 0.0
        %630 = vmatpush1.msra.mxu0 0.0
        %631 = vmatprep.subr.mxu0 0.0
        %632 = vmatpush1.msra.mxu0 0.0
        %633 = vmatprep.subr.mxu0 0.0
        %634 = vmatpush1.msra.mxu0 0.0
        %635 = vmatprep.subr.mxu0 0.0
        %636 = vmatpush1.msra.mxu0 0.0
        %637 = vmatprep.subr.mxu0 0.0
        %638 = vmatpush1.msra.mxu0 0.0
        %639 = vmatprep.subr.mxu0 0.0
        %640 = vmatpush1.msra.mxu0 0.0
        %641 = vmatprep.subr.mxu0 0.0
        %642 = vmatpush1.msra.mxu0 0.0
        %643 = vmatprep.subr.mxu0 0.0
        %644 = vmatpush1.msra.mxu0 0.0
        %645 = vmatprep.subr.mxu0 0.0
        %646 = vmatpush1.msra.mxu0 0.0
        %647 = vmatprep.subr.mxu0 0.0
        %648 = vmatpush1.msra.mxu0 0.0
        %649 = vmatprep.subr.mxu0 0.0
        %650 = vmatpush1.msra.mxu0 0.0
        %651 = vmatprep.subr.mxu0 0.0
        %652 = vmatpush1.msra.mxu0 0.0
        %653 = vmatprep.subr.mxu0 0.0
        %654 = vmatpush1.msra.mxu0 0.0
        %655 = vmatprep.subr.mxu0 0.0
        %656 = vmatpush1.msra.mxu0 0.0
        %657 = vmatprep.subr.mxu0 0.0
        %658 = vmatpush1.msra.mxu0 0.0
        %659 = vmatprep.subr.mxu0 0.0
        %660 = vmatpush1.msra.mxu0 0.0
        %661 = vmatprep.subr.mxu0 0.0
        %662 = vmatpush1.msra.mxu0 0.0
        %663 = vmatprep.subr.mxu0 0.0
        %664 = vmatpush1.msra.mxu0 0.0
        %665 = vmatprep.subr.mxu0 0.0
        %666 = vmatpush1.msra.mxu0 0.0
        %667 = vmatprep.subr.mxu0 0.0
        %668 = vmatpush1.msra.mxu0 0.0
        %669 = vmatprep.subr.mxu0 0.0
        %670 = vmatpush1.msra.mxu0 0.0
        %671 = vmatprep.subr.mxu0 0.0
        %672 = vmatpush1.msra.mxu0 0.0
        %673 = vmatprep.subr.mxu0 0.0
        %674 = vmatpush1.msra.mxu0 0.0
        %675 = vmatprep.subr.mxu0 0.0
        %676 = vmatpush1.msra.mxu0 0.0
        %677 = vmatprep.subr.mxu0 0.0
        %678 = vmatpush1.msra.mxu0 0.0
        %679 = vmatprep.subr.mxu0 0.0
        %680 = vmatpush1.msra.mxu0 0.0
        %681 = vmatprep.mubr.f32.mxu0 0.0
        %v682 = vand.u32 %v276, 4294901760
        %683 = vmatmul.mubr.f32.gmra.mrb[0].mxu0 %v682
        %v684 = vpop.f32.mrb[0].mxu0
        %v685 = vadd.f32 %v602, %v684
        %v686 = vpop.f32.mrb[0].mxu0
        %687 = vdwg.mxu0
        %688 = vmatprep.subr.mxu0 0.0
        %v689 = vand.u32 %v270, 4294901760
        %690 = vmatpush1.msra.mxu0 %v689
        %691 = vmatprep.subr.mxu0 0.0
        %v692 = vand.u32 %v271, 4294901760
        %693 = vmatpush1.msra.mxu0 %v692
        %694 = vmatprep.subr.mxu0 0.0
        %v695 = vand.u32 %v272, 4294901760
        %696 = vmatpush1.msra.mxu0 %v695
        %697 = vmatprep.subr.mxu0 0.0
        %v698 = vand.u32 %v273, 4294901760
        %699 = vmatpush1.msra.mxu0 %v698
        %700 = vmatprep.subr.mxu0 0.0
        %701 = vmatpush1.msra.mxu0 0.0
        %702 = vmatprep.subr.mxu0 0.0
        %703 = vmatpush1.msra.mxu0 0.0
        %704 = vmatprep.subr.mxu0 0.0
        %705 = vmatpush1.msra.mxu0 0.0
        %706 = vmatprep.subr.mxu0 0.0
        %707 = vmatpush1.msra.mxu0 0.0
        %708 = vmatprep.subr.mxu0 0.0
        %709 = vmatpush1.msra.mxu0 0.0
        %710 = vmatprep.subr.mxu0 0.0
        %711 = vmatpush1.msra.mxu0 0.0
        %712 = vmatprep.subr.mxu0 0.0
        %713 = vmatpush1.msra.mxu0 0.0
        %714 = vmatprep.subr.mxu0 0.0
        %715 = vmatpush1.msra.mxu0 0.0
        %716 = vmatprep.subr.mxu0 0.0
        %717 = vmatpush1.msra.mxu0 0.0
        %718 = vmatprep.subr.mxu0 0.0
        %719 = vmatpush1.msra.mxu0 0.0
        %720 = vmatprep.subr.mxu0 0.0
        %721 = vmatpush1.msra.mxu0 0.0
        %722 = vmatprep.subr.mxu0 0.0
        %723 = vmatpush1.msra.mxu0 0.0
        %724 = vmatprep.subr.mxu0 0.0
        %725 = vmatpush1.msra.mxu0 0.0
        %726 = vmatprep.subr.mxu0 0.0
        %727 = vmatpush1.msra.mxu0 0.0
        %728 = vmatprep.subr.mxu0 0.0
        %729 = vmatpush1.msra.mxu0 0.0
        %730 = vmatprep.subr.mxu0 0.0
        %731 = vmatpush1.msra.mxu0 0.0
        %732 = vmatprep.subr.mxu0 0.0
        %733 = vmatpush1.msra.mxu0 0.0
        %734 = vmatprep.subr.mxu0 0.0
        %735 = vmatpush1.msra.mxu0 0.0
        %736 = vmatprep.subr.mxu0 0.0
        %737 = vmatpush1.msra.mxu0 0.0
        %738 = vmatprep.subr.mxu0 0.0
        %739 = vmatpush1.msra.mxu0 0.0
        %740 = vmatprep.subr.mxu0 0.0
        %741 = vmatpush1.msra.mxu0 0.0
        %742 = vmatprep.subr.mxu0 0.0
        %743 = vmatpush1.msra.mxu0 0.0
        %744 = vmatprep.subr.mxu0 0.0
        %745 = vmatpush1.msra.mxu0 0.0
        %746 = vmatprep.subr.mxu0 0.0
        %747 = vmatpush1.msra.mxu0 0.0
        %748 = vmatprep.subr.mxu0 0.0
        %749 = vmatpush1.msra.mxu0 0.0
        %750 = vmatprep.subr.mxu0 0.0
        %751 = vmatpush1.msra.mxu0 0.0
        %752 = vmatprep.subr.mxu0 0.0
        %753 = vmatpush1.msra.mxu0 0.0
        %754 = vmatprep.subr.mxu0 0.0
        %755 = vmatpush1.msra.mxu0 0.0
        %756 = vmatprep.mubr.f32.mxu0 0.0
        %v757 = vand.u32 %v276, 4294901760
        %758 = vmatmul.mubr.f32.gmra.mrb[0].mxu0 %v757
        %v759 = vpop.f32.mrb[0].mxu0
        %v760 = vadd.f32 %v685, %v759
        %v761 = vpop.f32.mrb[0].mxu0
        %762 = vdwg.mxu0
        %764 = vrot.lane.b32.xlu0 %v760, 124
        %v765 = vpop.permute.xlu0 %764
        %766 = vrot.lane.b32.xlu0 %v760, 120
        %v767 = vpop.permute.xlu0 %766
        %768 = vrot.lane.b32.xlu0 %v760, 116
        %v769 = vpop.permute.xlu0 %768
        %770 = vrot.lane.b32.xlu0 %v760, 112
        %v771 = vpop.permute.xlu0 %770
        %772 = vrot.lane.b32.xlu0 %v760, 108
        %v773 = vpop.permute.xlu0 %772
        %774 = vrot.lane.b32.xlu0 %v760, 104
        %v775 = vpop.permute.xlu0 %774
        %776 = vrot.lane.b32.xlu0 %v760, 100
        %v777 = vpop.permute.xlu0 %776
        %778 = vrot.lane.b32.xlu0 %v760, 96
        %v779 = vpop.permute.xlu0 %778
        %vm780 = vcmask 31744
        %v781 = vsel %vm780, %v760, 0
        %v783 = vsel %vm780, %v779, 0
        %785 = vmatprep.subr.mxu0 0.0
        %v786 = vand.u32 %v783, 4294901760
        %787 = vmatpush1.xpose.msra.mxu0 %v786
        %788 = vmatprep.subr.mxu0 0.0
        %789 = vmatpush1.xpose.msra.mxu0 0.0
        %790 = vmatprep.subr.mxu0 0.0
        %791 = vmatpush1.xpose.msra.mxu0 0.0
        %792 = vmatprep.subr.mxu0 0.0
        %793 = vmatpush1.xpose.msra.mxu0 0.0
        %794 = vmatprep.subr.mxu0 0.0
        %795 = vmatpush1.xpose.msra.mxu0 0.0
        %796 = vmatprep.subr.mxu0 0.0
        %797 = vmatpush1.xpose.msra.mxu0 0.0
        %798 = vmatprep.subr.mxu0 0.0
        %799 = vmatpush1.xpose.msra.mxu0 0.0
        %800 = vmatprep.subr.mxu0 0.0
        %801 = vmatpush1.xpose.msra.mxu0 0.0
        %802 = vmatprep.subr.mxu0 0.0
        %803 = vmatpush1.xpose.msra.mxu0 0.0
        %804 = vmatprep.subr.mxu0 0.0
        %805 = vmatpush1.xpose.msra.mxu0 0.0
        %806 = vmatprep.subr.mxu0 0.0
        %807 = vmatpush1.xpose.msra.mxu0 0.0
        %808 = vmatprep.subr.mxu0 0.0
        %809 = vmatpush1.xpose.msra.mxu0 0.0
        %810 = vmatprep.subr.mxu0 0.0
        %811 = vmatpush1.xpose.msra.mxu0 0.0
        %812 = vmatprep.subr.mxu0 0.0
        %813 = vmatpush1.xpose.msra.mxu0 0.0
        %814 = vmatprep.subr.mxu0 0.0
        %815 = vmatpush1.xpose.msra.mxu0 0.0
        %816 = vmatprep.subr.mxu0 0.0
        %817 = vmatpush1.xpose.msra.mxu0 0.0
        %818 = vmatprep.subr.mxu0 0.0
        %819 = vmatpush1.xpose.msra.mxu0 0.0
        %820 = vmatprep.subr.mxu0 0.0
        %821 = vmatpush1.xpose.msra.mxu0 0.0
        %822 = vmatprep.subr.mxu0 0.0
        %823 = vmatpush1.xpose.msra.mxu0 0.0
        %824 = vmatprep.subr.mxu0 0.0
        %825 = vmatpush1.xpose.msra.mxu0 0.0
        %826 = vmatprep.subr.mxu0 0.0
        %827 = vmatpush1.xpose.msra.mxu0 0.0
        %828 = vmatprep.subr.mxu0 0.0
        %829 = vmatpush1.xpose.msra.mxu0 0.0
        %830 = vmatprep.subr.mxu0 0.0
        %831 = vmatpush1.xpose.msra.mxu0 0.0
        %832 = vmatprep.subr.mxu0 0.0
        %833 = vmatpush1.xpose.msra.mxu0 0.0
        %834 = vmatprep.subr.mxu0 0.0
        %835 = vmatpush1.xpose.msra.mxu0 0.0
        %836 = vmatprep.subr.mxu0 0.0
        %837 = vmatpush1.xpose.msra.mxu0 0.0
        %838 = vmatprep.subr.mxu0 0.0
        %839 = vmatpush1.xpose.msra.mxu0 0.0
        %840 = vmatprep.subr.mxu0 0.0
        %841 = vmatpush1.xpose.msra.mxu0 0.0
        %842 = vmatprep.subr.mxu0 0.0
        %843 = vmatpush1.xpose.msra.mxu0 0.0
        %844 = vmatprep.subr.mxu0 0.0
        %845 = vmatpush1.xpose.msra.mxu0 0.0
        %846 = vmatprep.subr.mxu0 0.0
        %847 = vmatpush1.xpose.msra.mxu0 0.0
        %848 = vmatprep.subr.mxu0 0.0
        %849 = vmatpush1.xpose.msra.mxu0 0.0
        %850 = vmatprep.mubr.f32.mxu0 0.0
        %v851 = vand.u32 %v781, 4294901760
        %v852 = vsub.f32 %v781, %v851
        %v853 = vand.u32 %v852, 4294901760
        %v854 = vsub.f32 %v852, %v853
        %v855 = vand.u32 %v854, 4294901760
        %856 = vmatmul.mubr.f32.gmra.mrb[0].mxu0 %v855
        %v857 = vpop.f32.mrb[0].mxu0
        %v858 = vadd.f32 0.0, %v857
        %v859 = vpop.f32.mrb[0].mxu0
        %860 = vdwg.mxu0
        %861 = vmatprep.subr.mxu0 0.0
        %v862 = vand.u32 %v783, 4294901760
        %v863 = vsub.f32 %v783, %v862
        %v864 = vand.u32 %v863, 4294901760
        %v865 = vsub.f32 %v863, %v864
        %v866 = vand.u32 %v865, 4294901760
        %867 = vmatpush1.xpose.msra.mxu0 %v866
        %868 = vmatprep.subr.mxu0 0.0
        %869 = vmatpush1.xpose.msra.mxu0 0.0
        %870 = vmatprep.subr.mxu0 0.0
        %871 = vmatpush1.xpose.msra.mxu0 0.0
        %872 = vmatprep.subr.mxu0 0.0
        %873 = vmatpush1.xpose.msra.mxu0 0.0
        %874 = vmatprep.subr.mxu0 0.0
        %875 = vmatpush1.xpose.msra.mxu0 0.0
        %876 = vmatprep.subr.mxu0 0.0
        %877 = vmatpush1.xpose.msra.mxu0 0.0
        %878 = vmatprep.subr.mxu0 0.0
        %879 = vmatpush1.xpose.msra.mxu0 0.0
        %880 = vmatprep.subr.mxu0 0.0
        %881 = vmatpush1.xpose.msra.mxu0 0.0
        %882 = vmatprep.subr.mxu0 0.0
        %883 = vmatpush1.xpose.msra.mxu0 0.0
        %884 = vmatprep.subr.mxu0 0.0
        %885 = vmatpush1.xpose.msra.mxu0 0.0
        %886 = vmatprep.subr.mxu0 0.0
        %887 = vmatpush1.xpose.msra.mxu0 0.0
        %888 = vmatprep.subr.mxu0 0.0
        %889 = vmatpush1.xpose.msra.mxu0 0.0
        %890 = vmatprep.subr.mxu0 0.0
        %891 = vmatpush1.xpose.msra.mxu0 0.0
        %892 = vmatprep.subr.mxu0 0.0
        %893 = vmatpush1.xpose.msra.mxu0 0.0
        %894 = vmatprep.subr.mxu0 0.0
        %895 = vmatpush1.xpose.msra.mxu0 0.0
        %896 = vmatprep.subr.mxu0 0.0
        %897 = vmatpush1.xpose.msra.mxu0 0.0
        %898 = vmatprep.subr.mxu0 0.0
        %899 = vmatpush1.xpose.msra.mxu0 0.0
        %900 = vmatprep.subr.mxu0 0.0
        %901 = vmatpush1.xpose.msra.mxu0 0.0
        %902 = vmatprep.subr.mxu0 0.0
        %903 = vmatpush1.xpose.msra.mxu0 0.0
        %904 = vmatprep.subr.mxu0 0.0
        %905 = vmatpush1.xpose.msra.mxu0 0.0
        %906 = vmatprep.subr.mxu0 0.0
        %907 = vmatpush1.xpose.msra.mxu0 0.0
        %908 = vmatprep.subr.mxu0 0.0
        %909 = vmatpush1.xpose.msra.mxu0 0.0
        %910 = vmatprep.subr.mxu0 0.0
        %911 = vmatpush1.xpose.msra.mxu0 0.0
        %912 = vmatprep.subr.mxu0 0.0
        %913 = vmatpush1.xpose.msra.mxu0 0.0
        %914 = vmatprep.subr.mxu0 0.0
        %915 = vmatpush1.xpose.msra.mxu0 0.0
        %916 = vmatprep.subr.mxu0 0.0
        %917 = vmatpush1.xpose.msra.mxu0 0.0
        %918 = vmatprep.subr.mxu0 0.0
        %919 = vmatpush1.xpose.msra.mxu0 0.0
        %920 = vmatprep.subr.mxu0 0.0
        %921 = vmatpush1.xpose.msra.mxu0 0.0
        %922 = vmatprep.subr.mxu0 0.0
        %923 = vmatpush1.xpose.msra.mxu0 0.0
        %924 = vmatprep.subr.mxu0 0.0
        %925 = vmatpush1.xpose.msra.mxu0 0.0
        %926 = vmatprep.subr.mxu0 0.0
        %927 = vmatpush1.xpose.msra.mxu0 0.0
        %928 = vmatprep.subr.mxu0 0.0
        %929 = vmatpush1.xpose.msra.mxu0 0.0
        %930 = vmatprep.mubr.f32.mxu0 0.0
        %v931 = vand.u32 %v781, 4294901760
        %932 = vmatmul.mubr.f32.gmra.mrb[0].mxu0 %v931
        %v933 = vpop.f32.mrb[0].mxu0
        %v934 = vadd.f32 %v858, %v933
        %v935 = vpop.f32.mrb[0].mxu0
        %936 = vdwg.mxu0
        %937 = vmatprep.subr.mxu0 0.0
        %v938 = vand.u32 %v783, 4294901760
        %v939 = vsub.f32 %v783, %v938
        %940 = vmatpush1.xpose.msra.mxu0 %v939
        %941 = vmatprep.subr.mxu0 0.0
        %942 = vmatpush1.xpose.msra.mxu0 0.0
        %943 = vmatprep.subr.mxu0 0.0
        %944 = vmatpush1.xpose.msra.mxu0 0.0
        %945 = vmatprep.subr.mxu0 0.0
        %946 = vmatpush1.xpose.msra.mxu0 0.0
        %947 = vmatprep.subr.mxu0 0.0
        %948 = vmatpush1.xpose.msra.mxu0 0.0
        %949 = vmatprep.subr.mxu0 0.0
        %950 = vmatpush1.xpose.msra.mxu0 0.0
        %951 = vmatprep.subr.mxu0 0.0
        %952 = vmatpush1.xpose.msra.mxu0 0.0
        %953 = vmatprep.subr.mxu0 0.0
        %954 = vmatpush1.xpose.msra.mxu0 0.0
        %955 = vmatprep.subr.mxu0 0.0
        %956 = vmatpush1.xpose.msra.mxu0 0.0
        %957 = vmatprep.subr.mxu0 0.0
        %958 = vmatpush1.xpose.msra.mxu0 0.0
        %959 = vmatprep.subr.mxu0 0.0
        %960 = vmatpush1.xpose.msra.mxu0 0.0
        %961 = vmatprep.subr.mxu0 0.0
        %962 = vmatpush1.xpose.msra.mxu0 0.0
        %963 = vmatprep.subr.mxu0 0.0
        %964 = vmatpush1.xpose.msra.mxu0 0.0
        %965 = vmatprep.subr.mxu0 0.0
        %966 = vmatpush1.xpose.msra.mxu0 0.0
        %967 = vmatprep.subr.mxu0 0.0
        %968 = vmatpush1.xpose.msra.mxu0 0.0
        %969 = vmatprep.subr.mxu0 0.0
        %970 = vmatpush1.xpose.msra.mxu0 0.0
        %971 = vmatprep.subr.mxu0 0.0
        %972 = vmatpush1.xpose.msra.mxu0 0.0
        %973 = vmatprep.subr.mxu0 0.0
        %974 = vmatpush1.xpose.msra.mxu0 0.0
        %975 = vmatprep.subr.mxu0 0.0
        %976 = vmatpush1.xpose.msra.mxu0 0.0
        %977 = vmatprep.subr.mxu0 0.0
        %978 = vmatpush1.xpose.msra.mxu0 0.0
        %979 = vmatprep.subr.mxu0 0.0
        %980 = vmatpush1.xpose.msra.mxu0 0.0
        %981 = vmatprep.subr.mxu0 0.0
        %982 = vmatpush1.xpose.msra.mxu0 0.0
        %983 = vmatprep.subr.mxu0 0.0
        %984 = vmatpush1.xpose.msra.mxu0 0.0
        %985 = vmatprep.subr.mxu0 0.0
        %986 = vmatpush1.xpose.msra.mxu0 0.0
        %987 = vmatprep.subr.mxu0 0.0
        %988 = vmatpush1.xpose.msra.mxu0 0.0
        %989 = vmatprep.subr.mxu0 0.0
        %990 = vmatpush1.xpose.msra.mxu0 0.0
        %991 = vmatprep.subr.mxu0 0.0
        %992 = vmatpush1.xpose.msra.mxu0 0.0
        %993 = vmatprep.subr.mxu0 0.0
        %994 = vmatpush1.xpose.msra.mxu0 0.0
        %995 = vmatprep.subr.mxu0 0.0
        %996 = vmatpush1.xpose.msra.mxu0 0.0
        %997 = vmatprep.subr.mxu0 0.0
        %998 = vmatpush1.xpose.msra.mxu0 0.0
        %999 = vmatprep.subr.mxu0 0.0
        %1000 = vmatpush1.xpose.msra.mxu0 0.0
        %1001 = vmatprep.subr.mxu0 0.0
        %1002 = vmatpush1.xpose.msra.mxu0 0.0
        %1003 = vmatprep.mubr.f32.mxu0 0.0
        %v1004 = vand.u32 %v781, 4294901760
        %v1005 = vsub.f32 %v781, %v1004
        %1006 = vmatmul.mubr.f32.gmra.mrb[0].mxu0 %v1005
        %v1007 = vpop.f32.mrb[0].mxu0
        %v1008 = vadd.f32 %v934, %v1007
        %v1009 = vpop.f32.mrb[0].mxu0
        %1010 = vdwg.mxu0
        %1011 = vmatprep.subr.mxu0 0.0
        %v1012 = vand.u32 %v783, 4294901760
        %1013 = vmatpush1.xpose.msra.mxu0 %v1012
        %1014 = vmatprep.subr.mxu0 0.0
        %1015 = vmatpush1.xpose.msra.mxu0 0.0
        %1016 = vmatprep.subr.mxu0 0.0
        %1017 = vmatpush1.xpose.msra.mxu0 0.0
        %1018 = vmatprep.subr.mxu0 0.0
        %1019 = vmatpush1.xpose.msra.mxu0 0.0
        %1020 = vmatprep.subr.mxu0 0.0
        %1021 = vmatpush1.xpose.msra.mxu0 0.0
        %1022 = vmatprep.subr.mxu0 0.0
        %1023 = vmatpush1.xpose.msra.mxu0 0.0
        %1024 = vmatprep.subr.mxu0 0.0
        %1025 = vmatpush1.xpose.msra.mxu0 0.0
        %1026 = vmatprep.subr.mxu0 0.0
        %1027 = vmatpush1.xpose.msra.mxu0 0.0
        %1028 = vmatprep.subr.mxu0 0.0
        %1029 = vmatpush1.xpose.msra.mxu0 0.0
        %1030 = vmatprep.subr.mxu0 0.0
        %1031 = vmatpush1.xpose.msra.mxu0 0.0
        %1032 = vmatprep.subr.mxu0 0.0
        %1033 = vmatpush1.xpose.msra.mxu0 0.0
        %1034 = vmatprep.subr.mxu0 0.0
        %1035 = vmatpush1.xpose.msra.mxu0 0.0
        %1036 = vmatprep.subr.mxu0 0.0
        %1037 = vmatpush1.xpose.msra.mxu0 0.0
        %1038 = vmatprep.subr.mxu0 0.0
        %1039 = vmatpush1.xpose.msra.mxu0 0.0
        %1040 = vmatprep.subr.mxu0 0.0
        %1041 = vmatpush1.xpose.msra.mxu0 0.0
        %1042 = vmatprep.subr.mxu0 0.0
        %1043 = vmatpush1.xpose.msra.mxu0 0.0
        %1044 = vmatprep.subr.mxu0 0.0
        %1045 = vmatpush1.xpose.msra.mxu0 0.0
        %1046 = vmatprep.subr.mxu0 0.0
        %1047 = vmatpush1.xpose.msra.mxu0 0.0
        %1048 = vmatprep.subr.mxu0 0.0
        %1049 = vmatpush1.xpose.msra.mxu0 0.0
        %1050 = vmatprep.subr.mxu0 0.0
        %1051 = vmatpush1.xpose.msra.mxu0 0.0
        %1052 = vmatprep.subr.mxu0 0.0
        %1053 = vmatpush1.xpose.msra.mxu0 0.0
        %1054 = vmatprep.subr.mxu0 0.0
        %1055 = vmatpush1.xpose.msra.mxu0 0.0
        %1056 = vmatprep.subr.mxu0 0.0
        %1057 = vmatpush1.xpose.msra.mxu0 0.0
        %1058 = vmatprep.subr.mxu0 0.0
        %1059 = vmatpush1.xpose.msra.mxu0 0.0
        %1060 = vmatprep.subr.mxu0 0.0
        %1061 = vmatpush1.xpose.msra.mxu0 0.0
        %1062 = vmatprep.subr.mxu0 0.0
        %1063 = vmatpush1.xpose.msra.mxu0 0.0
        %1064 = vmatprep.subr.mxu0 0.0
        %1065 = vmatpush1.xpose.msra.mxu0 0.0
        %1066 = vmatprep.subr.mxu0 0.0
        %1067 = vmatpush1.xpose.msra.mxu0 0.0
        %1068 = vmatprep.subr.mxu0 0.0
        %1069 = vmatpush1.xpose.msra.mxu0 0.0
        %1070 = vmatprep.subr.mxu0 0.0
        %1071 = vmatpush1.xpose.msra.mxu0 0.0
        %1072 = vmatprep.subr.mxu0 0.0
        %1073 = vmatpush1.xpose.msra.mxu0 0.0
        %1074 = vmatprep.subr.mxu0 0.0
        %1075 = vmatpush1.xpose.msra.mxu0 0.0
        %1076 = vmatprep.mubr.f32.mxu0 0.0
        %v1077 = vand.u32 %v781, 4294901760
        %v1078 = vsub.f32 %v781, %v1077
        %v1079 = vand.u32 %v1078, 4294901760
        %1080 = vmatmul.mubr.f32.gmra.mrb[0].mxu0 %v1079
        %v1081 = vpop.f32.mrb[0].mxu0
        %v1082 = vadd.f32 %v1008, %v1081
        %v1083 = vpop.f32.mrb[0].mxu0
        %1084 = vdwg.mxu0
        %1085 = vmatprep.subr.mxu0 0.0
        %v1086 = vand.u32 %v783, 4294901760
        %v1087 = vsub.f32 %v783, %v1086
        %v1088 = vand.u32 %v1087, 4294901760
        %1089 = vmatpush1.xpose.msra.mxu0 %v1088
        %1090 = vmatprep.subr.mxu0 0.0
        %1091 = vmatpush1.xpose.msra.mxu0 0.0
        %1092 = vmatprep.subr.mxu0 0.0
        %1093 = vmatpush1.xpose.msra.mxu0 0.0
        %1094 = vmatprep.subr.mxu0 0.0
        %1095 = vmatpush1.xpose.msra.mxu0 0.0
        %1096 = vmatprep.subr.mxu0 0.0
        %1097 = vmatpush1.xpose.msra.mxu0 0.0
        %1098 = vmatprep.subr.mxu0 0.0
        %1099 = vmatpush1.xpose.msra.mxu0 0.0
        %1100 = vmatprep.subr.mxu0 0.0
        %1101 = vmatpush1.xpose.msra.mxu0 0.0
        %1102 = vmatprep.subr.mxu0 0.0
        %1103 = vmatpush1.xpose.msra.mxu0 0.0
        %1104 = vmatprep.subr.mxu0 0.0
        %1105 = vmatpush1.xpose.msra.mxu0 0.0
        %1106 = vmatprep.subr.mxu0 0.0
        %1107 = vmatpush1.xpose.msra.mxu0 0.0
        %1108 = vmatprep.subr.mxu0 0.0
        %1109 = vmatpush1.xpose.msra.mxu0 0.0
        %1110 = vmatprep.subr.mxu0 0.0
        %1111 = vmatpush1.xpose.msra.mxu0 0.0
        %1112 = vmatprep.subr.mxu0 0.0
        %1113 = vmatpush1.xpose.msra.mxu0 0.0
        %1114 = vmatprep.subr.mxu0 0.0
        %1115 = vmatpush1.xpose.msra.mxu0 0.0
        %1116 = vmatprep.subr.mxu0 0.0
        %1117 = vmatpush1.xpose.msra.mxu0 0.0
        %1118 = vmatprep.subr.mxu0 0.0
        %1119 = vmatpush1.xpose.msra.mxu0 0.0
        %1120 = vmatprep.subr.mxu0 0.0
        %1121 = vmatpush1.xpose.msra.mxu0 0.0
        %1122 = vmatprep.subr.mxu0 0.0
        %1123 = vmatpush1.xpose.msra.mxu0 0.0
        %1124 = vmatprep.subr.mxu0 0.0
        %1125 = vmatpush1.xpose.msra.mxu0 0.0
        %1126 = vmatprep.subr.mxu0 0.0
        %1127 = vmatpush1.xpose.msra.mxu0 0.0
        %1128 = vmatprep.subr.mxu0 0.0
        %1129 = vmatpush1.xpose.msra.mxu0 0.0
        %1130 = vmatprep.subr.mxu0 0.0
        %1131 = vmatpush1.xpose.msra.mxu0 0.0
        %1132 = vmatprep.subr.mxu0 0.0
        %1133 = vmatpush1.xpose.msra.mxu0 0.0
        %1134 = vmatprep.subr.mxu0 0.0
        %1135 = vmatpush1.xpose.msra.mxu0 0.0
        %1136 = vmatprep.subr.mxu0 0.0
        %1137 = vmatpush1.xpose.msra.mxu0 0.0
        %1138 = vmatprep.subr.mxu0 0.0
        %1139 = vmatpush1.xpose.msra.mxu0 0.0
        %1140 = vmatprep.subr.mxu0 0.0
        %1141 = vmatpush1.xpose.msra.mxu0 0.0
        %1142 = vmatprep.subr.mxu0 0.0
        %1143 = vmatpush1.xpose.msra.mxu0 0.0
        %1144 = vmatprep.subr.mxu0 0.0
        %1145 = vmatpush1.xpose.msra.mxu0 0.0
        %1146 = vmatprep.subr.mxu0 0.0
        %1147 = vmatpush1.xpose.msra.mxu0 0.0
        %1148 = vmatprep.subr.mxu0 0.0
        %1149 = vmatpush1.xpose.msra.mxu0 0.0
        %1150 = vmatprep.subr.mxu0 0.0
        %1151 = vmatpush1.xpose.msra.mxu0 0.0
        %1152 = vmatprep.mubr.f32.mxu0 0.0
        %v1153 = vand.u32 %v781, 4294901760
        %1154 = vmatmul.mubr.f32.gmra.mrb[0].mxu0 %v1153
        %v1155 = vpop.f32.mrb[0].mxu0
        %v1156 = vadd.f32 %v1082, %v1155
        %v1157 = vpop.f32.mrb[0].mxu0
        %1158 = vdwg.mxu0
        %1159 = vmatprep.subr.mxu0 0.0
        %v1160 = vand.u32 %v783, 4294901760
        %1161 = vmatpush1.xpose.msra.mxu0 %v1160
        %1162 = vmatprep.subr.mxu0 0.0
        %1163 = vmatpush1.xpose.msra.mxu0 0.0
        %1164 = vmatprep.subr.mxu0 0.0
        %1165 = vmatpush1.xpose.msra.mxu0 0.0
        %1166 = vmatprep.subr.mxu0 0.0
        %1167 = vmatpush1.xpose.msra.mxu0 0.0
        %1168 = vmatprep.subr.mxu0 0.0
        %1169 = vmatpush1.xpose.msra.mxu0 0.0
        %1170 = vmatprep.subr.mxu0 0.0
        %1171 = vmatpush1.xpose.msra.mxu0 0.0
        %1172 = vmatprep.subr.mxu0 0.0
        %1173 = vmatpush1.xpose.msra.mxu0 0.0
        %1174 = vmatprep.subr.mxu0 0.0
        %1175 = vmatpush1.xpose.msra.mxu0 0.0
        %1176 = vmatprep.subr.mxu0 0.0
        %1177 = vmatpush1.xpose.msra.mxu0 0.0
        %1178 = vmatprep.subr.mxu0 0.0
        %1179 = vmatpush1.xpose.msra.mxu0 0.0
        %1180 = vmatprep.subr.mxu0 0.0
        %1181 = vmatpush1.xpose.msra.mxu0 0.0
        %1182 = vmatprep.subr.mxu0 0.0
        %1183 = vmatpush1.xpose.msra.mxu0 0.0
        %1184 = vmatprep.subr.mxu0 0.0
        %1185 = vmatpush1.xpose.msra.mxu0 0.0
        %1186 = vmatprep.subr.mxu0 0.0
        %1187 = vmatpush1.xpose.msra.mxu0 0.0
        %1188 = vmatprep.subr.mxu0 0.0
        %1189 = vmatpush1.xpose.msra.mxu0 0.0
        %1190 = vmatprep.subr.mxu0 0.0
        %1191 = vmatpush1.xpose.msra.mxu0 0.0
        %1192 = vmatprep.subr.mxu0 0.0
        %1193 = vmatpush1.xpose.msra.mxu0 0.0
        %1194 = vmatprep.subr.mxu0 0.0
        %1195 = vmatpush1.xpose.msra.mxu0 0.0
        %1196 = vmatprep.subr.mxu0 0.0
        %1197 = vmatpush1.xpose.msra.mxu0 0.0
        %1198 = vmatprep.subr.mxu0 0.0
        %1199 = vmatpush1.xpose.msra.mxu0 0.0
        %1200 = vmatprep.subr.mxu0 0.0
        %1201 = vmatpush1.xpose.msra.mxu0 0.0
        %1202 = vmatprep.subr.mxu0 0.0
        %1203 = vmatpush1.xpose.msra.mxu0 0.0
        %1204 = vmatprep.subr.mxu0 0.0
        %1205 = vmatpush1.xpose.msra.mxu0 0.0
        %1206 = vmatprep.subr.mxu0 0.0
        %1207 = vmatpush1.xpose.msra.mxu0 0.0
        %1208 = vmatprep.subr.mxu0 0.0
        %1209 = vmatpush1.xpose.msra.mxu0 0.0
        %1210 = vmatprep.subr.mxu0 0.0
        %1211 = vmatpush1.xpose.msra.mxu0 0.0
        %1212 = vmatprep.subr.mxu0 0.0
        %1213 = vmatpush1.xpose.msra.mxu0 0.0
        %1214 = vmatprep.subr.mxu0 0.0
        %1215 = vmatpush1.xpose.msra.mxu0 0.0
        %1216 = vmatprep.subr.mxu0 0.0
        %1217 = vmatpush1.xpose.msra.mxu0 0.0
        %1218 = vmatprep.subr.mxu0 0.0
        %1219 = vmatpush1.xpose.msra.mxu0 0.0
        %1220 = vmatprep.subr.mxu0 0.0
        %1221 = vmatpush1.xpose.msra.mxu0 0.0
        %1222 = vmatprep.subr.mxu0 0.0
        %1223 = vmatpush1.xpose.msra.mxu0 0.0
        %1224 = vmatprep.mubr.f32.mxu0 0.0
        %v1225 = vand.u32 %v781, 4294901760
        %1226 = vmatmul.mubr.f32.gmra.mrb[0].mxu0 %v1225
        %v1227 = vpop.f32.mrb[0].mxu0
        %v1228 = vadd.f32 %v1156, %v1227
        %v1229 = vpop.f32.mrb[0].mxu0
        %1230 = vdwg.mxu0
        %1231 = vrot.lane.b32.xlu0 %v765, 96
        %v1232 = vpop.permute.xlu0 %1231
        %v1233 = vsel %vm780, %v765, 0
        %v1235 = vsel %vm780, %v1232, 0
        %1237 = vmatprep.subr.mxu0 0.0
        %v1238 = vand.u32 %v1235, 4294901760
        %1239 = vmatpush1.xpose.msra.mxu0 %v1238
        %1240 = vmatprep.subr.mxu0 0.0
        %1241 = vmatpush1.xpose.msra.mxu0 0.0
        %1242 = vmatprep.subr.mxu0 0.0
        %1243 = vmatpush1.xpose.msra.mxu0 0.0
        %1244 = vmatprep.subr.mxu0 0.0
        %1245 = vmatpush1.xpose.msra.mxu0 0.0
        %1246 = vmatprep.subr.mxu0 0.0
        %1247 = vmatpush1.xpose.msra.mxu0 0.0
        %1248 = vmatprep.subr.mxu0 0.0
        %1249 = vmatpush1.xpose.msra.mxu0 0.0
        %1250 = vmatprep.subr.mxu0 0.0
        %1251 = vmatpush1.xpose.msra.mxu0 0.0
        %1252 = vmatprep.subr.mxu0 0.0
        %1253 = vmatpush1.xpose.msra.mxu0 0.0
        %1254 = vmatprep.subr.mxu0 0.0
        %1255 = vmatpush1.xpose.msra.mxu0 0.0
        %1256 = vmatprep.subr.mxu0 0.0
        %1257 = vmatpush1.xpose.msra.mxu0 0.0
        %1258 = vmatprep.subr.mxu0 0.0
        %1259 = vmatpush1.xpose.msra.mxu0 0.0
        %1260 = vmatprep.subr.mxu0 0.0
        %1261 = vmatpush1.xpose.msra.mxu0 0.0
        %1262 = vmatprep.subr.mxu0 0.0
        %1263 = vmatpush1.xpose.msra.mxu0 0.0
        %1264 = vmatprep.subr.mxu0 0.0
        %1265 = vmatpush1.xpose.msra.mxu0 0.0
        %1266 = vmatprep.subr.mxu0 0.0
        %1267 = vmatpush1.xpose.msra.mxu0 0.0
        %1268 = vmatprep.subr.mxu0 0.0
        %1269 = vmatpush1.xpose.msra.mxu0 0.0
        %1270 = vmatprep.subr.mxu0 0.0
        %1271 = vmatpush1.xpose.msra.mxu0 0.0
        %1272 = vmatprep.subr.mxu0 0.0
        %1273 = vmatpush1.xpose.msra.mxu0 0.0
        %1274 = vmatprep.subr.mxu0 0.0
        %1275 = vmatpush1.xpose.msra.mxu0 0.0
        %1276 = vmatprep.subr.mxu0 0.0
        %1277 = vmatpush1.xpose.msra.mxu0 0.0
        %1278 = vmatprep.subr.mxu0 0.0
        %1279 = vmatpush1.xpose.msra.mxu0 0.0
        %1280 = vmatprep.subr.mxu0 0.0
        %1281 = vmatpush1.xpose.msra.mxu0 0.0
        %1282 = vmatprep.subr.mxu0 0.0
        %1283 = vmatpush1.xpose.msra.mxu0 0.0
        %1284 = vmatprep.subr.mxu0 0.0
        %1285 = vmatpush1.xpose.msra.mxu0 0.0
        %1286 = vmatprep.subr.mxu0 0.0
        %1287 = vmatpush1.xpose.msra.mxu0 0.0
        %1288 = vmatprep.subr.mxu0 0.0
        %1289 = vmatpush1.xpose.msra.mxu0 0.0
        %1290 = vmatprep.subr.mxu0 0.0
        %1291 = vmatpush1.xpose.msra.mxu0 0.0
        %1292 = vmatprep.subr.mxu0 0.0
        %1293 = vmatpush1.xpose.msra.mxu0 0.0
        %1294 = vmatprep.subr.mxu0 0.0
        %1295 = vmatpush1.xpose.msra.mxu0 0.0
        %1296 = vmatprep.subr.mxu0 0.0
        %1297 = vmatpush1.xpose.msra.mxu0 0.0
        %1298 = vmatprep.subr.mxu0 0.0
        %1299 = vmatpush1.xpose.msra.mxu0 0.0
        %1300 = vmatprep.subr.mxu0 0.0
        %1301 = vmatpush1.xpose.msra.mxu0 0.0
        %1302 = vmatprep.mubr.f32.mxu0 0.0
        %v1303 = vand.u32 %v1233, 4294901760
        %v1304 = vsub.f32 %v1233, %v1303
        %v1305 = vand.u32 %v1304, 4294901760
        %v1306 = vsub.f32 %v1304, %v1305
        %v1307 = vand.u32 %v1306, 4294901760
        %1308 = vmatmul.mubr.f32.gmra.mrb[0].mxu0 %v1307
        %v1309 = vpop.f32.mrb[0].mxu0
        %v1310 = vadd.f32 0.0, %v1309
        %v1311 = vpop.f32.mrb[0].mxu0
        %1312 = vdwg.mxu0
        %1313 = vmatprep.subr.mxu0 0.0
        %v1314 = vand.u32 %v1235, 4294901760
        %v1315 = vsub.f32 %v1235, %v1314
        %v1316 = vand.u32 %v1315, 4294901760
        %v1317 = vsub.f32 %v1315, %v1316
        %v1318 = vand.u32 %v1317, 4294901760
        %1319 = vmatpush1.xpose.msra.mxu0 %v1318
        %1320 = vmatprep.subr.mxu0 0.0
        %1321 = vmatpush1.xpose.msra.mxu0 0.0
        %1322 = vmatprep.subr.mxu0 0.0
        %1323 = vmatpush1.xpose.msra.mxu0 0.0
        %1324 = vmatprep.subr.mxu0 0.0
        %1325 = vmatpush1.xpose.msra.mxu0 0.0
        %1326 = vmatprep.subr.mxu0 0.0
        %1327 = vmatpush1.xpose.msra.mxu0 0.0
        %1328 = vmatprep.subr.mxu0 0.0
        %1329 = vmatpush1.xpose.msra.mxu0 0.0
        %1330 = vmatprep.subr.mxu0 0.0
        %1331 = vmatpush1.xpose.msra.mxu0 0.0
        %1332 = vmatprep.subr.mxu0 0.0
        %1333 = vmatpush1.xpose.msra.mxu0 0.0
        %1334 = vmatprep.subr.mxu0 0.0
        %1335 = vmatpush1.xpose.msra.mxu0 0.0
        %1336 = vmatprep.subr.mxu0 0.0
        %1337 = vmatpush1.xpose.msra.mxu0 0.0
        %1338 = vmatprep.subr.mxu0 0.0
        %1339 = vmatpush1.xpose.msra.mxu0 0.0
        %1340 = vmatprep.subr.mxu0 0.0
        %1341 = vmatpush1.xpose.msra.mxu0 0.0
        %1342 = vmatprep.subr.mxu0 0.0
        %1343 = vmatpush1.xpose.msra.mxu0 0.0
        %1344 = vmatprep.subr.mxu0 0.0
        %1345 = vmatpush1.xpose.msra.mxu0 0.0
        %1346 = vmatprep.subr.mxu0 0.0
        %1347 = vmatpush1.xpose.msra.mxu0 0.0
        %1348 = vmatprep.subr.mxu0 0.0
        %1349 = vmatpush1.xpose.msra.mxu0 0.0
        %1350 = vmatprep.subr.mxu0 0.0
        %1351 = vmatpush1.xpose.msra.mxu0 0.0
        %1352 = vmatprep.subr.mxu0 0.0
        %1353 = vmatpush1.xpose.msra.mxu0 0.0
        %1354 = vmatprep.subr.mxu0 0.0
        %1355 = vmatpush1.xpose.msra.mxu0 0.0
        %1356 = vmatprep.subr.mxu0 0.0
        %1357 = vmatpush1.xpose.msra.mxu0 0.0
        %1358 = vmatprep.subr.mxu0 0.0
        %1359 = vmatpush1.xpose.msra.mxu0 0.0
        %1360 = vmatprep.subr.mxu0 0.0
        %1361 = vmatpush1.xpose.msra.mxu0 0.0
        %1362 = vmatprep.subr.mxu0 0.0
        %1363 = vmatpush1.xpose.msra.mxu0 0.0
        %1364 = vmatprep.subr.mxu0 0.0
        %1365 = vmatpush1.xpose.msra.mxu0 0.0
        %1366 = vmatprep.subr.mxu0 0.0
        %1367 = vmatpush1.xpose.msra.mxu0 0.0
        %1368 = vmatprep.subr.mxu0 0.0
        %1369 = vmatpush1.xpose.msra.mxu0 0.0
        %1370 = vmatprep.subr.mxu0 0.0
        %1371 = vmatpush1.xpose.msra.mxu0 0.0
        %1372 = vmatprep.subr.mxu0 0.0
        %1373 = vmatpush1.xpose.msra.mxu0 0.0
        %1374 = vmatprep.subr.mxu0 0.0
        %1375 = vmatpush1.xpose.msra.mxu0 0.0
        %1376 = vmatprep.subr.mxu0 0.0
        %1377 = vmatpush1.xpose.msra.mxu0 0.0
        %1378 = vmatprep.subr.mxu0 0.0
        %1379 = vmatpush1.xpose.msra.mxu0 0.0
        %1380 = vmatprep.subr.mxu0 0.0
        %1381 = vmatpush1.xpose.msra.mxu0 0.0
        %1382 = vmatprep.mubr.f32.mxu0 0.0
        %v1383 = vand.u32 %v1233, 4294901760
        %1384 = vmatmul.mubr.f32.gmra.mrb[0].mxu0 %v1383
        %v1385 = vpop.f32.mrb[0].mxu0
        %v1386 = vadd.f32 %v1310, %v1385
        %v1387 = vpop.f32.mrb[0].mxu0
        %1388 = vdwg.mxu0
        %1389 = vmatprep.subr.mxu0 0.0
        %v1390 = vand.u32 %v1235, 4294901760
        %v1391 = vsub.f32 %v1235, %v1390
        %1392 = vmatpush1.xpose.msra.mxu0 %v1391
        %1393 = vmatprep.subr.mxu0 0.0
        %1394 = vmatpush1.xpose.msra.mxu0 0.0
        %1395 = vmatprep.subr.mxu0 0.0
        %1396 = vmatpush1.xpose.msra.mxu0 0.0
        %1397 = vmatprep.subr.mxu0 0.0
        %1398 = vmatpush1.xpose.msra.mxu0 0.0
        %1399 = vmatprep.subr.mxu0 0.0
        %1400 = vmatpush1.xpose.msra.mxu0 0.0
        %1401 = vmatprep.subr.mxu0 0.0
        %1402 = vmatpush1.xpose.msra.mxu0 0.0
        %1403 = vmatprep.subr.mxu0 0.0
        %1404 = vmatpush1.xpose.msra.mxu0 0.0
        %1405 = vmatprep.subr.mxu0 0.0
        %1406 = vmatpush1.xpose.msra.mxu0 0.0
        %1407 = vmatprep.subr.mxu0 0.0
        %1408 = vmatpush1.xpose.msra.mxu0 0.0
        %1409 = vmatprep.subr.mxu0 0.0
        %1410 = vmatpush1.xpose.msra.mxu0 0.0
        %1411 = vmatprep.subr.mxu0 0.0
        %1412 = vmatpush1.xpose.msra.mxu0 0.0
        %1413 = vmatprep.subr.mxu0 0.0
        %1414 = vmatpush1.xpose.msra.mxu0 0.0
        %1415 = vmatprep.subr.mxu0 0.0
        %1416 = vmatpush1.xpose.msra.mxu0 0.0
        %1417 = vmatprep.subr.mxu0 0.0
        %1418 = vmatpush1.xpose.msra.mxu0 0.0
        %1419 = vmatprep.subr.mxu0 0.0
        %1420 = vmatpush1.xpose.msra.mxu0 0.0
        %1421 = vmatprep.subr.mxu0 0.0
        %1422 = vmatpush1.xpose.msra.mxu0 0.0
        %1423 = vmatprep.subr.mxu0 0.0
        %1424 = vmatpush1.xpose.msra.mxu0 0.0
        %1425 = vmatprep.subr.mxu0 0.0
        %1426 = vmatpush1.xpose.msra.mxu0 0.0
        %1427 = vmatprep.subr.mxu0 0.0
        %1428 = vmatpush1.xpose.msra.mxu0 0.0
        %1429 = vmatprep.subr.mxu0 0.0
        %1430 = vmatpush1.xpose.msra.mxu0 0.0
        %1431 = vmatprep.subr.mxu0 0.0
        %1432 = vmatpush1.xpose.msra.mxu0 0.0
        %1433 = vmatprep.subr.mxu0 0.0
        %1434 = vmatpush1.xpose.msra.mxu0 0.0
        %1435 = vmatprep.subr.mxu0 0.0
        %1436 = vmatpush1.xpose.msra.mxu0 0.0
        %1437 = vmatprep.subr.mxu0 0.0
        %1438 = vmatpush1.xpose.msra.mxu0 0.0
        %1439 = vmatprep.subr.mxu0 0.0
        %1440 = vmatpush1.xpose.msra.mxu0 0.0
        %1441 = vmatprep.subr.mxu0 0.0
        %1442 = vmatpush1.xpose.msra.mxu0 0.0
        %1443 = vmatprep.subr.mxu0 0.0
        %1444 = vmatpush1.xpose.msra.mxu0 0.0
        %1445 = vmatprep.subr.mxu0 0.0
        %1446 = vmatpush1.xpose.msra.mxu0 0.0
        %1447 = vmatprep.subr.mxu0 0.0
        %1448 = vmatpush1.xpose.msra.mxu0 0.0
        %1449 = vmatprep.subr.mxu0 0.0
        %1450 = vmatpush1.xpose.msra.mxu0 0.0
        %1451 = vmatprep.subr.mxu0 0.0
        %1452 = vmatpush1.xpose.msra.mxu0 0.0
        %1453 = vmatprep.subr.mxu0 0.0
        %1454 = vmatpush1.xpose.msra.mxu0 0.0
        %1455 = vmatprep.mubr.f32.mxu0 0.0
        %v1456 = vand.u32 %v1233, 4294901760
        %v1457 = vsub.f32 %v1233, %v1456
        %1458 = vmatmul.mubr.f32.gmra.mrb[0].mxu0 %v1457
        %v1459 = vpop.f32.mrb[0].mxu0
        %v1460 = vadd.f32 %v1386, %v1459
        %v1461 = vpop.f32.mrb[0].mxu0
        %1462 = vdwg.mxu0
        %1463 = vmatprep.subr.mxu0 0.0
        %v1464 = vand.u32 %v1235, 4294901760
        %1465 = vmatpush1.xpose.msra.mxu0 %v1464
        %1466 = vmatprep.subr.mxu0 0.0
        %1467 = vmatpush1.xpose.msra.mxu0 0.0
        %1468 = vmatprep.subr.mxu0 0.0
        %1469 = vmatpush1.xpose.msra.mxu0 0.0
        %1470 = vmatprep.subr.mxu0 0.0
        %1471 = vmatpush1.xpose.msra.mxu0 0.0
        %1472 = vmatprep.subr.mxu0 0.0
        %1473 = vmatpush1.xpose.msra.mxu0 0.0
        %1474 = vmatprep.subr.mxu0 0.0
        %1475 = vmatpush1.xpose.msra.mxu0 0.0
        %1476 = vmatprep.subr.mxu0 0.0
        %1477 = vmatpush1.xpose.msra.mxu0 0.0
        %1478 = vmatprep.subr.mxu0 0.0
        %1479 = vmatpush1.xpose.msra.mxu0 0.0
        %1480 = vmatprep.subr.mxu0 0.0
        %1481 = vmatpush1.xpose.msra.mxu0 0.0
        %1482 = vmatprep.subr.mxu0 0.0
        %1483 = vmatpush1.xpose.msra.mxu0 0.0
        %1484 = vmatprep.subr.mxu0 0.0
        %1485 = vmatpush1.xpose.msra.mxu0 0.0
        %1486 = vmatprep.subr.mxu0 0.0
        %1487 = vmatpush1.xpose.msra.mxu0 0.0
        %1488 = vmatprep.subr.mxu0 0.0
        %1489 = vmatpush1.xpose.msra.mxu0 0.0
        %1490 = vmatprep.subr.mxu0 0.0
        %1491 = vmatpush1.xpose.msra.mxu0 0.0
        %1492 = vmatprep.subr.mxu0 0.0
        %1493 = vmatpush1.xpose.msra.mxu0 0.0
        %1494 = vmatprep.subr.mxu0 0.0
        %1495 = vmatpush1.xpose.msra.mxu0 0.0
        %1496 = vmatprep.subr.mxu0 0.0
        %1497 = vmatpush1.xpose.msra.mxu0 0.0
        %1498 = vmatprep.subr.mxu0 0.0
        %1499 = vmatpush1.xpose.msra.mxu0 0.0
        %1500 = vmatprep.subr.mxu0 0.0
        %1501 = vmatpush1.xpose.msra.mxu0 0.0
        %1502 = vmatprep.subr.mxu0 0.0
        %1503 = vmatpush1.xpose.msra.mxu0 0.0
        %1504 = vmatprep.subr.mxu0 0.0
        %1505 = vmatpush1.xpose.msra.mxu0 0.0
        %1506 = vmatprep.subr.mxu0 0.0
        %1507 = vmatpush1.xpose.msra.mxu0 0.0
        %1508 = vmatprep.subr.mxu0 0.0
        %1509 = vmatpush1.xpose.msra.mxu0 0.0
        %1510 = vmatprep.subr.mxu0 0.0
        %1511 = vmatpush1.xpose.msra.mxu0 0.0
        %1512 = vmatprep.subr.mxu0 0.0
        %1513 = vmatpush1.xpose.msra.mxu0 0.0
        %1514 = vmatprep.subr.mxu0 0.0
        %1515 = vmatpush1.xpose.msra.mxu0 0.0
        %1516 = vmatprep.subr.mxu0 0.0
        %1517 = vmatpush1.xpose.msra.mxu0 0.0
        %1518 = vmatprep.subr.mxu0 0.0
        %1519 = vmatpush1.xpose.msra.mxu0 0.0
        %1520 = vmatprep.subr.mxu0 0.0
        %1521 = vmatpush1.xpose.msra.mxu0 0.0
        %1522 = vmatprep.subr.mxu0 0.0
        %1523 = vmatpush1.xpose.msra.mxu0 0.0
        %1524 = vmatprep.subr.mxu0 0.0
        %1525 = vmatpush1.xpose.msra.mxu0 0.0
        %1526 = vmatprep.subr.mxu0 0.0
        %1527 = vmatpush1.xpose.msra.mxu0 0.0
        %1528 = vmatprep.mubr.f32.mxu0 0.0
        %v1529 = vand.u32 %v1233, 4294901760
        %v1530 = vsub.f32 %v1233, %v1529
        %v1531 = vand.u32 %v1530, 4294901760
        %1532 = vmatmul.mubr.f32.gmra.mrb[0].mxu0 %v1531
        %v1533 = vpop.f32.mrb[0].mxu0
        %v1534 = vadd.f32 %v1460, %v1533
        %v1535 = vpop.f32.mrb[0].mxu0
        %1536 = vdwg.mxu0
        %1537 = vmatprep.subr.mxu0 0.0
        %v1538 = vand.u32 %v1235, 4294901760
        %v1539 = vsub.f32 %v1235, %v1538
        %v1540 = vand.u32 %v1539, 4294901760
        %1541 = vmatpush1.xpose.msra.mxu0 %v1540
        %1542 = vmatprep.subr.mxu0 0.0
        %1543 = vmatpush1.xpose.msra.mxu0 0.0
        %1544 = vmatprep.subr.mxu0 0.0
        %1545 = vmatpush1.xpose.msra.mxu0 0.0
        %1546 = vmatprep.subr.mxu0 0.0
        %1547 = vmatpush1.xpose.msra.mxu0 0.0
        %1548 = vmatprep.subr.mxu0 0.0
        %1549 = vmatpush1.xpose.msra.mxu0 0.0
        %1550 = vmatprep.subr.mxu0 0.0
        %1551 = vmatpush1.xpose.msra.mxu0 0.0
        %1552 = vmatprep.subr.mxu0 0.0
        %1553 = vmatpush1.xpose.msra.mxu0 0.0
        %1554 = vmatprep.subr.mxu0 0.0
        %1555 = vmatpush1.xpose.msra.mxu0 0.0
        %1556 = vmatprep.subr.mxu0 0.0
        %1557 = vmatpush1.xpose.msra.mxu0 0.0
        %1558 = vmatprep.subr.mxu0 0.0
        %1559 = vmatpush1.xpose.msra.mxu0 0.0
        %1560 = vmatprep.subr.mxu0 0.0
        %1561 = vmatpush1.xpose.msra.mxu0 0.0
        %1562 = vmatprep.subr.mxu0 0.0
        %1563 = vmatpush1.xpose.msra.mxu0 0.0
        %1564 = vmatprep.subr.mxu0 0.0
        %1565 = vmatpush1.xpose.msra.mxu0 0.0
        %1566 = vmatprep.subr.mxu0 0.0
        %1567 = vmatpush1.xpose.msra.mxu0 0.0
        %1568 = vmatprep.subr.mxu0 0.0
        %1569 = vmatpush1.xpose.msra.mxu0 0.0
        %1570 = vmatprep.subr.mxu0 0.0
        %1571 = vmatpush1.xpose.msra.mxu0 0.0
        %1572 = vmatprep.subr.mxu0 0.0
        %1573 = vmatpush1.xpose.msra.mxu0 0.0
        %1574 = vmatprep.subr.mxu0 0.0
        %1575 = vmatpush1.xpose.msra.mxu0 0.0
        %1576 = vmatprep.subr.mxu0 0.0
        %1577 = vmatpush1.xpose.msra.mxu0 0.0
        %1578 = vmatprep.subr.mxu0 0.0
        %1579 = vmatpush1.xpose.msra.mxu0 0.0
        %1580 = vmatprep.subr.mxu0 0.0
        %1581 = vmatpush1.xpose.msra.mxu0 0.0
        %1582 = vmatprep.subr.mxu0 0.0
        %1583 = vmatpush1.xpose.msra.mxu0 0.0
        %1584 = vmatprep.subr.mxu0 0.0
        %1585 = vmatpush1.xpose.msra.mxu0 0.0
        %1586 = vmatprep.subr.mxu0 0.0
        %1587 = vmatpush1.xpose.msra.mxu0 0.0
        %1588 = vmatprep.subr.mxu0 0.0
        %1589 = vmatpush1.xpose.msra.mxu0 0.0
        %1590 = vmatprep.subr.mxu0 0.0
        %1591 = vmatpush1.xpose.msra.mxu0 0.0
        %1592 = vmatprep.subr.mxu0 0.0
        %1593 = vmatpush1.xpose.msra.mxu0 0.0
        %1594 = vmatprep.subr.mxu0 0.0
        %1595 = vmatpush1.xpose.msra.mxu0 0.0
        %1596 = vmatprep.subr.mxu0 0.0
        %1597 = vmatpush1.xpose.msra.mxu0 0.0
        %1598 = vmatprep.subr.mxu0 0.0
        %1599 = vmatpush1.xpose.msra.mxu0 0.0
        %1600 = vmatprep.subr.mxu0 0.0
        %1601 = vmatpush1.xpose.msra.mxu0 0.0
        %1602 = vmatprep.subr.mxu0 0.0
        %1603 = vmatpush1.xpose.msra.mxu0 0.0
        %1604 = vmatprep.mubr.f32.mxu0 0.0
        %v1605 = vand.u32 %v1233, 4294901760
        %1606 = vmatmul.mubr.f32.gmra.mrb[0].mxu0 %v1605
        %v1607 = vpop.f32.mrb[0].mxu0
        %v1608 = vadd.f32 %v1534, %v1607
        %v1609 = vpop.f32.mrb[0].mxu0
        %1610 = vdwg.mxu0
        %1611 = vmatprep.subr.mxu0 0.0
        %v1612 = vand.u32 %v1235, 4294901760
        %1613 = vmatpush1.xpose.msra.mxu0 %v1612
        %1614 = vmatprep.subr.mxu0 0.0
        %1615 = vmatpush1.xpose.msra.mxu0 0.0
        %1616 = vmatprep.subr.mxu0 0.0
        %1617 = vmatpush1.xpose.msra.mxu0 0.0
        %1618 = vmatprep.subr.mxu0 0.0
        %1619 = vmatpush1.xpose.msra.mxu0 0.0
        %1620 = vmatprep.subr.mxu0 0.0
        %1621 = vmatpush1.xpose.msra.mxu0 0.0
        %1622 = vmatprep.subr.mxu0 0.0
        %1623 = vmatpush1.xpose.msra.mxu0 0.0
        %1624 = vmatprep.subr.mxu0 0.0
        %1625 = vmatpush1.xpose.msra.mxu0 0.0
        %1626 = vmatprep.subr.mxu0 0.0
        %1627 = vmatpush1.xpose.msra.mxu0 0.0
        %1628 = vmatprep.subr.mxu0 0.0
        %1629 = vmatpush1.xpose.msra.mxu0 0.0
        %1630 = vmatprep.subr.mxu0 0.0
        %1631 = vmatpush1.xpose.msra.mxu0 0.0
        %1632 = vmatprep.subr.mxu0 0.0
        %1633 = vmatpush1.xpose.msra.mxu0 0.0
        %1634 = vmatprep.subr.mxu0 0.0
        %1635 = vmatpush1.xpose.msra.mxu0 0.0
        %1636 = vmatprep.subr.mxu0 0.0
        %1637 = vmatpush1.xpose.msra.mxu0 0.0
        %1638 = vmatprep.subr.mxu0 0.0
        %1639 = vmatpush1.xpose.msra.mxu0 0.0
        %1640 = vmatprep.subr.mxu0 0.0
        %1641 = vmatpush1.xpose.msra.mxu0 0.0
        %1642 = vmatprep.subr.mxu0 0.0
        %1643 = vmatpush1.xpose.msra.mxu0 0.0
        %1644 = vmatprep.subr.mxu0 0.0
        %1645 = vmatpush1.xpose.msra.mxu0 0.0
        %1646 = vmatprep.subr.mxu0 0.0
        %1647 = vmatpush1.xpose.msra.mxu0 0.0
        %1648 = vmatprep.subr.mxu0 0.0
        %1649 = vmatpush1.xpose.msra.mxu0 0.0
        %1650 = vmatprep.subr.mxu0 0.0
        %1651 = vmatpush1.xpose.msra.mxu0 0.0
        %1652 = vmatprep.subr.mxu0 0.0
        %1653 = vmatpush1.xpose.msra.mxu0 0.0
        %1654 = vmatprep.subr.mxu0 0.0
        %1655 = vmatpush1.xpose.msra.mxu0 0.0
        %1656 = vmatprep.subr.mxu0 0.0
        %1657 = vmatpush1.xpose.msra.mxu0 0.0
        %1658 = vmatprep.subr.mxu0 0.0
        %1659 = vmatpush1.xpose.msra.mxu0 0.0
        %1660 = vmatprep.subr.mxu0 0.0
        %1661 = vmatpush1.xpose.msra.mxu0 0.0
        %1662 = vmatprep.subr.mxu0 0.0
        %1663 = vmatpush1.xpose.msra.mxu0 0.0
        %1664 = vmatprep.subr.mxu0 0.0
        %1665 = vmatpush1.xpose.msra.mxu0 0.0
        %1666 = vmatprep.subr.mxu0 0.0
        %1667 = vmatpush1.xpose.msra.mxu0 0.0
        %1668 = vmatprep.subr.mxu0 0.0
        %1669 = vmatpush1.xpose.msra.mxu0 0.0
        %1670 = vmatprep.subr.mxu0 0.0
        %1671 = vmatpush1.xpose.msra.mxu0 0.0
        %1672 = vmatprep.subr.mxu0 0.0
        %1673 = vmatpush1.xpose.msra.mxu0 0.0
        %1674 = vmatprep.subr.mxu0 0.0
        %1675 = vmatpush1.xpose.msra.mxu0 0.0
        %1676 = vmatprep.mubr.f32.mxu0 0.0
        %v1677 = vand.u32 %v1233, 4294901760
        %1678 = vmatmul.mubr.f32.gmra.mrb[0].mxu0 %v1677
        %v1679 = vpop.f32.mrb[0].mxu0
        %v1680 = vadd.f32 %v1608, %v1679
        %v1681 = vpop.f32.mrb[0].mxu0
        %1682 = vdwg.mxu0
        %1683 = vrot.lane.b32.xlu0 %v767, 96
        %v1684 = vpop.permute.xlu0 %1683
        %v1685 = vsel %vm780, %v767, 0
        %v1687 = vsel %vm780, %v1684, 0
        %1689 = vmatprep.subr.mxu0 0.0
        %v1690 = vand.u32 %v1687, 4294901760
        %1691 = vmatpush1.xpose.msra.mxu0 %v1690
        %1692 = vmatprep.subr.mxu0 0.0
        %1693 = vmatpush1.xpose.msra.mxu0 0.0
        %1694 = vmatprep.subr.mxu0 0.0
        %1695 = vmatpush1.xpose.msra.mxu0 0.0
        %1696 = vmatprep.subr.mxu0 0.0
        %1697 = vmatpush1.xpose.msra.mxu0 0.0
        %1698 = vmatprep.subr.mxu0 0.0
        %1699 = vmatpush1.xpose.msra.mxu0 0.0
        %1700 = vmatprep.subr.mxu0 0.0
        %1701 = vmatpush1.xpose.msra.mxu0 0.0
        %1702 = vmatprep.subr.mxu0 0.0
        %1703 = vmatpush1.xpose.msra.mxu0 0.0
        %1704 = vmatprep.subr.mxu0 0.0
        %1705 = vmatpush1.xpose.msra.mxu0 0.0
        %1706 = vmatprep.subr.mxu0 0.0
        %1707 = vmatpush1.xpose.msra.mxu0 0.0
        %1708 = vmatprep.subr.mxu0 0.0
        %1709 = vmatpush1.xpose.msra.mxu0 0.0
        %1710 = vmatprep.subr.mxu0 0.0
        %1711 = vmatpush1.xpose.msra.mxu0 0.0
        %1712 = vmatprep.subr.mxu0 0.0
        %1713 = vmatpush1.xpose.msra.mxu0 0.0
        %1714 = vmatprep.subr.mxu0 0.0
        %1715 = vmatpush1.xpose.msra.mxu0 0.0
        %1716 = vmatprep.subr.mxu0 0.0
        %1717 = vmatpush1.xpose.msra.mxu0 0.0
        %1718 = vmatprep.subr.mxu0 0.0
        %1719 = vmatpush1.xpose.msra.mxu0 0.0
        %1720 = vmatprep.subr.mxu0 0.0
        %1721 = vmatpush1.xpose.msra.mxu0 0.0
        %1722 = vmatprep.subr.mxu0 0.0
        %1723 = vmatpush1.xpose.msra.mxu0 0.0
        %1724 = vmatprep.subr.mxu0 0.0
        %1725 = vmatpush1.xpose.msra.mxu0 0.0
        %1726 = vmatprep.subr.mxu0 0.0
        %1727 = vmatpush1.xpose.msra.mxu0 0.0
        %1728 = vmatprep.subr.mxu0 0.0
        %1729 = vmatpush1.xpose.msra.mxu0 0.0
        %1730 = vmatprep.subr.mxu0 0.0
        %1731 = vmatpush1.xpose.msra.mxu0 0.0
        %1732 = vmatprep.subr.mxu0 0.0
        %1733 = vmatpush1.xpose.msra.mxu0 0.0
        %1734 = vmatprep.subr.mxu0 0.0
        %1735 = vmatpush1.xpose.msra.mxu0 0.0
        %1736 = vmatprep.subr.mxu0 0.0
        %1737 = vmatpush1.xpose.msra.mxu0 0.0
        %1738 = vmatprep.subr.mxu0 0.0
        %1739 = vmatpush1.xpose.msra.mxu0 0.0
        %1740 = vmatprep.subr.mxu0 0.0
        %1741 = vmatpush1.xpose.msra.mxu0 0.0
        %1742 = vmatprep.subr.mxu0 0.0
        %1743 = vmatpush1.xpose.msra.mxu0 0.0
        %1744 = vmatprep.subr.mxu0 0.0
        %1745 = vmatpush1.xpose.msra.mxu0 0.0
        %1746 = vmatprep.subr.mxu0 0.0
        %1747 = vmatpush1.xpose.msra.mxu0 0.0
        %1748 = vmatprep.subr.mxu0 0.0
        %1749 = vmatpush1.xpose.msra.mxu0 0.0
        %1750 = vmatprep.subr.mxu0 0.0
        %1751 = vmatpush1.xpose.msra.mxu0 0.0
        %1752 = vmatprep.subr.mxu0 0.0
        %1753 = vmatpush1.xpose.msra.mxu0 0.0
        %1754 = vmatprep.mubr.f32.mxu0 0.0
        %v1755 = vand.u32 %v1685, 4294901760
        %v1756 = vsub.f32 %v1685, %v1755
        %v1757 = vand.u32 %v1756, 4294901760
        %v1758 = vsub.f32 %v1756, %v1757
        %v1759 = vand.u32 %v1758, 4294901760
        %1760 = vmatmul.mubr.f32.gmra.mrb[0].mxu0 %v1759
        %v1761 = vpop.f32.mrb[0].mxu0
        %v1762 = vadd.f32 0.0, %v1761
        %v1763 = vpop.f32.mrb[0].mxu0
        %1764 = vdwg.mxu0
        %1765 = vmatprep.subr.mxu0 0.0
        %v1766 = vand.u32 %v1687, 4294901760
        %v1767 = vsub.f32 %v1687, %v1766
        %v1768 = vand.u32 %v1767, 4294901760
        %v1769 = vsub.f32 %v1767, %v1768
        %v1770 = vand.u32 %v1769, 4294901760
        %1771 = vmatpush1.xpose.msra.mxu0 %v1770
        %1772 = vmatprep.subr.mxu0 0.0
        %1773 = vmatpush1.xpose.msra.mxu0 0.0
        %1774 = vmatprep.subr.mxu0 0.0
        %1775 = vmatpush1.xpose.msra.mxu0 0.0
        %1776 = vmatprep.subr.mxu0 0.0
        %1777 = vmatpush1.xpose.msra.mxu0 0.0
        %1778 = vmatprep.subr.mxu0 0.0
        %1779 = vmatpush1.xpose.msra.mxu0 0.0
        %1780 = vmatprep.subr.mxu0 0.0
        %1781 = vmatpush1.xpose.msra.mxu0 0.0
        %1782 = vmatprep.subr.mxu0 0.0
        %1783 = vmatpush1.xpose.msra.mxu0 0.0
        %1784 = vmatprep.subr.mxu0 0.0
        %1785 = vmatpush1.xpose.msra.mxu0 0.0
        %1786 = vmatprep.subr.mxu0 0.0
        %1787 = vmatpush1.xpose.msra.mxu0 0.0
        %1788 = vmatprep.subr.mxu0 0.0
        %1789 = vmatpush1.xpose.msra.mxu0 0.0
        %1790 = vmatprep.subr.mxu0 0.0
        %1791 = vmatpush1.xpose.msra.mxu0 0.0
        %1792 = vmatprep.subr.mxu0 0.0
        %1793 = vmatpush1.xpose.msra.mxu0 0.0
        %1794 = vmatprep.subr.mxu0 0.0
        %1795 = vmatpush1.xpose.msra.mxu0 0.0
        %1796 = vmatprep.subr.mxu0 0.0
        %1797 = vmatpush1.xpose.msra.mxu0 0.0
        %1798 = vmatprep.subr.mxu0 0.0
        %1799 = vmatpush1.xpose.msra.mxu0 0.0
        %1800 = vmatprep.subr.mxu0 0.0
        %1801 = vmatpush1.xpose.msra.mxu0 0.0
        %1802 = vmatprep.subr.mxu0 0.0
        %1803 = vmatpush1.xpose.msra.mxu0 0.0
        %1804 = vmatprep.subr.mxu0 0.0
        %1805 = vmatpush1.xpose.msra.mxu0 0.0
        %1806 = vmatprep.subr.mxu0 0.0
        %1807 = vmatpush1.xpose.msra.mxu0 0.0
        %1808 = vmatprep.subr.mxu0 0.0
        %1809 = vmatpush1.xpose.msra.mxu0 0.0
        %1810 = vmatprep.subr.mxu0 0.0
        %1811 = vmatpush1.xpose.msra.mxu0 0.0
        %1812 = vmatprep.subr.mxu0 0.0
        %1813 = vmatpush1.xpose.msra.mxu0 0.0
        %1814 = vmatprep.subr.mxu0 0.0
        %1815 = vmatpush1.xpose.msra.mxu0 0.0
        %1816 = vmatprep.subr.mxu0 0.0
        %1817 = vmatpush1.xpose.msra.mxu0 0.0
        %1818 = vmatprep.subr.mxu0 0.0
        %1819 = vmatpush1.xpose.msra.mxu0 0.0
        %1820 = vmatprep.subr.mxu0 0.0
        %1821 = vmatpush1.xpose.msra.mxu0 0.0
        %1822 = vmatprep.subr.mxu0 0.0
        %1823 = vmatpush1.xpose.msra.mxu0 0.0
        %1824 = vmatprep.subr.mxu0 0.0
        %1825 = vmatpush1.xpose.msra.mxu0 0.0
        %1826 = vmatprep.subr.mxu0 0.0
        %1827 = vmatpush1.xpose.msra.mxu0 0.0
        %1828 = vmatprep.subr.mxu0 0.0
        %1829 = vmatpush1.xpose.msra.mxu0 0.0
        %1830 = vmatprep.subr.mxu0 0.0
        %1831 = vmatpush1.xpose.msra.mxu0 0.0
        %1832 = vmatprep.subr.mxu0 0.0
        %1833 = vmatpush1.xpose.msra.mxu0 0.0
        %1834 = vmatprep.mubr.f32.mxu0 0.0
        %v1835 = vand.u32 %v1685, 4294901760
        %1836 = vmatmul.mubr.f32.gmra.mrb[0].mxu0 %v1835
        %v1837 = vpop.f32.mrb[0].mxu0
        %v1838 = vadd.f32 %v1762, %v1837
        %v1839 = vpop.f32.mrb[0].mxu0
        %1840 = vdwg.mxu0
        %1841 = vmatprep.subr.mxu0 0.0
        %v1842 = vand.u32 %v1687, 4294901760
        %v1843 = vsub.f32 %v1687, %v1842
        %1844 = vmatpush1.xpose.msra.mxu0 %v1843
        %1845 = vmatprep.subr.mxu0 0.0
        %1846 = vmatpush1.xpose.msra.mxu0 0.0
        %1847 = vmatprep.subr.mxu0 0.0
        %1848 = vmatpush1.xpose.msra.mxu0 0.0
        %1849 = vmatprep.subr.mxu0 0.0
        %1850 = vmatpush1.xpose.msra.mxu0 0.0
        %1851 = vmatprep.subr.mxu0 0.0
        %1852 = vmatpush1.xpose.msra.mxu0 0.0
        %1853 = vmatprep.subr.mxu0 0.0
        %1854 = vmatpush1.xpose.msra.mxu0 0.0
        %1855 = vmatprep.subr.mxu0 0.0
        %1856 = vmatpush1.xpose.msra.mxu0 0.0
        %1857 = vmatprep.subr.mxu0 0.0
        %1858 = vmatpush1.xpose.msra.mxu0 0.0
        %1859 = vmatprep.subr.mxu0 0.0
        %1860 = vmatpush1.xpose.msra.mxu0 0.0
        %1861 = vmatprep.subr.mxu0 0.0
        %1862 = vmatpush1.xpose.msra.mxu0 0.0
        %1863 = vmatprep.subr.mxu0 0.0
        %1864 = vmatpush1.xpose.msra.mxu0 0.0
        %1865 = vmatprep.subr.mxu0 0.0
        %1866 = vmatpush1.xpose.msra.mxu0 0.0
        %1867 = vmatprep.subr.mxu0 0.0
        %1868 = vmatpush1.xpose.msra.mxu0 0.0
        %1869 = vmatprep.subr.mxu0 0.0
        %1870 = vmatpush1.xpose.msra.mxu0 0.0
        %1871 = vmatprep.subr.mxu0 0.0
        %1872 = vmatpush1.xpose.msra.mxu0 0.0
        %1873 = vmatprep.subr.mxu0 0.0
        %1874 = vmatpush1.xpose.msra.mxu0 0.0
        %1875 = vmatprep.subr.mxu0 0.0
        %1876 = vmatpush1.xpose.msra.mxu0 0.0
        %1877 = vmatprep.subr.mxu0 0.0
        %1878 = vmatpush1.xpose.msra.mxu0 0.0
        %1879 = vmatprep.subr.mxu0 0.0
        %1880 = vmatpush1.xpose.msra.mxu0 0.0
        %1881 = vmatprep.subr.mxu0 0.0
        %1882 = vmatpush1.xpose.msra.mxu0 0.0
        %1883 = vmatprep.subr.mxu0 0.0
        %1884 = vmatpush1.xpose.msra.mxu0 0.0
        %1885 = vmatprep.subr.mxu0 0.0
        %1886 = vmatpush1.xpose.msra.mxu0 0.0
        %1887 = vmatprep.subr.mxu0 0.0
        %1888 = vmatpush1.xpose.msra.mxu0 0.0
        %1889 = vmatprep.subr.mxu0 0.0
        %1890 = vmatpush1.xpose.msra.mxu0 0.0
        %1891 = vmatprep.subr.mxu0 0.0
        %1892 = vmatpush1.xpose.msra.mxu0 0.0
        %1893 = vmatprep.subr.mxu0 0.0
        %1894 = vmatpush1.xpose.msra.mxu0 0.0
        %1895 = vmatprep.subr.mxu0 0.0
        %1896 = vmatpush1.xpose.msra.mxu0 0.0
        %1897 = vmatprep.subr.mxu0 0.0
        %1898 = vmatpush1.xpose.msra.mxu0 0.0
        %1899 = vmatprep.subr.mxu0 0.0
        %1900 = vmatpush1.xpose.msra.mxu0 0.0
        %1901 = vmatprep.subr.mxu0 0.0
        %1902 = vmatpush1.xpose.msra.mxu0 0.0
        %1903 = vmatprep.subr.mxu0 0.0
        %1904 = vmatpush1.xpose.msra.mxu0 0.0
        %1905 = vmatprep.subr.mxu0 0.0
        %1906 = vmatpush1.xpose.msra.mxu0 0.0
        %1907 = vmatprep.mubr.f32.mxu0 0.0
        %v1908 = vand.u32 %v1685, 4294901760
        %v1909 = vsub.f32 %v1685, %v1908
        %1910 = vmatmul.mubr.f32.gmra.mrb[0].mxu0 %v1909
        %v1911 = vpop.f32.mrb[0].mxu0
        %v1912 = vadd.f32 %v1838, %v1911
        %v1913 = vpop.f32.mrb[0].mxu0
        %1914 = vdwg.mxu0
        %1915 = vmatprep.subr.mxu0 0.0
        %v1916 = vand.u32 %v1687, 4294901760
        %1917 = vmatpush1.xpose.msra.mxu0 %v1916
        %1918 = vmatprep.subr.mxu0 0.0
        %1919 = vmatpush1.xpose.msra.mxu0 0.0
        %1920 = vmatprep.subr.mxu0 0.0
        %1921 = vmatpush1.xpose.msra.mxu0 0.0
        %1922 = vmatprep.subr.mxu0 0.0
        %1923 = vmatpush1.xpose.msra.mxu0 0.0
        %1924 = vmatprep.subr.mxu0 0.0
        %1925 = vmatpush1.xpose.msra.mxu0 0.0
        %1926 = vmatprep.subr.mxu0 0.0
        %1927 = vmatpush1.xpose.msra.mxu0 0.0
        %1928 = vmatprep.subr.mxu0 0.0
        %1929 = vmatpush1.xpose.msra.mxu0 0.0
        %1930 = vmatprep.subr.mxu0 0.0
        %1931 = vmatpush1.xpose.msra.mxu0 0.0
        %1932 = vmatprep.subr.mxu0 0.0
        %1933 = vmatpush1.xpose.msra.mxu0 0.0
        %1934 = vmatprep.subr.mxu0 0.0
        %1935 = vmatpush1.xpose.msra.mxu0 0.0
        %1936 = vmatprep.subr.mxu0 0.0
        %1937 = vmatpush1.xpose.msra.mxu0 0.0
        %1938 = vmatprep.subr.mxu0 0.0
        %1939 = vmatpush1.xpose.msra.mxu0 0.0
        %1940 = vmatprep.subr.mxu0 0.0
        %1941 = vmatpush1.xpose.msra.mxu0 0.0
        %1942 = vmatprep.subr.mxu0 0.0
        %1943 = vmatpush1.xpose.msra.mxu0 0.0
        %1944 = vmatprep.subr.mxu0 0.0
        %1945 = vmatpush1.xpose.msra.mxu0 0.0
        %1946 = vmatprep.subr.mxu0 0.0
        %1947 = vmatpush1.xpose.msra.mxu0 0.0
        %1948 = vmatprep.subr.mxu0 0.0
        %1949 = vmatpush1.xpose.msra.mxu0 0.0
        %1950 = vmatprep.subr.mxu0 0.0
        %1951 = vmatpush1.xpose.msra.mxu0 0.0
        %1952 = vmatprep.subr.mxu0 0.0
        %1953 = vmatpush1.xpose.msra.mxu0 0.0
        %1954 = vmatprep.subr.mxu0 0.0
        %1955 = vmatpush1.xpose.msra.mxu0 0.0
        %1956 = vmatprep.subr.mxu0 0.0
        %1957 = vmatpush1.xpose.msra.mxu0 0.0
        %1958 = vmatprep.subr.mxu0 0.0
        %1959 = vmatpush1.xpose.msra.mxu0 0.0
        %1960 = vmatprep.subr.mxu0 0.0
        %1961 = vmatpush1.xpose.msra.mxu0 0.0
        %1962 = vmatprep.subr.mxu0 0.0
        %1963 = vmatpush1.xpose.msra.mxu0 0.0
        %1964 = vmatprep.subr.mxu0 0.0
        %1965 = vmatpush1.xpose.msra.mxu0 0.0
        %1966 = vmatprep.subr.mxu0 0.0
        %1967 = vmatpush1.xpose.msra.mxu0 0.0
        %1968 = vmatprep.subr.mxu0 0.0
        %1969 = vmatpush1.xpose.msra.mxu0 0.0
        %1970 = vmatprep.subr.mxu0 0.0
        %1971 = vmatpush1.xpose.msra.mxu0 0.0
        %1972 = vmatprep.subr.mxu0 0.0
        %1973 = vmatpush1.xpose.msra.mxu0 0.0
        %1974 = vmatprep.subr.mxu0 0.0
        %1975 = vmatpush1.xpose.msra.mxu0 0.0
        %1976 = vmatprep.subr.mxu0 0.0
        %1977 = vmatpush1.xpose.msra.mxu0 0.0
        %1978 = vmatprep.subr.mxu0 0.0
        %1979 = vmatpush1.xpose.msra.mxu0 0.0
        %1980 = vmatprep.mubr.f32.mxu0 0.0
        %v1981 = vand.u32 %v1685, 4294901760
        %v1982 = vsub.f32 %v1685, %v1981
        %v1983 = vand.u32 %v1982, 4294901760
        %1984 = vmatmul.mubr.f32.gmra.mrb[0].mxu0 %v1983
        %v1985 = vpop.f32.mrb[0].mxu0
        %v1986 = vadd.f32 %v1912, %v1985
        %v1987 = vpop.f32.mrb[0].mxu0
        %1988 = vdwg.mxu0
        %1989 = vmatprep.subr.mxu0 0.0
        %v1990 = vand.u32 %v1687, 4294901760
        %v1991 = vsub.f32 %v1687, %v1990
        %v1992 = vand.u32 %v1991, 4294901760
        %1993 = vmatpush1.xpose.msra.mxu0 %v1992
        %1994 = vmatprep.subr.mxu0 0.0
        %1995 = vmatpush1.xpose.msra.mxu0 0.0
        %1996 = vmatprep.subr.mxu0 0.0
        %1997 = vmatpush1.xpose.msra.mxu0 0.0
        %1998 = vmatprep.subr.mxu0 0.0
        %1999 = vmatpush1.xpose.msra.mxu0 0.0
        %2000 = vmatprep.subr.mxu0 0.0
        %2001 = vmatpush1.xpose.msra.mxu0 0.0
        %2002 = vmatprep.subr.mxu0 0.0
        %2003 = vmatpush1.xpose.msra.mxu0 0.0
        %2004 = vmatprep.subr.mxu0 0.0
        %2005 = vmatpush1.xpose.msra.mxu0 0.0
        %2006 = vmatprep.subr.mxu0 0.0
        %2007 = vmatpush1.xpose.msra.mxu0 0.0
        %2008 = vmatprep.subr.mxu0 0.0
        %2009 = vmatpush1.xpose.msra.mxu0 0.0
        %2010 = vmatprep.subr.mxu0 0.0
        %2011 = vmatpush1.xpose.msra.mxu0 0.0
        %2012 = vmatprep.subr.mxu0 0.0
        %2013 = vmatpush1.xpose.msra.mxu0 0.0
        %2014 = vmatprep.subr.mxu0 0.0
        %2015 = vmatpush1.xpose.msra.mxu0 0.0
        %2016 = vmatprep.subr.mxu0 0.0
        %2017 = vmatpush1.xpose.msra.mxu0 0.0
        %2018 = vmatprep.subr.mxu0 0.0
        %2019 = vmatpush1.xpose.msra.mxu0 0.0
        %2020 = vmatprep.subr.mxu0 0.0
        %2021 = vmatpush1.xpose.msra.mxu0 0.0
        %2022 = vmatprep.subr.mxu0 0.0
        %2023 = vmatpush1.xpose.msra.mxu0 0.0
        %2024 = vmatprep.subr.mxu0 0.0
        %2025 = vmatpush1.xpose.msra.mxu0 0.0
        %2026 = vmatprep.subr.mxu0 0.0
        %2027 = vmatpush1.xpose.msra.mxu0 0.0
        %2028 = vmatprep.subr.mxu0 0.0
        %2029 = vmatpush1.xpose.msra.mxu0 0.0
        %2030 = vmatprep.subr.mxu0 0.0
        %2031 = vmatpush1.xpose.msra.mxu0 0.0
        %2032 = vmatprep.subr.mxu0 0.0
        %2033 = vmatpush1.xpose.msra.mxu0 0.0
        %2034 = vmatprep.subr.mxu0 0.0
        %2035 = vmatpush1.xpose.msra.mxu0 0.0
        %2036 = vmatprep.subr.mxu0 0.0
        %2037 = vmatpush1.xpose.msra.mxu0 0.0
        %2038 = vmatprep.subr.mxu0 0.0
        %2039 = vmatpush1.xpose.msra.mxu0 0.0
        %2040 = vmatprep.subr.mxu0 0.0
        %2041 = vmatpush1.xpose.msra.mxu0 0.0
        %2042 = vmatprep.subr.mxu0 0.0
        %2043 = vmatpush1.xpose.msra.mxu0 0.0
        %2044 = vmatprep.subr.mxu0 0.0
        %2045 = vmatpush1.xpose.msra.mxu0 0.0
        %2046 = vmatprep.subr.mxu0 0.0
        %2047 = vmatpush1.xpose.msra.mxu0 0.0
        %2048 = vmatprep.subr.mxu0 0.0
        %2049 = vmatpush1.xpose.msra.mxu0 0.0
        %2050 = vmatprep.subr.mxu0 0.0
        %2051 = vmatpush1.xpose.msra.mxu0 0.0
        %2052 = vmatprep.subr.mxu0 0.0
        %2053 = vmatpush1.xpose.msra.mxu0 0.0
        %2054 = vmatprep.subr.mxu0 0.0
        %2055 = vmatpush1.xpose.msra.mxu0 0.0
        %2056 = vmatprep.mubr.f32.mxu0 0.0
        %v2057 = vand.u32 %v1685, 4294901760
        %2058 = vmatmul.mubr.f32.gmra.mrb[0].mxu0 %v2057
        %v2059 = vpop.f32.mrb[0].mxu0
        %v2060 = vadd.f32 %v1986, %v2059
        %v2061 = vpop.f32.mrb[0].mxu0
        %2062 = vdwg.mxu0
        %2063 = vmatprep.subr.mxu0 0.0
        %v2064 = vand.u32 %v1687, 4294901760
        %2065 = vmatpush1.xpose.msra.mxu0 %v2064
        %2066 = vmatprep.subr.mxu0 0.0
        %2067 = vmatpush1.xpose.msra.mxu0 0.0
        %2068 = vmatprep.subr.mxu0 0.0
        %2069 = vmatpush1.xpose.msra.mxu0 0.0
        %2070 = vmatprep.subr.mxu0 0.0
        %2071 = vmatpush1.xpose.msra.mxu0 0.0
        %2072 = vmatprep.subr.mxu0 0.0
        %2073 = vmatpush1.xpose.msra.mxu0 0.0
        %2074 = vmatprep.subr.mxu0 0.0
        %2075 = vmatpush1.xpose.msra.mxu0 0.0
        %2076 = vmatprep.subr.mxu0 0.0
        %2077 = vmatpush1.xpose.msra.mxu0 0.0
        %2078 = vmatprep.subr.mxu0 0.0
        %2079 = vmatpush1.xpose.msra.mxu0 0.0
        %2080 = vmatprep.subr.mxu0 0.0
        %2081 = vmatpush1.xpose.msra.mxu0 0.0
        %2082 = vmatprep.subr.mxu0 0.0
        %2083 = vmatpush1.xpose.msra.mxu0 0.0
        %2084 = vmatprep.subr.mxu0 0.0
        %2085 = vmatpush1.xpose.msra.mxu0 0.0
        %2086 = vmatprep.subr.mxu0 0.0
        %2087 = vmatpush1.xpose.msra.mxu0 0.0
        %2088 = vmatprep.subr.mxu0 0.0
        %2089 = vmatpush1.xpose.msra.mxu0 0.0
        %2090 = vmatprep.subr.mxu0 0.0
        %2091 = vmatpush1.xpose.msra.mxu0 0.0
        %2092 = vmatprep.subr.mxu0 0.0
        %2093 = vmatpush1.xpose.msra.mxu0 0.0
        %2094 = vmatprep.subr.mxu0 0.0
        %2095 = vmatpush1.xpose.msra.mxu0 0.0
        %2096 = vmatprep.subr.mxu0 0.0
        %2097 = vmatpush1.xpose.msra.mxu0 0.0
        %2098 = vmatprep.subr.mxu0 0.0
        %2099 = vmatpush1.xpose.msra.mxu0 0.0
        %2100 = vmatprep.subr.mxu0 0.0
        %2101 = vmatpush1.xpose.msra.mxu0 0.0
        %2102 = vmatprep.subr.mxu0 0.0
        %2103 = vmatpush1.xpose.msra.mxu0 0.0
        %2104 = vmatprep.subr.mxu0 0.0
        %2105 = vmatpush1.xpose.msra.mxu0 0.0
        %2106 = vmatprep.subr.mxu0 0.0
        %2107 = vmatpush1.xpose.msra.mxu0 0.0
        %2108 = vmatprep.subr.mxu0 0.0
        %2109 = vmatpush1.xpose.msra.mxu0 0.0
        %2110 = vmatprep.subr.mxu0 0.0
        %2111 = vmatpush1.xpose.msra.mxu0 0.0
        %2112 = vmatprep.subr.mxu0 0.0
        %2113 = vmatpush1.xpose.msra.mxu0 0.0
        %2114 = vmatprep.subr.mxu0 0.0
        %2115 = vmatpush1.xpose.msra.mxu0 0.0
        %2116 = vmatprep.subr.mxu0 0.0
        %2117 = vmatpush1.xpose.msra.mxu0 0.0
        %2118 = vmatprep.subr.mxu0 0.0
        %2119 = vmatpush1.xpose.msra.mxu0 0.0
        %2120 = vmatprep.subr.mxu0 0.0
        %2121 = vmatpush1.xpose.msra.mxu0 0.0
        %2122 = vmatprep.subr.mxu0 0.0
        %2123 = vmatpush1.xpose.msra.mxu0 0.0
        %2124 = vmatprep.subr.mxu0 0.0
        %2125 = vmatpush1.xpose.msra.mxu0 0.0
        %2126 = vmatprep.subr.mxu0 0.0
        %2127 = vmatpush1.xpose.msra.mxu0 0.0
        %2128 = vmatprep.mubr.f32.mxu0 0.0
        %v2129 = vand.u32 %v1685, 4294901760
        %2130 = vmatmul.mubr.f32.gmra.mrb[0].mxu0 %v2129
        %v2131 = vpop.f32.mrb[0].mxu0
        %v2132 = vadd.f32 %v2060, %v2131
        %v2133 = vpop.f32.mrb[0].mxu0
        %2134 = vdwg.mxu0
        %2135 = vrot.lane.b32.xlu0 %v769, 96
        %v2136 = vpop.permute.xlu0 %2135
        %v2137 = vsel %vm780, %v769, 0
        %v2139 = vsel %vm780, %v2136, 0
        %2141 = vmatprep.subr.mxu0 0.0
        %v2142 = vand.u32 %v2139, 4294901760
        %2143 = vmatpush1.xpose.msra.mxu0 %v2142
        %2144 = vmatprep.subr.mxu0 0.0
        %2145 = vmatpush1.xpose.msra.mxu0 0.0
        %2146 = vmatprep.subr.mxu0 0.0
        %2147 = vmatpush1.xpose.msra.mxu0 0.0
        %2148 = vmatprep.subr.mxu0 0.0
        %2149 = vmatpush1.xpose.msra.mxu0 0.0
        %2150 = vmatprep.subr.mxu0 0.0
        %2151 = vmatpush1.xpose.msra.mxu0 0.0
        %2152 = vmatprep.subr.mxu0 0.0
        %2153 = vmatpush1.xpose.msra.mxu0 0.0
        %2154 = vmatprep.subr.mxu0 0.0
        %2155 = vmatpush1.xpose.msra.mxu0 0.0
        %2156 = vmatprep.subr.mxu0 0.0
        %2157 = vmatpush1.xpose.msra.mxu0 0.0
        %2158 = vmatprep.subr.mxu0 0.0
        %2159 = vmatpush1.xpose.msra.mxu0 0.0
        %2160 = vmatprep.subr.mxu0 0.0
        %2161 = vmatpush1.xpose.msra.mxu0 0.0
        %2162 = vmatprep.subr.mxu0 0.0
        %2163 = vmatpush1.xpose.msra.mxu0 0.0
        %2164 = vmatprep.subr.mxu0 0.0
        %2165 = vmatpush1.xpose.msra.mxu0 0.0
        %2166 = vmatprep.subr.mxu0 0.0
        %2167 = vmatpush1.xpose.msra.mxu0 0.0
        %2168 = vmatprep.subr.mxu0 0.0
        %2169 = vmatpush1.xpose.msra.mxu0 0.0
        %2170 = vmatprep.subr.mxu0 0.0
        %2171 = vmatpush1.xpose.msra.mxu0 0.0
        %2172 = vmatprep.subr.mxu0 0.0
        %2173 = vmatpush1.xpose.msra.mxu0 0.0
        %2174 = vmatprep.subr.mxu0 0.0
        %2175 = vmatpush1.xpose.msra.mxu0 0.0
        %2176 = vmatprep.subr.mxu0 0.0
        %2177 = vmatpush1.xpose.msra.mxu0 0.0
        %2178 = vmatprep.subr.mxu0 0.0
        %2179 = vmatpush1.xpose.msra.mxu0 0.0
        %2180 = vmatprep.subr.mxu0 0.0
        %2181 = vmatpush1.xpose.msra.mxu0 0.0
        %2182 = vmatprep.subr.mxu0 0.0
        %2183 = vmatpush1.xpose.msra.mxu0 0.0
        %2184 = vmatprep.subr.mxu0 0.0
        %2185 = vmatpush1.xpose.msra.mxu0 0.0
        %2186 = vmatprep.subr.mxu0 0.0
        %2187 = vmatpush1.xpose.msra.mxu0 0.0
        %2188 = vmatprep.subr.mxu0 0.0
        %2189 = vmatpush1.xpose.msra.mxu0 0.0
        %2190 = vmatprep.subr.mxu0 0.0
        %2191 = vmatpush1.xpose.msra.mxu0 0.0
        %2192 = vmatprep.subr.mxu0 0.0
        %2193 = vmatpush1.xpose.msra.mxu0 0.0
        %2194 = vmatprep.subr.mxu0 0.0
        %2195 = vmatpush1.xpose.msra.mxu0 0.0
        %2196 = vmatprep.subr.mxu0 0.0
        %2197 = vmatpush1.xpose.msra.mxu0 0.0
        %2198 = vmatprep.subr.mxu0 0.0
        %2199 = vmatpush1.xpose.msra.mxu0 0.0
        %2200 = vmatprep.subr.mxu0 0.0
        %2201 = vmatpush1.xpose.msra.mxu0 0.0
        %2202 = vmatprep.subr.mxu0 0.0
        %2203 = vmatpush1.xpose.msra.mxu0 0.0
        %2204 = vmatprep.subr.mxu0 0.0
        %2205 = vmatpush1.xpose.msra.mxu0 0.0
        %2206 = vmatprep.mubr.f32.mxu0 0.0
        %v2207 = vand.u32 %v2137, 4294901760
        %v2208 = vsub.f32 %v2137, %v2207
        %v2209 = vand.u32 %v2208, 4294901760
        %v2210 = vsub.f32 %v2208, %v2209
        %v2211 = vand.u32 %v2210, 4294901760
        %2212 = vmatmul.mubr.f32.gmra.mrb[0].mxu0 %v2211
        %v2213 = vpop.f32.mrb[0].mxu0
        %v2214 = vadd.f32 0.0, %v2213
        %v2215 = vpop.f32.mrb[0].mxu0
        %2216 = vdwg.mxu0
        %2217 = vmatprep.subr.mxu0 0.0
        %v2218 = vand.u32 %v2139, 4294901760
        %v2219 = vsub.f32 %v2139, %v2218
        %v2220 = vand.u32 %v2219, 4294901760
        %v2221 = vsub.f32 %v2219, %v2220
        %v2222 = vand.u32 %v2221, 4294901760
        %2223 = vmatpush1.xpose.msra.mxu0 %v2222
        %2224 = vmatprep.subr.mxu0 0.0
        %2225 = vmatpush1.xpose.msra.mxu0 0.0
        %2226 = vmatprep.subr.mxu0 0.0
        %2227 = vmatpush1.xpose.msra.mxu0 0.0
        %2228 = vmatprep.subr.mxu0 0.0
        %2229 = vmatpush1.xpose.msra.mxu0 0.0
        %2230 = vmatprep.subr.mxu0 0.0
        %2231 = vmatpush1.xpose.msra.mxu0 0.0
        %2232 = vmatprep.subr.mxu0 0.0
        %2233 = vmatpush1.xpose.msra.mxu0 0.0
        %2234 = vmatprep.subr.mxu0 0.0
        %2235 = vmatpush1.xpose.msra.mxu0 0.0
        %2236 = vmatprep.subr.mxu0 0.0
        %2237 = vmatpush1.xpose.msra.mxu0 0.0
        %2238 = vmatprep.subr.mxu0 0.0
        %2239 = vmatpush1.xpose.msra.mxu0 0.0
        %2240 = vmatprep.subr.mxu0 0.0
        %2241 = vmatpush1.xpose.msra.mxu0 0.0
        %2242 = vmatprep.subr.mxu0 0.0
        %2243 = vmatpush1.xpose.msra.mxu0 0.0
        %2244 = vmatprep.subr.mxu0 0.0
        %2245 = vmatpush1.xpose.msra.mxu0 0.0
        %2246 = vmatprep.subr.mxu0 0.0
        %2247 = vmatpush1.xpose.msra.mxu0 0.0
        %2248 = vmatprep.subr.mxu0 0.0
        %2249 = vmatpush1.xpose.msra.mxu0 0.0
        %2250 = vmatprep.subr.mxu0 0.0
        %2251 = vmatpush1.xpose.msra.mxu0 0.0
        %2252 = vmatprep.subr.mxu0 0.0
        %2253 = vmatpush1.xpose.msra.mxu0 0.0
        %2254 = vmatprep.subr.mxu0 0.0
        %2255 = vmatpush1.xpose.msra.mxu0 0.0
        %2256 = vmatprep.subr.mxu0 0.0
        %2257 = vmatpush1.xpose.msra.mxu0 0.0
        %2258 = vmatprep.subr.mxu0 0.0
        %2259 = vmatpush1.xpose.msra.mxu0 0.0
        %2260 = vmatprep.subr.mxu0 0.0
        %2261 = vmatpush1.xpose.msra.mxu0 0.0
        %2262 = vmatprep.subr.mxu0 0.0
        %2263 = vmatpush1.xpose.msra.mxu0 0.0
        %2264 = vmatprep.subr.mxu0 0.0
        %2265 = vmatpush1.xpose.msra.mxu0 0.0
        %2266 = vmatprep.subr.mxu0 0.0
        %2267 = vmatpush1.xpose.msra.mxu0 0.0
        %2268 = vmatprep.subr.mxu0 0.0
        %2269 = vmatpush1.xpose.msra.mxu0 0.0
        %2270 = vmatprep.subr.mxu0 0.0
        %2271 = vmatpush1.xpose.msra.mxu0 0.0
        %2272 = vmatprep.subr.mxu0 0.0
        %2273 = vmatpush1.xpose.msra.mxu0 0.0
        %2274 = vmatprep.subr.mxu0 0.0
        %2275 = vmatpush1.xpose.msra.mxu0 0.0
        %2276 = vmatprep.subr.mxu0 0.0
        %2277 = vmatpush1.xpose.msra.mxu0 0.0
        %2278 = vmatprep.subr.mxu0 0.0
        %2279 = vmatpush1.xpose.msra.mxu0 0.0
        %2280 = vmatprep.subr.mxu0 0.0
        %2281 = vmatpush1.xpose.msra.mxu0 0.0
        %2282 = vmatprep.subr.mxu0 0.0
        %2283 = vmatpush1.xpose.msra.mxu0 0.0
        %2284 = vmatprep.subr.mxu0 0.0
        %2285 = vmatpush1.xpose.msra.mxu0 0.0
        %2286 = vmatprep.mubr.f32.mxu0 0.0
        %v2287 = vand.u32 %v2137, 4294901760
        %2288 = vmatmul.mubr.f32.gmra.mrb[0].mxu0 %v2287
        %v2289 = vpop.f32.mrb[0].mxu0
        %v2290 = vadd.f32 %v2214, %v2289
        %v2291 = vpop.f32.mrb[0].mxu0
        %2292 = vdwg.mxu0
        %2293 = vmatprep.subr.mxu0 0.0
        %v2294 = vand.u32 %v2139, 4294901760
        %v2295 = vsub.f32 %v2139, %v2294
        %2296 = vmatpush1.xpose.msra.mxu0 %v2295
        %2297 = vmatprep.subr.mxu0 0.0
        %2298 = vmatpush1.xpose.msra.mxu0 0.0
        %2299 = vmatprep.subr.mxu0 0.0
        %2300 = vmatpush1.xpose.msra.mxu0 0.0
        %2301 = vmatprep.subr.mxu0 0.0
        %2302 = vmatpush1.xpose.msra.mxu0 0.0
        %2303 = vmatprep.subr.mxu0 0.0
        %2304 = vmatpush1.xpose.msra.mxu0 0.0
        %2305 = vmatprep.subr.mxu0 0.0
        %2306 = vmatpush1.xpose.msra.mxu0 0.0
        %2307 = vmatprep.subr.mxu0 0.0
        %2308 = vmatpush1.xpose.msra.mxu0 0.0
        %2309 = vmatprep.subr.mxu0 0.0
        %2310 = vmatpush1.xpose.msra.mxu0 0.0
        %2311 = vmatprep.subr.mxu0 0.0
        %2312 = vmatpush1.xpose.msra.mxu0 0.0
        %2313 = vmatprep.subr.mxu0 0.0
        %2314 = vmatpush1.xpose.msra.mxu0 0.0
        %2315 = vmatprep.subr.mxu0 0.0
        %2316 = vmatpush1.xpose.msra.mxu0 0.0
        %2317 = vmatprep.subr.mxu0 0.0
        %2318 = vmatpush1.xpose.msra.mxu0 0.0
        %2319 = vmatprep.subr.mxu0 0.0
        %2320 = vmatpush1.xpose.msra.mxu0 0.0
        %2321 = vmatprep.subr.mxu0 0.0
        %2322 = vmatpush1.xpose.msra.mxu0 0.0
        %2323 = vmatprep.subr.mxu0 0.0
        %2324 = vmatpush1.xpose.msra.mxu0 0.0
        %2325 = vmatprep.subr.mxu0 0.0
        %2326 = vmatpush1.xpose.msra.mxu0 0.0
        %2327 = vmatprep.subr.mxu0 0.0
        %2328 = vmatpush1.xpose.msra.mxu0 0.0
        %2329 = vmatprep.subr.mxu0 0.0
        %2330 = vmatpush1.xpose.msra.mxu0 0.0
        %2331 = vmatprep.subr.mxu0 0.0
        %2332 = vmatpush1.xpose.msra.mxu0 0.0
        %2333 = vmatprep.subr.mxu0 0.0
        %2334 = vmatpush1.xpose.msra.mxu0 0.0
        %2335 = vmatprep.subr.mxu0 0.0
        %2336 = vmatpush1.xpose.msra.mxu0 0.0
        %2337 = vmatprep.subr.mxu0 0.0
        %2338 = vmatpush1.xpose.msra.mxu0 0.0
        %2339 = vmatprep.subr.mxu0 0.0
        %2340 = vmatpush1.xpose.msra.mxu0 0.0
        %2341 = vmatprep.subr.mxu0 0.0
        %2342 = vmatpush1.xpose.msra.mxu0 0.0
        %2343 = vmatprep.subr.mxu0 0.0
        %2344 = vmatpush1.xpose.msra.mxu0 0.0
        %2345 = vmatprep.subr.mxu0 0.0
        %2346 = vmatpush1.xpose.msra.mxu0 0.0
        %2347 = vmatprep.subr.mxu0 0.0
        %2348 = vmatpush1.xpose.msra.mxu0 0.0
        %2349 = vmatprep.subr.mxu0 0.0
        %2350 = vmatpush1.xpose.msra.mxu0 0.0
        %2351 = vmatprep.subr.mxu0 0.0
        %2352 = vmatpush1.xpose.msra.mxu0 0.0
        %2353 = vmatprep.subr.mxu0 0.0
        %2354 = vmatpush1.xpose.msra.mxu0 0.0
        %2355 = vmatprep.subr.mxu0 0.0
        %2356 = vmatpush1.xpose.msra.mxu0 0.0
        %2357 = vmatprep.subr.mxu0 0.0
        %2358 = vmatpush1.xpose.msra.mxu0 0.0
        %2359 = vmatprep.mubr.f32.mxu0 0.0
        %v2360 = vand.u32 %v2137, 4294901760
        %v2361 = vsub.f32 %v2137, %v2360
        %2362 = vmatmul.mubr.f32.gmra.mrb[0].mxu0 %v2361
        %v2363 = vpop.f32.mrb[0].mxu0
        %v2364 = vadd.f32 %v2290, %v2363
        %v2365 = vpop.f32.mrb[0].mxu0
        %2366 = vdwg.mxu0
        %2367 = vmatprep.subr.mxu0 0.0
        %v2368 = vand.u32 %v2139, 4294901760
        %2369 = vmatpush1.xpose.msra.mxu0 %v2368
        %2370 = vmatprep.subr.mxu0 0.0
        %2371 = vmatpush1.xpose.msra.mxu0 0.0
        %2372 = vmatprep.subr.mxu0 0.0
        %2373 = vmatpush1.xpose.msra.mxu0 0.0
        %2374 = vmatprep.subr.mxu0 0.0
        %2375 = vmatpush1.xpose.msra.mxu0 0.0
        %2376 = vmatprep.subr.mxu0 0.0
        %2377 = vmatpush1.xpose.msra.mxu0 0.0
        %2378 = vmatprep.subr.mxu0 0.0
        %2379 = vmatpush1.xpose.msra.mxu0 0.0
        %2380 = vmatprep.subr.mxu0 0.0
        %2381 = vmatpush1.xpose.msra.mxu0 0.0
        %2382 = vmatprep.subr.mxu0 0.0
        %2383 = vmatpush1.xpose.msra.mxu0 0.0
        %2384 = vmatprep.subr.mxu0 0.0
        %2385 = vmatpush1.xpose.msra.mxu0 0.0
        %2386 = vmatprep.subr.mxu0 0.0
        %2387 = vmatpush1.xpose.msra.mxu0 0.0
        %2388 = vmatprep.subr.mxu0 0.0
        %2389 = vmatpush1.xpose.msra.mxu0 0.0
        %2390 = vmatprep.subr.mxu0 0.0
        %2391 = vmatpush1.xpose.msra.mxu0 0.0
        %2392 = vmatprep.subr.mxu0 0.0
        %2393 = vmatpush1.xpose.msra.mxu0 0.0
        %2394 = vmatprep.subr.mxu0 0.0
        %2395 = vmatpush1.xpose.msra.mxu0 0.0
        %2396 = vmatprep.subr.mxu0 0.0
        %2397 = vmatpush1.xpose.msra.mxu0 0.0
        %2398 = vmatprep.subr.mxu0 0.0
        %2399 = vmatpush1.xpose.msra.mxu0 0.0
        %2400 = vmatprep.subr.mxu0 0.0
        %2401 = vmatpush1.xpose.msra.mxu0 0.0
        %2402 = vmatprep.subr.mxu0 0.0
        %2403 = vmatpush1.xpose.msra.mxu0 0.0
        %2404 = vmatprep.subr.mxu0 0.0
        %2405 = vmatpush1.xpose.msra.mxu0 0.0
        %2406 = vmatprep.subr.mxu0 0.0
        %2407 = vmatpush1.xpose.msra.mxu0 0.0
        %2408 = vmatprep.subr.mxu0 0.0
        %2409 = vmatpush1.xpose.msra.mxu0 0.0
        %2410 = vmatprep.subr.mxu0 0.0
        %2411 = vmatpush1.xpose.msra.mxu0 0.0
        %2412 = vmatprep.subr.mxu0 0.0
        %2413 = vmatpush1.xpose.msra.mxu0 0.0
        %2414 = vmatprep.subr.mxu0 0.0
        %2415 = vmatpush1.xpose.msra.mxu0 0.0
        %2416 = vmatprep.subr.mxu0 0.0
        %2417 = vmatpush1.xpose.msra.mxu0 0.0
        %2418 = vmatprep.subr.mxu0 0.0
        %2419 = vmatpush1.xpose.msra.mxu0 0.0
        %2420 = vmatprep.subr.mxu0 0.0
        %2421 = vmatpush1.xpose.msra.mxu0 0.0
        %2422 = vmatprep.subr.mxu0 0.0
        %2423 = vmatpush1.xpose.msra.mxu0 0.0
        %2424 = vmatprep.subr.mxu0 0.0
        %2425 = vmatpush1.xpose.msra.mxu0 0.0
        %2426 = vmatprep.subr.mxu0 0.0
        %2427 = vmatpush1.xpose.msra.mxu0 0.0
        %2428 = vmatprep.subr.mxu0 0.0
        %2429 = vmatpush1.xpose.msra.mxu0 0.0
        %2430 = vmatprep.subr.mxu0 0.0
        %2431 = vmatpush1.xpose.msra.mxu0 0.0
        %2432 = vmatprep.mubr.f32.mxu0 0.0
        %v2433 = vand.u32 %v2137, 4294901760
        %v2434 = vsub.f32 %v2137, %v2433
        %v2435 = vand.u32 %v2434, 4294901760
        %2436 = vmatmul.mubr.f32.gmra.mrb[0].mxu0 %v2435
        %v2437 = vpop.f32.mrb[0].mxu0
        %v2438 = vadd.f32 %v2364, %v2437
        %v2439 = vpop.f32.mrb[0].mxu0
        %2440 = vdwg.mxu0
        %2441 = vmatprep.subr.mxu0 0.0
        %v2442 = vand.u32 %v2139, 4294901760
        %v2443 = vsub.f32 %v2139, %v2442
        %v2444 = vand.u32 %v2443, 4294901760
        %2445 = vmatpush1.xpose.msra.mxu0 %v2444
        %2446 = vmatprep.subr.mxu0 0.0
        %2447 = vmatpush1.xpose.msra.mxu0 0.0
        %2448 = vmatprep.subr.mxu0 0.0
        %2449 = vmatpush1.xpose.msra.mxu0 0.0
        %2450 = vmatprep.subr.mxu0 0.0
        %2451 = vmatpush1.xpose.msra.mxu0 0.0
        %2452 = vmatprep.subr.mxu0 0.0
        %2453 = vmatpush1.xpose.msra.mxu0 0.0
        %2454 = vmatprep.subr.mxu0 0.0
        %2455 = vmatpush1.xpose.msra.mxu0 0.0
        %2456 = vmatprep.subr.mxu0 0.0
        %2457 = vmatpush1.xpose.msra.mxu0 0.0
        %2458 = vmatprep.subr.mxu0 0.0
        %2459 = vmatpush1.xpose.msra.mxu0 0.0
        %2460 = vmatprep.subr.mxu0 0.0
        %2461 = vmatpush1.xpose.msra.mxu0 0.0
        %2462 = vmatprep.subr.mxu0 0.0
        %2463 = vmatpush1.xpose.msra.mxu0 0.0
        %2464 = vmatprep.subr.mxu0 0.0
        %2465 = vmatpush1.xpose.msra.mxu0 0.0
        %2466 = vmatprep.subr.mxu0 0.0
        %2467 = vmatpush1.xpose.msra.mxu0 0.0
        %2468 = vmatprep.subr.mxu0 0.0
        %2469 = vmatpush1.xpose.msra.mxu0 0.0
        %2470 = vmatprep.subr.mxu0 0.0
        %2471 = vmatpush1.xpose.msra.mxu0 0.0
        %2472 = vmatprep.subr.mxu0 0.0
        %2473 = vmatpush1.xpose.msra.mxu0 0.0
        %2474 = vmatprep.subr.mxu0 0.0
        %2475 = vmatpush1.xpose.msra.mxu0 0.0
        %2476 = vmatprep.subr.mxu0 0.0
        %2477 = vmatpush1.xpose.msra.mxu0 0.0
        %2478 = vmatprep.subr.mxu0 0.0
        %2479 = vmatpush1.xpose.msra.mxu0 0.0
        %2480 = vmatprep.subr.mxu0 0.0
        %2481 = vmatpush1.xpose.msra.mxu0 0.0
        %2482 = vmatprep.subr.mxu0 0.0
        %2483 = vmatpush1.xpose.msra.mxu0 0.0
        %2484 = vmatprep.subr.mxu0 0.0
        %2485 = vmatpush1.xpose.msra.mxu0 0.0
        %2486 = vmatprep.subr.mxu0 0.0
        %2487 = vmatpush1.xpose.msra.mxu0 0.0
        %2488 = vmatprep.subr.mxu0 0.0
        %2489 = vmatpush1.xpose.msra.mxu0 0.0
        %2490 = vmatprep.subr.mxu0 0.0
        %2491 = vmatpush1.xpose.msra.mxu0 0.0
        %2492 = vmatprep.subr.mxu0 0.0
        %2493 = vmatpush1.xpose.msra.mxu0 0.0
        %2494 = vmatprep.subr.mxu0 0.0
        %2495 = vmatpush1.xpose.msra.mxu0 0.0
        %2496 = vmatprep.subr.mxu0 0.0
        %2497 = vmatpush1.xpose.msra.mxu0 0.0
        %2498 = vmatprep.subr.mxu0 0.0
        %2499 = vmatpush1.xpose.msra.mxu0 0.0
        %2500 = vmatprep.subr.mxu0 0.0
        %2501 = vmatpush1.xpose.msra.mxu0 0.0
        %2502 = vmatprep.subr.mxu0 0.0
        %2503 = vmatpush1.xpose.msra.mxu0 0.0
        %2504 = vmatprep.subr.mxu0 0.0
        %2505 = vmatpush1.xpose.msra.mxu0 0.0
        %2506 = vmatprep.subr.mxu0 0.0
        %2507 = vmatpush1.xpose.msra.mxu0 0.0
        %2508 = vmatprep.mubr.f32.mxu0 0.0
        %v2509 = vand.u32 %v2137, 4294901760
        %2510 = vmatmul.mubr.f32.gmra.mrb[0].mxu0 %v2509
        %v2511 = vpop.f32.mrb[0].mxu0
        %v2512 = vadd.f32 %v2438, %v2511
        %v2513 = vpop.f32.mrb[0].mxu0
        %2514 = vdwg.mxu0
        %2515 = vmatprep.subr.mxu0 0.0
        %v2516 = vand.u32 %v2139, 4294901760
        %2517 = vmatpush1.xpose.msra.mxu0 %v2516
        %2518 = vmatprep.subr.mxu0 0.0
        %2519 = vmatpush1.xpose.msra.mxu0 0.0
        %2520 = vmatprep.subr.mxu0 0.0
        %2521 = vmatpush1.xpose.msra.mxu0 0.0
        %2522 = vmatprep.subr.mxu0 0.0
        %2523 = vmatpush1.xpose.msra.mxu0 0.0
        %2524 = vmatprep.subr.mxu0 0.0
        %2525 = vmatpush1.xpose.msra.mxu0 0.0
        %2526 = vmatprep.subr.mxu0 0.0
        %2527 = vmatpush1.xpose.msra.mxu0 0.0
        %2528 = vmatprep.subr.mxu0 0.0
        %2529 = vmatpush1.xpose.msra.mxu0 0.0
        %2530 = vmatprep.subr.mxu0 0.0
        %2531 = vmatpush1.xpose.msra.mxu0 0.0
        %2532 = vmatprep.subr.mxu0 0.0
        %2533 = vmatpush1.xpose.msra.mxu0 0.0
        %2534 = vmatprep.subr.mxu0 0.0
        %2535 = vmatpush1.xpose.msra.mxu0 0.0
        %2536 = vmatprep.subr.mxu0 0.0
        %2537 = vmatpush1.xpose.msra.mxu0 0.0
        %2538 = vmatprep.subr.mxu0 0.0
        %2539 = vmatpush1.xpose.msra.mxu0 0.0
        %2540 = vmatprep.subr.mxu0 0.0
        %2541 = vmatpush1.xpose.msra.mxu0 0.0
        %2542 = vmatprep.subr.mxu0 0.0
        %2543 = vmatpush1.xpose.msra.mxu0 0.0
        %2544 = vmatprep.subr.mxu0 0.0
        %2545 = vmatpush1.xpose.msra.mxu0 0.0
        %2546 = vmatprep.subr.mxu0 0.0
        %2547 = vmatpush1.xpose.msra.mxu0 0.0
        %2548 = vmatprep.subr.mxu0 0.0
        %2549 = vmatpush1.xpose.msra.mxu0 0.0
        %2550 = vmatprep.subr.mxu0 0.0
        %2551 = vmatpush1.xpose.msra.mxu0 0.0
        %2552 = vmatprep.subr.mxu0 0.0
        %2553 = vmatpush1.xpose.msra.mxu0 0.0
        %2554 = vmatprep.subr.mxu0 0.0
        %2555 = vmatpush1.xpose.msra.mxu0 0.0
        %2556 = vmatprep.subr.mxu0 0.0
        %2557 = vmatpush1.xpose.msra.mxu0 0.0
        %2558 = vmatprep.subr.mxu0 0.0
        %2559 = vmatpush1.xpose.msra.mxu0 0.0
        %2560 = vmatprep.subr.mxu0 0.0
        %2561 = vmatpush1.xpose.msra.mxu0 0.0
        %2562 = vmatprep.subr.mxu0 0.0
        %2563 = vmatpush1.xpose.msra.mxu0 0.0
        %2564 = vmatprep.subr.mxu0 0.0
        %2565 = vmatpush1.xpose.msra.mxu0 0.0
        %2566 = vmatprep.subr.mxu0 0.0
        %2567 = vmatpush1.xpose.msra.mxu0 0.0
        %2568 = vmatprep.subr.mxu0 0.0
        %2569 = vmatpush1.xpose.msra.mxu0 0.0
        %2570 = vmatprep.subr.mxu0 0.0
        %2571 = vmatpush1.xpose.msra.mxu0 0.0
        %2572 = vmatprep.subr.mxu0 0.0
        %2573 = vmatpush1.xpose.msra.mxu0 0.0
        %2574 = vmatprep.subr.mxu0 0.0
        %2575 = vmatpush1.xpose.msra.mxu0 0.0
        %2576 = vmatprep.subr.mxu0 0.0
        %2577 = vmatpush1.xpose.msra.mxu0 0.0
        %2578 = vmatprep.subr.mxu0 0.0
        %2579 = vmatpush1.xpose.msra.mxu0 0.0
        %2580 = vmatprep.mubr.f32.mxu0 0.0
        %v2581 = vand.u32 %v2137, 4294901760
        %2582 = vmatmul.mubr.f32.gmra.mrb[0].mxu0 %v2581
        %v2583 = vpop.f32.mrb[0].mxu0
        %v2584 = vadd.f32 %v2512, %v2583
        %v2585 = vpop.f32.mrb[0].mxu0
        %2586 = vdwg.mxu0
        %2587 = vrot.lane.b32.xlu0 %v771, 96
        %v2588 = vpop.permute.xlu0 %2587
        %v2589 = vsel %vm780, %v771, 0
        %v2591 = vsel %vm780, %v2588, 0
        %2593 = vmatprep.subr.mxu0 0.0
        %v2594 = vand.u32 %v2591, 4294901760
        %2595 = vmatpush1.xpose.msra.mxu0 %v2594
        %2596 = vmatprep.subr.mxu0 0.0
        %2597 = vmatpush1.xpose.msra.mxu0 0.0
        %2598 = vmatprep.subr.mxu0 0.0
        %2599 = vmatpush1.xpose.msra.mxu0 0.0
        %2600 = vmatprep.subr.mxu0 0.0
        %2601 = vmatpush1.xpose.msra.mxu0 0.0
        %2602 = vmatprep.subr.mxu0 0.0
        %2603 = vmatpush1.xpose.msra.mxu0 0.0
        %2604 = vmatprep.subr.mxu0 0.0
        %2605 = vmatpush1.xpose.msra.mxu0 0.0
        %2606 = vmatprep.subr.mxu0 0.0
        %2607 = vmatpush1.xpose.msra.mxu0 0.0
        %2608 = vmatprep.subr.mxu0 0.0
        %2609 = vmatpush1.xpose.msra.mxu0 0.0
        %2610 = vmatprep.subr.mxu0 0.0
        %2611 = vmatpush1.xpose.msra.mxu0 0.0
        %2612 = vmatprep.subr.mxu0 0.0
        %2613 = vmatpush1.xpose.msra.mxu0 0.0
        %2614 = vmatprep.subr.mxu0 0.0
        %2615 = vmatpush1.xpose.msra.mxu0 0.0
        %2616 = vmatprep.subr.mxu0 0.0
        %2617 = vmatpush1.xpose.msra.mxu0 0.0
        %2618 = vmatprep.subr.mxu0 0.0
        %2619 = vmatpush1.xpose.msra.mxu0 0.0
        %2620 = vmatprep.subr.mxu0 0.0
        %2621 = vmatpush1.xpose.msra.mxu0 0.0
        %2622 = vmatprep.subr.mxu0 0.0
        %2623 = vmatpush1.xpose.msra.mxu0 0.0
        %2624 = vmatprep.subr.mxu0 0.0
        %2625 = vmatpush1.xpose.msra.mxu0 0.0
        %2626 = vmatprep.subr.mxu0 0.0
        %2627 = vmatpush1.xpose.msra.mxu0 0.0
        %2628 = vmatprep.subr.mxu0 0.0
        %2629 = vmatpush1.xpose.msra.mxu0 0.0
        %2630 = vmatprep.subr.mxu0 0.0
        %2631 = vmatpush1.xpose.msra.mxu0 0.0
        %2632 = vmatprep.subr.mxu0 0.0
        %2633 = vmatpush1.xpose.msra.mxu0 0.0
        %2634 = vmatprep.subr.mxu0 0.0
        %2635 = vmatpush1.xpose.msra.mxu0 0.0
        %2636 = vmatprep.subr.mxu0 0.0
        %2637 = vmatpush1.xpose.msra.mxu0 0.0
        %2638 = vmatprep.subr.mxu0 0.0
        %2639 = vmatpush1.xpose.msra.mxu0 0.0
        %2640 = vmatprep.subr.mxu0 0.0
        %2641 = vmatpush1.xpose.msra.mxu0 0.0
        %2642 = vmatprep.subr.mxu0 0.0
        %2643 = vmatpush1.xpose.msra.mxu0 0.0
        %2644 = vmatprep.subr.mxu0 0.0
        %2645 = vmatpush1.xpose.msra.mxu0 0.0
        %2646 = vmatprep.subr.mxu0 0.0
        %2647 = vmatpush1.xpose.msra.mxu0 0.0
        %2648 = vmatprep.subr.mxu0 0.0
        %2649 = vmatpush1.xpose.msra.mxu0 0.0
        %2650 = vmatprep.subr.mxu0 0.0
        %2651 = vmatpush1.xpose.msra.mxu0 0.0
        %2652 = vmatprep.subr.mxu0 0.0
        %2653 = vmatpush1.xpose.msra.mxu0 0.0
        %2654 = vmatprep.subr.mxu0 0.0
        %2655 = vmatpush1.xpose.msra.mxu0 0.0
        %2656 = vmatprep.subr.mxu0 0.0
        %2657 = vmatpush1.xpose.msra.mxu0 0.0
        %2658 = vmatprep.mubr.f32.mxu0 0.0
        %v2659 = vand.u32 %v2589, 4294901760
        %v2660 = vsub.f32 %v2589, %v2659
        %v2661 = vand.u32 %v2660, 4294901760
        %v2662 = vsub.f32 %v2660, %v2661
        %v2663 = vand.u32 %v2662, 4294901760
        %2664 = vmatmul.mubr.f32.gmra.mrb[0].mxu0 %v2663
        %v2665 = vpop.f32.mrb[0].mxu0
        %v2666 = vadd.f32 0.0, %v2665
        %v2667 = vpop.f32.mrb[0].mxu0
        %2668 = vdwg.mxu0
        %2669 = vmatprep.subr.mxu0 0.0
        %v2670 = vand.u32 %v2591, 4294901760
        %v2671 = vsub.f32 %v2591, %v2670
        %v2672 = vand.u32 %v2671, 4294901760
        %v2673 = vsub.f32 %v2671, %v2672
        %v2674 = vand.u32 %v2673, 4294901760
        %2675 = vmatpush1.xpose.msra.mxu0 %v2674
        %2676 = vmatprep.subr.mxu0 0.0
        %2677 = vmatpush1.xpose.msra.mxu0 0.0
        %2678 = vmatprep.subr.mxu0 0.0
        %2679 = vmatpush1.xpose.msra.mxu0 0.0
        %2680 = vmatprep.subr.mxu0 0.0
        %2681 = vmatpush1.xpose.msra.mxu0 0.0
        %2682 = vmatprep.subr.mxu0 0.0
        %2683 = vmatpush1.xpose.msra.mxu0 0.0
        %2684 = vmatprep.subr.mxu0 0.0
        %2685 = vmatpush1.xpose.msra.mxu0 0.0
        %2686 = vmatprep.subr.mxu0 0.0
        %2687 = vmatpush1.xpose.msra.mxu0 0.0
        %2688 = vmatprep.subr.mxu0 0.0
        %2689 = vmatpush1.xpose.msra.mxu0 0.0
        %2690 = vmatprep.subr.mxu0 0.0
        %2691 = vmatpush1.xpose.msra.mxu0 0.0
        %2692 = vmatprep.subr.mxu0 0.0
        %2693 = vmatpush1.xpose.msra.mxu0 0.0
        %2694 = vmatprep.subr.mxu0 0.0
        %2695 = vmatpush1.xpose.msra.mxu0 0.0
        %2696 = vmatprep.subr.mxu0 0.0
        %2697 = vmatpush1.xpose.msra.mxu0 0.0
        %2698 = vmatprep.subr.mxu0 0.0
        %2699 = vmatpush1.xpose.msra.mxu0 0.0
        %2700 = vmatprep.subr.mxu0 0.0
        %2701 = vmatpush1.xpose.msra.mxu0 0.0
        %2702 = vmatprep.subr.mxu0 0.0
        %2703 = vmatpush1.xpose.msra.mxu0 0.0
        %2704 = vmatprep.subr.mxu0 0.0
        %2705 = vmatpush1.xpose.msra.mxu0 0.0
        %2706 = vmatprep.subr.mxu0 0.0
        %2707 = vmatpush1.xpose.msra.mxu0 0.0
        %2708 = vmatprep.subr.mxu0 0.0
        %2709 = vmatpush1.xpose.msra.mxu0 0.0
        %2710 = vmatprep.subr.mxu0 0.0
        %2711 = vmatpush1.xpose.msra.mxu0 0.0
        %2712 = vmatprep.subr.mxu0 0.0
        %2713 = vmatpush1.xpose.msra.mxu0 0.0
        %2714 = vmatprep.subr.mxu0 0.0
        %2715 = vmatpush1.xpose.msra.mxu0 0.0
        %2716 = vmatprep.subr.mxu0 0.0
        %2717 = vmatpush1.xpose.msra.mxu0 0.0
        %2718 = vmatprep.subr.mxu0 0.0
        %2719 = vmatpush1.xpose.msra.mxu0 0.0
        %2720 = vmatprep.subr.mxu0 0.0
        %2721 = vmatpush1.xpose.msra.mxu0 0.0
        %2722 = vmatprep.subr.mxu0 0.0
        %2723 = vmatpush1.xpose.msra.mxu0 0.0
        %2724 = vmatprep.subr.mxu0 0.0
        %2725 = vmatpush1.xpose.msra.mxu0 0.0
        %2726 = vmatprep.subr.mxu0 0.0
        %2727 = vmatpush1.xpose.msra.mxu0 0.0
        %2728 = vmatprep.subr.mxu0 0.0
        %2729 = vmatpush1.xpose.msra.mxu0 0.0
        %2730 = vmatprep.subr.mxu0 0.0
        %2731 = vmatpush1.xpose.msra.mxu0 0.0
        %2732 = vmatprep.subr.mxu0 0.0
        %2733 = vmatpush1.xpose.msra.mxu0 0.0
        %2734 = vmatprep.subr.mxu0 0.0
        %2735 = vmatpush1.xpose.msra.mxu0 0.0
        %2736 = vmatprep.subr.mxu0 0.0
        %2737 = vmatpush1.xpose.msra.mxu0 0.0
        %2738 = vmatprep.mubr.f32.mxu0 0.0
        %v2739 = vand.u32 %v2589, 4294901760
        %2740 = vmatmul.mubr.f32.gmra.mrb[0].mxu0 %v2739
        %v2741 = vpop.f32.mrb[0].mxu0
        %v2742 = vadd.f32 %v2666, %v2741
        %v2743 = vpop.f32.mrb[0].mxu0
        %2744 = vdwg.mxu0
        %2745 = vmatprep.subr.mxu0 0.0
        %v2746 = vand.u32 %v2591, 4294901760
        %v2747 = vsub.f32 %v2591, %v2746
        %2748 = vmatpush1.xpose.msra.mxu0 %v2747
        %2749 = vmatprep.subr.mxu0 0.0
        %2750 = vmatpush1.xpose.msra.mxu0 0.0
        %2751 = vmatprep.subr.mxu0 0.0
        %2752 = vmatpush1.xpose.msra.mxu0 0.0
        %2753 = vmatprep.subr.mxu0 0.0
        %2754 = vmatpush1.xpose.msra.mxu0 0.0
        %2755 = vmatprep.subr.mxu0 0.0
        %2756 = vmatpush1.xpose.msra.mxu0 0.0
        %2757 = vmatprep.subr.mxu0 0.0
        %2758 = vmatpush1.xpose.msra.mxu0 0.0
        %2759 = vmatprep.subr.mxu0 0.0
        %2760 = vmatpush1.xpose.msra.mxu0 0.0
        %2761 = vmatprep.subr.mxu0 0.0
        %2762 = vmatpush1.xpose.msra.mxu0 0.0
        %2763 = vmatprep.subr.mxu0 0.0
        %2764 = vmatpush1.xpose.msra.mxu0 0.0
        %2765 = vmatprep.subr.mxu0 0.0
        %2766 = vmatpush1.xpose.msra.mxu0 0.0
        %2767 = vmatprep.subr.mxu0 0.0
        %2768 = vmatpush1.xpose.msra.mxu0 0.0
        %2769 = vmatprep.subr.mxu0 0.0
        %2770 = vmatpush1.xpose.msra.mxu0 0.0
        %2771 = vmatprep.subr.mxu0 0.0
        %2772 = vmatpush1.xpose.msra.mxu0 0.0
        %2773 = vmatprep.subr.mxu0 0.0
        %2774 = vmatpush1.xpose.msra.mxu0 0.0
        %2775 = vmatprep.subr.mxu0 0.0
        %2776 = vmatpush1.xpose.msra.mxu0 0.0
        %2777 = vmatprep.subr.mxu0 0.0
        %2778 = vmatpush1.xpose.msra.mxu0 0.0
        %2779 = vmatprep.subr.mxu0 0.0
        %2780 = vmatpush1.xpose.msra.mxu0 0.0
        %2781 = vmatprep.subr.mxu0 0.0
        %2782 = vmatpush1.xpose.msra.mxu0 0.0
        %2783 = vmatprep.subr.mxu0 0.0
        %2784 = vmatpush1.xpose.msra.mxu0 0.0
        %2785 = vmatprep.subr.mxu0 0.0
        %2786 = vmatpush1.xpose.msra.mxu0 0.0
        %2787 = vmatprep.subr.mxu0 0.0
        %2788 = vmatpush1.xpose.msra.mxu0 0.0
        %2789 = vmatprep.subr.mxu0 0.0
        %2790 = vmatpush1.xpose.msra.mxu0 0.0
        %2791 = vmatprep.subr.mxu0 0.0
        %2792 = vmatpush1.xpose.msra.mxu0 0.0
        %2793 = vmatprep.subr.mxu0 0.0
        %2794 = vmatpush1.xpose.msra.mxu0 0.0
        %2795 = vmatprep.subr.mxu0 0.0
        %2796 = vmatpush1.xpose.msra.mxu0 0.0
        %2797 = vmatprep.subr.mxu0 0.0
        %2798 = vmatpush1.xpose.msra.mxu0 0.0
        %2799 = vmatprep.subr.mxu0 0.0
        %2800 = vmatpush1.xpose.msra.mxu0 0.0
        %2801 = vmatprep.subr.mxu0 0.0
        %2802 = vmatpush1.xpose.msra.mxu0 0.0
        %2803 = vmatprep.subr.mxu0 0.0
        %2804 = vmatpush1.xpose.msra.mxu0 0.0
        %2805 = vmatprep.subr.mxu0 0.0
        %2806 = vmatpush1.xpose.msra.mxu0 0.0
        %2807 = vmatprep.subr.mxu0 0.0
        %2808 = vmatpush1.xpose.msra.mxu0 0.0
        %2809 = vmatprep.subr.mxu0 0.0
        %2810 = vmatpush1.xpose.msra.mxu0 0.0
        %2811 = vmatprep.mubr.f32.mxu0 0.0
        %v2812 = vand.u32 %v2589, 4294901760
        %v2813 = vsub.f32 %v2589, %v2812
        %2814 = vmatmul.mubr.f32.gmra.mrb[0].mxu0 %v2813
        %v2815 = vpop.f32.mrb[0].mxu0
        %v2816 = vadd.f32 %v2742, %v2815
        %v2817 = vpop.f32.mrb[0].mxu0
        %2818 = vdwg.mxu0
        %2819 = vmatprep.subr.mxu0 0.0
        %v2820 = vand.u32 %v2591, 4294901760
        %2821 = vmatpush1.xpose.msra.mxu0 %v2820
        %2822 = vmatprep.subr.mxu0 0.0
        %2823 = vmatpush1.xpose.msra.mxu0 0.0
        %2824 = vmatprep.subr.mxu0 0.0
        %2825 = vmatpush1.xpose.msra.mxu0 0.0
        %2826 = vmatprep.subr.mxu0 0.0
        %2827 = vmatpush1.xpose.msra.mxu0 0.0
        %2828 = vmatprep.subr.mxu0 0.0
        %2829 = vmatpush1.xpose.msra.mxu0 0.0
        %2830 = vmatprep.subr.mxu0 0.0
        %2831 = vmatpush1.xpose.msra.mxu0 0.0
        %2832 = vmatprep.subr.mxu0 0.0
        %2833 = vmatpush1.xpose.msra.mxu0 0.0
        %2834 = vmatprep.subr.mxu0 0.0
        %2835 = vmatpush1.xpose.msra.mxu0 0.0
        %2836 = vmatprep.subr.mxu0 0.0
        %2837 = vmatpush1.xpose.msra.mxu0 0.0
        %2838 = vmatprep.subr.mxu0 0.0
        %2839 = vmatpush1.xpose.msra.mxu0 0.0
        %2840 = vmatprep.subr.mxu0 0.0
        %2841 = vmatpush1.xpose.msra.mxu0 0.0
        %2842 = vmatprep.subr.mxu0 0.0
        %2843 = vmatpush1.xpose.msra.mxu0 0.0
        %2844 = vmatprep.subr.mxu0 0.0
        %2845 = vmatpush1.xpose.msra.mxu0 0.0
        %2846 = vmatprep.subr.mxu0 0.0
        %2847 = vmatpush1.xpose.msra.mxu0 0.0
        %2848 = vmatprep.subr.mxu0 0.0
        %2849 = vmatpush1.xpose.msra.mxu0 0.0
        %2850 = vmatprep.subr.mxu0 0.0
        %2851 = vmatpush1.xpose.msra.mxu0 0.0
        %2852 = vmatprep.subr.mxu0 0.0
        %2853 = vmatpush1.xpose.msra.mxu0 0.0
        %2854 = vmatprep.subr.mxu0 0.0
        %2855 = vmatpush1.xpose.msra.mxu0 0.0
        %2856 = vmatprep.subr.mxu0 0.0
        %2857 = vmatpush1.xpose.msra.mxu0 0.0
        %2858 = vmatprep.subr.mxu0 0.0
        %2859 = vmatpush1.xpose.msra.mxu0 0.0
        %2860 = vmatprep.subr.mxu0 0.0
        %2861 = vmatpush1.xpose.msra.mxu0 0.0
        %2862 = vmatprep.subr.mxu0 0.0
        %2863 = vmatpush1.xpose.msra.mxu0 0.0
        %2864 = vmatprep.subr.mxu0 0.0
        %2865 = vmatpush1.xpose.msra.mxu0 0.0
        %2866 = vmatprep.subr.mxu0 0.0
        %2867 = vmatpush1.xpose.msra.mxu0 0.0
        %2868 = vmatprep.subr.mxu0 0.0
        %2869 = vmatpush1.xpose.msra.mxu0 0.0
        %2870 = vmatprep.subr.mxu0 0.0
        %2871 = vmatpush1.xpose.msra.mxu0 0.0
        %2872 = vmatprep.subr.mxu0 0.0
        %2873 = vmatpush1.xpose.msra.mxu0 0.0
        %2874 = vmatprep.subr.mxu0 0.0
        %2875 = vmatpush1.xpose.msra.mxu0 0.0
        %2876 = vmatprep.subr.mxu0 0.0
        %2877 = vmatpush1.xpose.msra.mxu0 0.0
        %2878 = vmatprep.subr.mxu0 0.0
        %2879 = vmatpush1.xpose.msra.mxu0 0.0
        %2880 = vmatprep.subr.mxu0 0.0
        %2881 = vmatpush1.xpose.msra.mxu0 0.0
        %2882 = vmatprep.subr.mxu0 0.0
        %2883 = vmatpush1.xpose.msra.mxu0 0.0
        %2884 = vmatprep.mubr.f32.mxu0 0.0
        %v2885 = vand.u32 %v2589, 4294901760
        %v2886 = vsub.f32 %v2589, %v2885
        %v2887 = vand.u32 %v2886, 4294901760
        %2888 = vmatmul.mubr.f32.gmra.mrb[0].mxu0 %v2887
        %v2889 = vpop.f32.mrb[0].mxu0
        %v2890 = vadd.f32 %v2816, %v2889
        %v2891 = vpop.f32.mrb[0].mxu0
        %2892 = vdwg.mxu0
        %2893 = vmatprep.subr.mxu0 0.0
        %v2894 = vand.u32 %v2591, 4294901760
        %v2895 = vsub.f32 %v2591, %v2894
        %v2896 = vand.u32 %v2895, 4294901760
        %2897 = vmatpush1.xpose.msra.mxu0 %v2896
        %2898 = vmatprep.subr.mxu0 0.0
        %2899 = vmatpush1.xpose.msra.mxu0 0.0
        %2900 = vmatprep.subr.mxu0 0.0
        %2901 = vmatpush1.xpose.msra.mxu0 0.0
        %2902 = vmatprep.subr.mxu0 0.0
        %2903 = vmatpush1.xpose.msra.mxu0 0.0
        %2904 = vmatprep.subr.mxu0 0.0
        %2905 = vmatpush1.xpose.msra.mxu0 0.0
        %2906 = vmatprep.subr.mxu0 0.0
        %2907 = vmatpush1.xpose.msra.mxu0 0.0
        %2908 = vmatprep.subr.mxu0 0.0
        %2909 = vmatpush1.xpose.msra.mxu0 0.0
        %2910 = vmatprep.subr.mxu0 0.0
        %2911 = vmatpush1.xpose.msra.mxu0 0.0
        %2912 = vmatprep.subr.mxu0 0.0
        %2913 = vmatpush1.xpose.msra.mxu0 0.0
        %2914 = vmatprep.subr.mxu0 0.0
        %2915 = vmatpush1.xpose.msra.mxu0 0.0
        %2916 = vmatprep.subr.mxu0 0.0
        %2917 = vmatpush1.xpose.msra.mxu0 0.0
        %2918 = vmatprep.subr.mxu0 0.0
        %2919 = vmatpush1.xpose.msra.mxu0 0.0
        %2920 = vmatprep.subr.mxu0 0.0
        %2921 = vmatpush1.xpose.msra.mxu0 0.0
        %2922 = vmatprep.subr.mxu0 0.0
        %2923 = vmatpush1.xpose.msra.mxu0 0.0
        %2924 = vmatprep.subr.mxu0 0.0
        %2925 = vmatpush1.xpose.msra.mxu0 0.0
        %2926 = vmatprep.subr.mxu0 0.0
        %2927 = vmatpush1.xpose.msra.mxu0 0.0
        %2928 = vmatprep.subr.mxu0 0.0
        %2929 = vmatpush1.xpose.msra.mxu0 0.0
        %2930 = vmatprep.subr.mxu0 0.0
        %2931 = vmatpush1.xpose.msra.mxu0 0.0
        %2932 = vmatprep.subr.mxu0 0.0
        %2933 = vmatpush1.xpose.msra.mxu0 0.0
        %2934 = vmatprep.subr.mxu0 0.0
        %2935 = vmatpush1.xpose.msra.mxu0 0.0
        %2936 = vmatprep.subr.mxu0 0.0
        %2937 = vmatpush1.xpose.msra.mxu0 0.0
        %2938 = vmatprep.subr.mxu0 0.0
        %2939 = vmatpush1.xpose.msra.mxu0 0.0
        %2940 = vmatprep.subr.mxu0 0.0
        %2941 = vmatpush1.xpose.msra.mxu0 0.0
        %2942 = vmatprep.subr.mxu0 0.0
        %2943 = vmatpush1.xpose.msra.mxu0 0.0
        %2944 = vmatprep.subr.mxu0 0.0
        %2945 = vmatpush1.xpose.msra.mxu0 0.0
        %2946 = vmatprep.subr.mxu0 0.0
        %2947 = vmatpush1.xpose.msra.mxu0 0.0
        %2948 = vmatprep.subr.mxu0 0.0
        %2949 = vmatpush1.xpose.msra.mxu0 0.0
        %2950 = vmatprep.subr.mxu0 0.0
        %2951 = vmatpush1.xpose.msra.mxu0 0.0
        %2952 = vmatprep.subr.mxu0 0.0
        %2953 = vmatpush1.xpose.msra.mxu0 0.0
        %2954 = vmatprep.subr.mxu0 0.0
        %2955 = vmatpush1.xpose.msra.mxu0 0.0
        %2956 = vmatprep.subr.mxu0 0.0
        %2957 = vmatpush1.xpose.msra.mxu0 0.0
        %2958 = vmatprep.subr.mxu0 0.0
        %2959 = vmatpush1.xpose.msra.mxu0 0.0
        %2960 = vmatprep.mubr.f32.mxu0 0.0
        %v2961 = vand.u32 %v2589, 4294901760
        %2962 = vmatmul.mubr.f32.gmra.mrb[0].mxu0 %v2961
        %v2963 = vpop.f32.mrb[0].mxu0
        %v2964 = vadd.f32 %v2890, %v2963
        %v2965 = vpop.f32.mrb[0].mxu0
        %2966 = vdwg.mxu0
        %2967 = vmatprep.subr.mxu0 0.0
        %v2968 = vand.u32 %v2591, 4294901760
        %2969 = vmatpush1.xpose.msra.mxu0 %v2968
        %2970 = vmatprep.subr.mxu0 0.0
        %2971 = vmatpush1.xpose.msra.mxu0 0.0
        %2972 = vmatprep.subr.mxu0 0.0
        %2973 = vmatpush1.xpose.msra.mxu0 0.0
        %2974 = vmatprep.subr.mxu0 0.0
        %2975 = vmatpush1.xpose.msra.mxu0 0.0
        %2976 = vmatprep.subr.mxu0 0.0
        %2977 = vmatpush1.xpose.msra.mxu0 0.0
        %2978 = vmatprep.subr.mxu0 0.0
        %2979 = vmatpush1.xpose.msra.mxu0 0.0
        %2980 = vmatprep.subr.mxu0 0.0
        %2981 = vmatpush1.xpose.msra.mxu0 0.0
        %2982 = vmatprep.subr.mxu0 0.0
        %2983 = vmatpush1.xpose.msra.mxu0 0.0
        %2984 = vmatprep.subr.mxu0 0.0
        %2985 = vmatpush1.xpose.msra.mxu0 0.0
        %2986 = vmatprep.subr.mxu0 0.0
        %2987 = vmatpush1.xpose.msra.mxu0 0.0
        %2988 = vmatprep.subr.mxu0 0.0
        %2989 = vmatpush1.xpose.msra.mxu0 0.0
        %2990 = vmatprep.subr.mxu0 0.0
        %2991 = vmatpush1.xpose.msra.mxu0 0.0
        %2992 = vmatprep.subr.mxu0 0.0
        %2993 = vmatpush1.xpose.msra.mxu0 0.0
        %2994 = vmatprep.subr.mxu0 0.0
        %2995 = vmatpush1.xpose.msra.mxu0 0.0
        %2996 = vmatprep.subr.mxu0 0.0
        %2997 = vmatpush1.xpose.msra.mxu0 0.0
        %2998 = vmatprep.subr.mxu0 0.0
        %2999 = vmatpush1.xpose.msra.mxu0 0.0
        %3000 = vmatprep.subr.mxu0 0.0
        %3001 = vmatpush1.xpose.msra.mxu0 0.0
        %3002 = vmatprep.subr.mxu0 0.0
        %3003 = vmatpush1.xpose.msra.mxu0 0.0
        %3004 = vmatprep.subr.mxu0 0.0
        %3005 = vmatpush1.xpose.msra.mxu0 0.0
        %3006 = vmatprep.subr.mxu0 0.0
        %3007 = vmatpush1.xpose.msra.mxu0 0.0
        %3008 = vmatprep.subr.mxu0 0.0
        %3009 = vmatpush1.xpose.msra.mxu0 0.0
        %3010 = vmatprep.subr.mxu0 0.0
        %3011 = vmatpush1.xpose.msra.mxu0 0.0
        %3012 = vmatprep.subr.mxu0 0.0
        %3013 = vmatpush1.xpose.msra.mxu0 0.0
        %3014 = vmatprep.subr.mxu0 0.0
        %3015 = vmatpush1.xpose.msra.mxu0 0.0
        %3016 = vmatprep.subr.mxu0 0.0
        %3017 = vmatpush1.xpose.msra.mxu0 0.0
        %3018 = vmatprep.subr.mxu0 0.0
        %3019 = vmatpush1.xpose.msra.mxu0 0.0
        %3020 = vmatprep.subr.mxu0 0.0
        %3021 = vmatpush1.xpose.msra.mxu0 0.0
        %3022 = vmatprep.subr.mxu0 0.0
        %3023 = vmatpush1.xpose.msra.mxu0 0.0
        %3024 = vmatprep.subr.mxu0 0.0
        %3025 = vmatpush1.xpose.msra.mxu0 0.0
        %3026 = vmatprep.subr.mxu0 0.0
        %3027 = vmatpush1.xpose.msra.mxu0 0.0
        %3028 = vmatprep.subr.mxu0 0.0
        %3029 = vmatpush1.xpose.msra.mxu0 0.0
        %3030 = vmatprep.subr.mxu0 0.0
        %3031 = vmatpush1.xpose.msra.mxu0 0.0
        %3032 = vmatprep.mubr.f32.mxu0 0.0
        %v3033 = vand.u32 %v2589, 4294901760
        %3034 = vmatmul.mubr.f32.gmra.mrb[0].mxu0 %v3033
        %v3035 = vpop.f32.mrb[0].mxu0
        %v3036 = vadd.f32 %v2964, %v3035
        %v3037 = vpop.f32.mrb[0].mxu0
        %3038 = vdwg.mxu0
        %3039 = vrot.lane.b32.xlu0 %v773, 96
        %v3040 = vpop.permute.xlu0 %3039
        %v3041 = vsel %vm780, %v773, 0
        %v3043 = vsel %vm780, %v3040, 0
        %3045 = vmatprep.subr.mxu0 0.0
        %v3046 = vand.u32 %v3043, 4294901760
        %3047 = vmatpush1.xpose.msra.mxu0 %v3046
        %3048 = vmatprep.subr.mxu0 0.0
        %3049 = vmatpush1.xpose.msra.mxu0 0.0
        %3050 = vmatprep.subr.mxu0 0.0
        %3051 = vmatpush1.xpose.msra.mxu0 0.0
        %3052 = vmatprep.subr.mxu0 0.0
        %3053 = vmatpush1.xpose.msra.mxu0 0.0
        %3054 = vmatprep.subr.mxu0 0.0
        %3055 = vmatpush1.xpose.msra.mxu0 0.0
        %3056 = vmatprep.subr.mxu0 0.0
        %3057 = vmatpush1.xpose.msra.mxu0 0.0
        %3058 = vmatprep.subr.mxu0 0.0
        %3059 = vmatpush1.xpose.msra.mxu0 0.0
        %3060 = vmatprep.subr.mxu0 0.0
        %3061 = vmatpush1.xpose.msra.mxu0 0.0
        %3062 = vmatprep.subr.mxu0 0.0
        %3063 = vmatpush1.xpose.msra.mxu0 0.0
        %3064 = vmatprep.subr.mxu0 0.0
        %3065 = vmatpush1.xpose.msra.mxu0 0.0
        %3066 = vmatprep.subr.mxu0 0.0
        %3067 = vmatpush1.xpose.msra.mxu0 0.0
        %3068 = vmatprep.subr.mxu0 0.0
        %3069 = vmatpush1.xpose.msra.mxu0 0.0
        %3070 = vmatprep.subr.mxu0 0.0
        %3071 = vmatpush1.xpose.msra.mxu0 0.0
        %3072 = vmatprep.subr.mxu0 0.0
        %3073 = vmatpush1.xpose.msra.mxu0 0.0
        %3074 = vmatprep.subr.mxu0 0.0
        %3075 = vmatpush1.xpose.msra.mxu0 0.0
        %3076 = vmatprep.subr.mxu0 0.0
        %3077 = vmatpush1.xpose.msra.mxu0 0.0
        %3078 = vmatprep.subr.mxu0 0.0
        %3079 = vmatpush1.xpose.msra.mxu0 0.0
        %3080 = vmatprep.subr.mxu0 0.0
        %3081 = vmatpush1.xpose.msra.mxu0 0.0
        %3082 = vmatprep.subr.mxu0 0.0
        %3083 = vmatpush1.xpose.msra.mxu0 0.0
        %3084 = vmatprep.subr.mxu0 0.0
        %3085 = vmatpush1.xpose.msra.mxu0 0.0
        %3086 = vmatprep.subr.mxu0 0.0
        %3087 = vmatpush1.xpose.msra.mxu0 0.0
        %3088 = vmatprep.subr.mxu0 0.0
        %3089 = vmatpush1.xpose.msra.mxu0 0.0
        %3090 = vmatprep.subr.mxu0 0.0
        %3091 = vmatpush1.xpose.msra.mxu0 0.0
        %3092 = vmatprep.subr.mxu0 0.0
        %3093 = vmatpush1.xpose.msra.mxu0 0.0
        %3094 = vmatprep.subr.mxu0 0.0
        %3095 = vmatpush1.xpose.msra.mxu0 0.0
        %3096 = vmatprep.subr.mxu0 0.0
        %3097 = vmatpush1.xpose.msra.mxu0 0.0
        %3098 = vmatprep.subr.mxu0 0.0
        %3099 = vmatpush1.xpose.msra.mxu0 0.0
        %3100 = vmatprep.subr.mxu0 0.0
        %3101 = vmatpush1.xpose.msra.mxu0 0.0
        %3102 = vmatprep.subr.mxu0 0.0
        %3103 = vmatpush1.xpose.msra.mxu0 0.0
        %3104 = vmatprep.subr.mxu0 0.0
        %3105 = vmatpush1.xpose.msra.mxu0 0.0
        %3106 = vmatprep.subr.mxu0 0.0
        %3107 = vmatpush1.xpose.msra.mxu0 0.0
        %3108 = vmatprep.subr.mxu0 0.0
        %3109 = vmatpush1.xpose.msra.mxu0 0.0
        %3110 = vmatprep.mubr.f32.mxu0 0.0
        %v3111 = vand.u32 %v3041, 4294901760
        %v3112 = vsub.f32 %v3041, %v3111
        %v3113 = vand.u32 %v3112, 4294901760
        %v3114 = vsub.f32 %v3112, %v3113
        %v3115 = vand.u32 %v3114, 4294901760
        %3116 = vmatmul.mubr.f32.gmra.mrb[0].mxu0 %v3115
        %v3117 = vpop.f32.mrb[0].mxu0
        %v3118 = vadd.f32 0.0, %v3117
        %v3119 = vpop.f32.mrb[0].mxu0
        %3120 = vdwg.mxu0
        %3121 = vmatprep.subr.mxu0 0.0
        %v3122 = vand.u32 %v3043, 4294901760
        %v3123 = vsub.f32 %v3043, %v3122
        %v3124 = vand.u32 %v3123, 4294901760
        %v3125 = vsub.f32 %v3123, %v3124
        %v3126 = vand.u32 %v3125, 4294901760
        %3127 = vmatpush1.xpose.msra.mxu0 %v3126
        %3128 = vmatprep.subr.mxu0 0.0
        %3129 = vmatpush1.xpose.msra.mxu0 0.0
        %3130 = vmatprep.subr.mxu0 0.0
        %3131 = vmatpush1.xpose.msra.mxu0 0.0
        %3132 = vmatprep.subr.mxu0 0.0
        %3133 = vmatpush1.xpose.msra.mxu0 0.0
        %3134 = vmatprep.subr.mxu0 0.0
        %3135 = vmatpush1.xpose.msra.mxu0 0.0
        %3136 = vmatprep.subr.mxu0 0.0
        %3137 = vmatpush1.xpose.msra.mxu0 0.0
        %3138 = vmatprep.subr.mxu0 0.0
        %3139 = vmatpush1.xpose.msra.mxu0 0.0
        %3140 = vmatprep.subr.mxu0 0.0
        %3141 = vmatpush1.xpose.msra.mxu0 0.0
        %3142 = vmatprep.subr.mxu0 0.0
        %3143 = vmatpush1.xpose.msra.mxu0 0.0
        %3144 = vmatprep.subr.mxu0 0.0
        %3145 = vmatpush1.xpose.msra.mxu0 0.0
        %3146 = vmatprep.subr.mxu0 0.0
        %3147 = vmatpush1.xpose.msra.mxu0 0.0
        %3148 = vmatprep.subr.mxu0 0.0
        %3149 = vmatpush1.xpose.msra.mxu0 0.0
        %3150 = vmatprep.subr.mxu0 0.0
        %3151 = vmatpush1.xpose.msra.mxu0 0.0
        %3152 = vmatprep.subr.mxu0 0.0
        %3153 = vmatpush1.xpose.msra.mxu0 0.0
        %3154 = vmatprep.subr.mxu0 0.0
        %3155 = vmatpush1.xpose.msra.mxu0 0.0
        %3156 = vmatprep.subr.mxu0 0.0
        %3157 = vmatpush1.xpose.msra.mxu0 0.0
        %3158 = vmatprep.subr.mxu0 0.0
        %3159 = vmatpush1.xpose.msra.mxu0 0.0
        %3160 = vmatprep.subr.mxu0 0.0
        %3161 = vmatpush1.xpose.msra.mxu0 0.0
        %3162 = vmatprep.subr.mxu0 0.0
        %3163 = vmatpush1.xpose.msra.mxu0 0.0
        %3164 = vmatprep.subr.mxu0 0.0
        %3165 = vmatpush1.xpose.msra.mxu0 0.0
        %3166 = vmatprep.subr.mxu0 0.0
        %3167 = vmatpush1.xpose.msra.mxu0 0.0
        %3168 = vmatprep.subr.mxu0 0.0
        %3169 = vmatpush1.xpose.msra.mxu0 0.0
        %3170 = vmatprep.subr.mxu0 0.0
        %3171 = vmatpush1.xpose.msra.mxu0 0.0
        %3172 = vmatprep.subr.mxu0 0.0
        %3173 = vmatpush1.xpose.msra.mxu0 0.0
        %3174 = vmatprep.subr.mxu0 0.0
        %3175 = vmatpush1.xpose.msra.mxu0 0.0
        %3176 = vmatprep.subr.mxu0 0.0
        %3177 = vmatpush1.xpose.msra.mxu0 0.0
        %3178 = vmatprep.subr.mxu0 0.0
        %3179 = vmatpush1.xpose.msra.mxu0 0.0
        %3180 = vmatprep.subr.mxu0 0.0
        %3181 = vmatpush1.xpose.msra.mxu0 0.0
        %3182 = vmatprep.subr.mxu0 0.0
        %3183 = vmatpush1.xpose.msra.mxu0 0.0
        %3184 = vmatprep.subr.mxu0 0.0
        %3185 = vmatpush1.xpose.msra.mxu0 0.0
        %3186 = vmatprep.subr.mxu0 0.0
        %3187 = vmatpush1.xpose.msra.mxu0 0.0
        %3188 = vmatprep.subr.mxu0 0.0
        %3189 = vmatpush1.xpose.msra.mxu0 0.0
        %3190 = vmatprep.mubr.f32.mxu0 0.0
        %v3191 = vand.u32 %v3041, 4294901760
        %3192 = vmatmul.mubr.f32.gmra.mrb[0].mxu0 %v3191
        %v3193 = vpop.f32.mrb[0].mxu0
        %v3194 = vadd.f32 %v3118, %v3193
        %v3195 = vpop.f32.mrb[0].mxu0
        %3196 = vdwg.mxu0
        %3197 = vmatprep.subr.mxu0 0.0
        %v3198 = vand.u32 %v3043, 4294901760
        %v3199 = vsub.f32 %v3043, %v3198
        %3200 = vmatpush1.xpose.msra.mxu0 %v3199
        %3201 = vmatprep.subr.mxu0 0.0
        %3202 = vmatpush1.xpose.msra.mxu0 0.0
        %3203 = vmatprep.subr.mxu0 0.0
        %3204 = vmatpush1.xpose.msra.mxu0 0.0
        %3205 = vmatprep.subr.mxu0 0.0
        %3206 = vmatpush1.xpose.msra.mxu0 0.0
        %3207 = vmatprep.subr.mxu0 0.0
        %3208 = vmatpush1.xpose.msra.mxu0 0.0
        %3209 = vmatprep.subr.mxu0 0.0
        %3210 = vmatpush1.xpose.msra.mxu0 0.0
        %3211 = vmatprep.subr.mxu0 0.0
        %3212 = vmatpush1.xpose.msra.mxu0 0.0
        %3213 = vmatprep.subr.mxu0 0.0
        %3214 = vmatpush1.xpose.msra.mxu0 0.0
        %3215 = vmatprep.subr.mxu0 0.0
        %3216 = vmatpush1.xpose.msra.mxu0 0.0
        %3217 = vmatprep.subr.mxu0 0.0
        %3218 = vmatpush1.xpose.msra.mxu0 0.0
        %3219 = vmatprep.subr.mxu0 0.0
        %3220 = vmatpush1.xpose.msra.mxu0 0.0
        %3221 = vmatprep.subr.mxu0 0.0
        %3222 = vmatpush1.xpose.msra.mxu0 0.0
        %3223 = vmatprep.subr.mxu0 0.0
        %3224 = vmatpush1.xpose.msra.mxu0 0.0
        %3225 = vmatprep.subr.mxu0 0.0
        %3226 = vmatpush1.xpose.msra.mxu0 0.0
        %3227 = vmatprep.subr.mxu0 0.0
        %3228 = vmatpush1.xpose.msra.mxu0 0.0
        %3229 = vmatprep.subr.mxu0 0.0
        %3230 = vmatpush1.xpose.msra.mxu0 0.0
        %3231 = vmatprep.subr.mxu0 0.0
        %3232 = vmatpush1.xpose.msra.mxu0 0.0
        %3233 = vmatprep.subr.mxu0 0.0
        %3234 = vmatpush1.xpose.msra.mxu0 0.0
        %3235 = vmatprep.subr.mxu0 0.0
        %3236 = vmatpush1.xpose.msra.mxu0 0.0
        %3237 = vmatprep.subr.mxu0 0.0
        %3238 = vmatpush1.xpose.msra.mxu0 0.0
        %3239 = vmatprep.subr.mxu0 0.0
        %3240 = vmatpush1.xpose.msra.mxu0 0.0
        %3241 = vmatprep.subr.mxu0 0.0
        %3242 = vmatpush1.xpose.msra.mxu0 0.0
        %3243 = vmatprep.subr.mxu0 0.0
        %3244 = vmatpush1.xpose.msra.mxu0 0.0
        %3245 = vmatprep.subr.mxu0 0.0
        %3246 = vmatpush1.xpose.msra.mxu0 0.0
        %3247 = vmatprep.subr.mxu0 0.0
        %3248 = vmatpush1.xpose.msra.mxu0 0.0
        %3249 = vmatprep.subr.mxu0 0.0
        %3250 = vmatpush1.xpose.msra.mxu0 0.0
        %3251 = vmatprep.subr.mxu0 0.0
        %3252 = vmatpush1.xpose.msra.mxu0 0.0
        %3253 = vmatprep.subr.mxu0 0.0
        %3254 = vmatpush1.xpose.msra.mxu0 0.0
        %3255 = vmatprep.subr.mxu0 0.0
        %3256 = vmatpush1.xpose.msra.mxu0 0.0
        %3257 = vmatprep.subr.mxu0 0.0
        %3258 = vmatpush1.xpose.msra.mxu0 0.0
        %3259 = vmatprep.subr.mxu0 0.0
        %3260 = vmatpush1.xpose.msra.mxu0 0.0
        %3261 = vmatprep.subr.mxu0 0.0
        %3262 = vmatpush1.xpose.msra.mxu0 0.0
        %3263 = vmatprep.mubr.f32.mxu0 0.0
        %v3264 = vand.u32 %v3041, 4294901760
        %v3265 = vsub.f32 %v3041, %v3264
        %3266 = vmatmul.mubr.f32.gmra.mrb[0].mxu0 %v3265
        %v3267 = vpop.f32.mrb[0].mxu0
        %v3268 = vadd.f32 %v3194, %v3267
        %v3269 = vpop.f32.mrb[0].mxu0
        %3270 = vdwg.mxu0
        %3271 = vmatprep.subr.mxu0 0.0
        %v3272 = vand.u32 %v3043, 4294901760
        %3273 = vmatpush1.xpose.msra.mxu0 %v3272
        %3274 = vmatprep.subr.mxu0 0.0
        %3275 = vmatpush1.xpose.msra.mxu0 0.0
        %3276 = vmatprep.subr.mxu0 0.0
        %3277 = vmatpush1.xpose.msra.mxu0 0.0
        %3278 = vmatprep.subr.mxu0 0.0
        %3279 = vmatpush1.xpose.msra.mxu0 0.0
        %3280 = vmatprep.subr.mxu0 0.0
        %3281 = vmatpush1.xpose.msra.mxu0 0.0
        %3282 = vmatprep.subr.mxu0 0.0
        %3283 = vmatpush1.xpose.msra.mxu0 0.0
        %3284 = vmatprep.subr.mxu0 0.0
        %3285 = vmatpush1.xpose.msra.mxu0 0.0
        %3286 = vmatprep.subr.mxu0 0.0
        %3287 = vmatpush1.xpose.msra.mxu0 0.0
        %3288 = vmatprep.subr.mxu0 0.0
        %3289 = vmatpush1.xpose.msra.mxu0 0.0
        %3290 = vmatprep.subr.mxu0 0.0
        %3291 = vmatpush1.xpose.msra.mxu0 0.0
        %3292 = vmatprep.subr.mxu0 0.0
        %3293 = vmatpush1.xpose.msra.mxu0 0.0
        %3294 = vmatprep.subr.mxu0 0.0
        %3295 = vmatpush1.xpose.msra.mxu0 0.0
        %3296 = vmatprep.subr.mxu0 0.0
        %3297 = vmatpush1.xpose.msra.mxu0 0.0
        %3298 = vmatprep.subr.mxu0 0.0
        %3299 = vmatpush1.xpose.msra.mxu0 0.0
        %3300 = vmatprep.subr.mxu0 0.0
        %3301 = vmatpush1.xpose.msra.mxu0 0.0
        %3302 = vmatprep.subr.mxu0 0.0
        %3303 = vmatpush1.xpose.msra.mxu0 0.0
        %3304 = vmatprep.subr.mxu0 0.0
        %3305 = vmatpush1.xpose.msra.mxu0 0.0
        %3306 = vmatprep.subr.mxu0 0.0
        %3307 = vmatpush1.xpose.msra.mxu0 0.0
        %3308 = vmatprep.subr.mxu0 0.0
        %3309 = vmatpush1.xpose.msra.mxu0 0.0
        %3310 = vmatprep.subr.mxu0 0.0
        %3311 = vmatpush1.xpose.msra.mxu0 0.0
        %3312 = vmatprep.subr.mxu0 0.0
        %3313 = vmatpush1.xpose.msra.mxu0 0.0
        %3314 = vmatprep.subr.mxu0 0.0
        %3315 = vmatpush1.xpose.msra.mxu0 0.0
        %3316 = vmatprep.subr.mxu0 0.0
        %3317 = vmatpush1.xpose.msra.mxu0 0.0
        %3318 = vmatprep.subr.mxu0 0.0
        %3319 = vmatpush1.xpose.msra.mxu0 0.0
        %3320 = vmatprep.subr.mxu0 0.0
        %3321 = vmatpush1.xpose.msra.mxu0 0.0
        %3322 = vmatprep.subr.mxu0 0.0
        %3323 = vmatpush1.xpose.msra.mxu0 0.0
        %3324 = vmatprep.subr.mxu0 0.0
        %3325 = vmatpush1.xpose.msra.mxu0 0.0
        %3326 = vmatprep.subr.mxu0 0.0
        %3327 = vmatpush1.xpose.msra.mxu0 0.0
        %3328 = vmatprep.subr.mxu0 0.0
        %3329 = vmatpush1.xpose.msra.mxu0 0.0
        %3330 = vmatprep.subr.mxu0 0.0
        %3331 = vmatpush1.xpose.msra.mxu0 0.0
        %3332 = vmatprep.subr.mxu0 0.0
        %3333 = vmatpush1.xpose.msra.mxu0 0.0
        %3334 = vmatprep.subr.mxu0 0.0
        %3335 = vmatpush1.xpose.msra.mxu0 0.0
        %3336 = vmatprep.mubr.f32.mxu0 0.0
        %v3337 = vand.u32 %v3041, 4294901760
        %v3338 = vsub.f32 %v3041, %v3337
        %v3339 = vand.u32 %v3338, 4294901760
        %3340 = vmatmul.mubr.f32.gmra.mrb[0].mxu0 %v3339
        %v3341 = vpop.f32.mrb[0].mxu0
        %v3342 = vadd.f32 %v3268, %v3341
        %v3343 = vpop.f32.mrb[0].mxu0
        %3344 = vdwg.mxu0
        %3345 = vmatprep.subr.mxu0 0.0
        %v3346 = vand.u32 %v3043, 4294901760
        %v3347 = vsub.f32 %v3043, %v3346
        %v3348 = vand.u32 %v3347, 4294901760
        %3349 = vmatpush1.xpose.msra.mxu0 %v3348
        %3350 = vmatprep.subr.mxu0 0.0
        %3351 = vmatpush1.xpose.msra.mxu0 0.0
        %3352 = vmatprep.subr.mxu0 0.0
        %3353 = vmatpush1.xpose.msra.mxu0 0.0
        %3354 = vmatprep.subr.mxu0 0.0
        %3355 = vmatpush1.xpose.msra.mxu0 0.0
        %3356 = vmatprep.subr.mxu0 0.0
        %3357 = vmatpush1.xpose.msra.mxu0 0.0
        %3358 = vmatprep.subr.mxu0 0.0
        %3359 = vmatpush1.xpose.msra.mxu0 0.0
        %3360 = vmatprep.subr.mxu0 0.0
        %3361 = vmatpush1.xpose.msra.mxu0 0.0
        %3362 = vmatprep.subr.mxu0 0.0
        %3363 = vmatpush1.xpose.msra.mxu0 0.0
        %3364 = vmatprep.subr.mxu0 0.0
        %3365 = vmatpush1.xpose.msra.mxu0 0.0
        %3366 = vmatprep.subr.mxu0 0.0
        %3367 = vmatpush1.xpose.msra.mxu0 0.0
        %3368 = vmatprep.subr.mxu0 0.0
        %3369 = vmatpush1.xpose.msra.mxu0 0.0
        %3370 = vmatprep.subr.mxu0 0.0
        %3371 = vmatpush1.xpose.msra.mxu0 0.0
        %3372 = vmatprep.subr.mxu0 0.0
        %3373 = vmatpush1.xpose.msra.mxu0 0.0
        %3374 = vmatprep.subr.mxu0 0.0
        %3375 = vmatpush1.xpose.msra.mxu0 0.0
        %3376 = vmatprep.subr.mxu0 0.0
        %3377 = vmatpush1.xpose.msra.mxu0 0.0
        %3378 = vmatprep.subr.mxu0 0.0
        %3379 = vmatpush1.xpose.msra.mxu0 0.0
        %3380 = vmatprep.subr.mxu0 0.0
        %3381 = vmatpush1.xpose.msra.mxu0 0.0
        %3382 = vmatprep.subr.mxu0 0.0
        %3383 = vmatpush1.xpose.msra.mxu0 0.0
        %3384 = vmatprep.subr.mxu0 0.0
        %3385 = vmatpush1.xpose.msra.mxu0 0.0
        %3386 = vmatprep.subr.mxu0 0.0
        %3387 = vmatpush1.xpose.msra.mxu0 0.0
        %3388 = vmatprep.subr.mxu0 0.0
        %3389 = vmatpush1.xpose.msra.mxu0 0.0
        %3390 = vmatprep.subr.mxu0 0.0
        %3391 = vmatpush1.xpose.msra.mxu0 0.0
        %3392 = vmatprep.subr.mxu0 0.0
        %3393 = vmatpush1.xpose.msra.mxu0 0.0
        %3394 = vmatprep.subr.mxu0 0.0
        %3395 = vmatpush1.xpose.msra.mxu0 0.0
        %3396 = vmatprep.subr.mxu0 0.0
        %3397 = vmatpush1.xpose.msra.mxu0 0.0
        %3398 = vmatprep.subr.mxu0 0.0
        %3399 = vmatpush1.xpose.msra.mxu0 0.0
        %3400 = vmatprep.subr.mxu0 0.0
        %3401 = vmatpush1.xpose.msra.mxu0 0.0
        %3402 = vmatprep.subr.mxu0 0.0
        %3403 = vmatpush1.xpose.msra.mxu0 0.0
        %3404 = vmatprep.subr.mxu0 0.0
        %3405 = vmatpush1.xpose.msra.mxu0 0.0
        %3406 = vmatprep.subr.mxu0 0.0
        %3407 = vmatpush1.xpose.msra.mxu0 0.0
        %3408 = vmatprep.subr.mxu0 0.0
        %3409 = vmatpush1.xpose.msra.mxu0 0.0
        %3410 = vmatprep.subr.mxu0 0.0
        %3411 = vmatpush1.xpose.msra.mxu0 0.0
        %3412 = vmatprep.mubr.f32.mxu0 0.0
        %v3413 = vand.u32 %v3041, 4294901760
        %3414 = vmatmul.mubr.f32.gmra.mrb[0].mxu0 %v3413
        %v3415 = vpop.f32.mrb[0].mxu0
        %v3416 = vadd.f32 %v3342, %v3415
        %v3417 = vpop.f32.mrb[0].mxu0
        %3418 = vdwg.mxu0
        %3419 = vmatprep.subr.mxu0 0.0
        %v3420 = vand.u32 %v3043, 4294901760
        %3421 = vmatpush1.xpose.msra.mxu0 %v3420
        %3422 = vmatprep.subr.mxu0 0.0
        %3423 = vmatpush1.xpose.msra.mxu0 0.0
        %3424 = vmatprep.subr.mxu0 0.0
        %3425 = vmatpush1.xpose.msra.mxu0 0.0
        %3426 = vmatprep.subr.mxu0 0.0
        %3427 = vmatpush1.xpose.msra.mxu0 0.0
        %3428 = vmatprep.subr.mxu0 0.0
        %3429 = vmatpush1.xpose.msra.mxu0 0.0
        %3430 = vmatprep.subr.mxu0 0.0
        %3431 = vmatpush1.xpose.msra.mxu0 0.0
        %3432 = vmatprep.subr.mxu0 0.0
        %3433 = vmatpush1.xpose.msra.mxu0 0.0
        %3434 = vmatprep.subr.mxu0 0.0
        %3435 = vmatpush1.xpose.msra.mxu0 0.0
        %3436 = vmatprep.subr.mxu0 0.0
        %3437 = vmatpush1.xpose.msra.mxu0 0.0
        %3438 = vmatprep.subr.mxu0 0.0
        %3439 = vmatpush1.xpose.msra.mxu0 0.0
        %3440 = vmatprep.subr.mxu0 0.0
        %3441 = vmatpush1.xpose.msra.mxu0 0.0
        %3442 = vmatprep.subr.mxu0 0.0
        %3443 = vmatpush1.xpose.msra.mxu0 0.0
        %3444 = vmatprep.subr.mxu0 0.0
        %3445 = vmatpush1.xpose.msra.mxu0 0.0
        %3446 = vmatprep.subr.mxu0 0.0
        %3447 = vmatpush1.xpose.msra.mxu0 0.0
        %3448 = vmatprep.subr.mxu0 0.0
        %3449 = vmatpush1.xpose.msra.mxu0 0.0
        %3450 = vmatprep.subr.mxu0 0.0
        %3451 = vmatpush1.xpose.msra.mxu0 0.0
        %3452 = vmatprep.subr.mxu0 0.0
        %3453 = vmatpush1.xpose.msra.mxu0 0.0
        %3454 = vmatprep.subr.mxu0 0.0
        %3455 = vmatpush1.xpose.msra.mxu0 0.0
        %3456 = vmatprep.subr.mxu0 0.0
        %3457 = vmatpush1.xpose.msra.mxu0 0.0
        %3458 = vmatprep.subr.mxu0 0.0
        %3459 = vmatpush1.xpose.msra.mxu0 0.0
        %3460 = vmatprep.subr.mxu0 0.0
        %3461 = vmatpush1.xpose.msra.mxu0 0.0
        %3462 = vmatprep.subr.mxu0 0.0
        %3463 = vmatpush1.xpose.msra.mxu0 0.0
        %3464 = vmatprep.subr.mxu0 0.0
        %3465 = vmatpush1.xpose.msra.mxu0 0.0
        %3466 = vmatprep.subr.mxu0 0.0
        %3467 = vmatpush1.xpose.msra.mxu0 0.0
        %3468 = vmatprep.subr.mxu0 0.0
        %3469 = vmatpush1.xpose.msra.mxu0 0.0
        %3470 = vmatprep.subr.mxu0 0.0
        %3471 = vmatpush1.xpose.msra.mxu0 0.0
        %3472 = vmatprep.subr.mxu0 0.0
        %3473 = vmatpush1.xpose.msra.mxu0 0.0
        %3474 = vmatprep.subr.mxu0 0.0
        %3475 = vmatpush1.xpose.msra.mxu0 0.0
        %3476 = vmatprep.subr.mxu0 0.0
        %3477 = vmatpush1.xpose.msra.mxu0 0.0
        %3478 = vmatprep.subr.mxu0 0.0
        %3479 = vmatpush1.xpose.msra.mxu0 0.0
        %3480 = vmatprep.subr.mxu0 0.0
        %3481 = vmatpush1.xpose.msra.mxu0 0.0
        %3482 = vmatprep.subr.mxu0 0.0
        %3483 = vmatpush1.xpose.msra.mxu0 0.0
        %3484 = vmatprep.mubr.f32.mxu0 0.0
        %v3485 = vand.u32 %v3041, 4294901760
        %3486 = vmatmul.mubr.f32.gmra.mrb[0].mxu0 %v3485
        %v3487 = vpop.f32.mrb[0].mxu0
        %v3488 = vadd.f32 %v3416, %v3487
        %v3489 = vpop.f32.mrb[0].mxu0
        %3490 = vdwg.mxu0
        %3491 = vrot.lane.b32.xlu0 %v775, 96
        %v3492 = vpop.permute.xlu0 %3491
        %v3493 = vsel %vm780, %v775, 0
        %v3495 = vsel %vm780, %v3492, 0
        %3497 = vmatprep.subr.mxu0 0.0
        %v3498 = vand.u32 %v3495, 4294901760
        %3499 = vmatpush1.xpose.msra.mxu0 %v3498
        %3500 = vmatprep.subr.mxu0 0.0
        %3501 = vmatpush1.xpose.msra.mxu0 0.0
        %3502 = vmatprep.subr.mxu0 0.0
        %3503 = vmatpush1.xpose.msra.mxu0 0.0
        %3504 = vmatprep.subr.mxu0 0.0
        %3505 = vmatpush1.xpose.msra.mxu0 0.0
        %3506 = vmatprep.subr.mxu0 0.0
        %3507 = vmatpush1.xpose.msra.mxu0 0.0
        %3508 = vmatprep.subr.mxu0 0.0
        %3509 = vmatpush1.xpose.msra.mxu0 0.0
        %3510 = vmatprep.subr.mxu0 0.0
        %3511 = vmatpush1.xpose.msra.mxu0 0.0
        %3512 = vmatprep.subr.mxu0 0.0
        %3513 = vmatpush1.xpose.msra.mxu0 0.0
        %3514 = vmatprep.subr.mxu0 0.0
        %3515 = vmatpush1.xpose.msra.mxu0 0.0
        %3516 = vmatprep.subr.mxu0 0.0
        %3517 = vmatpush1.xpose.msra.mxu0 0.0
        %3518 = vmatprep.subr.mxu0 0.0
        %3519 = vmatpush1.xpose.msra.mxu0 0.0
        %3520 = vmatprep.subr.mxu0 0.0
        %3521 = vmatpush1.xpose.msra.mxu0 0.0
        %3522 = vmatprep.subr.mxu0 0.0
        %3523 = vmatpush1.xpose.msra.mxu0 0.0
        %3524 = vmatprep.subr.mxu0 0.0
        %3525 = vmatpush1.xpose.msra.mxu0 0.0
        %3526 = vmatprep.subr.mxu0 0.0
        %3527 = vmatpush1.xpose.msra.mxu0 0.0
        %3528 = vmatprep.subr.mxu0 0.0
        %3529 = vmatpush1.xpose.msra.mxu0 0.0
        %3530 = vmatprep.subr.mxu0 0.0
        %3531 = vmatpush1.xpose.msra.mxu0 0.0
        %3532 = vmatprep.subr.mxu0 0.0
        %3533 = vmatpush1.xpose.msra.mxu0 0.0
        %3534 = vmatprep.subr.mxu0 0.0
        %3535 = vmatpush1.xpose.msra.mxu0 0.0
        %3536 = vmatprep.subr.mxu0 0.0
        %3537 = vmatpush1.xpose.msra.mxu0 0.0
        %3538 = vmatprep.subr.mxu0 0.0
        %3539 = vmatpush1.xpose.msra.mxu0 0.0
        %3540 = vmatprep.subr.mxu0 0.0
        %3541 = vmatpush1.xpose.msra.mxu0 0.0
        %3542 = vmatprep.subr.mxu0 0.0
        %3543 = vmatpush1.xpose.msra.mxu0 0.0
        %3544 = vmatprep.subr.mxu0 0.0
        %3545 = vmatpush1.xpose.msra.mxu0 0.0
        %3546 = vmatprep.subr.mxu0 0.0
        %3547 = vmatpush1.xpose.msra.mxu0 0.0
        %3548 = vmatprep.subr.mxu0 0.0
        %3549 = vmatpush1.xpose.msra.mxu0 0.0
        %3550 = vmatprep.subr.mxu0 0.0
        %3551 = vmatpush1.xpose.msra.mxu0 0.0
        %3552 = vmatprep.subr.mxu0 0.0
        %3553 = vmatpush1.xpose.msra.mxu0 0.0
        %3554 = vmatprep.subr.mxu0 0.0
        %3555 = vmatpush1.xpose.msra.mxu0 0.0
        %3556 = vmatprep.subr.mxu0 0.0
        %3557 = vmatpush1.xpose.msra.mxu0 0.0
        %3558 = vmatprep.subr.mxu0 0.0
        %3559 = vmatpush1.xpose.msra.mxu0 0.0
        %3560 = vmatprep.subr.mxu0 0.0
        %3561 = vmatpush1.xpose.msra.mxu0 0.0
        %3562 = vmatprep.mubr.f32.mxu0 0.0
        %v3563 = vand.u32 %v3493, 4294901760
        %v3564 = vsub.f32 %v3493, %v3563
        %v3565 = vand.u32 %v3564, 4294901760
        %v3566 = vsub.f32 %v3564, %v3565
        %v3567 = vand.u32 %v3566, 4294901760
        %3568 = vmatmul.mubr.f32.gmra.mrb[0].mxu0 %v3567
        %v3569 = vpop.f32.mrb[0].mxu0
        %v3570 = vadd.f32 0.0, %v3569
        %v3571 = vpop.f32.mrb[0].mxu0
        %3572 = vdwg.mxu0
        %3573 = vmatprep.subr.mxu0 0.0
        %v3574 = vand.u32 %v3495, 4294901760
        %v3575 = vsub.f32 %v3495, %v3574
        %v3576 = vand.u32 %v3575, 4294901760
        %v3577 = vsub.f32 %v3575, %v3576
        %v3578 = vand.u32 %v3577, 4294901760
        %3579 = vmatpush1.xpose.msra.mxu0 %v3578
        %3580 = vmatprep.subr.mxu0 0.0
        %3581 = vmatpush1.xpose.msra.mxu0 0.0
        %3582 = vmatprep.subr.mxu0 0.0
        %3583 = vmatpush1.xpose.msra.mxu0 0.0
        %3584 = vmatprep.subr.mxu0 0.0
        %3585 = vmatpush1.xpose.msra.mxu0 0.0
        %3586 = vmatprep.subr.mxu0 0.0
        %3587 = vmatpush1.xpose.msra.mxu0 0.0
        %3588 = vmatprep.subr.mxu0 0.0
        %3589 = vmatpush1.xpose.msra.mxu0 0.0
        %3590 = vmatprep.subr.mxu0 0.0
        %3591 = vmatpush1.xpose.msra.mxu0 0.0
        %3592 = vmatprep.subr.mxu0 0.0
        %3593 = vmatpush1.xpose.msra.mxu0 0.0
        %3594 = vmatprep.subr.mxu0 0.0
        %3595 = vmatpush1.xpose.msra.mxu0 0.0
        %3596 = vmatprep.subr.mxu0 0.0
        %3597 = vmatpush1.xpose.msra.mxu0 0.0
        %3598 = vmatprep.subr.mxu0 0.0
        %3599 = vmatpush1.xpose.msra.mxu0 0.0
        %3600 = vmatprep.subr.mxu0 0.0
        %3601 = vmatpush1.xpose.msra.mxu0 0.0
        %3602 = vmatprep.subr.mxu0 0.0
        %3603 = vmatpush1.xpose.msra.mxu0 0.0
        %3604 = vmatprep.subr.mxu0 0.0
        %3605 = vmatpush1.xpose.msra.mxu0 0.0
        %3606 = vmatprep.subr.mxu0 0.0
        %3607 = vmatpush1.xpose.msra.mxu0 0.0
        %3608 = vmatprep.subr.mxu0 0.0
        %3609 = vmatpush1.xpose.msra.mxu0 0.0
        %3610 = vmatprep.subr.mxu0 0.0
        %3611 = vmatpush1.xpose.msra.mxu0 0.0
        %3612 = vmatprep.subr.mxu0 0.0
        %3613 = vmatpush1.xpose.msra.mxu0 0.0
        %3614 = vmatprep.subr.mxu0 0.0
        %3615 = vmatpush1.xpose.msra.mxu0 0.0
        %3616 = vmatprep.subr.mxu0 0.0
        %3617 = vmatpush1.xpose.msra.mxu0 0.0
        %3618 = vmatprep.subr.mxu0 0.0
        %3619 = vmatpush1.xpose.msra.mxu0 0.0
        %3620 = vmatprep.subr.mxu0 0.0
        %3621 = vmatpush1.xpose.msra.mxu0 0.0
        %3622 = vmatprep.subr.mxu0 0.0
        %3623 = vmatpush1.xpose.msra.mxu0 0.0
        %3624 = vmatprep.subr.mxu0 0.0
        %3625 = vmatpush1.xpose.msra.mxu0 0.0
        %3626 = vmatprep.subr.mxu0 0.0
        %3627 = vmatpush1.xpose.msra.mxu0 0.0
        %3628 = vmatprep.subr.mxu0 0.0
        %3629 = vmatpush1.xpose.msra.mxu0 0.0
        %3630 = vmatprep.subr.mxu0 0.0
        %3631 = vmatpush1.xpose.msra.mxu0 0.0
        %3632 = vmatprep.subr.mxu0 0.0
        %3633 = vmatpush1.xpose.msra.mxu0 0.0
        %3634 = vmatprep.subr.mxu0 0.0
        %3635 = vmatpush1.xpose.msra.mxu0 0.0
        %3636 = vmatprep.subr.mxu0 0.0
        %3637 = vmatpush1.xpose.msra.mxu0 0.0
        %3638 = vmatprep.subr.mxu0 0.0
        %3639 = vmatpush1.xpose.msra.mxu0 0.0
        %3640 = vmatprep.subr.mxu0 0.0
        %3641 = vmatpush1.xpose.msra.mxu0 0.0
        %3642 = vmatprep.mubr.f32.mxu0 0.0
        %v3643 = vand.u32 %v3493, 4294901760
        %3644 = vmatmul.mubr.f32.gmra.mrb[0].mxu0 %v3643
        %v3645 = vpop.f32.mrb[0].mxu0
        %v3646 = vadd.f32 %v3570, %v3645
        %v3647 = vpop.f32.mrb[0].mxu0
        %3648 = vdwg.mxu0
        %3649 = vmatprep.subr.mxu0 0.0
        %v3650 = vand.u32 %v3495, 4294901760
        %v3651 = vsub.f32 %v3495, %v3650
        %3652 = vmatpush1.xpose.msra.mxu0 %v3651
        %3653 = vmatprep.subr.mxu0 0.0
        %3654 = vmatpush1.xpose.msra.mxu0 0.0
        %3655 = vmatprep.subr.mxu0 0.0
        %3656 = vmatpush1.xpose.msra.mxu0 0.0
        %3657 = vmatprep.subr.mxu0 0.0
        %3658 = vmatpush1.xpose.msra.mxu0 0.0
        %3659 = vmatprep.subr.mxu0 0.0
        %3660 = vmatpush1.xpose.msra.mxu0 0.0
        %3661 = vmatprep.subr.mxu0 0.0
        %3662 = vmatpush1.xpose.msra.mxu0 0.0
        %3663 = vmatprep.subr.mxu0 0.0
        %3664 = vmatpush1.xpose.msra.mxu0 0.0
        %3665 = vmatprep.subr.mxu0 0.0
        %3666 = vmatpush1.xpose.msra.mxu0 0.0
        %3667 = vmatprep.subr.mxu0 0.0
        %3668 = vmatpush1.xpose.msra.mxu0 0.0
        %3669 = vmatprep.subr.mxu0 0.0
        %3670 = vmatpush1.xpose.msra.mxu0 0.0
        %3671 = vmatprep.subr.mxu0 0.0
        %3672 = vmatpush1.xpose.msra.mxu0 0.0
        %3673 = vmatprep.subr.mxu0 0.0
        %3674 = vmatpush1.xpose.msra.mxu0 0.0
        %3675 = vmatprep.subr.mxu0 0.0
        %3676 = vmatpush1.xpose.msra.mxu0 0.0
        %3677 = vmatprep.subr.mxu0 0.0
        %3678 = vmatpush1.xpose.msra.mxu0 0.0
        %3679 = vmatprep.subr.mxu0 0.0
        %3680 = vmatpush1.xpose.msra.mxu0 0.0
        %3681 = vmatprep.subr.mxu0 0.0
        %3682 = vmatpush1.xpose.msra.mxu0 0.0
        %3683 = vmatprep.subr.mxu0 0.0
        %3684 = vmatpush1.xpose.msra.mxu0 0.0
        %3685 = vmatprep.subr.mxu0 0.0
        %3686 = vmatpush1.xpose.msra.mxu0 0.0
        %3687 = vmatprep.subr.mxu0 0.0
        %3688 = vmatpush1.xpose.msra.mxu0 0.0
        %3689 = vmatprep.subr.mxu0 0.0
        %3690 = vmatpush1.xpose.msra.mxu0 0.0
        %3691 = vmatprep.subr.mxu0 0.0
        %3692 = vmatpush1.xpose.msra.mxu0 0.0
        %3693 = vmatprep.subr.mxu0 0.0
        %3694 = vmatpush1.xpose.msra.mxu0 0.0
        %3695 = vmatprep.subr.mxu0 0.0
        %3696 = vmatpush1.xpose.msra.mxu0 0.0
        %3697 = vmatprep.subr.mxu0 0.0
        %3698 = vmatpush1.xpose.msra.mxu0 0.0
        %3699 = vmatprep.subr.mxu0 0.0
        %3700 = vmatpush1.xpose.msra.mxu0 0.0
        %3701 = vmatprep.subr.mxu0 0.0
        %3702 = vmatpush1.xpose.msra.mxu0 0.0
        %3703 = vmatprep.subr.mxu0 0.0
        %3704 = vmatpush1.xpose.msra.mxu0 0.0
        %3705 = vmatprep.subr.mxu0 0.0
        %3706 = vmatpush1.xpose.msra.mxu0 0.0
        %3707 = vmatprep.subr.mxu0 0.0
        %3708 = vmatpush1.xpose.msra.mxu0 0.0
        %3709 = vmatprep.subr.mxu0 0.0
        %3710 = vmatpush1.xpose.msra.mxu0 0.0
        %3711 = vmatprep.subr.mxu0 0.0
        %3712 = vmatpush1.xpose.msra.mxu0 0.0
        %3713 = vmatprep.subr.mxu0 0.0
        %3714 = vmatpush1.xpose.msra.mxu0 0.0
        %3715 = vmatprep.mubr.f32.mxu0 0.0
        %v3716 = vand.u32 %v3493, 4294901760
        %v3717 = vsub.f32 %v3493, %v3716
        %3718 = vmatmul.mubr.f32.gmra.mrb[0].mxu0 %v3717
        %v3719 = vpop.f32.mrb[0].mxu0
        %v3720 = vadd.f32 %v3646, %v3719
        %v3721 = vpop.f32.mrb[0].mxu0
        %3722 = vdwg.mxu0
        %3723 = vmatprep.subr.mxu0 0.0
        %v3724 = vand.u32 %v3495, 4294901760
        %3725 = vmatpush1.xpose.msra.mxu0 %v3724
        %3726 = vmatprep.subr.mxu0 0.0
        %3727 = vmatpush1.xpose.msra.mxu0 0.0
        %3728 = vmatprep.subr.mxu0 0.0
        %3729 = vmatpush1.xpose.msra.mxu0 0.0
        %3730 = vmatprep.subr.mxu0 0.0
        %3731 = vmatpush1.xpose.msra.mxu0 0.0
        %3732 = vmatprep.subr.mxu0 0.0
        %3733 = vmatpush1.xpose.msra.mxu0 0.0
        %3734 = vmatprep.subr.mxu0 0.0
        %3735 = vmatpush1.xpose.msra.mxu0 0.0
        %3736 = vmatprep.subr.mxu0 0.0
        %3737 = vmatpush1.xpose.msra.mxu0 0.0
        %3738 = vmatprep.subr.mxu0 0.0
        %3739 = vmatpush1.xpose.msra.mxu0 0.0
        %3740 = vmatprep.subr.mxu0 0.0
        %3741 = vmatpush1.xpose.msra.mxu0 0.0
        %3742 = vmatprep.subr.mxu0 0.0
        %3743 = vmatpush1.xpose.msra.mxu0 0.0
        %3744 = vmatprep.subr.mxu0 0.0
        %3745 = vmatpush1.xpose.msra.mxu0 0.0
        %3746 = vmatprep.subr.mxu0 0.0
        %3747 = vmatpush1.xpose.msra.mxu0 0.0
        %3748 = vmatprep.subr.mxu0 0.0
        %3749 = vmatpush1.xpose.msra.mxu0 0.0
        %3750 = vmatprep.subr.mxu0 0.0
        %3751 = vmatpush1.xpose.msra.mxu0 0.0
        %3752 = vmatprep.subr.mxu0 0.0
        %3753 = vmatpush1.xpose.msra.mxu0 0.0
        %3754 = vmatprep.subr.mxu0 0.0
        %3755 = vmatpush1.xpose.msra.mxu0 0.0
        %3756 = vmatprep.subr.mxu0 0.0
        %3757 = vmatpush1.xpose.msra.mxu0 0.0
        %3758 = vmatprep.subr.mxu0 0.0
        %3759 = vmatpush1.xpose.msra.mxu0 0.0
        %3760 = vmatprep.subr.mxu0 0.0
        %3761 = vmatpush1.xpose.msra.mxu0 0.0
        %3762 = vmatprep.subr.mxu0 0.0
        %3763 = vmatpush1.xpose.msra.mxu0 0.0
        %3764 = vmatprep.subr.mxu0 0.0
        %3765 = vmatpush1.xpose.msra.mxu0 0.0
        %3766 = vmatprep.subr.mxu0 0.0
        %3767 = vmatpush1.xpose.msra.mxu0 0.0
        %3768 = vmatprep.subr.mxu0 0.0
        %3769 = vmatpush1.xpose.msra.mxu0 0.0
        %3770 = vmatprep.subr.mxu0 0.0
        %3771 = vmatpush1.xpose.msra.mxu0 0.0
        %3772 = vmatprep.subr.mxu0 0.0
        %3773 = vmatpush1.xpose.msra.mxu0 0.0
        %3774 = vmatprep.subr.mxu0 0.0
        %3775 = vmatpush1.xpose.msra.mxu0 0.0
        %3776 = vmatprep.subr.mxu0 0.0
        %3777 = vmatpush1.xpose.msra.mxu0 0.0
        %3778 = vmatprep.subr.mxu0 0.0
        %3779 = vmatpush1.xpose.msra.mxu0 0.0
        %3780 = vmatprep.subr.mxu0 0.0
        %3781 = vmatpush1.xpose.msra.mxu0 0.0
        %3782 = vmatprep.subr.mxu0 0.0
        %3783 = vmatpush1.xpose.msra.mxu0 0.0
        %3784 = vmatprep.subr.mxu0 0.0
        %3785 = vmatpush1.xpose.msra.mxu0 0.0
        %3786 = vmatprep.subr.mxu0 0.0
        %3787 = vmatpush1.xpose.msra.mxu0 0.0
        %3788 = vmatprep.mubr.f32.mxu0 0.0
        %v3789 = vand.u32 %v3493, 4294901760
        %v3790 = vsub.f32 %v3493, %v3789
        %v3791 = vand.u32 %v3790, 4294901760
        %3792 = vmatmul.mubr.f32.gmra.mrb[0].mxu0 %v3791
        %v3793 = vpop.f32.mrb[0].mxu0
        %v3794 = vadd.f32 %v3720, %v3793
        %v3795 = vpop.f32.mrb[0].mxu0
        %3796 = vdwg.mxu0
        %3797 = vmatprep.subr.mxu0 0.0
        %v3798 = vand.u32 %v3495, 4294901760
        %v3799 = vsub.f32 %v3495, %v3798
        %v3800 = vand.u32 %v3799, 4294901760
        %3801 = vmatpush1.xpose.msra.mxu0 %v3800
        %3802 = vmatprep.subr.mxu0 0.0
        %3803 = vmatpush1.xpose.msra.mxu0 0.0
        %3804 = vmatprep.subr.mxu0 0.0
        %3805 = vmatpush1.xpose.msra.mxu0 0.0
        %3806 = vmatprep.subr.mxu0 0.0
        %3807 = vmatpush1.xpose.msra.mxu0 0.0
        %3808 = vmatprep.subr.mxu0 0.0
        %3809 = vmatpush1.xpose.msra.mxu0 0.0
        %3810 = vmatprep.subr.mxu0 0.0
        %3811 = vmatpush1.xpose.msra.mxu0 0.0
        %3812 = vmatprep.subr.mxu0 0.0
        %3813 = vmatpush1.xpose.msra.mxu0 0.0
        %3814 = vmatprep.subr.mxu0 0.0
        %3815 = vmatpush1.xpose.msra.mxu0 0.0
        %3816 = vmatprep.subr.mxu0 0.0
        %3817 = vmatpush1.xpose.msra.mxu0 0.0
        %3818 = vmatprep.subr.mxu0 0.0
        %3819 = vmatpush1.xpose.msra.mxu0 0.0
        %3820 = vmatprep.subr.mxu0 0.0
        %3821 = vmatpush1.xpose.msra.mxu0 0.0
        %3822 = vmatprep.subr.mxu0 0.0
        %3823 = vmatpush1.xpose.msra.mxu0 0.0
        %3824 = vmatprep.subr.mxu0 0.0
        %3825 = vmatpush1.xpose.msra.mxu0 0.0
        %3826 = vmatprep.subr.mxu0 0.0
        %3827 = vmatpush1.xpose.msra.mxu0 0.0
        %3828 = vmatprep.subr.mxu0 0.0
        %3829 = vmatpush1.xpose.msra.mxu0 0.0
        %3830 = vmatprep.subr.mxu0 0.0
        %3831 = vmatpush1.xpose.msra.mxu0 0.0
        %3832 = vmatprep.subr.mxu0 0.0
        %3833 = vmatpush1.xpose.msra.mxu0 0.0
        %3834 = vmatprep.subr.mxu0 0.0
        %3835 = vmatpush1.xpose.msra.mxu0 0.0
        %3836 = vmatprep.subr.mxu0 0.0
        %3837 = vmatpush1.xpose.msra.mxu0 0.0
        %3838 = vmatprep.subr.mxu0 0.0
        %3839 = vmatpush1.xpose.msra.mxu0 0.0
        %3840 = vmatprep.subr.mxu0 0.0
        %3841 = vmatpush1.xpose.msra.mxu0 0.0
        %3842 = vmatprep.subr.mxu0 0.0
        %3843 = vmatpush1.xpose.msra.mxu0 0.0
        %3844 = vmatprep.subr.mxu0 0.0
        %3845 = vmatpush1.xpose.msra.mxu0 0.0
        %3846 = vmatprep.subr.mxu0 0.0
        %3847 = vmatpush1.xpose.msra.mxu0 0.0
        %3848 = vmatprep.subr.mxu0 0.0
        %3849 = vmatpush1.xpose.msra.mxu0 0.0
        %3850 = vmatprep.subr.mxu0 0.0
        %3851 = vmatpush1.xpose.msra.mxu0 0.0
        %3852 = vmatprep.subr.mxu0 0.0
        %3853 = vmatpush1.xpose.msra.mxu0 0.0
        %3854 = vmatprep.subr.mxu0 0.0
        %3855 = vmatpush1.xpose.msra.mxu0 0.0
        %3856 = vmatprep.subr.mxu0 0.0
        %3857 = vmatpush1.xpose.msra.mxu0 0.0
        %3858 = vmatprep.subr.mxu0 0.0
        %3859 = vmatpush1.xpose.msra.mxu0 0.0
        %3860 = vmatprep.subr.mxu0 0.0
        %3861 = vmatpush1.xpose.msra.mxu0 0.0
        %3862 = vmatprep.subr.mxu0 0.0
        %3863 = vmatpush1.xpose.msra.mxu0 0.0
        %3864 = vmatprep.mubr.f32.mxu0 0.0
        %v3865 = vand.u32 %v3493, 4294901760
        %3866 = vmatmul.mubr.f32.gmra.mrb[0].mxu0 %v3865
        %v3867 = vpop.f32.mrb[0].mxu0
        %v3868 = vadd.f32 %v3794, %v3867
        %v3869 = vpop.f32.mrb[0].mxu0
        %3870 = vdwg.mxu0
        %3871 = vmatprep.subr.mxu0 0.0
        %v3872 = vand.u32 %v3495, 4294901760
        %3873 = vmatpush1.xpose.msra.mxu0 %v3872
        %3874 = vmatprep.subr.mxu0 0.0
        %3875 = vmatpush1.xpose.msra.mxu0 0.0
        %3876 = vmatprep.subr.mxu0 0.0
        %3877 = vmatpush1.xpose.msra.mxu0 0.0
        %3878 = vmatprep.subr.mxu0 0.0
        %3879 = vmatpush1.xpose.msra.mxu0 0.0
        %3880 = vmatprep.subr.mxu0 0.0
        %3881 = vmatpush1.xpose.msra.mxu0 0.0
        %3882 = vmatprep.subr.mxu0 0.0
        %3883 = vmatpush1.xpose.msra.mxu0 0.0
        %3884 = vmatprep.subr.mxu0 0.0
        %3885 = vmatpush1.xpose.msra.mxu0 0.0
        %3886 = vmatprep.subr.mxu0 0.0
        %3887 = vmatpush1.xpose.msra.mxu0 0.0
        %3888 = vmatprep.subr.mxu0 0.0
        %3889 = vmatpush1.xpose.msra.mxu0 0.0
        %3890 = vmatprep.subr.mxu0 0.0
        %3891 = vmatpush1.xpose.msra.mxu0 0.0
        %3892 = vmatprep.subr.mxu0 0.0
        %3893 = vmatpush1.xpose.msra.mxu0 0.0
        %3894 = vmatprep.subr.mxu0 0.0
        %3895 = vmatpush1.xpose.msra.mxu0 0.0
        %3896 = vmatprep.subr.mxu0 0.0
        %3897 = vmatpush1.xpose.msra.mxu0 0.0
        %3898 = vmatprep.subr.mxu0 0.0
        %3899 = vmatpush1.xpose.msra.mxu0 0.0
        %3900 = vmatprep.subr.mxu0 0.0
        %3901 = vmatpush1.xpose.msra.mxu0 0.0
        %3902 = vmatprep.subr.mxu0 0.0
        %3903 = vmatpush1.xpose.msra.mxu0 0.0
        %3904 = vmatprep.subr.mxu0 0.0
        %3905 = vmatpush1.xpose.msra.mxu0 0.0
        %3906 = vmatprep.subr.mxu0 0.0
        %3907 = vmatpush1.xpose.msra.mxu0 0.0
        %3908 = vmatprep.subr.mxu0 0.0
        %3909 = vmatpush1.xpose.msra.mxu0 0.0
        %3910 = vmatprep.subr.mxu0 0.0
        %3911 = vmatpush1.xpose.msra.mxu0 0.0
        %3912 = vmatprep.subr.mxu0 0.0
        %3913 = vmatpush1.xpose.msra.mxu0 0.0
        %3914 = vmatprep.subr.mxu0 0.0
        %3915 = vmatpush1.xpose.msra.mxu0 0.0
        %3916 = vmatprep.subr.mxu0 0.0
        %3917 = vmatpush1.xpose.msra.mxu0 0.0
        %3918 = vmatprep.subr.mxu0 0.0
        %3919 = vmatpush1.xpose.msra.mxu0 0.0
        %3920 = vmatprep.subr.mxu0 0.0
        %3921 = vmatpush1.xpose.msra.mxu0 0.0
        %3922 = vmatprep.subr.mxu0 0.0
        %3923 = vmatpush1.xpose.msra.mxu0 0.0
        %3924 = vmatprep.subr.mxu0 0.0
        %3925 = vmatpush1.xpose.msra.mxu0 0.0
        %3926 = vmatprep.subr.mxu0 0.0
        %3927 = vmatpush1.xpose.msra.mxu0 0.0
        %3928 = vmatprep.subr.mxu0 0.0
        %3929 = vmatpush1.xpose.msra.mxu0 0.0
        %3930 = vmatprep.subr.mxu0 0.0
        %3931 = vmatpush1.xpose.msra.mxu0 0.0
        %3932 = vmatprep.subr.mxu0 0.0
        %3933 = vmatpush1.xpose.msra.mxu0 0.0
        %3934 = vmatprep.subr.mxu0 0.0
        %3935 = vmatpush1.xpose.msra.mxu0 0.0
        %3936 = vmatprep.mubr.f32.mxu0 0.0
        %v3937 = vand.u32 %v3493, 4294901760
        %3938 = vmatmul.mubr.f32.gmra.mrb[0].mxu0 %v3937
        %v3939 = vpop.f32.mrb[0].mxu0
        %v3940 = vadd.f32 %v3868, %v3939
        %v3941 = vpop.f32.mrb[0].mxu0
        %3942 = vdwg.mxu0
        %3943 = vrot.lane.b32.xlu0 %v777, 96
        %v3944 = vpop.permute.xlu0 %3943
        %v3945 = vsel %vm780, %v777, 0
        %v3947 = vsel %vm780, %v3944, 0
        %3949 = vmatprep.subr.mxu0 0.0
        %v3950 = vand.u32 %v3947, 4294901760
        %3951 = vmatpush1.xpose.msra.mxu0 %v3950
        %3952 = vmatprep.subr.mxu0 0.0
        %3953 = vmatpush1.xpose.msra.mxu0 0.0
        %3954 = vmatprep.subr.mxu0 0.0
        %3955 = vmatpush1.xpose.msra.mxu0 0.0
        %3956 = vmatprep.subr.mxu0 0.0
        %3957 = vmatpush1.xpose.msra.mxu0 0.0
        %3958 = vmatprep.subr.mxu0 0.0
        %3959 = vmatpush1.xpose.msra.mxu0 0.0
        %3960 = vmatprep.subr.mxu0 0.0
        %3961 = vmatpush1.xpose.msra.mxu0 0.0
        %3962 = vmatprep.subr.mxu0 0.0
        %3963 = vmatpush1.xpose.msra.mxu0 0.0
        %3964 = vmatprep.subr.mxu0 0.0
        %3965 = vmatpush1.xpose.msra.mxu0 0.0
        %3966 = vmatprep.subr.mxu0 0.0
        %3967 = vmatpush1.xpose.msra.mxu0 0.0
        %3968 = vmatprep.subr.mxu0 0.0
        %3969 = vmatpush1.xpose.msra.mxu0 0.0
        %3970 = vmatprep.subr.mxu0 0.0
        %3971 = vmatpush1.xpose.msra.mxu0 0.0
        %3972 = vmatprep.subr.mxu0 0.0
        %3973 = vmatpush1.xpose.msra.mxu0 0.0
        %3974 = vmatprep.subr.mxu0 0.0
        %3975 = vmatpush1.xpose.msra.mxu0 0.0
        %3976 = vmatprep.subr.mxu0 0.0
        %3977 = vmatpush1.xpose.msra.mxu0 0.0
        %3978 = vmatprep.subr.mxu0 0.0
        %3979 = vmatpush1.xpose.msra.mxu0 0.0
        %3980 = vmatprep.subr.mxu0 0.0
        %3981 = vmatpush1.xpose.msra.mxu0 0.0
        %3982 = vmatprep.subr.mxu0 0.0
        %3983 = vmatpush1.xpose.msra.mxu0 0.0
        %3984 = vmatprep.subr.mxu0 0.0
        %3985 = vmatpush1.xpose.msra.mxu0 0.0
        %3986 = vmatprep.subr.mxu0 0.0
        %3987 = vmatpush1.xpose.msra.mxu0 0.0
        %3988 = vmatprep.subr.mxu0 0.0
        %3989 = vmatpush1.xpose.msra.mxu0 0.0
        %3990 = vmatprep.subr.mxu0 0.0
        %3991 = vmatpush1.xpose.msra.mxu0 0.0
        %3992 = vmatprep.subr.mxu0 0.0
        %3993 = vmatpush1.xpose.msra.mxu0 0.0
        %3994 = vmatprep.subr.mxu0 0.0
        %3995 = vmatpush1.xpose.msra.mxu0 0.0
        %3996 = vmatprep.subr.mxu0 0.0
        %3997 = vmatpush1.xpose.msra.mxu0 0.0
        %3998 = vmatprep.subr.mxu0 0.0
        %3999 = vmatpush1.xpose.msra.mxu0 0.0
        %4000 = vmatprep.subr.mxu0 0.0
        %4001 = vmatpush1.xpose.msra.mxu0 0.0
        %4002 = vmatprep.subr.mxu0 0.0
        %4003 = vmatpush1.xpose.msra.mxu0 0.0
        %4004 = vmatprep.subr.mxu0 0.0
        %4005 = vmatpush1.xpose.msra.mxu0 0.0
        %4006 = vmatprep.subr.mxu0 0.0
        %4007 = vmatpush1.xpose.msra.mxu0 0.0
        %4008 = vmatprep.subr.mxu0 0.0
        %4009 = vmatpush1.xpose.msra.mxu0 0.0
        %4010 = vmatprep.subr.mxu0 0.0
        %4011 = vmatpush1.xpose.msra.mxu0 0.0
        %4012 = vmatprep.subr.mxu0 0.0
        %4013 = vmatpush1.xpose.msra.mxu0 0.0
        %4014 = vmatprep.mubr.f32.mxu0 0.0
        %v4015 = vand.u32 %v3945, 4294901760
        %v4016 = vsub.f32 %v3945, %v4015
        %v4017 = vand.u32 %v4016, 4294901760
        %v4018 = vsub.f32 %v4016, %v4017
        %v4019 = vand.u32 %v4018, 4294901760
        %4020 = vmatmul.mubr.f32.gmra.mrb[0].mxu0 %v4019
        %v4021 = vpop.f32.mrb[0].mxu0
        %v4022 = vadd.f32 0.0, %v4021
        %v4023 = vpop.f32.mrb[0].mxu0
        %4024 = vdwg.mxu0
        %4025 = vmatprep.subr.mxu0 0.0
        %v4026 = vand.u32 %v3947, 4294901760
        %v4027 = vsub.f32 %v3947, %v4026
        %v4028 = vand.u32 %v4027, 4294901760
        %v4029 = vsub.f32 %v4027, %v4028
        %v4030 = vand.u32 %v4029, 4294901760
        %4031 = vmatpush1.xpose.msra.mxu0 %v4030
        %4032 = vmatprep.subr.mxu0 0.0
        %4033 = vmatpush1.xpose.msra.mxu0 0.0
        %4034 = vmatprep.subr.mxu0 0.0
        %4035 = vmatpush1.xpose.msra.mxu0 0.0
        %4036 = vmatprep.subr.mxu0 0.0
        %4037 = vmatpush1.xpose.msra.mxu0 0.0
        %4038 = vmatprep.subr.mxu0 0.0
        %4039 = vmatpush1.xpose.msra.mxu0 0.0
        %4040 = vmatprep.subr.mxu0 0.0
        %4041 = vmatpush1.xpose.msra.mxu0 0.0
        %4042 = vmatprep.subr.mxu0 0.0
        %4043 = vmatpush1.xpose.msra.mxu0 0.0
        %4044 = vmatprep.subr.mxu0 0.0
        %4045 = vmatpush1.xpose.msra.mxu0 0.0
        %4046 = vmatprep.subr.mxu0 0.0
        %4047 = vmatpush1.xpose.msra.mxu0 0.0
        %4048 = vmatprep.subr.mxu0 0.0
        %4049 = vmatpush1.xpose.msra.mxu0 0.0
        %4050 = vmatprep.subr.mxu0 0.0
        %4051 = vmatpush1.xpose.msra.mxu0 0.0
        %4052 = vmatprep.subr.mxu0 0.0
        %4053 = vmatpush1.xpose.msra.mxu0 0.0
        %4054 = vmatprep.subr.mxu0 0.0
        %4055 = vmatpush1.xpose.msra.mxu0 0.0
        %4056 = vmatprep.subr.mxu0 0.0
        %4057 = vmatpush1.xpose.msra.mxu0 0.0
        %4058 = vmatprep.subr.mxu0 0.0
        %4059 = vmatpush1.xpose.msra.mxu0 0.0
        %4060 = vmatprep.subr.mxu0 0.0
        %4061 = vmatpush1.xpose.msra.mxu0 0.0
        %4062 = vmatprep.subr.mxu0 0.0
        %4063 = vmatpush1.xpose.msra.mxu0 0.0
        %4064 = vmatprep.subr.mxu0 0.0
        %4065 = vmatpush1.xpose.msra.mxu0 0.0
        %4066 = vmatprep.subr.mxu0 0.0
        %4067 = vmatpush1.xpose.msra.mxu0 0.0
        %4068 = vmatprep.subr.mxu0 0.0
        %4069 = vmatpush1.xpose.msra.mxu0 0.0
        %4070 = vmatprep.subr.mxu0 0.0
        %4071 = vmatpush1.xpose.msra.mxu0 0.0
        %4072 = vmatprep.subr.mxu0 0.0
        %4073 = vmatpush1.xpose.msra.mxu0 0.0
        %4074 = vmatprep.subr.mxu0 0.0
        %4075 = vmatpush1.xpose.msra.mxu0 0.0
        %4076 = vmatprep.subr.mxu0 0.0
        %4077 = vmatpush1.xpose.msra.mxu0 0.0
        %4078 = vmatprep.subr.mxu0 0.0
        %4079 = vmatpush1.xpose.msra.mxu0 0.0
        %4080 = vmatprep.subr.mxu0 0.0
        %4081 = vmatpush1.xpose.msra.mxu0 0.0
        %4082 = vmatprep.subr.mxu0 0.0
        %4083 = vmatpush1.xpose.msra.mxu0 0.0
        %4084 = vmatprep.subr.mxu0 0.0
        %4085 = vmatpush1.xpose.msra.mxu0 0.0
        %4086 = vmatprep.subr.mxu0 0.0
        %4087 = vmatpush1.xpose.msra.mxu0 0.0
        %4088 = vmatprep.subr.mxu0 0.0
        %4089 = vmatpush1.xpose.msra.mxu0 0.0
        %4090 = vmatprep.subr.mxu0 0.0
        %4091 = vmatpush1.xpose.msra.mxu0 0.0
        %4092 = vmatprep.subr.mxu0 0.0
        %4093 = vmatpush1.xpose.msra.mxu0 0.0
        %4094 = vmatprep.mubr.f32.mxu0 0.0
        %v4095 = vand.u32 %v3945, 4294901760
        %4096 = vmatmul.mubr.f32.gmra.mrb[0].mxu0 %v4095
        %v4097 = vpop.f32.mrb[0].mxu0
        %v4098 = vadd.f32 %v4022, %v4097
        %v4099 = vpop.f32.mrb[0].mxu0
        %4100 = vdwg.mxu0
        %4101 = vmatprep.subr.mxu0 0.0
        %v4102 = vand.u32 %v3947, 4294901760
        %v4103 = vsub.f32 %v3947, %v4102
        %4104 = vmatpush1.xpose.msra.mxu0 %v4103
        %4105 = vmatprep.subr.mxu0 0.0
        %4106 = vmatpush1.xpose.msra.mxu0 0.0
        %4107 = vmatprep.subr.mxu0 0.0
        %4108 = vmatpush1.xpose.msra.mxu0 0.0
        %4109 = vmatprep.subr.mxu0 0.0
        %4110 = vmatpush1.xpose.msra.mxu0 0.0
        %4111 = vmatprep.subr.mxu0 0.0
        %4112 = vmatpush1.xpose.msra.mxu0 0.0
        %4113 = vmatprep.subr.mxu0 0.0
        %4114 = vmatpush1.xpose.msra.mxu0 0.0
        %4115 = vmatprep.subr.mxu0 0.0
        %4116 = vmatpush1.xpose.msra.mxu0 0.0
        %4117 = vmatprep.subr.mxu0 0.0
        %4118 = vmatpush1.xpose.msra.mxu0 0.0
        %4119 = vmatprep.subr.mxu0 0.0
        %4120 = vmatpush1.xpose.msra.mxu0 0.0
        %4121 = vmatprep.subr.mxu0 0.0
        %4122 = vmatpush1.xpose.msra.mxu0 0.0
        %4123 = vmatprep.subr.mxu0 0.0
        %4124 = vmatpush1.xpose.msra.mxu0 0.0
        %4125 = vmatprep.subr.mxu0 0.0
        %4126 = vmatpush1.xpose.msra.mxu0 0.0
        %4127 = vmatprep.subr.mxu0 0.0
        %4128 = vmatpush1.xpose.msra.mxu0 0.0
        %4129 = vmatprep.subr.mxu0 0.0
        %4130 = vmatpush1.xpose.msra.mxu0 0.0
        %4131 = vmatprep.subr.mxu0 0.0
        %4132 = vmatpush1.xpose.msra.mxu0 0.0
        %4133 = vmatprep.subr.mxu0 0.0
        %4134 = vmatpush1.xpose.msra.mxu0 0.0
        %4135 = vmatprep.subr.mxu0 0.0
        %4136 = vmatpush1.xpose.msra.mxu0 0.0
        %4137 = vmatprep.subr.mxu0 0.0
        %4138 = vmatpush1.xpose.msra.mxu0 0.0
        %4139 = vmatprep.subr.mxu0 0.0
        %4140 = vmatpush1.xpose.msra.mxu0 0.0
        %4141 = vmatprep.subr.mxu0 0.0
        %4142 = vmatpush1.xpose.msra.mxu0 0.0
        %4143 = vmatprep.subr.mxu0 0.0
        %4144 = vmatpush1.xpose.msra.mxu0 0.0
        %4145 = vmatprep.subr.mxu0 0.0
        %4146 = vmatpush1.xpose.msra.mxu0 0.0
        %4147 = vmatprep.subr.mxu0 0.0
        %4148 = vmatpush1.xpose.msra.mxu0 0.0
        %4149 = vmatprep.subr.mxu0 0.0
        %4150 = vmatpush1.xpose.msra.mxu0 0.0
        %4151 = vmatprep.subr.mxu0 0.0
        %4152 = vmatpush1.xpose.msra.mxu0 0.0
        %4153 = vmatprep.subr.mxu0 0.0
        %4154 = vmatpush1.xpose.msra.mxu0 0.0
        %4155 = vmatprep.subr.mxu0 0.0
        %4156 = vmatpush1.xpose.msra.mxu0 0.0
        %4157 = vmatprep.subr.mxu0 0.0
        %4158 = vmatpush1.xpose.msra.mxu0 0.0
        %4159 = vmatprep.subr.mxu0 0.0
        %4160 = vmatpush1.xpose.msra.mxu0 0.0
        %4161 = vmatprep.subr.mxu0 0.0
        %4162 = vmatpush1.xpose.msra.mxu0 0.0
        %4163 = vmatprep.subr.mxu0 0.0
        %4164 = vmatpush1.xpose.msra.mxu0 0.0
        %4165 = vmatprep.subr.mxu0 0.0
        %4166 = vmatpush1.xpose.msra.mxu0 0.0
        %4167 = vmatprep.mubr.f32.mxu0 0.0
        %v4168 = vand.u32 %v3945, 4294901760
        %v4169 = vsub.f32 %v3945, %v4168
        %4170 = vmatmul.mubr.f32.gmra.mrb[0].mxu0 %v4169
        %v4171 = vpop.f32.mrb[0].mxu0
        %v4172 = vadd.f32 %v4098, %v4171
        %v4173 = vpop.f32.mrb[0].mxu0
        %4174 = vdwg.mxu0
        %4175 = vmatprep.subr.mxu0 0.0
        %v4176 = vand.u32 %v3947, 4294901760
        %4177 = vmatpush1.xpose.msra.mxu0 %v4176
        %4178 = vmatprep.subr.mxu0 0.0
        %4179 = vmatpush1.xpose.msra.mxu0 0.0
        %4180 = vmatprep.subr.mxu0 0.0
        %4181 = vmatpush1.xpose.msra.mxu0 0.0
        %4182 = vmatprep.subr.mxu0 0.0
        %4183 = vmatpush1.xpose.msra.mxu0 0.0
        %4184 = vmatprep.subr.mxu0 0.0
        %4185 = vmatpush1.xpose.msra.mxu0 0.0
        %4186 = vmatprep.subr.mxu0 0.0
        %4187 = vmatpush1.xpose.msra.mxu0 0.0
        %4188 = vmatprep.subr.mxu0 0.0
        %4189 = vmatpush1.xpose.msra.mxu0 0.0
        %4190 = vmatprep.subr.mxu0 0.0
        %4191 = vmatpush1.xpose.msra.mxu0 0.0
        %4192 = vmatprep.subr.mxu0 0.0
        %4193 = vmatpush1.xpose.msra.mxu0 0.0
        %4194 = vmatprep.subr.mxu0 0.0
        %4195 = vmatpush1.xpose.msra.mxu0 0.0
        %4196 = vmatprep.subr.mxu0 0.0
        %4197 = vmatpush1.xpose.msra.mxu0 0.0
        %4198 = vmatprep.subr.mxu0 0.0
        %4199 = vmatpush1.xpose.msra.mxu0 0.0
        %4200 = vmatprep.subr.mxu0 0.0
        %4201 = vmatpush1.xpose.msra.mxu0 0.0
        %4202 = vmatprep.subr.mxu0 0.0
        %4203 = vmatpush1.xpose.msra.mxu0 0.0
        %4204 = vmatprep.subr.mxu0 0.0
        %4205 = vmatpush1.xpose.msra.mxu0 0.0
        %4206 = vmatprep.subr.mxu0 0.0
        %4207 = vmatpush1.xpose.msra.mxu0 0.0
        %4208 = vmatprep.subr.mxu0 0.0
        %4209 = vmatpush1.xpose.msra.mxu0 0.0
        %4210 = vmatprep.subr.mxu0 0.0
        %4211 = vmatpush1.xpose.msra.mxu0 0.0
        %4212 = vmatprep.subr.mxu0 0.0
        %4213 = vmatpush1.xpose.msra.mxu0 0.0
        %4214 = vmatprep.subr.mxu0 0.0
        %4215 = vmatpush1.xpose.msra.mxu0 0.0
        %4216 = vmatprep.subr.mxu0 0.0
        %4217 = vmatpush1.xpose.msra.mxu0 0.0
        %4218 = vmatprep.subr.mxu0 0.0
        %4219 = vmatpush1.xpose.msra.mxu0 0.0
        %4220 = vmatprep.subr.mxu0 0.0
        %4221 = vmatpush1.xpose.msra.mxu0 0.0
        %4222 = vmatprep.subr.mxu0 0.0
        %4223 = vmatpush1.xpose.msra.mxu0 0.0
        %4224 = vmatprep.subr.mxu0 0.0
        %4225 = vmatpush1.xpose.msra.mxu0 0.0
        %4226 = vmatprep.subr.mxu0 0.0
        %4227 = vmatpush1.xpose.msra.mxu0 0.0
        %4228 = vmatprep.subr.mxu0 0.0
        %4229 = vmatpush1.xpose.msra.mxu0 0.0
        %4230 = vmatprep.subr.mxu0 0.0
        %4231 = vmatpush1.xpose.msra.mxu0 0.0
        %4232 = vmatprep.subr.mxu0 0.0
        %4233 = vmatpush1.xpose.msra.mxu0 0.0
        %4234 = vmatprep.subr.mxu0 0.0
        %4235 = vmatpush1.xpose.msra.mxu0 0.0
        %4236 = vmatprep.subr.mxu0 0.0
        %4237 = vmatpush1.xpose.msra.mxu0 0.0
        %4238 = vmatprep.subr.mxu0 0.0
        %4239 = vmatpush1.xpose.msra.mxu0 0.0
        %4240 = vmatprep.mubr.f32.mxu0 0.0
        %v4241 = vand.u32 %v3945, 4294901760
        %v4242 = vsub.f32 %v3945, %v4241
        %v4243 = vand.u32 %v4242, 4294901760
        %4244 = vmatmul.mubr.f32.gmra.mrb[0].mxu0 %v4243
        %v4245 = vpop.f32.mrb[0].mxu0
        %v4246 = vadd.f32 %v4172, %v4245
        %v4247 = vpop.f32.mrb[0].mxu0
        %4248 = vdwg.mxu0
        %4249 = vmatprep.subr.mxu0 0.0
        %v4250 = vand.u32 %v3947, 4294901760
        %v4251 = vsub.f32 %v3947, %v4250
        %v4252 = vand.u32 %v4251, 4294901760
        %4253 = vmatpush1.xpose.msra.mxu0 %v4252
        %4254 = vmatprep.subr.mxu0 0.0
        %4255 = vmatpush1.xpose.msra.mxu0 0.0
        %4256 = vmatprep.subr.mxu0 0.0
        %4257 = vmatpush1.xpose.msra.mxu0 0.0
        %4258 = vmatprep.subr.mxu0 0.0
        %4259 = vmatpush1.xpose.msra.mxu0 0.0
        %4260 = vmatprep.subr.mxu0 0.0
        %4261 = vmatpush1.xpose.msra.mxu0 0.0
        %4262 = vmatprep.subr.mxu0 0.0
        %4263 = vmatpush1.xpose.msra.mxu0 0.0
        %4264 = vmatprep.subr.mxu0 0.0
        %4265 = vmatpush1.xpose.msra.mxu0 0.0
        %4266 = vmatprep.subr.mxu0 0.0
        %4267 = vmatpush1.xpose.msra.mxu0 0.0
        %4268 = vmatprep.subr.mxu0 0.0
        %4269 = vmatpush1.xpose.msra.mxu0 0.0
        %4270 = vmatprep.subr.mxu0 0.0
        %4271 = vmatpush1.xpose.msra.mxu0 0.0
        %4272 = vmatprep.subr.mxu0 0.0
        %4273 = vmatpush1.xpose.msra.mxu0 0.0
        %4274 = vmatprep.subr.mxu0 0.0
        %4275 = vmatpush1.xpose.msra.mxu0 0.0
        %4276 = vmatprep.subr.mxu0 0.0
        %4277 = vmatpush1.xpose.msra.mxu0 0.0
        %4278 = vmatprep.subr.mxu0 0.0
        %4279 = vmatpush1.xpose.msra.mxu0 0.0
        %4280 = vmatprep.subr.mxu0 0.0
        %4281 = vmatpush1.xpose.msra.mxu0 0.0
        %4282 = vmatprep.subr.mxu0 0.0
        %4283 = vmatpush1.xpose.msra.mxu0 0.0
        %4284 = vmatprep.subr.mxu0 0.0
        %4285 = vmatpush1.xpose.msra.mxu0 0.0
        %4286 = vmatprep.subr.mxu0 0.0
        %4287 = vmatpush1.xpose.msra.mxu0 0.0
        %4288 = vmatprep.subr.mxu0 0.0
        %4289 = vmatpush1.xpose.msra.mxu0 0.0
        %4290 = vmatprep.subr.mxu0 0.0
        %4291 = vmatpush1.xpose.msra.mxu0 0.0
        %4292 = vmatprep.subr.mxu0 0.0
        %4293 = vmatpush1.xpose.msra.mxu0 0.0
        %4294 = vmatprep.subr.mxu0 0.0
        %4295 = vmatpush1.xpose.msra.mxu0 0.0
        %4296 = vmatprep.subr.mxu0 0.0
        %4297 = vmatpush1.xpose.msra.mxu0 0.0
        %4298 = vmatprep.subr.mxu0 0.0
        %4299 = vmatpush1.xpose.msra.mxu0 0.0
        %4300 = vmatprep.subr.mxu0 0.0
        %4301 = vmatpush1.xpose.msra.mxu0 0.0
        %4302 = vmatprep.subr.mxu0 0.0
        %4303 = vmatpush1.xpose.msra.mxu0 0.0
        %4304 = vmatprep.subr.mxu0 0.0
        %4305 = vmatpush1.xpose.msra.mxu0 0.0
        %4306 = vmatprep.subr.mxu0 0.0
        %4307 = vmatpush1.xpose.msra.mxu0 0.0
        %4308 = vmatprep.subr.mxu0 0.0
        %4309 = vmatpush1.xpose.msra.mxu0 0.0
        %4310 = vmatprep.subr.mxu0 0.0
        %4311 = vmatpush1.xpose.msra.mxu0 0.0
        %4312 = vmatprep.subr.mxu0 0.0
        %4313 = vmatpush1.xpose.msra.mxu0 0.0
        %4314 = vmatprep.subr.mxu0 0.0
        %4315 = vmatpush1.xpose.msra.mxu0 0.0
        %4316 = vmatprep.mubr.f32.mxu0 0.0
        %v4317 = vand.u32 %v3945, 4294901760
        %4318 = vmatmul.mubr.f32.gmra.mrb[0].mxu0 %v4317
        %v4319 = vpop.f32.mrb[0].mxu0
        %v4320 = vadd.f32 %v4246, %v4319
        %v4321 = vpop.f32.mrb[0].mxu0
        %4322 = vdwg.mxu0
        %4323 = vmatprep.subr.mxu0 0.0
        %v4324 = vand.u32 %v3947, 4294901760
        %4325 = vmatpush1.xpose.msra.mxu0 %v4324
        %4326 = vmatprep.subr.mxu0 0.0
        %4327 = vmatpush1.xpose.msra.mxu0 0.0
        %4328 = vmatprep.subr.mxu0 0.0
        %4329 = vmatpush1.xpose.msra.mxu0 0.0
        %4330 = vmatprep.subr.mxu0 0.0
        %4331 = vmatpush1.xpose.msra.mxu0 0.0
        %4332 = vmatprep.subr.mxu0 0.0
        %4333 = vmatpush1.xpose.msra.mxu0 0.0
        %4334 = vmatprep.subr.mxu0 0.0
        %4335 = vmatpush1.xpose.msra.mxu0 0.0
        %4336 = vmatprep.subr.mxu0 0.0
        %4337 = vmatpush1.xpose.msra.mxu0 0.0
        %4338 = vmatprep.subr.mxu0 0.0
        %4339 = vmatpush1.xpose.msra.mxu0 0.0
        %4340 = vmatprep.subr.mxu0 0.0
        %4341 = vmatpush1.xpose.msra.mxu0 0.0
        %4342 = vmatprep.subr.mxu0 0.0
        %4343 = vmatpush1.xpose.msra.mxu0 0.0
        %4344 = vmatprep.subr.mxu0 0.0
        %4345 = vmatpush1.xpose.msra.mxu0 0.0
        %4346 = vmatprep.subr.mxu0 0.0
        %4347 = vmatpush1.xpose.msra.mxu0 0.0
        %4348 = vmatprep.subr.mxu0 0.0
        %4349 = vmatpush1.xpose.msra.mxu0 0.0
        %4350 = vmatprep.subr.mxu0 0.0
        %4351 = vmatpush1.xpose.msra.mxu0 0.0
        %4352 = vmatprep.subr.mxu0 0.0
        %4353 = vmatpush1.xpose.msra.mxu0 0.0
        %4354 = vmatprep.subr.mxu0 0.0
        %4355 = vmatpush1.xpose.msra.mxu0 0.0
        %4356 = vmatprep.subr.mxu0 0.0
        %4357 = vmatpush1.xpose.msra.mxu0 0.0
        %4358 = vmatprep.subr.mxu0 0.0
        %4359 = vmatpush1.xpose.msra.mxu0 0.0
        %4360 = vmatprep.subr.mxu0 0.0
        %4361 = vmatpush1.xpose.msra.mxu0 0.0
        %4362 = vmatprep.subr.mxu0 0.0
        %4363 = vmatpush1.xpose.msra.mxu0 0.0
        %4364 = vmatprep.subr.mxu0 0.0
        %4365 = vmatpush1.xpose.msra.mxu0 0.0
        %4366 = vmatprep.subr.mxu0 0.0
        %4367 = vmatpush1.xpose.msra.mxu0 0.0
        %4368 = vmatprep.subr.mxu0 0.0
        %4369 = vmatpush1.xpose.msra.mxu0 0.0
        %4370 = vmatprep.subr.mxu0 0.0
        %4371 = vmatpush1.xpose.msra.mxu0 0.0
        %4372 = vmatprep.subr.mxu0 0.0
        %4373 = vmatpush1.xpose.msra.mxu0 0.0
        %4374 = vmatprep.subr.mxu0 0.0
        %4375 = vmatpush1.xpose.msra.mxu0 0.0
        %4376 = vmatprep.subr.mxu0 0.0
        %4377 = vmatpush1.xpose.msra.mxu0 0.0
        %4378 = vmatprep.subr.mxu0 0.0
        %4379 = vmatpush1.xpose.msra.mxu0 0.0
        %4380 = vmatprep.subr.mxu0 0.0
        %4381 = vmatpush1.xpose.msra.mxu0 0.0
        %4382 = vmatprep.subr.mxu0 0.0
        %4383 = vmatpush1.xpose.msra.mxu0 0.0
        %4384 = vmatprep.subr.mxu0 0.0
        %4385 = vmatpush1.xpose.msra.mxu0 0.0
        %4386 = vmatprep.subr.mxu0 0.0
        %4387 = vmatpush1.xpose.msra.mxu0 0.0
        %4388 = vmatprep.mubr.f32.mxu0 0.0
        %v4389 = vand.u32 %v3945, 4294901760
        %4390 = vmatmul.mubr.f32.gmra.mrb[0].mxu0 %v4389
        %v4391 = vpop.f32.mrb[0].mxu0
        %v4392 = vadd.f32 %v4320, %v4391
        %v4393 = vpop.f32.mrb[0].mxu0
        %4394 = vdwg.mxu0
        %vm4395 = vcmask 64512
        %v4396 = vsel %vm4395, %v1228, -inf
        %4397 = vmax.xlane.f32.xlu0 %v4396
        %v4398 = vpop.xlane.xlu0 %4397
        %v4399 = vsel %vm4395, %v1680, -inf
        %4400 = vmax.xlane.f32.xlu0 %v4399
        %v4401 = vpop.xlane.xlu0 %4400
        %v4402 = vsel %vm4395, %v2132, -inf
        %4403 = vmax.xlane.f32.xlu0 %v4402
        %v4404 = vpop.xlane.xlu0 %4403
        %v4405 = vsel %vm4395, %v2584, -inf
        %4406 = vmax.xlane.f32.xlu0 %v4405
        %v4407 = vpop.xlane.xlu0 %4406
        %v4408 = vsel %vm4395, %v3036, -inf
        %4409 = vmax.xlane.f32.xlu0 %v4408
        %v4410 = vpop.xlane.xlu0 %4409
        %v4411 = vsel %vm4395, %v3488, -inf
        %4412 = vmax.xlane.f32.xlu0 %v4411
        %v4413 = vpop.xlane.xlu0 %4412
        %v4414 = vsel %vm4395, %v3940, -inf
        %4415 = vmax.xlane.f32.xlu0 %v4414
        %v4416 = vpop.xlane.xlu0 %4415
        %v4417 = vsel %vm4395, %v4392, -inf
        %4418 = vmax.xlane.f32.xlu0 %v4417
        %v4419 = vpop.xlane.xlu0 %4418
        %v4420 = vsub.f32 %v1228, %v4398
        %v4421 = vsub.f32 %v1680, %v4401
        %v4422 = vsub.f32 %v2132, %v4404
        %v4423 = vsub.f32 %v2584, %v4407
        %v4424 = vsub.f32 %v3036, %v4410
        %v4425 = vsub.f32 %v3488, %v4413
        %v4426 = vsub.f32 %v3940, %v4416
        %v4427 = vsub.f32 %v4392, %v4419
        %v4428 = vmul.f32 %v4420, 1.442695
        %v4429 = vpow.pop %v4428
        %v4430 = vmul.f32 %v4421, 1.442695
        %v4431 = vpow.pop %v4430
        %v4432 = vmul.f32 %v4422, 1.442695
        %v4433 = vpow.pop %v4432
        %v4434 = vmul.f32 %v4423, 1.442695
        %v4435 = vpow.pop %v4434
        %v4436 = vmul.f32 %v4424, 1.442695
        %v4437 = vpow.pop %v4436
        %v4438 = vmul.f32 %v4425, 1.442695
        %v4439 = vpow.pop %v4438
        %v4440 = vmul.f32 %v4426, 1.442695
        %v4441 = vpow.pop %v4440
        %v4442 = vmul.f32 %v4427, 1.442695
        %v4443 = vpow.pop %v4442
        %v4444 = vsel %vm4395, %v4429, 0.0
        %4445 = vadd.xlane.f32.xlu0 %v4444
        %v4446 = vpop.xlane.xlu0 %4445
        %v4447 = vsel %vm4395, %v4431, 0.0
        %4448 = vadd.xlane.f32.xlu0 %v4447
        %v4449 = vpop.xlane.xlu0 %4448
        %v4450 = vsel %vm4395, %v4433, 0.0
        %4451 = vadd.xlane.f32.xlu0 %v4450
        %v4452 = vpop.xlane.xlu0 %4451
        %v4453 = vsel %vm4395, %v4435, 0.0
        %4454 = vadd.xlane.f32.xlu0 %v4453
        %v4455 = vpop.xlane.xlu0 %4454
        %v4456 = vsel %vm4395, %v4437, 0.0
        %4457 = vadd.xlane.f32.xlu0 %v4456
        %v4458 = vpop.xlane.xlu0 %4457
        %v4459 = vsel %vm4395, %v4439, 0.0
        %4460 = vadd.xlane.f32.xlu0 %v4459
        %v4461 = vpop.xlane.xlu0 %4460
        %v4462 = vsel %vm4395, %v4441, 0.0
        %4463 = vadd.xlane.f32.xlu0 %v4462
        %v4464 = vpop.xlane.xlu0 %4463
        %v4465 = vsel %vm4395, %v4443, 0.0
        %4466 = vadd.xlane.f32.xlu0 %v4465
        %v4467 = vpop.xlane.xlu0 %4466
        %v4468 = vrcp.pop %v4446
        %v4469 = vmul.f32 %v4429, %v4468
        %v4470 = vrcp.pop %v4449
        %v4471 = vmul.f32 %v4431, %v4470
        %v4472 = vrcp.pop %v4452
        %v4473 = vmul.f32 %v4433, %v4472
        %v4474 = vrcp.pop %v4455
        %v4475 = vmul.f32 %v4435, %v4474
        %v4476 = vrcp.pop %v4458
        %v4477 = vmul.f32 %v4437, %v4476
        %v4478 = vrcp.pop %v4461
        %v4479 = vmul.f32 %v4439, %v4478
        %v4480 = vrcp.pop %v4464
        %v4481 = vmul.f32 %v4441, %v4480
        %v4482 = vrcp.pop %v4467
        %v4483 = vmul.f32 %v4443, %v4482
        %v4484 = vld [vmem:[#allocation7] sm:$0xff]
        %v4485 = vld [vmem:[#allocation7 + $0x8] sm:$0xff]
        %v4486 = vld [vmem:[#allocation7 + $0x10] sm:$0xff]
        %v4487 = vld [vmem:[#allocation7 + $0x18] sm:$0xff]
        %v4488 = vld [vmem:[#allocation7 + $0x20] sm:$0xff]
        %v4489 = vld [vmem:[#allocation7 + $0x28] sm:$0xff]
        %v4490 = vld [vmem:[#allocation7 + $0x30] sm:$0xff]
        %v4491 = vld [vmem:[#allocation7 + $0x38] sm:$0xff]
        %v4492 = vadd.f32 %v4469, %v4484
        %v4493 = vadd.f32 %v4471, %v4485
        %v4494 = vadd.f32 %v4473, %v4486
        %v4495 = vadd.f32 %v4475, %v4487
        %v4496 = vadd.f32 %v4477, %v4488
        %v4497 = vadd.f32 %v4479, %v4489
        %v4498 = vadd.f32 %v4481, %v4490
        %v4499 = vadd.f32 %v4483, %v4491
        %4500 = vrot.lane.b32.xlu0 %v760, 64
        %v4501 = vpop.permute.xlu0 %4500
        %v4504 = vsel %vm4395, %v4492, 0
        %4506 = vmatprep.subr.mxu0 0.0
        %v4507 = vand.u32 %v4501, 4294901760
        %4508 = vmatpush1.msra.mxu0 %v4507
        %4509 = vmatprep.subr.mxu0 0.0
        %4510 = vmatpush1.msra.mxu0 0.0
        %4511 = vmatprep.subr.mxu0 0.0
        %4512 = vmatpush1.msra.mxu0 0.0
        %4513 = vmatprep.subr.mxu0 0.0
        %4514 = vmatpush1.msra.mxu0 0.0
        %4515 = vmatprep.subr.mxu0 0.0
        %4516 = vmatpush1.msra.mxu0 0.0
        %4517 = vmatprep.subr.mxu0 0.0
        %4518 = vmatpush1.msra.mxu0 0.0
        %4519 = vmatprep.subr.mxu0 0.0
        %4520 = vmatpush1.msra.mxu0 0.0
        %4521 = vmatprep.subr.mxu0 0.0
        %4522 = vmatpush1.msra.mxu0 0.0
        %4523 = vmatprep.subr.mxu0 0.0
        %4524 = vmatpush1.msra.mxu0 0.0
        %4525 = vmatprep.subr.mxu0 0.0
        %4526 = vmatpush1.msra.mxu0 0.0
        %4527 = vmatprep.subr.mxu0 0.0
        %4528 = vmatpush1.msra.mxu0 0.0
        %4529 = vmatprep.subr.mxu0 0.0
        %4530 = vmatpush1.msra.mxu0 0.0
        %4531 = vmatprep.subr.mxu0 0.0
        %4532 = vmatpush1.msra.mxu0 0.0
        %4533 = vmatprep.subr.mxu0 0.0
        %4534 = vmatpush1.msra.mxu0 0.0
        %4535 = vmatprep.subr.mxu0 0.0
        %4536 = vmatpush1.msra.mxu0 0.0
        %4537 = vmatprep.subr.mxu0 0.0
        %4538 = vmatpush1.msra.mxu0 0.0
        %4539 = vmatprep.subr.mxu0 0.0
        %4540 = vmatpush1.msra.mxu0 0.0
        %4541 = vmatprep.subr.mxu0 0.0
        %4542 = vmatpush1.msra.mxu0 0.0
        %4543 = vmatprep.subr.mxu0 0.0
        %4544 = vmatpush1.msra.mxu0 0.0
        %4545 = vmatprep.subr.mxu0 0.0
        %4546 = vmatpush1.msra.mxu0 0.0
        %4547 = vmatprep.subr.mxu0 0.0
        %4548 = vmatpush1.msra.mxu0 0.0
        %4549 = vmatprep.subr.mxu0 0.0
        %4550 = vmatpush1.msra.mxu0 0.0
        %4551 = vmatprep.subr.mxu0 0.0
        %4552 = vmatpush1.msra.mxu0 0.0
        %4553 = vmatprep.subr.mxu0 0.0
        %4554 = vmatpush1.msra.mxu0 0.0
        %4555 = vmatprep.subr.mxu0 0.0
        %4556 = vmatpush1.msra.mxu0 0.0
        %4557 = vmatprep.subr.mxu0 0.0
        %4558 = vmatpush1.msra.mxu0 0.0
        %4559 = vmatprep.subr.mxu0 0.0
        %4560 = vmatpush1.msra.mxu0 0.0
        %4561 = vmatprep.subr.mxu0 0.0
        %4562 = vmatpush1.msra.mxu0 0.0
        %4563 = vmatprep.subr.mxu0 0.0
        %4564 = vmatpush1.msra.mxu0 0.0
        %4565 = vmatprep.subr.mxu0 0.0
        %4566 = vmatpush1.msra.mxu0 0.0
        %4567 = vmatprep.subr.mxu0 0.0
        %4568 = vmatpush1.msra.mxu0 0.0
        %4569 = vmatprep.subr.mxu0 0.0
        %4570 = vmatpush1.msra.mxu0 0.0
        %4571 = vmatprep.mubr.f32.mxu0 0.0
        %v4572 = vand.u32 %v4504, 4294901760
        %v4573 = vsub.f32 %v4504, %v4572
        %v4574 = vand.u32 %v4573, 4294901760
        %v4575 = vsub.f32 %v4573, %v4574
        %v4576 = vand.u32 %v4575, 4294901760
        %4577 = vmatmul.mubr.f32.gmra.mrb[0].mxu0 %v4576
        %v4578 = vpop.f32.mrb[0].mxu0
        %v4579 = vadd.f32 0.0, %v4578
        %v4580 = vpop.f32.mrb[0].mxu0
        %4581 = vdwg.mxu0
        %4582 = vmatprep.subr.mxu0 0.0
        %v4583 = vand.u32 %v4501, 4294901760
        %v4584 = vsub.f32 %v4501, %v4583
        %v4585 = vand.u32 %v4584, 4294901760
        %v4586 = vsub.f32 %v4584, %v4585
        %v4587 = vand.u32 %v4586, 4294901760
        %4588 = vmatpush1.msra.mxu0 %v4587
        %4589 = vmatprep.subr.mxu0 0.0
        %4590 = vmatpush1.msra.mxu0 0.0
        %4591 = vmatprep.subr.mxu0 0.0
        %4592 = vmatpush1.msra.mxu0 0.0
        %4593 = vmatprep.subr.mxu0 0.0
        %4594 = vmatpush1.msra.mxu0 0.0
        %4595 = vmatprep.subr.mxu0 0.0
        %4596 = vmatpush1.msra.mxu0 0.0
        %4597 = vmatprep.subr.mxu0 0.0
        %4598 = vmatpush1.msra.mxu0 0.0
        %4599 = vmatprep.subr.mxu0 0.0
        %4600 = vmatpush1.msra.mxu0 0.0
        %4601 = vmatprep.subr.mxu0 0.0
        %4602 = vmatpush1.msra.mxu0 0.0
        %4603 = vmatprep.subr.mxu0 0.0
        %4604 = vmatpush1.msra.mxu0 0.0
        %4605 = vmatprep.subr.mxu0 0.0
        %4606 = vmatpush1.msra.mxu0 0.0
        %4607 = vmatprep.subr.mxu0 0.0
        %4608 = vmatpush1.msra.mxu0 0.0
        %4609 = vmatprep.subr.mxu0 0.0
        %4610 = vmatpush1.msra.mxu0 0.0
        %4611 = vmatprep.subr.mxu0 0.0
        %4612 = vmatpush1.msra.mxu0 0.0
        %4613 = vmatprep.subr.mxu0 0.0
        %4614 = vmatpush1.msra.mxu0 0.0
        %4615 = vmatprep.subr.mxu0 0.0
        %4616 = vmatpush1.msra.mxu0 0.0
        %4617 = vmatprep.subr.mxu0 0.0
        %4618 = vmatpush1.msra.mxu0 0.0
        %4619 = vmatprep.subr.mxu0 0.0
        %4620 = vmatpush1.msra.mxu0 0.0
        %4621 = vmatprep.subr.mxu0 0.0
        %4622 = vmatpush1.msra.mxu0 0.0
        %4623 = vmatprep.subr.mxu0 0.0
        %4624 = vmatpush1.msra.mxu0 0.0
        %4625 = vmatprep.subr.mxu0 0.0
        %4626 = vmatpush1.msra.mxu0 0.0
        %4627 = vmatprep.subr.mxu0 0.0
        %4628 = vmatpush1.msra.mxu0 0.0
        %4629 = vmatprep.subr.mxu0 0.0
        %4630 = vmatpush1.msra.mxu0 0.0
        %4631 = vmatprep.subr.mxu0 0.0
        %4632 = vmatpush1.msra.mxu0 0.0
        %4633 = vmatprep.subr.mxu0 0.0
        %4634 = vmatpush1.msra.mxu0 0.0
        %4635 = vmatprep.subr.mxu0 0.0
        %4636 = vmatpush1.msra.mxu0 0.0
        %4637 = vmatprep.subr.mxu0 0.0
        %4638 = vmatpush1.msra.mxu0 0.0
        %4639 = vmatprep.subr.mxu0 0.0
        %4640 = vmatpush1.msra.mxu0 0.0
        %4641 = vmatprep.subr.mxu0 0.0
        %4642 = vmatpush1.msra.mxu0 0.0
        %4643 = vmatprep.subr.mxu0 0.0
        %4644 = vmatpush1.msra.mxu0 0.0
        %4645 = vmatprep.subr.mxu0 0.0
        %4646 = vmatpush1.msra.mxu0 0.0
        %4647 = vmatprep.subr.mxu0 0.0
        %4648 = vmatpush1.msra.mxu0 0.0
        %4649 = vmatprep.subr.mxu0 0.0
        %4650 = vmatpush1.msra.mxu0 0.0
        %4651 = vmatprep.mubr.f32.mxu0 0.0
        %v4652 = vand.u32 %v4504, 4294901760
        %4653 = vmatmul.mubr.f32.gmra.mrb[0].mxu0 %v4652
        %v4654 = vpop.f32.mrb[0].mxu0
        %v4655 = vadd.f32 %v4579, %v4654
        %v4656 = vpop.f32.mrb[0].mxu0
        %4657 = vdwg.mxu0
        %4658 = vmatprep.subr.mxu0 0.0
        %v4659 = vand.u32 %v4501, 4294901760
        %v4660 = vsub.f32 %v4501, %v4659
        %4661 = vmatpush1.msra.mxu0 %v4660
        %4662 = vmatprep.subr.mxu0 0.0
        %4663 = vmatpush1.msra.mxu0 0.0
        %4664 = vmatprep.subr.mxu0 0.0
        %4665 = vmatpush1.msra.mxu0 0.0
        %4666 = vmatprep.subr.mxu0 0.0
        %4667 = vmatpush1.msra.mxu0 0.0
        %4668 = vmatprep.subr.mxu0 0.0
        %4669 = vmatpush1.msra.mxu0 0.0
        %4670 = vmatprep.subr.mxu0 0.0
        %4671 = vmatpush1.msra.mxu0 0.0
        %4672 = vmatprep.subr.mxu0 0.0
        %4673 = vmatpush1.msra.mxu0 0.0
        %4674 = vmatprep.subr.mxu0 0.0
        %4675 = vmatpush1.msra.mxu0 0.0
        %4676 = vmatprep.subr.mxu0 0.0
        %4677 = vmatpush1.msra.mxu0 0.0
        %4678 = vmatprep.subr.mxu0 0.0
        %4679 = vmatpush1.msra.mxu0 0.0
        %4680 = vmatprep.subr.mxu0 0.0
        %4681 = vmatpush1.msra.mxu0 0.0
        %4682 = vmatprep.subr.mxu0 0.0
        %4683 = vmatpush1.msra.mxu0 0.0
        %4684 = vmatprep.subr.mxu0 0.0
        %4685 = vmatpush1.msra.mxu0 0.0
        %4686 = vmatprep.subr.mxu0 0.0
        %4687 = vmatpush1.msra.mxu0 0.0
        %4688 = vmatprep.subr.mxu0 0.0
        %4689 = vmatpush1.msra.mxu0 0.0
        %4690 = vmatprep.subr.mxu0 0.0
        %4691 = vmatpush1.msra.mxu0 0.0
        %4692 = vmatprep.subr.mxu0 0.0
        %4693 = vmatpush1.msra.mxu0 0.0
        %4694 = vmatprep.subr.mxu0 0.0
        %4695 = vmatpush1.msra.mxu0 0.0
        %4696 = vmatprep.subr.mxu0 0.0
        %4697 = vmatpush1.msra.mxu0 0.0
        %4698 = vmatprep.subr.mxu0 0.0
        %4699 = vmatpush1.msra.mxu0 0.0
        %4700 = vmatprep.subr.mxu0 0.0
        %4701 = vmatpush1.msra.mxu0 0.0
        %4702 = vmatprep.subr.mxu0 0.0
        %4703 = vmatpush1.msra.mxu0 0.0
        %4704 = vmatprep.subr.mxu0 0.0
        %4705 = vmatpush1.msra.mxu0 0.0
        %4706 = vmatprep.subr.mxu0 0.0
        %4707 = vmatpush1.msra.mxu0 0.0
        %4708 = vmatprep.subr.mxu0 0.0
        %4709 = vmatpush1.msra.mxu0 0.0
        %4710 = vmatprep.subr.mxu0 0.0
        %4711 = vmatpush1.msra.mxu0 0.0
        %4712 = vmatprep.subr.mxu0 0.0
        %4713 = vmatpush1.msra.mxu0 0.0
        %4714 = vmatprep.subr.mxu0 0.0
        %4715 = vmatpush1.msra.mxu0 0.0
        %4716 = vmatprep.subr.mxu0 0.0
        %4717 = vmatpush1.msra.mxu0 0.0
        %4718 = vmatprep.subr.mxu0 0.0
        %4719 = vmatpush1.msra.mxu0 0.0
        %4720 = vmatprep.subr.mxu0 0.0
        %4721 = vmatpush1.msra.mxu0 0.0
        %4722 = vmatprep.subr.mxu0 0.0
        %4723 = vmatpush1.msra.mxu0 0.0
        %4724 = vmatprep.mubr.f32.mxu0 0.0
        %v4725 = vand.u32 %v4504, 4294901760
        %v4726 = vsub.f32 %v4504, %v4725
        %4727 = vmatmul.mubr.f32.gmra.mrb[0].mxu0 %v4726
        %v4728 = vpop.f32.mrb[0].mxu0
        %v4729 = vadd.f32 %v4655, %v4728
        %v4730 = vpop.f32.mrb[0].mxu0
        %4731 = vdwg.mxu0
        %4732 = vmatprep.subr.mxu0 0.0
        %v4733 = vand.u32 %v4501, 4294901760
        %4734 = vmatpush1.msra.mxu0 %v4733
        %4735 = vmatprep.subr.mxu0 0.0
        %4736 = vmatpush1.msra.mxu0 0.0
        %4737 = vmatprep.subr.mxu0 0.0
        %4738 = vmatpush1.msra.mxu0 0.0
        %4739 = vmatprep.subr.mxu0 0.0
        %4740 = vmatpush1.msra.mxu0 0.0
        %4741 = vmatprep.subr.mxu0 0.0
        %4742 = vmatpush1.msra.mxu0 0.0
        %4743 = vmatprep.subr.mxu0 0.0
        %4744 = vmatpush1.msra.mxu0 0.0
        %4745 = vmatprep.subr.mxu0 0.0
        %4746 = vmatpush1.msra.mxu0 0.0
        %4747 = vmatprep.subr.mxu0 0.0
        %4748 = vmatpush1.msra.mxu0 0.0
        %4749 = vmatprep.subr.mxu0 0.0
        %4750 = vmatpush1.msra.mxu0 0.0
        %4751 = vmatprep.subr.mxu0 0.0
        %4752 = vmatpush1.msra.mxu0 0.0
        %4753 = vmatprep.subr.mxu0 0.0
        %4754 = vmatpush1.msra.mxu0 0.0
        %4755 = vmatprep.subr.mxu0 0.0
        %4756 = vmatpush1.msra.mxu0 0.0
        %4757 = vmatprep.subr.mxu0 0.0
        %4758 = vmatpush1.msra.mxu0 0.0
        %4759 = vmatprep.subr.mxu0 0.0
        %4760 = vmatpush1.msra.mxu0 0.0
        %4761 = vmatprep.subr.mxu0 0.0
        %4762 = vmatpush1.msra.mxu0 0.0
        %4763 = vmatprep.subr.mxu0 0.0
        %4764 = vmatpush1.msra.mxu0 0.0
        %4765 = vmatprep.subr.mxu0 0.0
        %4766 = vmatpush1.msra.mxu0 0.0
        %4767 = vmatprep.subr.mxu0 0.0
        %4768 = vmatpush1.msra.mxu0 0.0
        %4769 = vmatprep.subr.mxu0 0.0
        %4770 = vmatpush1.msra.mxu0 0.0
        %4771 = vmatprep.subr.mxu0 0.0
        %4772 = vmatpush1.msra.mxu0 0.0
        %4773 = vmatprep.subr.mxu0 0.0
        %4774 = vmatpush1.msra.mxu0 0.0
        %4775 = vmatprep.subr.mxu0 0.0
        %4776 = vmatpush1.msra.mxu0 0.0
        %4777 = vmatprep.subr.mxu0 0.0
        %4778 = vmatpush1.msra.mxu0 0.0
        %4779 = vmatprep.subr.mxu0 0.0
        %4780 = vmatpush1.msra.mxu0 0.0
        %4781 = vmatprep.subr.mxu0 0.0
        %4782 = vmatpush1.msra.mxu0 0.0
        %4783 = vmatprep.subr.mxu0 0.0
        %4784 = vmatpush1.msra.mxu0 0.0
        %4785 = vmatprep.subr.mxu0 0.0
        %4786 = vmatpush1.msra.mxu0 0.0
        %4787 = vmatprep.subr.mxu0 0.0
        %4788 = vmatpush1.msra.mxu0 0.0
        %4789 = vmatprep.subr.mxu0 0.0
        %4790 = vmatpush1.msra.mxu0 0.0
        %4791 = vmatprep.subr.mxu0 0.0
        %4792 = vmatpush1.msra.mxu0 0.0
        %4793 = vmatprep.subr.mxu0 0.0
        %4794 = vmatpush1.msra.mxu0 0.0
        %4795 = vmatprep.subr.mxu0 0.0
        %4796 = vmatpush1.msra.mxu0 0.0
        %4797 = vmatprep.mubr.f32.mxu0 0.0
        %v4798 = vand.u32 %v4504, 4294901760
        %v4799 = vsub.f32 %v4504, %v4798
        %v4800 = vand.u32 %v4799, 4294901760
        %4801 = vmatmul.mubr.f32.gmra.mrb[0].mxu0 %v4800
        %v4802 = vpop.f32.mrb[0].mxu0
        %v4803 = vadd.f32 %v4729, %v4802
        %v4804 = vpop.f32.mrb[0].mxu0
        %4805 = vdwg.mxu0
        %4806 = vmatprep.subr.mxu0 0.0
        %v4807 = vand.u32 %v4501, 4294901760
        %v4808 = vsub.f32 %v4501, %v4807
        %v4809 = vand.u32 %v4808, 4294901760
        %4810 = vmatpush1.msra.mxu0 %v4809
        %4811 = vmatprep.subr.mxu0 0.0
        %4812 = vmatpush1.msra.mxu0 0.0
        %4813 = vmatprep.subr.mxu0 0.0
        %4814 = vmatpush1.msra.mxu0 0.0
        %4815 = vmatprep.subr.mxu0 0.0
        %4816 = vmatpush1.msra.mxu0 0.0
        %4817 = vmatprep.subr.mxu0 0.0
        %4818 = vmatpush1.msra.mxu0 0.0
        %4819 = vmatprep.subr.mxu0 0.0
        %4820 = vmatpush1.msra.mxu0 0.0
        %4821 = vmatprep.subr.mxu0 0.0
        %4822 = vmatpush1.msra.mxu0 0.0
        %4823 = vmatprep.subr.mxu0 0.0
        %4824 = vmatpush1.msra.mxu0 0.0
        %4825 = vmatprep.subr.mxu0 0.0
        %4826 = vmatpush1.msra.mxu0 0.0
        %4827 = vmatprep.subr.mxu0 0.0
        %4828 = vmatpush1.msra.mxu0 0.0
        %4829 = vmatprep.subr.mxu0 0.0
        %4830 = vmatpush1.msra.mxu0 0.0
        %4831 = vmatprep.subr.mxu0 0.0
        %4832 = vmatpush1.msra.mxu0 0.0
        %4833 = vmatprep.subr.mxu0 0.0
        %4834 = vmatpush1.msra.mxu0 0.0
        %4835 = vmatprep.subr.mxu0 0.0
        %4836 = vmatpush1.msra.mxu0 0.0
        %4837 = vmatprep.subr.mxu0 0.0
        %4838 = vmatpush1.msra.mxu0 0.0
        %4839 = vmatprep.subr.mxu0 0.0
        %4840 = vmatpush1.msra.mxu0 0.0
        %4841 = vmatprep.subr.mxu0 0.0
        %4842 = vmatpush1.msra.mxu0 0.0
        %4843 = vmatprep.subr.mxu0 0.0
        %4844 = vmatpush1.msra.mxu0 0.0
        %4845 = vmatprep.subr.mxu0 0.0
        %4846 = vmatpush1.msra.mxu0 0.0
        %4847 = vmatprep.subr.mxu0 0.0
        %4848 = vmatpush1.msra.mxu0 0.0
        %4849 = vmatprep.subr.mxu0 0.0
        %4850 = vmatpush1.msra.mxu0 0.0
        %4851 = vmatprep.subr.mxu0 0.0
        %4852 = vmatpush1.msra.mxu0 0.0
        %4853 = vmatprep.subr.mxu0 0.0
        %4854 = vmatpush1.msra.mxu0 0.0
        %4855 = vmatprep.subr.mxu0 0.0
        %4856 = vmatpush1.msra.mxu0 0.0
        %4857 = vmatprep.subr.mxu0 0.0
        %4858 = vmatpush1.msra.mxu0 0.0
        %4859 = vmatprep.subr.mxu0 0.0
        %4860 = vmatpush1.msra.mxu0 0.0
        %4861 = vmatprep.subr.mxu0 0.0
        %4862 = vmatpush1.msra.mxu0 0.0
        %4863 = vmatprep.subr.mxu0 0.0
        %4864 = vmatpush1.msra.mxu0 0.0
        %4865 = vmatprep.subr.mxu0 0.0
        %4866 = vmatpush1.msra.mxu0 0.0
        %4867 = vmatprep.subr.mxu0 0.0
        %4868 = vmatpush1.msra.mxu0 0.0
        %4869 = vmatprep.subr.mxu0 0.0
        %4870 = vmatpush1.msra.mxu0 0.0
        %4871 = vmatprep.subr.mxu0 0.0
        %4872 = vmatpush1.msra.mxu0 0.0
        %4873 = vmatprep.mubr.f32.mxu0 0.0
        %v4874 = vand.u32 %v4504, 4294901760
        %4875 = vmatmul.mubr.f32.gmra.mrb[0].mxu0 %v4874
        %v4876 = vpop.f32.mrb[0].mxu0
        %v4877 = vadd.f32 %v4803, %v4876
        %v4878 = vpop.f32.mrb[0].mxu0
        %4879 = vdwg.mxu0
        %4880 = vmatprep.subr.mxu0 0.0
        %v4881 = vand.u32 %v4501, 4294901760
        %4882 = vmatpush1.msra.mxu0 %v4881
        %4883 = vmatprep.subr.mxu0 0.0
        %4884 = vmatpush1.msra.mxu0 0.0
        %4885 = vmatprep.subr.mxu0 0.0
        %4886 = vmatpush1.msra.mxu0 0.0
        %4887 = vmatprep.subr.mxu0 0.0
        %4888 = vmatpush1.msra.mxu0 0.0
        %4889 = vmatprep.subr.mxu0 0.0
        %4890 = vmatpush1.msra.mxu0 0.0
        %4891 = vmatprep.subr.mxu0 0.0
        %4892 = vmatpush1.msra.mxu0 0.0
        %4893 = vmatprep.subr.mxu0 0.0
        %4894 = vmatpush1.msra.mxu0 0.0
        %4895 = vmatprep.subr.mxu0 0.0
        %4896 = vmatpush1.msra.mxu0 0.0
        %4897 = vmatprep.subr.mxu0 0.0
        %4898 = vmatpush1.msra.mxu0 0.0
        %4899 = vmatprep.subr.mxu0 0.0
        %4900 = vmatpush1.msra.mxu0 0.0
        %4901 = vmatprep.subr.mxu0 0.0
        %4902 = vmatpush1.msra.mxu0 0.0
        %4903 = vmatprep.subr.mxu0 0.0
        %4904 = vmatpush1.msra.mxu0 0.0
        %4905 = vmatprep.subr.mxu0 0.0
        %4906 = vmatpush1.msra.mxu0 0.0
        %4907 = vmatprep.subr.mxu0 0.0
        %4908 = vmatpush1.msra.mxu0 0.0
        %4909 = vmatprep.subr.mxu0 0.0
        %4910 = vmatpush1.msra.mxu0 0.0
        %4911 = vmatprep.subr.mxu0 0.0
        %4912 = vmatpush1.msra.mxu0 0.0
        %4913 = vmatprep.subr.mxu0 0.0
        %4914 = vmatpush1.msra.mxu0 0.0
        %4915 = vmatprep.subr.mxu0 0.0
        %4916 = vmatpush1.msra.mxu0 0.0
        %4917 = vmatprep.subr.mxu0 0.0
        %4918 = vmatpush1.msra.mxu0 0.0
        %4919 = vmatprep.subr.mxu0 0.0
        %4920 = vmatpush1.msra.mxu0 0.0
        %4921 = vmatprep.subr.mxu0 0.0
        %4922 = vmatpush1.msra.mxu0 0.0
        %4923 = vmatprep.subr.mxu0 0.0
        %4924 = vmatpush1.msra.mxu0 0.0
        %4925 = vmatprep.subr.mxu0 0.0
        %4926 = vmatpush1.msra.mxu0 0.0
        %4927 = vmatprep.subr.mxu0 0.0
        %4928 = vmatpush1.msra.mxu0 0.0
        %4929 = vmatprep.subr.mxu0 0.0
        %4930 = vmatpush1.msra.mxu0 0.0
        %4931 = vmatprep.subr.mxu0 0.0
        %4932 = vmatpush1.msra.mxu0 0.0
        %4933 = vmatprep.subr.mxu0 0.0
        %4934 = vmatpush1.msra.mxu0 0.0
        %4935 = vmatprep.subr.mxu0 0.0
        %4936 = vmatpush1.msra.mxu0 0.0
        %4937 = vmatprep.subr.mxu0 0.0
        %4938 = vmatpush1.msra.mxu0 0.0
        %4939 = vmatprep.subr.mxu0 0.0
        %4940 = vmatpush1.msra.mxu0 0.0
        %4941 = vmatprep.subr.mxu0 0.0
        %4942 = vmatpush1.msra.mxu0 0.0
        %4943 = vmatprep.subr.mxu0 0.0
        %4944 = vmatpush1.msra.mxu0 0.0
        %4945 = vmatprep.mubr.f32.mxu0 0.0
        %v4946 = vand.u32 %v4504, 4294901760
        %4947 = vmatmul.mubr.f32.gmra.mrb[0].mxu0 %v4946
        %v4948 = vpop.f32.mrb[0].mxu0
        %v4949 = vadd.f32 %v4877, %v4948
        %v4950 = vpop.f32.mrb[0].mxu0
        %4951 = vdwg.mxu0
        %4952 = vrot.lane.b32.xlu0 %v765, 64
        %v4953 = vpop.permute.xlu0 %4952
        %v4956 = vsel %vm4395, %v4493, 0
        %4958 = vmatprep.subr.mxu0 0.0
        %v4959 = vand.u32 %v4953, 4294901760
        %4960 = vmatpush1.msra.mxu0 %v4959
        %4961 = vmatprep.subr.mxu0 0.0
        %4962 = vmatpush1.msra.mxu0 0.0
        %4963 = vmatprep.subr.mxu0 0.0
        %4964 = vmatpush1.msra.mxu0 0.0
        %4965 = vmatprep.subr.mxu0 0.0
        %4966 = vmatpush1.msra.mxu0 0.0
        %4967 = vmatprep.subr.mxu0 0.0
        %4968 = vmatpush1.msra.mxu0 0.0
        %4969 = vmatprep.subr.mxu0 0.0
        %4970 = vmatpush1.msra.mxu0 0.0
        %4971 = vmatprep.subr.mxu0 0.0
        %4972 = vmatpush1.msra.mxu0 0.0
        %4973 = vmatprep.subr.mxu0 0.0
        %4974 = vmatpush1.msra.mxu0 0.0
        %4975 = vmatprep.subr.mxu0 0.0
        %4976 = vmatpush1.msra.mxu0 0.0
        %4977 = vmatprep.subr.mxu0 0.0
        %4978 = vmatpush1.msra.mxu0 0.0
        %4979 = vmatprep.subr.mxu0 0.0
        %4980 = vmatpush1.msra.mxu0 0.0
        %4981 = vmatprep.subr.mxu0 0.0
        %4982 = vmatpush1.msra.mxu0 0.0
        %4983 = vmatprep.subr.mxu0 0.0
        %4984 = vmatpush1.msra.mxu0 0.0
        %4985 = vmatprep.subr.mxu0 0.0
        %4986 = vmatpush1.msra.mxu0 0.0
        %4987 = vmatprep.subr.mxu0 0.0
        %4988 = vmatpush1.msra.mxu0 0.0
        %4989 = vmatprep.subr.mxu0 0.0
        %4990 = vmatpush1.msra.mxu0 0.0
        %4991 = vmatprep.subr.mxu0 0.0
        %4992 = vmatpush1.msra.mxu0 0.0
        %4993 = vmatprep.subr.mxu0 0.0
        %4994 = vmatpush1.msra.mxu0 0.0
        %4995 = vmatprep.subr.mxu0 0.0
        %4996 = vmatpush1.msra.mxu0 0.0
        %4997 = vmatprep.subr.mxu0 0.0
        %4998 = vmatpush1.msra.mxu0 0.0
        %4999 = vmatprep.subr.mxu0 0.0
        %5000 = vmatpush1.msra.mxu0 0.0
        %5001 = vmatprep.subr.mxu0 0.0
        %5002 = vmatpush1.msra.mxu0 0.0
        %5003 = vmatprep.subr.mxu0 0.0
        %5004 = vmatpush1.msra.mxu0 0.0
        %5005 = vmatprep.subr.mxu0 0.0
        %5006 = vmatpush1.msra.mxu0 0.0
        %5007 = vmatprep.subr.mxu0 0.0
        %5008 = vmatpush1.msra.mxu0 0.0
        %5009 = vmatprep.subr.mxu0 0.0
        %5010 = vmatpush1.msra.mxu0 0.0
        %5011 = vmatprep.subr.mxu0 0.0
        %5012 = vmatpush1.msra.mxu0 0.0
        %5013 = vmatprep.subr.mxu0 0.0
        %5014 = vmatpush1.msra.mxu0 0.0
        %5015 = vmatprep.subr.mxu0 0.0
        %5016 = vmatpush1.msra.mxu0 0.0
        %5017 = vmatprep.subr.mxu0 0.0
        %5018 = vmatpush1.msra.mxu0 0.0
        %5019 = vmatprep.subr.mxu0 0.0
        %5020 = vmatpush1.msra.mxu0 0.0
        %5021 = vmatprep.subr.mxu0 0.0
        %5022 = vmatpush1.msra.mxu0 0.0
        %5023 = vmatprep.mubr.f32.mxu0 0.0
        %v5024 = vand.u32 %v4956, 4294901760
        %v5025 = vsub.f32 %v4956, %v5024
        %v5026 = vand.u32 %v5025, 4294901760
        %v5027 = vsub.f32 %v5025, %v5026
        %v5028 = vand.u32 %v5027, 4294901760
        %5029 = vmatmul.mubr.f32.gmra.mrb[0].mxu0 %v5028
        %v5030 = vpop.f32.mrb[0].mxu0
        %v5031 = vadd.f32 0.0, %v5030
        %v5032 = vpop.f32.mrb[0].mxu0
        %5033 = vdwg.mxu0
        %5034 = vmatprep.subr.mxu0 0.0
        %v5035 = vand.u32 %v4953, 4294901760
        %v5036 = vsub.f32 %v4953, %v5035
        %v5037 = vand.u32 %v5036, 4294901760
        %v5038 = vsub.f32 %v5036, %v5037
        %v5039 = vand.u32 %v5038, 4294901760
        %5040 = vmatpush1.msra.mxu0 %v5039
        %5041 = vmatprep.subr.mxu0 0.0
        %5042 = vmatpush1.msra.mxu0 0.0
        %5043 = vmatprep.subr.mxu0 0.0
        %5044 = vmatpush1.msra.mxu0 0.0
        %5045 = vmatprep.subr.mxu0 0.0
        %5046 = vmatpush1.msra.mxu0 0.0
        %5047 = vmatprep.subr.mxu0 0.0
        %5048 = vmatpush1.msra.mxu0 0.0
        %5049 = vmatprep.subr.mxu0 0.0
        %5050 = vmatpush1.msra.mxu0 0.0
        %5051 = vmatprep.subr.mxu0 0.0
        %5052 = vmatpush1.msra.mxu0 0.0
        %5053 = vmatprep.subr.mxu0 0.0
        %5054 = vmatpush1.msra.mxu0 0.0
        %5055 = vmatprep.subr.mxu0 0.0
        %5056 = vmatpush1.msra.mxu0 0.0
        %5057 = vmatprep.subr.mxu0 0.0
        %5058 = vmatpush1.msra.mxu0 0.0
        %5059 = vmatprep.subr.mxu0 0.0
        %5060 = vmatpush1.msra.mxu0 0.0
        %5061 = vmatprep.subr.mxu0 0.0
        %5062 = vmatpush1.msra.mxu0 0.0
        %5063 = vmatprep.subr.mxu0 0.0
        %5064 = vmatpush1.msra.mxu0 0.0
        %5065 = vmatprep.subr.mxu0 0.0
        %5066 = vmatpush1.msra.mxu0 0.0
        %5067 = vmatprep.subr.mxu0 0.0
        %5068 = vmatpush1.msra.mxu0 0.0
        %5069 = vmatprep.subr.mxu0 0.0
        %5070 = vmatpush1.msra.mxu0 0.0
        %5071 = vmatprep.subr.mxu0 0.0
        %5072 = vmatpush1.msra.mxu0 0.0
        %5073 = vmatprep.subr.mxu0 0.0
        %5074 = vmatpush1.msra.mxu0 0.0
        %5075 = vmatprep.subr.mxu0 0.0
        %5076 = vmatpush1.msra.mxu0 0.0
        %5077 = vmatprep.subr.mxu0 0.0
        %5078 = vmatpush1.msra.mxu0 0.0
        %5079 = vmatprep.subr.mxu0 0.0
        %5080 = vmatpush1.msra.mxu0 0.0
        %5081 = vmatprep.subr.mxu0 0.0
        %5082 = vmatpush1.msra.mxu0 0.0
        %5083 = vmatprep.subr.mxu0 0.0
        %5084 = vmatpush1.msra.mxu0 0.0
        %5085 = vmatprep.subr.mxu0 0.0
        %5086 = vmatpush1.msra.mxu0 0.0
        %5087 = vmatprep.subr.mxu0 0.0
        %5088 = vmatpush1.msra.mxu0 0.0
        %5089 = vmatprep.subr.mxu0 0.0
        %5090 = vmatpush1.msra.mxu0 0.0
        %5091 = vmatprep.subr.mxu0 0.0
        %5092 = vmatpush1.msra.mxu0 0.0
        %5093 = vmatprep.subr.mxu0 0.0
        %5094 = vmatpush1.msra.mxu0 0.0
        %5095 = vmatprep.subr.mxu0 0.0
        %5096 = vmatpush1.msra.mxu0 0.0
        %5097 = vmatprep.subr.mxu0 0.0
        %5098 = vmatpush1.msra.mxu0 0.0
        %5099 = vmatprep.subr.mxu0 0.0
        %5100 = vmatpush1.msra.mxu0 0.0
        %5101 = vmatprep.subr.mxu0 0.0
        %5102 = vmatpush1.msra.mxu0 0.0
        %5103 = vmatprep.mubr.f32.mxu0 0.0
        %v5104 = vand.u32 %v4956, 4294901760
        %5105 = vmatmul.mubr.f32.gmra.mrb[0].mxu0 %v5104
        %v5106 = vpop.f32.mrb[0].mxu0
        %v5107 = vadd.f32 %v5031, %v5106
        %v5108 = vpop.f32.mrb[0].mxu0
        %5109 = vdwg.mxu0
        %5110 = vmatprep.subr.mxu0 0.0
        %v5111 = vand.u32 %v4953, 4294901760
        %v5112 = vsub.f32 %v4953, %v5111
        %5113 = vmatpush1.msra.mxu0 %v5112
        %5114 = vmatprep.subr.mxu0 0.0
        %5115 = vmatpush1.msra.mxu0 0.0
        %5116 = vmatprep.subr.mxu0 0.0
        %5117 = vmatpush1.msra.mxu0 0.0
        %5118 = vmatprep.subr.mxu0 0.0
        %5119 = vmatpush1.msra.mxu0 0.0
        %5120 = vmatprep.subr.mxu0 0.0
        %5121 = vmatpush1.msra.mxu0 0.0
        %5122 = vmatprep.subr.mxu0 0.0
        %5123 = vmatpush1.msra.mxu0 0.0
        %5124 = vmatprep.subr.mxu0 0.0
        %5125 = vmatpush1.msra.mxu0 0.0
        %5126 = vmatprep.subr.mxu0 0.0
        %5127 = vmatpush1.msra.mxu0 0.0
        %5128 = vmatprep.subr.mxu0 0.0
        %5129 = vmatpush1.msra.mxu0 0.0
        %5130 = vmatprep.subr.mxu0 0.0
        %5131 = vmatpush1.msra.mxu0 0.0
        %5132 = vmatprep.subr.mxu0 0.0
        %5133 = vmatpush1.msra.mxu0 0.0
        %5134 = vmatprep.subr.mxu0 0.0
        %5135 = vmatpush1.msra.mxu0 0.0
        %5136 = vmatprep.subr.mxu0 0.0
        %5137 = vmatpush1.msra.mxu0 0.0
        %5138 = vmatprep.subr.mxu0 0.0
        %5139 = vmatpush1.msra.mxu0 0.0
        %5140 = vmatprep.subr.mxu0 0.0
        %5141 = vmatpush1.msra.mxu0 0.0
        %5142 = vmatprep.subr.mxu0 0.0
        %5143 = vmatpush1.msra.mxu0 0.0
        %5144 = vmatprep.subr.mxu0 0.0
        %5145 = vmatpush1.msra.mxu0 0.0
        %5146 = vmatprep.subr.mxu0 0.0
        %5147 = vmatpush1.msra.mxu0 0.0
        %5148 = vmatprep.subr.mxu0 0.0
        %5149 = vmatpush1.msra.mxu0 0.0
        %5150 = vmatprep.subr.mxu0 0.0
        %5151 = vmatpush1.msra.mxu0 0.0
        %5152 = vmatprep.subr.mxu0 0.0
        %5153 = vmatpush1.msra.mxu0 0.0
        %5154 = vmatprep.subr.mxu0 0.0
        %5155 = vmatpush1.msra.mxu0 0.0
        %5156 = vmatprep.subr.mxu0 0.0
        %5157 = vmatpush1.msra.mxu0 0.0
        %5158 = vmatprep.subr.mxu0 0.0
        %5159 = vmatpush1.msra.mxu0 0.0
        %5160 = vmatprep.subr.mxu0 0.0
        %5161 = vmatpush1.msra.mxu0 0.0
        %5162 = vmatprep.subr.mxu0 0.0
        %5163 = vmatpush1.msra.mxu0 0.0
        %5164 = vmatprep.subr.mxu0 0.0
        %5165 = vmatpush1.msra.mxu0 0.0
        %5166 = vmatprep.subr.mxu0 0.0
        %5167 = vmatpush1.msra.mxu0 0.0
        %5168 = vmatprep.subr.mxu0 0.0
        %5169 = vmatpush1.msra.mxu0 0.0
        %5170 = vmatprep.subr.mxu0 0.0
        %5171 = vmatpush1.msra.mxu0 0.0
        %5172 = vmatprep.subr.mxu0 0.0
        %5173 = vmatpush1.msra.mxu0 0.0
        %5174 = vmatprep.subr.mxu0 0.0
        %5175 = vmatpush1.msra.mxu0 0.0
        %5176 = vmatprep.mubr.f32.mxu0 0.0
        %v5177 = vand.u32 %v4956, 4294901760
        %v5178 = vsub.f32 %v4956, %v5177
        %5179 = vmatmul.mubr.f32.gmra.mrb[0].mxu0 %v5178
        %v5180 = vpop.f32.mrb[0].mxu0
        %v5181 = vadd.f32 %v5107, %v5180
        %v5182 = vpop.f32.mrb[0].mxu0
        %5183 = vdwg.mxu0
        %5184 = vmatprep.subr.mxu0 0.0
        %v5185 = vand.u32 %v4953, 4294901760
        %5186 = vmatpush1.msra.mxu0 %v5185
        %5187 = vmatprep.subr.mxu0 0.0
        %5188 = vmatpush1.msra.mxu0 0.0
        %5189 = vmatprep.subr.mxu0 0.0
        %5190 = vmatpush1.msra.mxu0 0.0
        %5191 = vmatprep.subr.mxu0 0.0
        %5192 = vmatpush1.msra.mxu0 0.0
        %5193 = vmatprep.subr.mxu0 0.0
        %5194 = vmatpush1.msra.mxu0 0.0
        %5195 = vmatprep.subr.mxu0 0.0
        %5196 = vmatpush1.msra.mxu0 0.0
        %5197 = vmatprep.subr.mxu0 0.0
        %5198 = vmatpush1.msra.mxu0 0.0
        %5199 = vmatprep.subr.mxu0 0.0
        %5200 = vmatpush1.msra.mxu0 0.0
        %5201 = vmatprep.subr.mxu0 0.0
        %5202 = vmatpush1.msra.mxu0 0.0
        %5203 = vmatprep.subr.mxu0 0.0
        %5204 = vmatpush1.msra.mxu0 0.0
        %5205 = vmatprep.subr.mxu0 0.0
        %5206 = vmatpush1.msra.mxu0 0.0
        %5207 = vmatprep.subr.mxu0 0.0
        %5208 = vmatpush1.msra.mxu0 0.0
        %5209 = vmatprep.subr.mxu0 0.0
        %5210 = vmatpush1.msra.mxu0 0.0
        %5211 = vmatprep.subr.mxu0 0.0
        %5212 = vmatpush1.msra.mxu0 0.0
        %5213 = vmatprep.subr.mxu0 0.0
        %5214 = vmatpush1.msra.mxu0 0.0
        %5215 = vmatprep.subr.mxu0 0.0
        %5216 = vmatpush1.msra.mxu0 0.0
        %5217 = vmatprep.subr.mxu0 0.0
        %5218 = vmatpush1.msra.mxu0 0.0
        %5219 = vmatprep.subr.mxu0 0.0
        %5220 = vmatpush1.msra.mxu0 0.0
        %5221 = vmatprep.subr.mxu0 0.0
        %5222 = vmatpush1.msra.mxu0 0.0
        %5223 = vmatprep.subr.mxu0 0.0
        %5224 = vmatpush1.msra.mxu0 0.0
        %5225 = vmatprep.subr.mxu0 0.0
        %5226 = vmatpush1.msra.mxu0 0.0
        %5227 = vmatprep.subr.mxu0 0.0
        %5228 = vmatpush1.msra.mxu0 0.0
        %5229 = vmatprep.subr.mxu0 0.0
        %5230 = vmatpush1.msra.mxu0 0.0
        %5231 = vmatprep.subr.mxu0 0.0
        %5232 = vmatpush1.msra.mxu0 0.0
        %5233 = vmatprep.subr.mxu0 0.0
        %5234 = vmatpush1.msra.mxu0 0.0
        %5235 = vmatprep.subr.mxu0 0.0
        %5236 = vmatpush1.msra.mxu0 0.0
        %5237 = vmatprep.subr.mxu0 0.0
        %5238 = vmatpush1.msra.mxu0 0.0
        %5239 = vmatprep.subr.mxu0 0.0
        %5240 = vmatpush1.msra.mxu0 0.0
        %5241 = vmatprep.subr.mxu0 0.0
        %5242 = vmatpush1.msra.mxu0 0.0
        %5243 = vmatprep.subr.mxu0 0.0
        %5244 = vmatpush1.msra.mxu0 0.0
        %5245 = vmatprep.subr.mxu0 0.0
        %5246 = vmatpush1.msra.mxu0 0.0
        %5247 = vmatprep.subr.mxu0 0.0
        %5248 = vmatpush1.msra.mxu0 0.0
        %5249 = vmatprep.mubr.f32.mxu0 0.0
        %v5250 = vand.u32 %v4956, 4294901760
        %v5251 = vsub.f32 %v4956, %v5250
        %v5252 = vand.u32 %v5251, 4294901760
        %5253 = vmatmul.mubr.f32.gmra.mrb[0].mxu0 %v5252
        %v5254 = vpop.f32.mrb[0].mxu0
        %v5255 = vadd.f32 %v5181, %v5254
        %v5256 = vpop.f32.mrb[0].mxu0
        %5257 = vdwg.mxu0
        %5258 = vmatprep.subr.mxu0 0.0
        %v5259 = vand.u32 %v4953, 4294901760
        %v5260 = vsub.f32 %v4953, %v5259
        %v5261 = vand.u32 %v5260, 4294901760
        %5262 = vmatpush1.msra.mxu0 %v5261
        %5263 = vmatprep.subr.mxu0 0.0
        %5264 = vmatpush1.msra.mxu0 0.0
        %5265 = vmatprep.subr.mxu0 0.0
        %5266 = vmatpush1.msra.mxu0 0.0
        %5267 = vmatprep.subr.mxu0 0.0
        %5268 = vmatpush1.msra.mxu0 0.0
        %5269 = vmatprep.subr.mxu0 0.0
        %5270 = vmatpush1.msra.mxu0 0.0
        %5271 = vmatprep.subr.mxu0 0.0
        %5272 = vmatpush1.msra.mxu0 0.0
        %5273 = vmatprep.subr.mxu0 0.0
        %5274 = vmatpush1.msra.mxu0 0.0
        %5275 = vmatprep.subr.mxu0 0.0
        %5276 = vmatpush1.msra.mxu0 0.0
        %5277 = vmatprep.subr.mxu0 0.0
        %5278 = vmatpush1.msra.mxu0 0.0
        %5279 = vmatprep.subr.mxu0 0.0
        %5280 = vmatpush1.msra.mxu0 0.0
        %5281 = vmatprep.subr.mxu0 0.0
        %5282 = vmatpush1.msra.mxu0 0.0
        %5283 = vmatprep.subr.mxu0 0.0
        %5284 = vmatpush1.msra.mxu0 0.0
        %5285 = vmatprep.subr.mxu0 0.0
        %5286 = vmatpush1.msra.mxu0 0.0
        %5287 = vmatprep.subr.mxu0 0.0
        %5288 = vmatpush1.msra.mxu0 0.0
        %5289 = vmatprep.subr.mxu0 0.0
        %5290 = vmatpush1.msra.mxu0 0.0
        %5291 = vmatprep.subr.mxu0 0.0
        %5292 = vmatpush1.msra.mxu0 0.0
        %5293 = vmatprep.subr.mxu0 0.0
        %5294 = vmatpush1.msra.mxu0 0.0
        %5295 = vmatprep.subr.mxu0 0.0
        %5296 = vmatpush1.msra.mxu0 0.0
        %5297 = vmatprep.subr.mxu0 0.0
        %5298 = vmatpush1.msra.mxu0 0.0
        %5299 = vmatprep.subr.mxu0 0.0
        %5300 = vmatpush1.msra.mxu0 0.0
        %5301 = vmatprep.subr.mxu0 0.0
        %5302 = vmatpush1.msra.mxu0 0.0
        %5303 = vmatprep.subr.mxu0 0.0
        %5304 = vmatpush1.msra.mxu0 0.0
        %5305 = vmatprep.subr.mxu0 0.0
        %5306 = vmatpush1.msra.mxu0 0.0
        %5307 = vmatprep.subr.mxu0 0.0
        %5308 = vmatpush1.msra.mxu0 0.0
        %5309 = vmatprep.subr.mxu0 0.0
        %5310 = vmatpush1.msra.mxu0 0.0
        %5311 = vmatprep.subr.mxu0 0.0
        %5312 = vmatpush1.msra.mxu0 0.0
        %5313 = vmatprep.subr.mxu0 0.0
        %5314 = vmatpush1.msra.mxu0 0.0
        %5315 = vmatprep.subr.mxu0 0.0
        %5316 = vmatpush1.msra.mxu0 0.0
        %5317 = vmatprep.subr.mxu0 0.0
        %5318 = vmatpush1.msra.mxu0 0.0
        %5319 = vmatprep.subr.mxu0 0.0
        %5320 = vmatpush1.msra.mxu0 0.0
        %5321 = vmatprep.subr.mxu0 0.0
        %5322 = vmatpush1.msra.mxu0 0.0
        %5323 = vmatprep.subr.mxu0 0.0
        %5324 = vmatpush1.msra.mxu0 0.0
        %5325 = vmatprep.mubr.f32.mxu0 0.0
        %v5326 = vand.u32 %v4956, 4294901760
        %5327 = vmatmul.mubr.f32.gmra.mrb[0].mxu0 %v5326
        %v5328 = vpop.f32.mrb[0].mxu0
        %v5329 = vadd.f32 %v5255, %v5328
        %v5330 = vpop.f32.mrb[0].mxu0
        %5331 = vdwg.mxu0
        %5332 = vmatprep.subr.mxu0 0.0
        %v5333 = vand.u32 %v4953, 4294901760
        %5334 = vmatpush1.msra.mxu0 %v5333
        %5335 = vmatprep.subr.mxu0 0.0
        %5336 = vmatpush1.msra.mxu0 0.0
        %5337 = vmatprep.subr.mxu0 0.0
        %5338 = vmatpush1.msra.mxu0 0.0
        %5339 = vmatprep.subr.mxu0 0.0
        %5340 = vmatpush1.msra.mxu0 0.0
        %5341 = vmatprep.subr.mxu0 0.0
        %5342 = vmatpush1.msra.mxu0 0.0
        %5343 = vmatprep.subr.mxu0 0.0
        %5344 = vmatpush1.msra.mxu0 0.0
        %5345 = vmatprep.subr.mxu0 0.0
        %5346 = vmatpush1.msra.mxu0 0.0
        %5347 = vmatprep.subr.mxu0 0.0
        %5348 = vmatpush1.msra.mxu0 0.0
        %5349 = vmatprep.subr.mxu0 0.0
        %5350 = vmatpush1.msra.mxu0 0.0
        %5351 = vmatprep.subr.mxu0 0.0
        %5352 = vmatpush1.msra.mxu0 0.0
        %5353 = vmatprep.subr.mxu0 0.0
        %5354 = vmatpush1.msra.mxu0 0.0
        %5355 = vmatprep.subr.mxu0 0.0
        %5356 = vmatpush1.msra.mxu0 0.0
        %5357 = vmatprep.subr.mxu0 0.0
        %5358 = vmatpush1.msra.mxu0 0.0
        %5359 = vmatprep.subr.mxu0 0.0
        %5360 = vmatpush1.msra.mxu0 0.0
        %5361 = vmatprep.subr.mxu0 0.0
        %5362 = vmatpush1.msra.mxu0 0.0
        %5363 = vmatprep.subr.mxu0 0.0
        %5364 = vmatpush1.msra.mxu0 0.0
        %5365 = vmatprep.subr.mxu0 0.0
        %5366 = vmatpush1.msra.mxu0 0.0
        %5367 = vmatprep.subr.mxu0 0.0
        %5368 = vmatpush1.msra.mxu0 0.0
        %5369 = vmatprep.subr.mxu0 0.0
        %5370 = vmatpush1.msra.mxu0 0.0
        %5371 = vmatprep.subr.mxu0 0.0
        %5372 = vmatpush1.msra.mxu0 0.0
        %5373 = vmatprep.subr.mxu0 0.0
        %5374 = vmatpush1.msra.mxu0 0.0
        %5375 = vmatprep.subr.mxu0 0.0
        %5376 = vmatpush1.msra.mxu0 0.0
        %5377 = vmatprep.subr.mxu0 0.0
        %5378 = vmatpush1.msra.mxu0 0.0
        %5379 = vmatprep.subr.mxu0 0.0
        %5380 = vmatpush1.msra.mxu0 0.0
        %5381 = vmatprep.subr.mxu0 0.0
        %5382 = vmatpush1.msra.mxu0 0.0
        %5383 = vmatprep.subr.mxu0 0.0
        %5384 = vmatpush1.msra.mxu0 0.0
        %5385 = vmatprep.subr.mxu0 0.0
        %5386 = vmatpush1.msra.mxu0 0.0
        %5387 = vmatprep.subr.mxu0 0.0
        %5388 = vmatpush1.msra.mxu0 0.0
        %5389 = vmatprep.subr.mxu0 0.0
        %5390 = vmatpush1.msra.mxu0 0.0
        %5391 = vmatprep.subr.mxu0 0.0
        %5392 = vmatpush1.msra.mxu0 0.0
        %5393 = vmatprep.subr.mxu0 0.0
        %5394 = vmatpush1.msra.mxu0 0.0
        %5395 = vmatprep.subr.mxu0 0.0
        %5396 = vmatpush1.msra.mxu0 0.0
        %5397 = vmatprep.mubr.f32.mxu0 0.0
        %v5398 = vand.u32 %v4956, 4294901760
        %5399 = vmatmul.mubr.f32.gmra.mrb[0].mxu0 %v5398
        %v5400 = vpop.f32.mrb[0].mxu0
        %v5401 = vadd.f32 %v5329, %v5400
        %v5402 = vpop.f32.mrb[0].mxu0
        %5403 = vdwg.mxu0
        %5404 = vrot.lane.b32.xlu0 %v767, 64
        %v5405 = vpop.permute.xlu0 %5404
        %v5408 = vsel %vm4395, %v4494, 0
        %5410 = vmatprep.subr.mxu0 0.0
        %v5411 = vand.u32 %v5405, 4294901760
        %5412 = vmatpush1.msra.mxu0 %v5411
        %5413 = vmatprep.subr.mxu0 0.0
        %5414 = vmatpush1.msra.mxu0 0.0
        %5415 = vmatprep.subr.mxu0 0.0
        %5416 = vmatpush1.msra.mxu0 0.0
        %5417 = vmatprep.subr.mxu0 0.0
        %5418 = vmatpush1.msra.mxu0 0.0
        %5419 = vmatprep.subr.mxu0 0.0
        %5420 = vmatpush1.msra.mxu0 0.0
        %5421 = vmatprep.subr.mxu0 0.0
        %5422 = vmatpush1.msra.mxu0 0.0
        %5423 = vmatprep.subr.mxu0 0.0
        %5424 = vmatpush1.msra.mxu0 0.0
        %5425 = vmatprep.subr.mxu0 0.0
        %5426 = vmatpush1.msra.mxu0 0.0
        %5427 = vmatprep.subr.mxu0 0.0
        %5428 = vmatpush1.msra.mxu0 0.0
        %5429 = vmatprep.subr.mxu0 0.0
        %5430 = vmatpush1.msra.mxu0 0.0
        %5431 = vmatprep.subr.mxu0 0.0
        %5432 = vmatpush1.msra.mxu0 0.0
        %5433 = vmatprep.subr.mxu0 0.0
        %5434 = vmatpush1.msra.mxu0 0.0
        %5435 = vmatprep.subr.mxu0 0.0
        %5436 = vmatpush1.msra.mxu0 0.0
        %5437 = vmatprep.subr.mxu0 0.0
        %5438 = vmatpush1.msra.mxu0 0.0
        %5439 = vmatprep.subr.mxu0 0.0
        %5440 = vmatpush1.msra.mxu0 0.0
        %5441 = vmatprep.subr.mxu0 0.0
        %5442 = vmatpush1.msra.mxu0 0.0
        %5443 = vmatprep.subr.mxu0 0.0
        %5444 = vmatpush1.msra.mxu0 0.0
        %5445 = vmatprep.subr.mxu0 0.0
        %5446 = vmatpush1.msra.mxu0 0.0
        %5447 = vmatprep.subr.mxu0 0.0
        %5448 = vmatpush1.msra.mxu0 0.0
        %5449 = vmatprep.subr.mxu0 0.0
        %5450 = vmatpush1.msra.mxu0 0.0
        %5451 = vmatprep.subr.mxu0 0.0
        %5452 = vmatpush1.msra.mxu0 0.0
        %5453 = vmatprep.subr.mxu0 0.0
        %5454 = vmatpush1.msra.mxu0 0.0
        %5455 = vmatprep.subr.mxu0 0.0
        %5456 = vmatpush1.msra.mxu0 0.0
        %5457 = vmatprep.subr.mxu0 0.0
        %5458 = vmatpush1.msra.mxu0 0.0
        %5459 = vmatprep.subr.mxu0 0.0
        %5460 = vmatpush1.msra.mxu0 0.0
        %5461 = vmatprep.subr.mxu0 0.0
        %5462 = vmatpush1.msra.mxu0 0.0
        %5463 = vmatprep.subr.mxu0 0.0
        %5464 = vmatpush1.msra.mxu0 0.0
        %5465 = vmatprep.subr.mxu0 0.0
        %5466 = vmatpush1.msra.mxu0 0.0
        %5467 = vmatprep.subr.mxu0 0.0
        %5468 = vmatpush1.msra.mxu0 0.0
        %5469 = vmatprep.subr.mxu0 0.0
        %5470 = vmatpush1.msra.mxu0 0.0
        %5471 = vmatprep.subr.mxu0 0.0
        %5472 = vmatpush1.msra.mxu0 0.0
        %5473 = vmatprep.subr.mxu0 0.0
        %5474 = vmatpush1.msra.mxu0 0.0
        %5475 = vmatprep.mubr.f32.mxu0 0.0
        %v5476 = vand.u32 %v5408, 4294901760
        %v5477 = vsub.f32 %v5408, %v5476
        %v5478 = vand.u32 %v5477, 4294901760
        %v5479 = vsub.f32 %v5477, %v5478
        %v5480 = vand.u32 %v5479, 4294901760
        %5481 = vmatmul.mubr.f32.gmra.mrb[0].mxu0 %v5480
        %v5482 = vpop.f32.mrb[0].mxu0
        %v5483 = vadd.f32 0.0, %v5482
        %v5484 = vpop.f32.mrb[0].mxu0
        %5485 = vdwg.mxu0
        %5486 = vmatprep.subr.mxu0 0.0
        %v5487 = vand.u32 %v5405, 4294901760
        %v5488 = vsub.f32 %v5405, %v5487
        %v5489 = vand.u32 %v5488, 4294901760
        %v5490 = vsub.f32 %v5488, %v5489
        %v5491 = vand.u32 %v5490, 4294901760
        %5492 = vmatpush1.msra.mxu0 %v5491
        %5493 = vmatprep.subr.mxu0 0.0
        %5494 = vmatpush1.msra.mxu0 0.0
        %5495 = vmatprep.subr.mxu0 0.0
        %5496 = vmatpush1.msra.mxu0 0.0
        %5497 = vmatprep.subr.mxu0 0.0
        %5498 = vmatpush1.msra.mxu0 0.0
        %5499 = vmatprep.subr.mxu0 0.0
        %5500 = vmatpush1.msra.mxu0 0.0
        %5501 = vmatprep.subr.mxu0 0.0
        %5502 = vmatpush1.msra.mxu0 0.0
        %5503 = vmatprep.subr.mxu0 0.0
        %5504 = vmatpush1.msra.mxu0 0.0
        %5505 = vmatprep.subr.mxu0 0.0
        %5506 = vmatpush1.msra.mxu0 0.0
        %5507 = vmatprep.subr.mxu0 0.0
        %5508 = vmatpush1.msra.mxu0 0.0
        %5509 = vmatprep.subr.mxu0 0.0
        %5510 = vmatpush1.msra.mxu0 0.0
        %5511 = vmatprep.subr.mxu0 0.0
        %5512 = vmatpush1.msra.mxu0 0.0
        %5513 = vmatprep.subr.mxu0 0.0
        %5514 = vmatpush1.msra.mxu0 0.0
        %5515 = vmatprep.subr.mxu0 0.0
        %5516 = vmatpush1.msra.mxu0 0.0
        %5517 = vmatprep.subr.mxu0 0.0
        %5518 = vmatpush1.msra.mxu0 0.0
        %5519 = vmatprep.subr.mxu0 0.0
        %5520 = vmatpush1.msra.mxu0 0.0
        %5521 = vmatprep.subr.mxu0 0.0
        %5522 = vmatpush1.msra.mxu0 0.0
        %5523 = vmatprep.subr.mxu0 0.0
        %5524 = vmatpush1.msra.mxu0 0.0
        %5525 = vmatprep.subr.mxu0 0.0
        %5526 = vmatpush1.msra.mxu0 0.0
        %5527 = vmatprep.subr.mxu0 0.0
        %5528 = vmatpush1.msra.mxu0 0.0
        %5529 = vmatprep.subr.mxu0 0.0
        %5530 = vmatpush1.msra.mxu0 0.0
        %5531 = vmatprep.subr.mxu0 0.0
        %5532 = vmatpush1.msra.mxu0 0.0
        %5533 = vmatprep.subr.mxu0 0.0
        %5534 = vmatpush1.msra.mxu0 0.0
        %5535 = vmatprep.subr.mxu0 0.0
        %5536 = vmatpush1.msra.mxu0 0.0
        %5537 = vmatprep.subr.mxu0 0.0
        %5538 = vmatpush1.msra.mxu0 0.0
        %5539 = vmatprep.subr.mxu0 0.0
        %5540 = vmatpush1.msra.mxu0 0.0
        %5541 = vmatprep.subr.mxu0 0.0
        %5542 = vmatpush1.msra.mxu0 0.0
        %5543 = vmatprep.subr.mxu0 0.0
        %5544 = vmatpush1.msra.mxu0 0.0
        %5545 = vmatprep.subr.mxu0 0.0
        %5546 = vmatpush1.msra.mxu0 0.0
        %5547 = vmatprep.subr.mxu0 0.0
        %5548 = vmatpush1.msra.mxu0 0.0
        %5549 = vmatprep.subr.mxu0 0.0
        %5550 = vmatpush1.msra.mxu0 0.0
        %5551 = vmatprep.subr.mxu0 0.0
        %5552 = vmatpush1.msra.mxu0 0.0
        %5553 = vmatprep.subr.mxu0 0.0
        %5554 = vmatpush1.msra.mxu0 0.0
        %5555 = vmatprep.mubr.f32.mxu0 0.0
        %v5556 = vand.u32 %v5408, 4294901760
        %5557 = vmatmul.mubr.f32.gmra.mrb[0].mxu0 %v5556
        %v5558 = vpop.f32.mrb[0].mxu0
        %v5559 = vadd.f32 %v5483, %v5558
        %v5560 = vpop.f32.mrb[0].mxu0
        %5561 = vdwg.mxu0
        %5562 = vmatprep.subr.mxu0 0.0
        %v5563 = vand.u32 %v5405, 4294901760
        %v5564 = vsub.f32 %v5405, %v5563
        %5565 = vmatpush1.msra.mxu0 %v5564
        %5566 = vmatprep.subr.mxu0 0.0
        %5567 = vmatpush1.msra.mxu0 0.0
        %5568 = vmatprep.subr.mxu0 0.0
        %5569 = vmatpush1.msra.mxu0 0.0
        %5570 = vmatprep.subr.mxu0 0.0
        %5571 = vmatpush1.msra.mxu0 0.0
        %5572 = vmatprep.subr.mxu0 0.0
        %5573 = vmatpush1.msra.mxu0 0.0
        %5574 = vmatprep.subr.mxu0 0.0
        %5575 = vmatpush1.msra.mxu0 0.0
        %5576 = vmatprep.subr.mxu0 0.0
        %5577 = vmatpush1.msra.mxu0 0.0
        %5578 = vmatprep.subr.mxu0 0.0
        %5579 = vmatpush1.msra.mxu0 0.0
        %5580 = vmatprep.subr.mxu0 0.0
        %5581 = vmatpush1.msra.mxu0 0.0
        %5582 = vmatprep.subr.mxu0 0.0
        %5583 = vmatpush1.msra.mxu0 0.0
        %5584 = vmatprep.subr.mxu0 0.0
        %5585 = vmatpush1.msra.mxu0 0.0
        %5586 = vmatprep.subr.mxu0 0.0
        %5587 = vmatpush1.msra.mxu0 0.0
        %5588 = vmatprep.subr.mxu0 0.0
        %5589 = vmatpush1.msra.mxu0 0.0
        %5590 = vmatprep.subr.mxu0 0.0
        %5591 = vmatpush1.msra.mxu0 0.0
        %5592 = vmatprep.subr.mxu0 0.0
        %5593 = vmatpush1.msra.mxu0 0.0
        %5594 = vmatprep.subr.mxu0 0.0
        %5595 = vmatpush1.msra.mxu0 0.0
        %5596 = vmatprep.subr.mxu0 0.0
        %5597 = vmatpush1.msra.mxu0 0.0
        %5598 = vmatprep.subr.mxu0 0.0
        %5599 = vmatpush1.msra.mxu0 0.0
        %5600 = vmatprep.subr.mxu0 0.0
        %5601 = vmatpush1.msra.mxu0 0.0
        %5602 = vmatprep.subr.mxu0 0.0
        %5603 = vmatpush1.msra.mxu0 0.0
        %5604 = vmatprep.subr.mxu0 0.0
        %5605 = vmatpush1.msra.mxu0 0.0
        %5606 = vmatprep.subr.mxu0 0.0
        %5607 = vmatpush1.msra.mxu0 0.0
        %5608 = vmatprep.subr.mxu0 0.0
        %5609 = vmatpush1.msra.mxu0 0.0
        %5610 = vmatprep.subr.mxu0 0.0
        %5611 = vmatpush1.msra.mxu0 0.0
        %5612 = vmatprep.subr.mxu0 0.0
        %5613 = vmatpush1.msra.mxu0 0.0
        %5614 = vmatprep.subr.mxu0 0.0
        %5615 = vmatpush1.msra.mxu0 0.0
        %5616 = vmatprep.subr.mxu0 0.0
        %5617 = vmatpush1.msra.mxu0 0.0
        %5618 = vmatprep.subr.mxu0 0.0
        %5619 = vmatpush1.msra.mxu0 0.0
        %5620 = vmatprep.subr.mxu0 0.0
        %5621 = vmatpush1.msra.mxu0 0.0
        %5622 = vmatprep.subr.mxu0 0.0
        %5623 = vmatpush1.msra.mxu0 0.0
        %5624 = vmatprep.subr.mxu0 0.0
        %5625 = vmatpush1.msra.mxu0 0.0
        %5626 = vmatprep.subr.mxu0 0.0
        %5627 = vmatpush1.msra.mxu0 0.0
        %5628 = vmatprep.mubr.f32.mxu0 0.0
        %v5629 = vand.u32 %v5408, 4294901760
        %v5630 = vsub.f32 %v5408, %v5629
        %5631 = vmatmul.mubr.f32.gmra.mrb[0].mxu0 %v5630
        %v5632 = vpop.f32.mrb[0].mxu0
        %v5633 = vadd.f32 %v5559, %v5632
        %v5634 = vpop.f32.mrb[0].mxu0
        %5635 = vdwg.mxu0
        %5636 = vmatprep.subr.mxu0 0.0
        %v5637 = vand.u32 %v5405, 4294901760
        %5638 = vmatpush1.msra.mxu0 %v5637
        %5639 = vmatprep.subr.mxu0 0.0
        %5640 = vmatpush1.msra.mxu0 0.0
        %5641 = vmatprep.subr.mxu0 0.0
        %5642 = vmatpush1.msra.mxu0 0.0
        %5643 = vmatprep.subr.mxu0 0.0
        %5644 = vmatpush1.msra.mxu0 0.0
        %5645 = vmatprep.subr.mxu0 0.0
        %5646 = vmatpush1.msra.mxu0 0.0
        %5647 = vmatprep.subr.mxu0 0.0
        %5648 = vmatpush1.msra.mxu0 0.0
        %5649 = vmatprep.subr.mxu0 0.0
        %5650 = vmatpush1.msra.mxu0 0.0
        %5651 = vmatprep.subr.mxu0 0.0
        %5652 = vmatpush1.msra.mxu0 0.0
        %5653 = vmatprep.subr.mxu0 0.0
        %5654 = vmatpush1.msra.mxu0 0.0
        %5655 = vmatprep.subr.mxu0 0.0
        %5656 = vmatpush1.msra.mxu0 0.0
        %5657 = vmatprep.subr.mxu0 0.0
        %5658 = vmatpush1.msra.mxu0 0.0
        %5659 = vmatprep.subr.mxu0 0.0
        %5660 = vmatpush1.msra.mxu0 0.0
        %5661 = vmatprep.subr.mxu0 0.0
        %5662 = vmatpush1.msra.mxu0 0.0
        %5663 = vmatprep.subr.mxu0 0.0
        %5664 = vmatpush1.msra.mxu0 0.0
        %5665 = vmatprep.subr.mxu0 0.0
        %5666 = vmatpush1.msra.mxu0 0.0
        %5667 = vmatprep.subr.mxu0 0.0
        %5668 = vmatpush1.msra.mxu0 0.0
        %5669 = vmatprep.subr.mxu0 0.0
        %5670 = vmatpush1.msra.mxu0 0.0
        %5671 = vmatprep.subr.mxu0 0.0
        %5672 = vmatpush1.msra.mxu0 0.0
        %5673 = vmatprep.subr.mxu0 0.0
        %5674 = vmatpush1.msra.mxu0 0.0
        %5675 = vmatprep.subr.mxu0 0.0
        %5676 = vmatpush1.msra.mxu0 0.0
        %5677 = vmatprep.subr.mxu0 0.0
        %5678 = vmatpush1.msra.mxu0 0.0
        %5679 = vmatprep.subr.mxu0 0.0
        %5680 = vmatpush1.msra.mxu0 0.0
        %5681 = vmatprep.subr.mxu0 0.0
        %5682 = vmatpush1.msra.mxu0 0.0
        %5683 = vmatprep.subr.mxu0 0.0
        %5684 = vmatpush1.msra.mxu0 0.0
        %5685 = vmatprep.subr.mxu0 0.0
        %5686 = vmatpush1.msra.mxu0 0.0
        %5687 = vmatprep.subr.mxu0 0.0
        %5688 = vmatpush1.msra.mxu0 0.0
        %5689 = vmatprep.subr.mxu0 0.0
        %5690 = vmatpush1.msra.mxu0 0.0
        %5691 = vmatprep.subr.mxu0 0.0
        %5692 = vmatpush1.msra.mxu0 0.0
        %5693 = vmatprep.subr.mxu0 0.0
        %5694 = vmatpush1.msra.mxu0 0.0
        %5695 = vmatprep.subr.mxu0 0.0
        %5696 = vmatpush1.msra.mxu0 0.0
        %5697 = vmatprep.subr.mxu0 0.0
        %5698 = vmatpush1.msra.mxu0 0.0
        %5699 = vmatprep.subr.mxu0 0.0
        %5700 = vmatpush1.msra.mxu0 0.0
        %5701 = vmatprep.mubr.f32.mxu0 0.0
        %v5702 = vand.u32 %v5408, 4294901760
        %v5703 = vsub.f32 %v5408, %v5702
        %v5704 = vand.u32 %v5703, 4294901760
        %5705 = vmatmul.mubr.f32.gmra.mrb[0].mxu0 %v5704
        %v5706 = vpop.f32.mrb[0].mxu0
        %v5707 = vadd.f32 %v5633, %v5706
        %v5708 = vpop.f32.mrb[0].mxu0
        %5709 = vdwg.mxu0
        %5710 = vmatprep.subr.mxu0 0.0
        %v5711 = vand.u32 %v5405, 4294901760
        %v5712 = vsub.f32 %v5405, %v5711
        %v5713 = vand.u32 %v5712, 4294901760
        %5714 = vmatpush1.msra.mxu0 %v5713
        %5715 = vmatprep.subr.mxu0 0.0
        %5716 = vmatpush1.msra.mxu0 0.0
        %5717 = vmatprep.subr.mxu0 0.0
        %5718 = vmatpush1.msra.mxu0 0.0
        %5719 = vmatprep.subr.mxu0 0.0
        %5720 = vmatpush1.msra.mxu0 0.0
        %5721 = vmatprep.subr.mxu0 0.0
        %5722 = vmatpush1.msra.mxu0 0.0
        %5723 = vmatprep.subr.mxu0 0.0
        %5724 = vmatpush1.msra.mxu0 0.0
        %5725 = vmatprep.subr.mxu0 0.0
        %5726 = vmatpush1.msra.mxu0 0.0
        %5727 = vmatprep.subr.mxu0 0.0
        %5728 = vmatpush1.msra.mxu0 0.0
        %5729 = vmatprep.subr.mxu0 0.0
        %5730 = vmatpush1.msra.mxu0 0.0
        %5731 = vmatprep.subr.mxu0 0.0
        %5732 = vmatpush1.msra.mxu0 0.0
        %5733 = vmatprep.subr.mxu0 0.0
        %5734 = vmatpush1.msra.mxu0 0.0
        %5735 = vmatprep.subr.mxu0 0.0
        %5736 = vmatpush1.msra.mxu0 0.0
        %5737 = vmatprep.subr.mxu0 0.0
        %5738 = vmatpush1.msra.mxu0 0.0
        %5739 = vmatprep.subr.mxu0 0.0
        %5740 = vmatpush1.msra.mxu0 0.0
        %5741 = vmatprep.subr.mxu0 0.0
        %5742 = vmatpush1.msra.mxu0 0.0
        %5743 = vmatprep.subr.mxu0 0.0
        %5744 = vmatpush1.msra.mxu0 0.0
        %5745 = vmatprep.subr.mxu0 0.0
        %5746 = vmatpush1.msra.mxu0 0.0
        %5747 = vmatprep.subr.mxu0 0.0
        %5748 = vmatpush1.msra.mxu0 0.0
        %5749 = vmatprep.subr.mxu0 0.0
        %5750 = vmatpush1.msra.mxu0 0.0
        %5751 = vmatprep.subr.mxu0 0.0
        %5752 = vmatpush1.msra.mxu0 0.0
        %5753 = vmatprep.subr.mxu0 0.0
        %5754 = vmatpush1.msra.mxu0 0.0
        %5755 = vmatprep.subr.mxu0 0.0
        %5756 = vmatpush1.msra.mxu0 0.0
        %5757 = vmatprep.subr.mxu0 0.0
        %5758 = vmatpush1.msra.mxu0 0.0
        %5759 = vmatprep.subr.mxu0 0.0
        %5760 = vmatpush1.msra.mxu0 0.0
        %5761 = vmatprep.subr.mxu0 0.0
        %5762 = vmatpush1.msra.mxu0 0.0
        %5763 = vmatprep.subr.mxu0 0.0
        %5764 = vmatpush1.msra.mxu0 0.0
        %5765 = vmatprep.subr.mxu0 0.0
        %5766 = vmatpush1.msra.mxu0 0.0
        %5767 = vmatprep.subr.mxu0 0.0
        %5768 = vmatpush1.msra.mxu0 0.0
        %5769 = vmatprep.subr.mxu0 0.0
        %5770 = vmatpush1.msra.mxu0 0.0
        %5771 = vmatprep.subr.mxu0 0.0
        %5772 = vmatpush1.msra.mxu0 0.0
        %5773 = vmatprep.subr.mxu0 0.0
        %5774 = vmatpush1.msra.mxu0 0.0
        %5775 = vmatprep.subr.mxu0 0.0
        %5776 = vmatpush1.msra.mxu0 0.0
        %5777 = vmatprep.mubr.f32.mxu0 0.0
        %v5778 = vand.u32 %v5408, 4294901760
        %5779 = vmatmul.mubr.f32.gmra.mrb[0].mxu0 %v5778
        %v5780 = vpop.f32.mrb[0].mxu0
        %v5781 = vadd.f32 %v5707, %v5780
        %v5782 = vpop.f32.mrb[0].mxu0
        %5783 = vdwg.mxu0
        %5784 = vmatprep.subr.mxu0 0.0
        %v5785 = vand.u32 %v5405, 4294901760
        %5786 = vmatpush1.msra.mxu0 %v5785
        %5787 = vmatprep.subr.mxu0 0.0
        %5788 = vmatpush1.msra.mxu0 0.0
        %5789 = vmatprep.subr.mxu0 0.0
        %5790 = vmatpush1.msra.mxu0 0.0
        %5791 = vmatprep.subr.mxu0 0.0
        %5792 = vmatpush1.msra.mxu0 0.0
        %5793 = vmatprep.subr.mxu0 0.0
        %5794 = vmatpush1.msra.mxu0 0.0
        %5795 = vmatprep.subr.mxu0 0.0
        %5796 = vmatpush1.msra.mxu0 0.0
        %5797 = vmatprep.subr.mxu0 0.0
        %5798 = vmatpush1.msra.mxu0 0.0
        %5799 = vmatprep.subr.mxu0 0.0
        %5800 = vmatpush1.msra.mxu0 0.0
        %5801 = vmatprep.subr.mxu0 0.0
        %5802 = vmatpush1.msra.mxu0 0.0
        %5803 = vmatprep.subr.mxu0 0.0
        %5804 = vmatpush1.msra.mxu0 0.0
        %5805 = vmatprep.subr.mxu0 0.0
        %5806 = vmatpush1.msra.mxu0 0.0
        %5807 = vmatprep.subr.mxu0 0.0
        %5808 = vmatpush1.msra.mxu0 0.0
        %5809 = vmatprep.subr.mxu0 0.0
        %5810 = vmatpush1.msra.mxu0 0.0
        %5811 = vmatprep.subr.mxu0 0.0
        %5812 = vmatpush1.msra.mxu0 0.0
        %5813 = vmatprep.subr.mxu0 0.0
        %5814 = vmatpush1.msra.mxu0 0.0
        %5815 = vmatprep.subr.mxu0 0.0
        %5816 = vmatpush1.msra.mxu0 0.0
        %5817 = vmatprep.subr.mxu0 0.0
        %5818 = vmatpush1.msra.mxu0 0.0
        %5819 = vmatprep.subr.mxu0 0.0
        %5820 = vmatpush1.msra.mxu0 0.0
        %5821 = vmatprep.subr.mxu0 0.0
        %5822 = vmatpush1.msra.mxu0 0.0
        %5823 = vmatprep.subr.mxu0 0.0
        %5824 = vmatpush1.msra.mxu0 0.0
        %5825 = vmatprep.subr.mxu0 0.0
        %5826 = vmatpush1.msra.mxu0 0.0
        %5827 = vmatprep.subr.mxu0 0.0
        %5828 = vmatpush1.msra.mxu0 0.0
        %5829 = vmatprep.subr.mxu0 0.0
        %5830 = vmatpush1.msra.mxu0 0.0
        %5831 = vmatprep.subr.mxu0 0.0
        %5832 = vmatpush1.msra.mxu0 0.0
        %5833 = vmatprep.subr.mxu0 0.0
        %5834 = vmatpush1.msra.mxu0 0.0
        %5835 = vmatprep.subr.mxu0 0.0
        %5836 = vmatpush1.msra.mxu0 0.0
        %5837 = vmatprep.subr.mxu0 0.0
        %5838 = vmatpush1.msra.mxu0 0.0
        %5839 = vmatprep.subr.mxu0 0.0
        %5840 = vmatpush1.msra.mxu0 0.0
        %5841 = vmatprep.subr.mxu0 0.0
        %5842 = vmatpush1.msra.mxu0 0.0
        %5843 = vmatprep.subr.mxu0 0.0
        %5844 = vmatpush1.msra.mxu0 0.0
        %5845 = vmatprep.subr.mxu0 0.0
        %5846 = vmatpush1.msra.mxu0 0.0
        %5847 = vmatprep.subr.mxu0 0.0
        %5848 = vmatpush1.msra.mxu0 0.0
        %5849 = vmatprep.mubr.f32.mxu0 0.0
        %v5850 = vand.u32 %v5408, 4294901760
        %5851 = vmatmul.mubr.f32.gmra.mrb[0].mxu0 %v5850
        %v5852 = vpop.f32.mrb[0].mxu0
        %v5853 = vadd.f32 %v5781, %v5852
        %v5854 = vpop.f32.mrb[0].mxu0
        %5855 = vdwg.mxu0
        %5856 = vrot.lane.b32.xlu0 %v769, 64
        %v5857 = vpop.permute.xlu0 %5856
        %v5860 = vsel %vm4395, %v4495, 0
        %5862 = vmatprep.subr.mxu0 0.0
        %v5863 = vand.u32 %v5857, 4294901760
        %5864 = vmatpush1.msra.mxu0 %v5863
        %5865 = vmatprep.subr.mxu0 0.0
        %5866 = vmatpush1.msra.mxu0 0.0
        %5867 = vmatprep.subr.mxu0 0.0
        %5868 = vmatpush1.msra.mxu0 0.0
        %5869 = vmatprep.subr.mxu0 0.0
        %5870 = vmatpush1.msra.mxu0 0.0
        %5871 = vmatprep.subr.mxu0 0.0
        %5872 = vmatpush1.msra.mxu0 0.0
        %5873 = vmatprep.subr.mxu0 0.0
        %5874 = vmatpush1.msra.mxu0 0.0
        %5875 = vmatprep.subr.mxu0 0.0
        %5876 = vmatpush1.msra.mxu0 0.0
        %5877 = vmatprep.subr.mxu0 0.0
        %5878 = vmatpush1.msra.mxu0 0.0
        %5879 = vmatprep.subr.mxu0 0.0
        %5880 = vmatpush1.msra.mxu0 0.0
        %5881 = vmatprep.subr.mxu0 0.0
        %5882 = vmatpush1.msra.mxu0 0.0
        %5883 = vmatprep.subr.mxu0 0.0
        %5884 = vmatpush1.msra.mxu0 0.0
        %5885 = vmatprep.subr.mxu0 0.0
        %5886 = vmatpush1.msra.mxu0 0.0
        %5887 = vmatprep.subr.mxu0 0.0
        %5888 = vmatpush1.msra.mxu0 0.0
        %5889 = vmatprep.subr.mxu0 0.0
        %5890 = vmatpush1.msra.mxu0 0.0
        %5891 = vmatprep.subr.mxu0 0.0
        %5892 = vmatpush1.msra.mxu0 0.0
        %5893 = vmatprep.subr.mxu0 0.0
        %5894 = vmatpush1.msra.mxu0 0.0
        %5895 = vmatprep.subr.mxu0 0.0
        %5896 = vmatpush1.msra.mxu0 0.0
        %5897 = vmatprep.subr.mxu0 0.0
        %5898 = vmatpush1.msra.mxu0 0.0
        %5899 = vmatprep.subr.mxu0 0.0
        %5900 = vmatpush1.msra.mxu0 0.0
        %5901 = vmatprep.subr.mxu0 0.0
        %5902 = vmatpush1.msra.mxu0 0.0
        %5903 = vmatprep.subr.mxu0 0.0
        %5904 = vmatpush1.msra.mxu0 0.0
        %5905 = vmatprep.subr.mxu0 0.0
        %5906 = vmatpush1.msra.mxu0 0.0
        %5907 = vmatprep.subr.mxu0 0.0
        %5908 = vmatpush1.msra.mxu0 0.0
        %5909 = vmatprep.subr.mxu0 0.0
        %5910 = vmatpush1.msra.mxu0 0.0
        %5911 = vmatprep.subr.mxu0 0.0
        %5912 = vmatpush1.msra.mxu0 0.0
        %5913 = vmatprep.subr.mxu0 0.0
        %5914 = vmatpush1.msra.mxu0 0.0
        %5915 = vmatprep.subr.mxu0 0.0
        %5916 = vmatpush1.msra.mxu0 0.0
        %5917 = vmatprep.subr.mxu0 0.0
        %5918 = vmatpush1.msra.mxu0 0.0
        %5919 = vmatprep.subr.mxu0 0.0
        %5920 = vmatpush1.msra.mxu0 0.0
        %5921 = vmatprep.subr.mxu0 0.0
        %5922 = vmatpush1.msra.mxu0 0.0
        %5923 = vmatprep.subr.mxu0 0.0
        %5924 = vmatpush1.msra.mxu0 0.0
        %5925 = vmatprep.subr.mxu0 0.0
        %5926 = vmatpush1.msra.mxu0 0.0
        %5927 = vmatprep.mubr.f32.mxu0 0.0
        %v5928 = vand.u32 %v5860, 4294901760
        %v5929 = vsub.f32 %v5860, %v5928
        %v5930 = vand.u32 %v5929, 4294901760
        %v5931 = vsub.f32 %v5929, %v5930
        %v5932 = vand.u32 %v5931, 4294901760
        %5933 = vmatmul.mubr.f32.gmra.mrb[0].mxu0 %v5932
        %v5934 = vpop.f32.mrb[0].mxu0
        %v5935 = vadd.f32 0.0, %v5934
        %v5936 = vpop.f32.mrb[0].mxu0
        %5937 = vdwg.mxu0
        %5938 = vmatprep.subr.mxu0 0.0
        %v5939 = vand.u32 %v5857, 4294901760
        %v5940 = vsub.f32 %v5857, %v5939
        %v5941 = vand.u32 %v5940, 4294901760
        %v5942 = vsub.f32 %v5940, %v5941
        %v5943 = vand.u32 %v5942, 4294901760
        %5944 = vmatpush1.msra.mxu0 %v5943
        %5945 = vmatprep.subr.mxu0 0.0
        %5946 = vmatpush1.msra.mxu0 0.0
        %5947 = vmatprep.subr.mxu0 0.0
        %5948 = vmatpush1.msra.mxu0 0.0
        %5949 = vmatprep.subr.mxu0 0.0
        %5950 = vmatpush1.msra.mxu0 0.0
        %5951 = vmatprep.subr.mxu0 0.0
        %5952 = vmatpush1.msra.mxu0 0.0
        %5953 = vmatprep.subr.mxu0 0.0
        %5954 = vmatpush1.msra.mxu0 0.0
        %5955 = vmatprep.subr.mxu0 0.0
        %5956 = vmatpush1.msra.mxu0 0.0
        %5957 = vmatprep.subr.mxu0 0.0
        %5958 = vmatpush1.msra.mxu0 0.0
        %5959 = vmatprep.subr.mxu0 0.0
        %5960 = vmatpush1.msra.mxu0 0.0
        %5961 = vmatprep.subr.mxu0 0.0
        %5962 = vmatpush1.msra.mxu0 0.0
        %5963 = vmatprep.subr.mxu0 0.0
        %5964 = vmatpush1.msra.mxu0 0.0
        %5965 = vmatprep.subr.mxu0 0.0
        %5966 = vmatpush1.msra.mxu0 0.0
        %5967 = vmatprep.subr.mxu0 0.0
        %5968 = vmatpush1.msra.mxu0 0.0
        %5969 = vmatprep.subr.mxu0 0.0
        %5970 = vmatpush1.msra.mxu0 0.0
        %5971 = vmatprep.subr.mxu0 0.0
        %5972 = vmatpush1.msra.mxu0 0.0
        %5973 = vmatprep.subr.mxu0 0.0
        %5974 = vmatpush1.msra.mxu0 0.0
        %5975 = vmatprep.subr.mxu0 0.0
        %5976 = vmatpush1.msra.mxu0 0.0
        %5977 = vmatprep.subr.mxu0 0.0
        %5978 = vmatpush1.msra.mxu0 0.0
        %5979 = vmatprep.subr.mxu0 0.0
        %5980 = vmatpush1.msra.mxu0 0.0
        %5981 = vmatprep.subr.mxu0 0.0
        %5982 = vmatpush1.msra.mxu0 0.0
        %5983 = vmatprep.subr.mxu0 0.0
        %5984 = vmatpush1.msra.mxu0 0.0
        %5985 = vmatprep.subr.mxu0 0.0
        %5986 = vmatpush1.msra.mxu0 0.0
        %5987 = vmatprep.subr.mxu0 0.0
        %5988 = vmatpush1.msra.mxu0 0.0
        %5989 = vmatprep.subr.mxu0 0.0
        %5990 = vmatpush1.msra.mxu0 0.0
        %5991 = vmatprep.subr.mxu0 0.0
        %5992 = vmatpush1.msra.mxu0 0.0
        %5993 = vmatprep.subr.mxu0 0.0
        %5994 = vmatpush1.msra.mxu0 0.0
        %5995 = vmatprep.subr.mxu0 0.0
        %5996 = vmatpush1.msra.mxu0 0.0
        %5997 = vmatprep.subr.mxu0 0.0
        %5998 = vmatpush1.msra.mxu0 0.0
        %5999 = vmatprep.subr.mxu0 0.0
        %6000 = vmatpush1.msra.mxu0 0.0
        %6001 = vmatprep.subr.mxu0 0.0
        %6002 = vmatpush1.msra.mxu0 0.0
        %6003 = vmatprep.subr.mxu0 0.0
        %6004 = vmatpush1.msra.mxu0 0.0
        %6005 = vmatprep.subr.mxu0 0.0
        %6006 = vmatpush1.msra.mxu0 0.0
        %6007 = vmatprep.mubr.f32.mxu0 0.0
        %v6008 = vand.u32 %v5860, 4294901760
        %6009 = vmatmul.mubr.f32.gmra.mrb[0].mxu0 %v6008
        %v6010 = vpop.f32.mrb[0].mxu0
        %v6011 = vadd.f32 %v5935, %v6010
        %v6012 = vpop.f32.mrb[0].mxu0
        %6013 = vdwg.mxu0
        %6014 = vmatprep.subr.mxu0 0.0
        %v6015 = vand.u32 %v5857, 4294901760
        %v6016 = vsub.f32 %v5857, %v6015
        %6017 = vmatpush1.msra.mxu0 %v6016
        %6018 = vmatprep.subr.mxu0 0.0
        %6019 = vmatpush1.msra.mxu0 0.0
        %6020 = vmatprep.subr.mxu0 0.0
        %6021 = vmatpush1.msra.mxu0 0.0
        %6022 = vmatprep.subr.mxu0 0.0
        %6023 = vmatpush1.msra.mxu0 0.0
        %6024 = vmatprep.subr.mxu0 0.0
        %6025 = vmatpush1.msra.mxu0 0.0
        %6026 = vmatprep.subr.mxu0 0.0
        %6027 = vmatpush1.msra.mxu0 0.0
        %6028 = vmatprep.subr.mxu0 0.0
        %6029 = vmatpush1.msra.mxu0 0.0
        %6030 = vmatprep.subr.mxu0 0.0
        %6031 = vmatpush1.msra.mxu0 0.0
        %6032 = vmatprep.subr.mxu0 0.0
        %6033 = vmatpush1.msra.mxu0 0.0
        %6034 = vmatprep.subr.mxu0 0.0
        %6035 = vmatpush1.msra.mxu0 0.0
        %6036 = vmatprep.subr.mxu0 0.0
        %6037 = vmatpush1.msra.mxu0 0.0
        %6038 = vmatprep.subr.mxu0 0.0
        %6039 = vmatpush1.msra.mxu0 0.0
        %6040 = vmatprep.subr.mxu0 0.0
        %6041 = vmatpush1.msra.mxu0 0.0
        %6042 = vmatprep.subr.mxu0 0.0
        %6043 = vmatpush1.msra.mxu0 0.0
        %6044 = vmatprep.subr.mxu0 0.0
        %6045 = vmatpush1.msra.mxu0 0.0
        %6046 = vmatprep.subr.mxu0 0.0
        %6047 = vmatpush1.msra.mxu0 0.0
        %6048 = vmatprep.subr.mxu0 0.0
        %6049 = vmatpush1.msra.mxu0 0.0
        %6050 = vmatprep.subr.mxu0 0.0
        %6051 = vmatpush1.msra.mxu0 0.0
        %6052 = vmatprep.subr.mxu0 0.0
        %6053 = vmatpush1.msra.mxu0 0.0
        %6054 = vmatprep.subr.mxu0 0.0
        %6055 = vmatpush1.msra.mxu0 0.0
        %6056 = vmatprep.subr.mxu0 0.0
        %6057 = vmatpush1.msra.mxu0 0.0
        %6058 = vmatprep.subr.mxu0 0.0
        %6059 = vmatpush1.msra.mxu0 0.0
        %6060 = vmatprep.subr.mxu0 0.0
        %6061 = vmatpush1.msra.mxu0 0.0
        %6062 = vmatprep.subr.mxu0 0.0
        %6063 = vmatpush1.msra.mxu0 0.0
        %6064 = vmatprep.subr.mxu0 0.0
        %6065 = vmatpush1.msra.mxu0 0.0
        %6066 = vmatprep.subr.mxu0 0.0
        %6067 = vmatpush1.msra.mxu0 0.0
        %6068 = vmatprep.subr.mxu0 0.0
        %6069 = vmatpush1.msra.mxu0 0.0
        %6070 = vmatprep.subr.mxu0 0.0
        %6071 = vmatpush1.msra.mxu0 0.0
        %6072 = vmatprep.subr.mxu0 0.0
        %6073 = vmatpush1.msra.mxu0 0.0
        %6074 = vmatprep.subr.mxu0 0.0
        %6075 = vmatpush1.msra.mxu0 0.0
        %6076 = vmatprep.subr.mxu0 0.0
        %6077 = vmatpush1.msra.mxu0 0.0
        %6078 = vmatprep.subr.mxu0 0.0
        %6079 = vmatpush1.msra.mxu0 0.0
        %6080 = vmatprep.mubr.f32.mxu0 0.0
        %v6081 = vand.u32 %v5860, 4294901760
        %v6082 = vsub.f32 %v5860, %v6081
        %6083 = vmatmul.mubr.f32.gmra.mrb[0].mxu0 %v6082
        %v6084 = vpop.f32.mrb[0].mxu0
        %v6085 = vadd.f32 %v6011, %v6084
        %v6086 = vpop.f32.mrb[0].mxu0
        %6087 = vdwg.mxu0
        %6088 = vmatprep.subr.mxu0 0.0
        %v6089 = vand.u32 %v5857, 4294901760
        %6090 = vmatpush1.msra.mxu0 %v6089
        %6091 = vmatprep.subr.mxu0 0.0
        %6092 = vmatpush1.msra.mxu0 0.0
        %6093 = vmatprep.subr.mxu0 0.0
        %6094 = vmatpush1.msra.mxu0 0.0
        %6095 = vmatprep.subr.mxu0 0.0
        %6096 = vmatpush1.msra.mxu0 0.0
        %6097 = vmatprep.subr.mxu0 0.0
        %6098 = vmatpush1.msra.mxu0 0.0
        %6099 = vmatprep.subr.mxu0 0.0
        %6100 = vmatpush1.msra.mxu0 0.0
        %6101 = vmatprep.subr.mxu0 0.0
        %6102 = vmatpush1.msra.mxu0 0.0
        %6103 = vmatprep.subr.mxu0 0.0
        %6104 = vmatpush1.msra.mxu0 0.0
        %6105 = vmatprep.subr.mxu0 0.0
        %6106 = vmatpush1.msra.mxu0 0.0
        %6107 = vmatprep.subr.mxu0 0.0
        %6108 = vmatpush1.msra.mxu0 0.0
        %6109 = vmatprep.subr.mxu0 0.0
        %6110 = vmatpush1.msra.mxu0 0.0
        %6111 = vmatprep.subr.mxu0 0.0
        %6112 = vmatpush1.msra.mxu0 0.0
        %6113 = vmatprep.subr.mxu0 0.0
        %6114 = vmatpush1.msra.mxu0 0.0
        %6115 = vmatprep.subr.mxu0 0.0
        %6116 = vmatpush1.msra.mxu0 0.0
        %6117 = vmatprep.subr.mxu0 0.0
        %6118 = vmatpush1.msra.mxu0 0.0
        %6119 = vmatprep.subr.mxu0 0.0
        %6120 = vmatpush1.msra.mxu0 0.0
        %6121 = vmatprep.subr.mxu0 0.0
        %6122 = vmatpush1.msra.mxu0 0.0
        %6123 = vmatprep.subr.mxu0 0.0
        %6124 = vmatpush1.msra.mxu0 0.0
        %6125 = vmatprep.subr.mxu0 0.0
        %6126 = vmatpush1.msra.mxu0 0.0
        %6127 = vmatprep.subr.mxu0 0.0
        %6128 = vmatpush1.msra.mxu0 0.0
        %6129 = vmatprep.subr.mxu0 0.0
        %6130 = vmatpush1.msra.mxu0 0.0
        %6131 = vmatprep.subr.mxu0 0.0
        %6132 = vmatpush1.msra.mxu0 0.0
        %6133 = vmatprep.subr.mxu0 0.0
        %6134 = vmatpush1.msra.mxu0 0.0
        %6135 = vmatprep.subr.mxu0 0.0
        %6136 = vmatpush1.msra.mxu0 0.0
        %6137 = vmatprep.subr.mxu0 0.0
        %6138 = vmatpush1.msra.mxu0 0.0
        %6139 = vmatprep.subr.mxu0 0.0
        %6140 = vmatpush1.msra.mxu0 0.0
        %6141 = vmatprep.subr.mxu0 0.0
        %6142 = vmatpush1.msra.mxu0 0.0
        %6143 = vmatprep.subr.mxu0 0.0
        %6144 = vmatpush1.msra.mxu0 0.0
        %6145 = vmatprep.subr.mxu0 0.0
        %6146 = vmatpush1.msra.mxu0 0.0
        %6147 = vmatprep.subr.mxu0 0.0
        %6148 = vmatpush1.msra.mxu0 0.0
        %6149 = vmatprep.subr.mxu0 0.0
        %6150 = vmatpush1.msra.mxu0 0.0
        %6151 = vmatprep.subr.mxu0 0.0
        %6152 = vmatpush1.msra.mxu0 0.0
        %6153 = vmatprep.mubr.f32.mxu0 0.0
        %v6154 = vand.u32 %v5860, 4294901760
        %v6155 = vsub.f32 %v5860, %v6154
        %v6156 = vand.u32 %v6155, 4294901760
        %6157 = vmatmul.mubr.f32.gmra.mrb[0].mxu0 %v6156
        %v6158 = vpop.f32.mrb[0].mxu0
        %v6159 = vadd.f32 %v6085, %v6158
        %v6160 = vpop.f32.mrb[0].mxu0
        %6161 = vdwg.mxu0
        %6162 = vmatprep.subr.mxu0 0.0
        %v6163 = vand.u32 %v5857, 4294901760
        %v6164 = vsub.f32 %v5857, %v6163
        %v6165 = vand.u32 %v6164, 4294901760
        %6166 = vmatpush1.msra.mxu0 %v6165
        %6167 = vmatprep.subr.mxu0 0.0
        %6168 = vmatpush1.msra.mxu0 0.0
        %6169 = vmatprep.subr.mxu0 0.0
        %6170 = vmatpush1.msra.mxu0 0.0
        %6171 = vmatprep.subr.mxu0 0.0
        %6172 = vmatpush1.msra.mxu0 0.0
        %6173 = vmatprep.subr.mxu0 0.0
        %6174 = vmatpush1.msra.mxu0 0.0
        %6175 = vmatprep.subr.mxu0 0.0
        %6176 = vmatpush1.msra.mxu0 0.0
        %6177 = vmatprep.subr.mxu0 0.0
        %6178 = vmatpush1.msra.mxu0 0.0
        %6179 = vmatprep.subr.mxu0 0.0
        %6180 = vmatpush1.msra.mxu0 0.0
        %6181 = vmatprep.subr.mxu0 0.0
        %6182 = vmatpush1.msra.mxu0 0.0
        %6183 = vmatprep.subr.mxu0 0.0
        %6184 = vmatpush1.msra.mxu0 0.0
        %6185 = vmatprep.subr.mxu0 0.0
        %6186 = vmatpush1.msra.mxu0 0.0
        %6187 = vmatprep.subr.mxu0 0.0
        %6188 = vmatpush1.msra.mxu0 0.0
        %6189 = vmatprep.subr.mxu0 0.0
        %6190 = vmatpush1.msra.mxu0 0.0
        %6191 = vmatprep.subr.mxu0 0.0
        %6192 = vmatpush1.msra.mxu0 0.0
        %6193 = vmatprep.subr.mxu0 0.0
        %6194 = vmatpush1.msra.mxu0 0.0
        %6195 = vmatprep.subr.mxu0 0.0
        %6196 = vmatpush1.msra.mxu0 0.0
        %6197 = vmatprep.subr.mxu0 0.0
        %6198 = vmatpush1.msra.mxu0 0.0
        %6199 = vmatprep.subr.mxu0 0.0
        %6200 = vmatpush1.msra.mxu0 0.0
        %6201 = vmatprep.subr.mxu0 0.0
        %6202 = vmatpush1.msra.mxu0 0.0
        %6203 = vmatprep.subr.mxu0 0.0
        %6204 = vmatpush1.msra.mxu0 0.0
        %6205 = vmatprep.subr.mxu0 0.0
        %6206 = vmatpush1.msra.mxu0 0.0
        %6207 = vmatprep.subr.mxu0 0.0
        %6208 = vmatpush1.msra.mxu0 0.0
        %6209 = vmatprep.subr.mxu0 0.0
        %6210 = vmatpush1.msra.mxu0 0.0
        %6211 = vmatprep.subr.mxu0 0.0
        %6212 = vmatpush1.msra.mxu0 0.0
        %6213 = vmatprep.subr.mxu0 0.0
        %6214 = vmatpush1.msra.mxu0 0.0
        %6215 = vmatprep.subr.mxu0 0.0
        %6216 = vmatpush1.msra.mxu0 0.0
        %6217 = vmatprep.subr.mxu0 0.0
        %6218 = vmatpush1.msra.mxu0 0.0
        %6219 = vmatprep.subr.mxu0 0.0
        %6220 = vmatpush1.msra.mxu0 0.0
        %6221 = vmatprep.subr.mxu0 0.0
        %6222 = vmatpush1.msra.mxu0 0.0
        %6223 = vmatprep.subr.mxu0 0.0
        %6224 = vmatpush1.msra.mxu0 0.0
        %6225 = vmatprep.subr.mxu0 0.0
        %6226 = vmatpush1.msra.mxu0 0.0
        %6227 = vmatprep.subr.mxu0 0.0
        %6228 = vmatpush1.msra.mxu0 0.0
        %6229 = vmatprep.mubr.f32.mxu0 0.0
        %v6230 = vand.u32 %v5860, 4294901760
        %6231 = vmatmul.mubr.f32.gmra.mrb[0].mxu0 %v6230
        %v6232 = vpop.f32.mrb[0].mxu0
        %v6233 = vadd.f32 %v6159, %v6232
        %v6234 = vpop.f32.mrb[0].mxu0
        %6235 = vdwg.mxu0
        %6236 = vmatprep.subr.mxu0 0.0
        %v6237 = vand.u32 %v5857, 4294901760
        %6238 = vmatpush1.msra.mxu0 %v6237
        %6239 = vmatprep.subr.mxu0 0.0
        %6240 = vmatpush1.msra.mxu0 0.0
        %6241 = vmatprep.subr.mxu0 0.0
        %6242 = vmatpush1.msra.mxu0 0.0
        %6243 = vmatprep.subr.mxu0 0.0
        %6244 = vmatpush1.msra.mxu0 0.0
        %6245 = vmatprep.subr.mxu0 0.0
        %6246 = vmatpush1.msra.mxu0 0.0
        %6247 = vmatprep.subr.mxu0 0.0
        %6248 = vmatpush1.msra.mxu0 0.0
        %6249 = vmatprep.subr.mxu0 0.0
        %6250 = vmatpush1.msra.mxu0 0.0
        %6251 = vmatprep.subr.mxu0 0.0
        %6252 = vmatpush1.msra.mxu0 0.0
        %6253 = vmatprep.subr.mxu0 0.0
        %6254 = vmatpush1.msra.mxu0 0.0
        %6255 = vmatprep.subr.mxu0 0.0
        %6256 = vmatpush1.msra.mxu0 0.0
        %6257 = vmatprep.subr.mxu0 0.0
        %6258 = vmatpush1.msra.mxu0 0.0
        %6259 = vmatprep.subr.mxu0 0.0
        %6260 = vmatpush1.msra.mxu0 0.0
        %6261 = vmatprep.subr.mxu0 0.0
        %6262 = vmatpush1.msra.mxu0 0.0
        %6263 = vmatprep.subr.mxu0 0.0
        %6264 = vmatpush1.msra.mxu0 0.0
        %6265 = vmatprep.subr.mxu0 0.0
        %6266 = vmatpush1.msra.mxu0 0.0
        %6267 = vmatprep.subr.mxu0 0.0
        %6268 = vmatpush1.msra.mxu0 0.0
        %6269 = vmatprep.subr.mxu0 0.0
        %6270 = vmatpush1.msra.mxu0 0.0
        %6271 = vmatprep.subr.mxu0 0.0
        %6272 = vmatpush1.msra.mxu0 0.0
        %6273 = vmatprep.subr.mxu0 0.0
        %6274 = vmatpush1.msra.mxu0 0.0
        %6275 = vmatprep.subr.mxu0 0.0
        %6276 = vmatpush1.msra.mxu0 0.0
        %6277 = vmatprep.subr.mxu0 0.0
        %6278 = vmatpush1.msra.mxu0 0.0
        %6279 = vmatprep.subr.mxu0 0.0
        %6280 = vmatpush1.msra.mxu0 0.0
        %6281 = vmatprep.subr.mxu0 0.0
        %6282 = vmatpush1.msra.mxu0 0.0
        %6283 = vmatprep.subr.mxu0 0.0
        %6284 = vmatpush1.msra.mxu0 0.0
        %6285 = vmatprep.subr.mxu0 0.0
        %6286 = vmatpush1.msra.mxu0 0.0
        %6287 = vmatprep.subr.mxu0 0.0
        %6288 = vmatpush1.msra.mxu0 0.0
        %6289 = vmatprep.subr.mxu0 0.0
        %6290 = vmatpush1.msra.mxu0 0.0
        %6291 = vmatprep.subr.mxu0 0.0
        %6292 = vmatpush1.msra.mxu0 0.0
        %6293 = vmatprep.subr.mxu0 0.0
        %6294 = vmatpush1.msra.mxu0 0.0
        %6295 = vmatprep.subr.mxu0 0.0
        %6296 = vmatpush1.msra.mxu0 0.0
        %6297 = vmatprep.subr.mxu0 0.0
        %6298 = vmatpush1.msra.mxu0 0.0
        %6299 = vmatprep.subr.mxu0 0.0
        %6300 = vmatpush1.msra.mxu0 0.0
        %6301 = vmatprep.mubr.f32.mxu0 0.0
        %v6302 = vand.u32 %v5860, 4294901760
        %6303 = vmatmul.mubr.f32.gmra.mrb[0].mxu0 %v6302
        %v6304 = vpop.f32.mrb[0].mxu0
        %v6305 = vadd.f32 %v6233, %v6304
        %v6306 = vpop.f32.mrb[0].mxu0
        %6307 = vdwg.mxu0
        %6308 = vrot.lane.b32.xlu0 %v771, 64
        %v6309 = vpop.permute.xlu0 %6308
        %v6312 = vsel %vm4395, %v4496, 0
        %6314 = vmatprep.subr.mxu0 0.0
        %v6315 = vand.u32 %v6309, 4294901760
        %6316 = vmatpush1.msra.mxu0 %v6315
        %6317 = vmatprep.subr.mxu0 0.0
        %6318 = vmatpush1.msra.mxu0 0.0
        %6319 = vmatprep.subr.mxu0 0.0
        %6320 = vmatpush1.msra.mxu0 0.0
        %6321 = vmatprep.subr.mxu0 0.0
        %6322 = vmatpush1.msra.mxu0 0.0
        %6323 = vmatprep.subr.mxu0 0.0
        %6324 = vmatpush1.msra.mxu0 0.0
        %6325 = vmatprep.subr.mxu0 0.0
        %6326 = vmatpush1.msra.mxu0 0.0
        %6327 = vmatprep.subr.mxu0 0.0
        %6328 = vmatpush1.msra.mxu0 0.0
        %6329 = vmatprep.subr.mxu0 0.0
        %6330 = vmatpush1.msra.mxu0 0.0
        %6331 = vmatprep.subr.mxu0 0.0
        %6332 = vmatpush1.msra.mxu0 0.0
        %6333 = vmatprep.subr.mxu0 0.0
        %6334 = vmatpush1.msra.mxu0 0.0
        %6335 = vmatprep.subr.mxu0 0.0
        %6336 = vmatpush1.msra.mxu0 0.0
        %6337 = vmatprep.subr.mxu0 0.0
        %6338 = vmatpush1.msra.mxu0 0.0
        %6339 = vmatprep.subr.mxu0 0.0
        %6340 = vmatpush1.msra.mxu0 0.0
        %6341 = vmatprep.subr.mxu0 0.0
        %6342 = vmatpush1.msra.mxu0 0.0
        %6343 = vmatprep.subr.mxu0 0.0
        %6344 = vmatpush1.msra.mxu0 0.0
        %6345 = vmatprep.subr.mxu0 0.0
        %6346 = vmatpush1.msra.mxu0 0.0
        %6347 = vmatprep.subr.mxu0 0.0
        %6348 = vmatpush1.msra.mxu0 0.0
        %6349 = vmatprep.subr.mxu0 0.0
        %6350 = vmatpush1.msra.mxu0 0.0
        %6351 = vmatprep.subr.mxu0 0.0
        %6352 = vmatpush1.msra.mxu0 0.0
        %6353 = vmatprep.subr.mxu0 0.0
        %6354 = vmatpush1.msra.mxu0 0.0
        %6355 = vmatprep.subr.mxu0 0.0
        %6356 = vmatpush1.msra.mxu0 0.0
        %6357 = vmatprep.subr.mxu0 0.0
        %6358 = vmatpush1.msra.mxu0 0.0
        %6359 = vmatprep.subr.mxu0 0.0
        %6360 = vmatpush1.msra.mxu0 0.0
        %6361 = vmatprep.subr.mxu0 0.0
        %6362 = vmatpush1.msra.mxu0 0.0
        %6363 = vmatprep.subr.mxu0 0.0
        %6364 = vmatpush1.msra.mxu0 0.0
        %6365 = vmatprep.subr.mxu0 0.0
        %6366 = vmatpush1.msra.mxu0 0.0
        %6367 = vmatprep.subr.mxu0 0.0
        %6368 = vmatpush1.msra.mxu0 0.0
        %6369 = vmatprep.subr.mxu0 0.0
        %6370 = vmatpush1.msra.mxu0 0.0
        %6371 = vmatprep.subr.mxu0 0.0
        %6372 = vmatpush1.msra.mxu0 0.0
        %6373 = vmatprep.subr.mxu0 0.0
        %6374 = vmatpush1.msra.mxu0 0.0
        %6375 = vmatprep.subr.mxu0 0.0
        %6376 = vmatpush1.msra.mxu0 0.0
        %6377 = vmatprep.subr.mxu0 0.0
        %6378 = vmatpush1.msra.mxu0 0.0
        %6379 = vmatprep.mubr.f32.mxu0 0.0
        %v6380 = vand.u32 %v6312, 4294901760
        %v6381 = vsub.f32 %v6312, %v6380
        %v6382 = vand.u32 %v6381, 4294901760
        %v6383 = vsub.f32 %v6381, %v6382
        %v6384 = vand.u32 %v6383, 4294901760
        %6385 = vmatmul.mubr.f32.gmra.mrb[0].mxu0 %v6384
        %v6386 = vpop.f32.mrb[0].mxu0
        %v6387 = vadd.f32 0.0, %v6386
        %v6388 = vpop.f32.mrb[0].mxu0
        %6389 = vdwg.mxu0
        %6390 = vmatprep.subr.mxu0 0.0
        %v6391 = vand.u32 %v6309, 4294901760
        %v6392 = vsub.f32 %v6309, %v6391
        %v6393 = vand.u32 %v6392, 4294901760
        %v6394 = vsub.f32 %v6392, %v6393
        %v6395 = vand.u32 %v6394, 4294901760
        %6396 = vmatpush1.msra.mxu0 %v6395
        %6397 = vmatprep.subr.mxu0 0.0
        %6398 = vmatpush1.msra.mxu0 0.0
        %6399 = vmatprep.subr.mxu0 0.0
        %6400 = vmatpush1.msra.mxu0 0.0
        %6401 = vmatprep.subr.mxu0 0.0
        %6402 = vmatpush1.msra.mxu0 0.0
        %6403 = vmatprep.subr.mxu0 0.0
        %6404 = vmatpush1.msra.mxu0 0.0
        %6405 = vmatprep.subr.mxu0 0.0
        %6406 = vmatpush1.msra.mxu0 0.0
        %6407 = vmatprep.subr.mxu0 0.0
        %6408 = vmatpush1.msra.mxu0 0.0
        %6409 = vmatprep.subr.mxu0 0.0
        %6410 = vmatpush1.msra.mxu0 0.0
        %6411 = vmatprep.subr.mxu0 0.0
        %6412 = vmatpush1.msra.mxu0 0.0
        %6413 = vmatprep.subr.mxu0 0.0
        %6414 = vmatpush1.msra.mxu0 0.0
        %6415 = vmatprep.subr.mxu0 0.0
        %6416 = vmatpush1.msra.mxu0 0.0
        %6417 = vmatprep.subr.mxu0 0.0
        %6418 = vmatpush1.msra.mxu0 0.0
        %6419 = vmatprep.subr.mxu0 0.0
        %6420 = vmatpush1.msra.mxu0 0.0
        %6421 = vmatprep.subr.mxu0 0.0
        %6422 = vmatpush1.msra.mxu0 0.0
        %6423 = vmatprep.subr.mxu0 0.0
        %6424 = vmatpush1.msra.mxu0 0.0
        %6425 = vmatprep.subr.mxu0 0.0
        %6426 = vmatpush1.msra.mxu0 0.0
        %6427 = vmatprep.subr.mxu0 0.0
        %6428 = vmatpush1.msra.mxu0 0.0
        %6429 = vmatprep.subr.mxu0 0.0
        %6430 = vmatpush1.msra.mxu0 0.0
        %6431 = vmatprep.subr.mxu0 0.0
        %6432 = vmatpush1.msra.mxu0 0.0
        %6433 = vmatprep.subr.mxu0 0.0
        %6434 = vmatpush1.msra.mxu0 0.0
        %6435 = vmatprep.subr.mxu0 0.0
        %6436 = vmatpush1.msra.mxu0 0.0
        %6437 = vmatprep.subr.mxu0 0.0
        %6438 = vmatpush1.msra.mxu0 0.0
        %6439 = vmatprep.subr.mxu0 0.0
        %6440 = vmatpush1.msra.mxu0 0.0
        %6441 = vmatprep.subr.mxu0 0.0
        %6442 = vmatpush1.msra.mxu0 0.0
        %6443 = vmatprep.subr.mxu0 0.0
        %6444 = vmatpush1.msra.mxu0 0.0
        %6445 = vmatprep.subr.mxu0 0.0
        %6446 = vmatpush1.msra.mxu0 0.0
        %6447 = vmatprep.subr.mxu0 0.0
        %6448 = vmatpush1.msra.mxu0 0.0
        %6449 = vmatprep.subr.mxu0 0.0
        %6450 = vmatpush1.msra.mxu0 0.0
        %6451 = vmatprep.subr.mxu0 0.0
        %6452 = vmatpush1.msra.mxu0 0.0
        %6453 = vmatprep.subr.mxu0 0.0
        %6454 = vmatpush1.msra.mxu0 0.0
        %6455 = vmatprep.subr.mxu0 0.0
        %6456 = vmatpush1.msra.mxu0 0.0
        %6457 = vmatprep.subr.mxu0 0.0
        %6458 = vmatpush1.msra.mxu0 0.0
        %6459 = vmatprep.mubr.f32.mxu0 0.0
        %v6460 = vand.u32 %v6312, 4294901760
        %6461 = vmatmul.mubr.f32.gmra.mrb[0].mxu0 %v6460
        %v6462 = vpop.f32.mrb[0].mxu0
        %v6463 = vadd.f32 %v6387, %v6462
        %v6464 = vpop.f32.mrb[0].mxu0
        %6465 = vdwg.mxu0
        %6466 = vmatprep.subr.mxu0 0.0
        %v6467 = vand.u32 %v6309, 4294901760
        %v6468 = vsub.f32 %v6309, %v6467
        %6469 = vmatpush1.msra.mxu0 %v6468
        %6470 = vmatprep.subr.mxu0 0.0
        %6471 = vmatpush1.msra.mxu0 0.0
        %6472 = vmatprep.subr.mxu0 0.0
        %6473 = vmatpush1.msra.mxu0 0.0
        %6474 = vmatprep.subr.mxu0 0.0
        %6475 = vmatpush1.msra.mxu0 0.0
        %6476 = vmatprep.subr.mxu0 0.0
        %6477 = vmatpush1.msra.mxu0 0.0
        %6478 = vmatprep.subr.mxu0 0.0
        %6479 = vmatpush1.msra.mxu0 0.0
        %6480 = vmatprep.subr.mxu0 0.0
        %6481 = vmatpush1.msra.mxu0 0.0
        %6482 = vmatprep.subr.mxu0 0.0
        %6483 = vmatpush1.msra.mxu0 0.0
        %6484 = vmatprep.subr.mxu0 0.0
        %6485 = vmatpush1.msra.mxu0 0.0
        %6486 = vmatprep.subr.mxu0 0.0
        %6487 = vmatpush1.msra.mxu0 0.0
        %6488 = vmatprep.subr.mxu0 0.0
        %6489 = vmatpush1.msra.mxu0 0.0
        %6490 = vmatprep.subr.mxu0 0.0
        %6491 = vmatpush1.msra.mxu0 0.0
        %6492 = vmatprep.subr.mxu0 0.0
        %6493 = vmatpush1.msra.mxu0 0.0
        %6494 = vmatprep.subr.mxu0 0.0
        %6495 = vmatpush1.msra.mxu0 0.0
        %6496 = vmatprep.subr.mxu0 0.0
        %6497 = vmatpush1.msra.mxu0 0.0
        %6498 = vmatprep.subr.mxu0 0.0
        %6499 = vmatpush1.msra.mxu0 0.0
        %6500 = vmatprep.subr.mxu0 0.0
        %6501 = vmatpush1.msra.mxu0 0.0
        %6502 = vmatprep.subr.mxu0 0.0
        %6503 = vmatpush1.msra.mxu0 0.0
        %6504 = vmatprep.subr.mxu0 0.0
        %6505 = vmatpush1.msra.mxu0 0.0
        %6506 = vmatprep.subr.mxu0 0.0
        %6507 = vmatpush1.msra.mxu0 0.0
        %6508 = vmatprep.subr.mxu0 0.0
        %6509 = vmatpush1.msra.mxu0 0.0
        %6510 = vmatprep.subr.mxu0 0.0
        %6511 = vmatpush1.msra.mxu0 0.0
        %6512 = vmatprep.subr.mxu0 0.0
        %6513 = vmatpush1.msra.mxu0 0.0
        %6514 = vmatprep.subr.mxu0 0.0
        %6515 = vmatpush1.msra.mxu0 0.0
        %6516 = vmatprep.subr.mxu0 0.0
        %6517 = vmatpush1.msra.mxu0 0.0
        %6518 = vmatprep.subr.mxu0 0.0
        %6519 = vmatpush1.msra.mxu0 0.0
        %6520 = vmatprep.subr.mxu0 0.0
        %6521 = vmatpush1.msra.mxu0 0.0
        %6522 = vmatprep.subr.mxu0 0.0
        %6523 = vmatpush1.msra.mxu0 0.0
        %6524 = vmatprep.subr.mxu0 0.0
        %6525 = vmatpush1.msra.mxu0 0.0
        %6526 = vmatprep.subr.mxu0 0.0
        %6527 = vmatpush1.msra.mxu0 0.0
        %6528 = vmatprep.subr.mxu0 0.0
        %6529 = vmatpush1.msra.mxu0 0.0
        %6530 = vmatprep.subr.mxu0 0.0
        %6531 = vmatpush1.msra.mxu0 0.0
        %6532 = vmatprep.mubr.f32.mxu0 0.0
        %v6533 = vand.u32 %v6312, 4294901760
        %v6534 = vsub.f32 %v6312, %v6533
        %6535 = vmatmul.mubr.f32.gmra.mrb[0].mxu0 %v6534
        %v6536 = vpop.f32.mrb[0].mxu0
        %v6537 = vadd.f32 %v6463, %v6536
        %v6538 = vpop.f32.mrb[0].mxu0
        %6539 = vdwg.mxu0
        %6540 = vmatprep.subr.mxu0 0.0
        %v6541 = vand.u32 %v6309, 4294901760
        %6542 = vmatpush1.msra.mxu0 %v6541
        %6543 = vmatprep.subr.mxu0 0.0
        %6544 = vmatpush1.msra.mxu0 0.0
        %6545 = vmatprep.subr.mxu0 0.0
        %6546 = vmatpush1.msra.mxu0 0.0
        %6547 = vmatprep.subr.mxu0 0.0
        %6548 = vmatpush1.msra.mxu0 0.0
        %6549 = vmatprep.subr.mxu0 0.0
        %6550 = vmatpush1.msra.mxu0 0.0
        %6551 = vmatprep.subr.mxu0 0.0
        %6552 = vmatpush1.msra.mxu0 0.0
        %6553 = vmatprep.subr.mxu0 0.0
        %6554 = vmatpush1.msra.mxu0 0.0
        %6555 = vmatprep.subr.mxu0 0.0
        %6556 = vmatpush1.msra.mxu0 0.0
        %6557 = vmatprep.subr.mxu0 0.0
        %6558 = vmatpush1.msra.mxu0 0.0
        %6559 = vmatprep.subr.mxu0 0.0
        %6560 = vmatpush1.msra.mxu0 0.0
        %6561 = vmatprep.subr.mxu0 0.0
        %6562 = vmatpush1.msra.mxu0 0.0
        %6563 = vmatprep.subr.mxu0 0.0
        %6564 = vmatpush1.msra.mxu0 0.0
        %6565 = vmatprep.subr.mxu0 0.0
        %6566 = vmatpush1.msra.mxu0 0.0
        %6567 = vmatprep.subr.mxu0 0.0
        %6568 = vmatpush1.msra.mxu0 0.0
        %6569 = vmatprep.subr.mxu0 0.0
        %6570 = vmatpush1.msra.mxu0 0.0
        %6571 = vmatprep.subr.mxu0 0.0
        %6572 = vmatpush1.msra.mxu0 0.0
        %6573 = vmatprep.subr.mxu0 0.0
        %6574 = vmatpush1.msra.mxu0 0.0
        %6575 = vmatprep.subr.mxu0 0.0
        %6576 = vmatpush1.msra.mxu0 0.0
        %6577 = vmatprep.subr.mxu0 0.0
        %6578 = vmatpush1.msra.mxu0 0.0
        %6579 = vmatprep.subr.mxu0 0.0
        %6580 = vmatpush1.msra.mxu0 0.0
        %6581 = vmatprep.subr.mxu0 0.0
        %6582 = vmatpush1.msra.mxu0 0.0
        %6583 = vmatprep.subr.mxu0 0.0
        %6584 = vmatpush1.msra.mxu0 0.0
        %6585 = vmatprep.subr.mxu0 0.0
        %6586 = vmatpush1.msra.mxu0 0.0
        %6587 = vmatprep.subr.mxu0 0.0
        %6588 = vmatpush1.msra.mxu0 0.0
        %6589 = vmatprep.subr.mxu0 0.0
        %6590 = vmatpush1.msra.mxu0 0.0
        %6591 = vmatprep.subr.mxu0 0.0
        %6592 = vmatpush1.msra.mxu0 0.0
        %6593 = vmatprep.subr.mxu0 0.0
        %6594 = vmatpush1.msra.mxu0 0.0
        %6595 = vmatprep.subr.mxu0 0.0
        %6596 = vmatpush1.msra.mxu0 0.0
        %6597 = vmatprep.subr.mxu0 0.0
        %6598 = vmatpush1.msra.mxu0 0.0
        %6599 = vmatprep.subr.mxu0 0.0
        %6600 = vmatpush1.msra.mxu0 0.0
        %6601 = vmatprep.subr.mxu0 0.0
        %6602 = vmatpush1.msra.mxu0 0.0
        %6603 = vmatprep.subr.mxu0 0.0
        %6604 = vmatpush1.msra.mxu0 0.0
        %6605 = vmatprep.mubr.f32.mxu0 0.0
        %v6606 = vand.u32 %v6312, 4294901760
        %v6607 = vsub.f32 %v6312, %v6606
        %v6608 = vand.u32 %v6607, 4294901760
        %6609 = vmatmul.mubr.f32.gmra.mrb[0].mxu0 %v6608
        %v6610 = vpop.f32.mrb[0].mxu0
        %v6611 = vadd.f32 %v6537, %v6610
        %v6612 = vpop.f32.mrb[0].mxu0
        %6613 = vdwg.mxu0
        %6614 = vmatprep.subr.mxu0 0.0
        %v6615 = vand.u32 %v6309, 4294901760
        %v6616 = vsub.f32 %v6309, %v6615
        %v6617 = vand.u32 %v6616, 4294901760
        %6618 = vmatpush1.msra.mxu0 %v6617
        %6619 = vmatprep.subr.mxu0 0.0
        %6620 = vmatpush1.msra.mxu0 0.0
        %6621 = vmatprep.subr.mxu0 0.0
        %6622 = vmatpush1.msra.mxu0 0.0
        %6623 = vmatprep.subr.mxu0 0.0
        %6624 = vmatpush1.msra.mxu0 0.0
        %6625 = vmatprep.subr.mxu0 0.0
        %6626 = vmatpush1.msra.mxu0 0.0
        %6627 = vmatprep.subr.mxu0 0.0
        %6628 = vmatpush1.msra.mxu0 0.0
        %6629 = vmatprep.subr.mxu0 0.0
        %6630 = vmatpush1.msra.mxu0 0.0
        %6631 = vmatprep.subr.mxu0 0.0
        %6632 = vmatpush1.msra.mxu0 0.0
        %6633 = vmatprep.subr.mxu0 0.0
        %6634 = vmatpush1.msra.mxu0 0.0
        %6635 = vmatprep.subr.mxu0 0.0
        %6636 = vmatpush1.msra.mxu0 0.0
        %6637 = vmatprep.subr.mxu0 0.0
        %6638 = vmatpush1.msra.mxu0 0.0
        %6639 = vmatprep.subr.mxu0 0.0
        %6640 = vmatpush1.msra.mxu0 0.0
        %6641 = vmatprep.subr.mxu0 0.0
        %6642 = vmatpush1.msra.mxu0 0.0
        %6643 = vmatprep.subr.mxu0 0.0
        %6644 = vmatpush1.msra.mxu0 0.0
        %6645 = vmatprep.subr.mxu0 0.0
        %6646 = vmatpush1.msra.mxu0 0.0
        %6647 = vmatprep.subr.mxu0 0.0
        %6648 = vmatpush1.msra.mxu0 0.0
        %6649 = vmatprep.subr.mxu0 0.0
        %6650 = vmatpush1.msra.mxu0 0.0
        %6651 = vmatprep.subr.mxu0 0.0
        %6652 = vmatpush1.msra.mxu0 0.0
        %6653 = vmatprep.subr.mxu0 0.0
        %6654 = vmatpush1.msra.mxu0 0.0
        %6655 = vmatprep.subr.mxu0 0.0
        %6656 = vmatpush1.msra.mxu0 0.0
        %6657 = vmatprep.subr.mxu0 0.0
        %6658 = vmatpush1.msra.mxu0 0.0
        %6659 = vmatprep.subr.mxu0 0.0
        %6660 = vmatpush1.msra.mxu0 0.0
        %6661 = vmatprep.subr.mxu0 0.0
        %6662 = vmatpush1.msra.mxu0 0.0
        %6663 = vmatprep.subr.mxu0 0.0
        %6664 = vmatpush1.msra.mxu0 0.0
        %6665 = vmatprep.subr.mxu0 0.0
        %6666 = vmatpush1.msra.mxu0 0.0
        %6667 = vmatprep.subr.mxu0 0.0
        %6668 = vmatpush1.msra.mxu0 0.0
        %6669 = vmatprep.subr.mxu0 0.0
        %6670 = vmatpush1.msra.mxu0 0.0
        %6671 = vmatprep.subr.mxu0 0.0
        %6672 = vmatpush1.msra.mxu0 0.0
        %6673 = vmatprep.subr.mxu0 0.0
        %6674 = vmatpush1.msra.mxu0 0.0
        %6675 = vmatprep.subr.mxu0 0.0
        %6676 = vmatpush1.msra.mxu0 0.0
        %6677 = vmatprep.subr.mxu0 0.0
        %6678 = vmatpush1.msra.mxu0 0.0
        %6679 = vmatprep.subr.mxu0 0.0
        %6680 = vmatpush1.msra.mxu0 0.0
        %6681 = vmatprep.mubr.f32.mxu0 0.0
        %v6682 = vand.u32 %v6312, 4294901760
        %6683 = vmatmul.mubr.f32.gmra.mrb[0].mxu0 %v6682
        %v6684 = vpop.f32.mrb[0].mxu0
        %v6685 = vadd.f32 %v6611, %v6684
        %v6686 = vpop.f32.mrb[0].mxu0
        %6687 = vdwg.mxu0
        %6688 = vmatprep.subr.mxu0 0.0
        %v6689 = vand.u32 %v6309, 4294901760
        %6690 = vmatpush1.msra.mxu0 %v6689
        %6691 = vmatprep.subr.mxu0 0.0
        %6692 = vmatpush1.msra.mxu0 0.0
        %6693 = vmatprep.subr.mxu0 0.0
        %6694 = vmatpush1.msra.mxu0 0.0
        %6695 = vmatprep.subr.mxu0 0.0
        %6696 = vmatpush1.msra.mxu0 0.0
        %6697 = vmatprep.subr.mxu0 0.0
        %6698 = vmatpush1.msra.mxu0 0.0
        %6699 = vmatprep.subr.mxu0 0.0
        %6700 = vmatpush1.msra.mxu0 0.0
        %6701 = vmatprep.subr.mxu0 0.0
        %6702 = vmatpush1.msra.mxu0 0.0
        %6703 = vmatprep.subr.mxu0 0.0
        %6704 = vmatpush1.msra.mxu0 0.0
        %6705 = vmatprep.subr.mxu0 0.0
        %6706 = vmatpush1.msra.mxu0 0.0
        %6707 = vmatprep.subr.mxu0 0.0
        %6708 = vmatpush1.msra.mxu0 0.0
        %6709 = vmatprep.subr.mxu0 0.0
        %6710 = vmatpush1.msra.mxu0 0.0
        %6711 = vmatprep.subr.mxu0 0.0
        %6712 = vmatpush1.msra.mxu0 0.0
        %6713 = vmatprep.subr.mxu0 0.0
        %6714 = vmatpush1.msra.mxu0 0.0
        %6715 = vmatprep.subr.mxu0 0.0
        %6716 = vmatpush1.msra.mxu0 0.0
        %6717 = vmatprep.subr.mxu0 0.0
        %6718 = vmatpush1.msra.mxu0 0.0
        %6719 = vmatprep.subr.mxu0 0.0
        %6720 = vmatpush1.msra.mxu0 0.0
        %6721 = vmatprep.subr.mxu0 0.0
        %6722 = vmatpush1.msra.mxu0 0.0
        %6723 = vmatprep.subr.mxu0 0.0
        %6724 = vmatpush1.msra.mxu0 0.0
        %6725 = vmatprep.subr.mxu0 0.0
        %6726 = vmatpush1.msra.mxu0 0.0
        %6727 = vmatprep.subr.mxu0 0.0
        %6728 = vmatpush1.msra.mxu0 0.0
        %6729 = vmatprep.subr.mxu0 0.0
        %6730 = vmatpush1.msra.mxu0 0.0
        %6731 = vmatprep.subr.mxu0 0.0
        %6732 = vmatpush1.msra.mxu0 0.0
        %6733 = vmatprep.subr.mxu0 0.0
        %6734 = vmatpush1.msra.mxu0 0.0
        %6735 = vmatprep.subr.mxu0 0.0
        %6736 = vmatpush1.msra.mxu0 0.0
        %6737 = vmatprep.subr.mxu0 0.0
        %6738 = vmatpush1.msra.mxu0 0.0
        %6739 = vmatprep.subr.mxu0 0.0
        %6740 = vmatpush1.msra.mxu0 0.0
        %6741 = vmatprep.subr.mxu0 0.0
        %6742 = vmatpush1.msra.mxu0 0.0
        %6743 = vmatprep.subr.mxu0 0.0
        %6744 = vmatpush1.msra.mxu0 0.0
        %6745 = vmatprep.subr.mxu0 0.0
        %6746 = vmatpush1.msra.mxu0 0.0
        %6747 = vmatprep.subr.mxu0 0.0
        %6748 = vmatpush1.msra.mxu0 0.0
        %6749 = vmatprep.subr.mxu0 0.0
        %6750 = vmatpush1.msra.mxu0 0.0
        %6751 = vmatprep.subr.mxu0 0.0
        %6752 = vmatpush1.msra.mxu0 0.0
        %6753 = vmatprep.mubr.f32.mxu0 0.0
        %v6754 = vand.u32 %v6312, 4294901760
        %6755 = vmatmul.mubr.f32.gmra.mrb[0].mxu0 %v6754
        %v6756 = vpop.f32.mrb[0].mxu0
        %v6757 = vadd.f32 %v6685, %v6756
        %v6758 = vpop.f32.mrb[0].mxu0
        %6759 = vdwg.mxu0
        %6760 = vrot.lane.b32.xlu0 %v773, 64
        %v6761 = vpop.permute.xlu0 %6760
        %v6764 = vsel %vm4395, %v4497, 0
        %6766 = vmatprep.subr.mxu0 0.0
        %v6767 = vand.u32 %v6761, 4294901760
        %6768 = vmatpush1.msra.mxu0 %v6767
        %6769 = vmatprep.subr.mxu0 0.0
        %6770 = vmatpush1.msra.mxu0 0.0
        %6771 = vmatprep.subr.mxu0 0.0
        %6772 = vmatpush1.msra.mxu0 0.0
        %6773 = vmatprep.subr.mxu0 0.0
        %6774 = vmatpush1.msra.mxu0 0.0
        %6775 = vmatprep.subr.mxu0 0.0
        %6776 = vmatpush1.msra.mxu0 0.0
        %6777 = vmatprep.subr.mxu0 0.0
        %6778 = vmatpush1.msra.mxu0 0.0
        %6779 = vmatprep.subr.mxu0 0.0
        %6780 = vmatpush1.msra.mxu0 0.0
        %6781 = vmatprep.subr.mxu0 0.0
        %6782 = vmatpush1.msra.mxu0 0.0
        %6783 = vmatprep.subr.mxu0 0.0
        %6784 = vmatpush1.msra.mxu0 0.0
        %6785 = vmatprep.subr.mxu0 0.0
        %6786 = vmatpush1.msra.mxu0 0.0
        %6787 = vmatprep.subr.mxu0 0.0
        %6788 = vmatpush1.msra.mxu0 0.0
        %6789 = vmatprep.subr.mxu0 0.0
        %6790 = vmatpush1.msra.mxu0 0.0
        %6791 = vmatprep.subr.mxu0 0.0
        %6792 = vmatpush1.msra.mxu0 0.0
        %6793 = vmatprep.subr.mxu0 0.0
        %6794 = vmatpush1.msra.mxu0 0.0
        %6795 = vmatprep.subr.mxu0 0.0
        %6796 = vmatpush1.msra.mxu0 0.0
        %6797 = vmatprep.subr.mxu0 0.0
        %6798 = vmatpush1.msra.mxu0 0.0
        %6799 = vmatprep.subr.mxu0 0.0
        %6800 = vmatpush1.msra.mxu0 0.0
        %6801 = vmatprep.subr.mxu0 0.0
        %6802 = vmatpush1.msra.mxu0 0.0
        %6803 = vmatprep.subr.mxu0 0.0
        %6804 = vmatpush1.msra.mxu0 0.0
        %6805 = vmatprep.subr.mxu0 0.0
        %6806 = vmatpush1.msra.mxu0 0.0
        %6807 = vmatprep.subr.mxu0 0.0
        %6808 = vmatpush1.msra.mxu0 0.0
        %6809 = vmatprep.subr.mxu0 0.0
        %6810 = vmatpush1.msra.mxu0 0.0
        %6811 = vmatprep.subr.mxu0 0.0
        %6812 = vmatpush1.msra.mxu0 0.0
        %6813 = vmatprep.subr.mxu0 0.0
        %6814 = vmatpush1.msra.mxu0 0.0
        %6815 = vmatprep.subr.mxu0 0.0
        %6816 = vmatpush1.msra.mxu0 0.0
        %6817 = vmatprep.subr.mxu0 0.0
        %6818 = vmatpush1.msra.mxu0 0.0
        %6819 = vmatprep.subr.mxu0 0.0
        %6820 = vmatpush1.msra.mxu0 0.0
        %6821 = vmatprep.subr.mxu0 0.0
        %6822 = vmatpush1.msra.mxu0 0.0
        %6823 = vmatprep.subr.mxu0 0.0
        %6824 = vmatpush1.msra.mxu0 0.0
        %6825 = vmatprep.subr.mxu0 0.0
        %6826 = vmatpush1.msra.mxu0 0.0
        %6827 = vmatprep.subr.mxu0 0.0
        %6828 = vmatpush1.msra.mxu0 0.0
        %6829 = vmatprep.subr.mxu0 0.0
        %6830 = vmatpush1.msra.mxu0 0.0
        %6831 = vmatprep.mubr.f32.mxu0 0.0
        %v6832 = vand.u32 %v6764, 4294901760
        %v6833 = vsub.f32 %v6764, %v6832
        %v6834 = vand.u32 %v6833, 4294901760
        %v6835 = vsub.f32 %v6833, %v6834
        %v6836 = vand.u32 %v6835, 4294901760
        %6837 = vmatmul.mubr.f32.gmra.mrb[0].mxu0 %v6836
        %v6838 = vpop.f32.mrb[0].mxu0
        %v6839 = vadd.f32 0.0, %v6838
        %v6840 = vpop.f32.mrb[0].mxu0
        %6841 = vdwg.mxu0
        %6842 = vmatprep.subr.mxu0 0.0
        %v6843 = vand.u32 %v6761, 4294901760
        %v6844 = vsub.f32 %v6761, %v6843
        %v6845 = vand.u32 %v6844, 4294901760
        %v6846 = vsub.f32 %v6844, %v6845
        %v6847 = vand.u32 %v6846, 4294901760
        %6848 = vmatpush1.msra.mxu0 %v6847
        %6849 = vmatprep.subr.mxu0 0.0
        %6850 = vmatpush1.msra.mxu0 0.0
        %6851 = vmatprep.subr.mxu0 0.0
        %6852 = vmatpush1.msra.mxu0 0.0
        %6853 = vmatprep.subr.mxu0 0.0
        %6854 = vmatpush1.msra.mxu0 0.0
        %6855 = vmatprep.subr.mxu0 0.0
        %6856 = vmatpush1.msra.mxu0 0.0
        %6857 = vmatprep.subr.mxu0 0.0
        %6858 = vmatpush1.msra.mxu0 0.0
        %6859 = vmatprep.subr.mxu0 0.0
        %6860 = vmatpush1.msra.mxu0 0.0
        %6861 = vmatprep.subr.mxu0 0.0
        %6862 = vmatpush1.msra.mxu0 0.0
        %6863 = vmatprep.subr.mxu0 0.0
        %6864 = vmatpush1.msra.mxu0 0.0
        %6865 = vmatprep.subr.mxu0 0.0
        %6866 = vmatpush1.msra.mxu0 0.0
        %6867 = vmatprep.subr.mxu0 0.0
        %6868 = vmatpush1.msra.mxu0 0.0
        %6869 = vmatprep.subr.mxu0 0.0
        %6870 = vmatpush1.msra.mxu0 0.0
        %6871 = vmatprep.subr.mxu0 0.0
        %6872 = vmatpush1.msra.mxu0 0.0
        %6873 = vmatprep.subr.mxu0 0.0
        %6874 = vmatpush1.msra.mxu0 0.0
        %6875 = vmatprep.subr.mxu0 0.0
        %6876 = vmatpush1.msra.mxu0 0.0
        %6877 = vmatprep.subr.mxu0 0.0
        %6878 = vmatpush1.msra.mxu0 0.0
        %6879 = vmatprep.subr.mxu0 0.0
        %6880 = vmatpush1.msra.mxu0 0.0
        %6881 = vmatprep.subr.mxu0 0.0
        %6882 = vmatpush1.msra.mxu0 0.0
        %6883 = vmatprep.subr.mxu0 0.0
        %6884 = vmatpush1.msra.mxu0 0.0
        %6885 = vmatprep.subr.mxu0 0.0
        %6886 = vmatpush1.msra.mxu0 0.0
        %6887 = vmatprep.subr.mxu0 0.0
        %6888 = vmatpush1.msra.mxu0 0.0
        %6889 = vmatprep.subr.mxu0 0.0
        %6890 = vmatpush1.msra.mxu0 0.0
        %6891 = vmatprep.subr.mxu0 0.0
        %6892 = vmatpush1.msra.mxu0 0.0
        %6893 = vmatprep.subr.mxu0 0.0
        %6894 = vmatpush1.msra.mxu0 0.0
        %6895 = vmatprep.subr.mxu0 0.0
        %6896 = vmatpush1.msra.mxu0 0.0
        %6897 = vmatprep.subr.mxu0 0.0
        %6898 = vmatpush1.msra.mxu0 0.0
        %6899 = vmatprep.subr.mxu0 0.0
        %6900 = vmatpush1.msra.mxu0 0.0
        %6901 = vmatprep.subr.mxu0 0.0
        %6902 = vmatpush1.msra.mxu0 0.0
        %6903 = vmatprep.subr.mxu0 0.0
        %6904 = vmatpush1.msra.mxu0 0.0
        %6905 = vmatprep.subr.mxu0 0.0
        %6906 = vmatpush1.msra.mxu0 0.0
        %6907 = vmatprep.subr.mxu0 0.0
        %6908 = vmatpush1.msra.mxu0 0.0
        %6909 = vmatprep.subr.mxu0 0.0
        %6910 = vmatpush1.msra.mxu0 0.0
        %6911 = vmatprep.mubr.f32.mxu0 0.0
        %v6912 = vand.u32 %v6764, 4294901760
        %6913 = vmatmul.mubr.f32.gmra.mrb[0].mxu0 %v6912
        %v6914 = vpop.f32.mrb[0].mxu0
        %v6915 = vadd.f32 %v6839, %v6914
        %v6916 = vpop.f32.mrb[0].mxu0
        %6917 = vdwg.mxu0
        %6918 = vmatprep.subr.mxu0 0.0
        %v6919 = vand.u32 %v6761, 4294901760
        %v6920 = vsub.f32 %v6761, %v6919
        %6921 = vmatpush1.msra.mxu0 %v6920
        %6922 = vmatprep.subr.mxu0 0.0
        %6923 = vmatpush1.msra.mxu0 0.0
        %6924 = vmatprep.subr.mxu0 0.0
        %6925 = vmatpush1.msra.mxu0 0.0
        %6926 = vmatprep.subr.mxu0 0.0
        %6927 = vmatpush1.msra.mxu0 0.0
        %6928 = vmatprep.subr.mxu0 0.0
        %6929 = vmatpush1.msra.mxu0 0.0
        %6930 = vmatprep.subr.mxu0 0.0
        %6931 = vmatpush1.msra.mxu0 0.0
        %6932 = vmatprep.subr.mxu0 0.0
        %6933 = vmatpush1.msra.mxu0 0.0
        %6934 = vmatprep.subr.mxu0 0.0
        %6935 = vmatpush1.msra.mxu0 0.0
        %6936 = vmatprep.subr.mxu0 0.0
        %6937 = vmatpush1.msra.mxu0 0.0
        %6938 = vmatprep.subr.mxu0 0.0
        %6939 = vmatpush1.msra.mxu0 0.0
        %6940 = vmatprep.subr.mxu0 0.0
        %6941 = vmatpush1.msra.mxu0 0.0
        %6942 = vmatprep.subr.mxu0 0.0
        %6943 = vmatpush1.msra.mxu0 0.0
        %6944 = vmatprep.subr.mxu0 0.0
        %6945 = vmatpush1.msra.mxu0 0.0
        %6946 = vmatprep.subr.mxu0 0.0
        %6947 = vmatpush1.msra.mxu0 0.0
        %6948 = vmatprep.subr.mxu0 0.0
        %6949 = vmatpush1.msra.mxu0 0.0
        %6950 = vmatprep.subr.mxu0 0.0
        %6951 = vmatpush1.msra.mxu0 0.0
        %6952 = vmatprep.subr.mxu0 0.0
        %6953 = vmatpush1.msra.mxu0 0.0
        %6954 = vmatprep.subr.mxu0 0.0
        %6955 = vmatpush1.msra.mxu0 0.0
        %6956 = vmatprep.subr.mxu0 0.0
        %6957 = vmatpush1.msra.mxu0 0.0
        %6958 = vmatprep.subr.mxu0 0.0
        %6959 = vmatpush1.msra.mxu0 0.0
        %6960 = vmatprep.subr.mxu0 0.0
        %6961 = vmatpush1.msra.mxu0 0.0
        %6962 = vmatprep.subr.mxu0 0.0
        %6963 = vmatpush1.msra.mxu0 0.0
        %6964 = vmatprep.subr.mxu0 0.0
        %6965 = vmatpush1.msra.mxu0 0.0
        %6966 = vmatprep.subr.mxu0 0.0
        %6967 = vmatpush1.msra.mxu0 0.0
        %6968 = vmatprep.subr.mxu0 0.0
        %6969 = vmatpush1.msra.mxu0 0.0
        %6970 = vmatprep.subr.mxu0 0.0
        %6971 = vmatpush1.msra.mxu0 0.0
        %6972 = vmatprep.subr.mxu0 0.0
        %6973 = vmatpush1.msra.mxu0 0.0
        %6974 = vmatprep.subr.mxu0 0.0
        %6975 = vmatpush1.msra.mxu0 0.0
        %6976 = vmatprep.subr.mxu0 0.0
        %6977 = vmatpush1.msra.mxu0 0.0
        %6978 = vmatprep.subr.mxu0 0.0
        %6979 = vmatpush1.msra.mxu0 0.0
        %6980 = vmatprep.subr.mxu0 0.0
        %6981 = vmatpush1.msra.mxu0 0.0
        %6982 = vmatprep.subr.mxu0 0.0
        %6983 = vmatpush1.msra.mxu0 0.0
        %6984 = vmatprep.mubr.f32.mxu0 0.0
        %v6985 = vand.u32 %v6764, 4294901760
        %v6986 = vsub.f32 %v6764, %v6985
        %6987 = vmatmul.mubr.f32.gmra.mrb[0].mxu0 %v6986
        %v6988 = vpop.f32.mrb[0].mxu0
        %v6989 = vadd.f32 %v6915, %v6988
        %v6990 = vpop.f32.mrb[0].mxu0
        %6991 = vdwg.mxu0
        %6992 = vmatprep.subr.mxu0 0.0
        %v6993 = vand.u32 %v6761, 4294901760
        %6994 = vmatpush1.msra.mxu0 %v6993
        %6995 = vmatprep.subr.mxu0 0.0
        %6996 = vmatpush1.msra.mxu0 0.0
        %6997 = vmatprep.subr.mxu0 0.0
        %6998 = vmatpush1.msra.mxu0 0.0
        %6999 = vmatprep.subr.mxu0 0.0
        %7000 = vmatpush1.msra.mxu0 0.0
        %7001 = vmatprep.subr.mxu0 0.0
        %7002 = vmatpush1.msra.mxu0 0.0
        %7003 = vmatprep.subr.mxu0 0.0
        %7004 = vmatpush1.msra.mxu0 0.0
        %7005 = vmatprep.subr.mxu0 0.0
        %7006 = vmatpush1.msra.mxu0 0.0
        %7007 = vmatprep.subr.mxu0 0.0
        %7008 = vmatpush1.msra.mxu0 0.0
        %7009 = vmatprep.subr.mxu0 0.0
        %7010 = vmatpush1.msra.mxu0 0.0
        %7011 = vmatprep.subr.mxu0 0.0
        %7012 = vmatpush1.msra.mxu0 0.0
        %7013 = vmatprep.subr.mxu0 0.0
        %7014 = vmatpush1.msra.mxu0 0.0
        %7015 = vmatprep.subr.mxu0 0.0
        %7016 = vmatpush1.msra.mxu0 0.0
        %7017 = vmatprep.subr.mxu0 0.0
        %7018 = vmatpush1.msra.mxu0 0.0
        %7019 = vmatprep.subr.mxu0 0.0
        %7020 = vmatpush1.msra.mxu0 0.0
        %7021 = vmatprep.subr.mxu0 0.0
        %7022 = vmatpush1.msra.mxu0 0.0
        %7023 = vmatprep.subr.mxu0 0.0
        %7024 = vmatpush1.msra.mxu0 0.0
        %7025 = vmatprep.subr.mxu0 0.0
        %7026 = vmatpush1.msra.mxu0 0.0
        %7027 = vmatprep.subr.mxu0 0.0
        %7028 = vmatpush1.msra.mxu0 0.0
        %7029 = vmatprep.subr.mxu0 0.0
        %7030 = vmatpush1.msra.mxu0 0.0
        %7031 = vmatprep.subr.mxu0 0.0
        %7032 = vmatpush1.msra.mxu0 0.0
        %7033 = vmatprep.subr.mxu0 0.0
        %7034 = vmatpush1.msra.mxu0 0.0
        %7035 = vmatprep.subr.mxu0 0.0
        %7036 = vmatpush1.msra.mxu0 0.0
        %7037 = vmatprep.subr.mxu0 0.0
        %7038 = vmatpush1.msra.mxu0 0.0
        %7039 = vmatprep.subr.mxu0 0.0
        %7040 = vmatpush1.msra.mxu0 0.0
        %7041 = vmatprep.subr.mxu0 0.0
        %7042 = vmatpush1.msra.mxu0 0.0
        %7043 = vmatprep.subr.mxu0 0.0
        %7044 = vmatpush1.msra.mxu0 0.0
        %7045 = vmatprep.subr.mxu0 0.0
        %7046 = vmatpush1.msra.mxu0 0.0
        %7047 = vmatprep.subr.mxu0 0.0
        %7048 = vmatpush1.msra.mxu0 0.0
        %7049 = vmatprep.subr.mxu0 0.0
        %7050 = vmatpush1.msra.mxu0 0.0
        %7051 = vmatprep.subr.mxu0 0.0
        %7052 = vmatpush1.msra.mxu0 0.0
        %7053 = vmatprep.subr.mxu0 0.0
        %7054 = vmatpush1.msra.mxu0 0.0
        %7055 = vmatprep.subr.mxu0 0.0
        %7056 = vmatpush1.msra.mxu0 0.0
        %7057 = vmatprep.mubr.f32.mxu0 0.0
        %v7058 = vand.u32 %v6764, 4294901760
        %v7059 = vsub.f32 %v6764, %v7058
        %v7060 = vand.u32 %v7059, 4294901760
        %7061 = vmatmul.mubr.f32.gmra.mrb[0].mxu0 %v7060
        %v7062 = vpop.f32.mrb[0].mxu0
        %v7063 = vadd.f32 %v6989, %v7062
        %v7064 = vpop.f32.mrb[0].mxu0
        %7065 = vdwg.mxu0
        %7066 = vmatprep.subr.mxu0 0.0
        %v7067 = vand.u32 %v6761, 4294901760
        %v7068 = vsub.f32 %v6761, %v7067
        %v7069 = vand.u32 %v7068, 4294901760
        %7070 = vmatpush1.msra.mxu0 %v7069
        %7071 = vmatprep.subr.mxu0 0.0
        %7072 = vmatpush1.msra.mxu0 0.0
        %7073 = vmatprep.subr.mxu0 0.0
        %7074 = vmatpush1.msra.mxu0 0.0
        %7075 = vmatprep.subr.mxu0 0.0
        %7076 = vmatpush1.msra.mxu0 0.0
        %7077 = vmatprep.subr.mxu0 0.0
        %7078 = vmatpush1.msra.mxu0 0.0
        %7079 = vmatprep.subr.mxu0 0.0
        %7080 = vmatpush1.msra.mxu0 0.0
        %7081 = vmatprep.subr.mxu0 0.0
        %7082 = vmatpush1.msra.mxu0 0.0
        %7083 = vmatprep.subr.mxu0 0.0
        %7084 = vmatpush1.msra.mxu0 0.0
        %7085 = vmatprep.subr.mxu0 0.0
        %7086 = vmatpush1.msra.mxu0 0.0
        %7087 = vmatprep.subr.mxu0 0.0
        %7088 = vmatpush1.msra.mxu0 0.0
        %7089 = vmatprep.subr.mxu0 0.0
        %7090 = vmatpush1.msra.mxu0 0.0
        %7091 = vmatprep.subr.mxu0 0.0
        %7092 = vmatpush1.msra.mxu0 0.0
        %7093 = vmatprep.subr.mxu0 0.0
        %7094 = vmatpush1.msra.mxu0 0.0
        %7095 = vmatprep.subr.mxu0 0.0
        %7096 = vmatpush1.msra.mxu0 0.0
        %7097 = vmatprep.subr.mxu0 0.0
        %7098 = vmatpush1.msra.mxu0 0.0
        %7099 = vmatprep.subr.mxu0 0.0
        %7100 = vmatpush1.msra.mxu0 0.0
        %7101 = vmatprep.subr.mxu0 0.0
        %7102 = vmatpush1.msra.mxu0 0.0
        %7103 = vmatprep.subr.mxu0 0.0
        %7104 = vmatpush1.msra.mxu0 0.0
        %7105 = vmatprep.subr.mxu0 0.0
        %7106 = vmatpush1.msra.mxu0 0.0
        %7107 = vmatprep.subr.mxu0 0.0
        %7108 = vmatpush1.msra.mxu0 0.0
        %7109 = vmatprep.subr.mxu0 0.0
        %7110 = vmatpush1.msra.mxu0 0.0
        %7111 = vmatprep.subr.mxu0 0.0
        %7112 = vmatpush1.msra.mxu0 0.0
        %7113 = vmatprep.subr.mxu0 0.0
        %7114 = vmatpush1.msra.mxu0 0.0
        %7115 = vmatprep.subr.mxu0 0.0
        %7116 = vmatpush1.msra.mxu0 0.0
        %7117 = vmatprep.subr.mxu0 0.0
        %7118 = vmatpush1.msra.mxu0 0.0
        %7119 = vmatprep.subr.mxu0 0.0
        %7120 = vmatpush1.msra.mxu0 0.0
        %7121 = vmatprep.subr.mxu0 0.0
        %7122 = vmatpush1.msra.mxu0 0.0
        %7123 = vmatprep.subr.mxu0 0.0
        %7124 = vmatpush1.msra.mxu0 0.0
        %7125 = vmatprep.subr.mxu0 0.0
        %7126 = vmatpush1.msra.mxu0 0.0
        %7127 = vmatprep.subr.mxu0 0.0
        %7128 = vmatpush1.msra.mxu0 0.0
        %7129 = vmatprep.subr.mxu0 0.0
        %7130 = vmatpush1.msra.mxu0 0.0
        %7131 = vmatprep.subr.mxu0 0.0
        %7132 = vmatpush1.msra.mxu0 0.0
        %7133 = vmatprep.mubr.f32.mxu0 0.0
        %v7134 = vand.u32 %v6764, 4294901760
        %7135 = vmatmul.mubr.f32.gmra.mrb[0].mxu0 %v7134
        %v7136 = vpop.f32.mrb[0].mxu0
        %v7137 = vadd.f32 %v7063, %v7136
        %v7138 = vpop.f32.mrb[0].mxu0
        %7139 = vdwg.mxu0
        %7140 = vmatprep.subr.mxu0 0.0
        %v7141 = vand.u32 %v6761, 4294901760
        %7142 = vmatpush1.msra.mxu0 %v7141
        %7143 = vmatprep.subr.mxu0 0.0
        %7144 = vmatpush1.msra.mxu0 0.0
        %7145 = vmatprep.subr.mxu0 0.0
        %7146 = vmatpush1.msra.mxu0 0.0
        %7147 = vmatprep.subr.mxu0 0.0
        %7148 = vmatpush1.msra.mxu0 0.0
        %7149 = vmatprep.subr.mxu0 0.0
        %7150 = vmatpush1.msra.mxu0 0.0
        %7151 = vmatprep.subr.mxu0 0.0
        %7152 = vmatpush1.msra.mxu0 0.0
        %7153 = vmatprep.subr.mxu0 0.0
        %7154 = vmatpush1.msra.mxu0 0.0
        %7155 = vmatprep.subr.mxu0 0.0
        %7156 = vmatpush1.msra.mxu0 0.0
        %7157 = vmatprep.subr.mxu0 0.0
        %7158 = vmatpush1.msra.mxu0 0.0
        %7159 = vmatprep.subr.mxu0 0.0
        %7160 = vmatpush1.msra.mxu0 0.0
        %7161 = vmatprep.subr.mxu0 0.0
        %7162 = vmatpush1.msra.mxu0 0.0
        %7163 = vmatprep.subr.mxu0 0.0
        %7164 = vmatpush1.msra.mxu0 0.0
        %7165 = vmatprep.subr.mxu0 0.0
        %7166 = vmatpush1.msra.mxu0 0.0
        %7167 = vmatprep.subr.mxu0 0.0
        %7168 = vmatpush1.msra.mxu0 0.0
        %7169 = vmatprep.subr.mxu0 0.0
        %7170 = vmatpush1.msra.mxu0 0.0
        %7171 = vmatprep.subr.mxu0 0.0
        %7172 = vmatpush1.msra.mxu0 0.0
        %7173 = vmatprep.subr.mxu0 0.0
        %7174 = vmatpush1.msra.mxu0 0.0
        %7175 = vmatprep.subr.mxu0 0.0
        %7176 = vmatpush1.msra.mxu0 0.0
        %7177 = vmatprep.subr.mxu0 0.0
        %7178 = vmatpush1.msra.mxu0 0.0
        %7179 = vmatprep.subr.mxu0 0.0
        %7180 = vmatpush1.msra.mxu0 0.0
        %7181 = vmatprep.subr.mxu0 0.0
        %7182 = vmatpush1.msra.mxu0 0.0
        %7183 = vmatprep.subr.mxu0 0.0
        %7184 = vmatpush1.msra.mxu0 0.0
        %7185 = vmatprep.subr.mxu0 0.0
        %7186 = vmatpush1.msra.mxu0 0.0
        %7187 = vmatprep.subr.mxu0 0.0
        %7188 = vmatpush1.msra.mxu0 0.0
        %7189 = vmatprep.subr.mxu0 0.0
        %7190 = vmatpush1.msra.mxu0 0.0
        %7191 = vmatprep.subr.mxu0 0.0
        %7192 = vmatpush1.msra.mxu0 0.0
        %7193 = vmatprep.subr.mxu0 0.0
        %7194 = vmatpush1.msra.mxu0 0.0
        %7195 = vmatprep.subr.mxu0 0.0
        %7196 = vmatpush1.msra.mxu0 0.0
        %7197 = vmatprep.subr.mxu0 0.0
        %7198 = vmatpush1.msra.mxu0 0.0
        %7199 = vmatprep.subr.mxu0 0.0
        %7200 = vmatpush1.msra.mxu0 0.0
        %7201 = vmatprep.subr.mxu0 0.0
        %7202 = vmatpush1.msra.mxu0 0.0
        %7203 = vmatprep.subr.mxu0 0.0
        %7204 = vmatpush1.msra.mxu0 0.0
        %7205 = vmatprep.mubr.f32.mxu0 0.0
        %v7206 = vand.u32 %v6764, 4294901760
        %7207 = vmatmul.mubr.f32.gmra.mrb[0].mxu0 %v7206
        %v7208 = vpop.f32.mrb[0].mxu0
        %v7209 = vadd.f32 %v7137, %v7208
        %v7210 = vpop.f32.mrb[0].mxu0
        %7211 = vdwg.mxu0
        %7212 = vrot.lane.b32.xlu0 %v775, 64
        %v7213 = vpop.permute.xlu0 %7212
        %v7216 = vsel %vm4395, %v4498, 0
        %7218 = vmatprep.subr.mxu0 0.0
        %v7219 = vand.u32 %v7213, 4294901760
        %7220 = vmatpush1.msra.mxu0 %v7219
        %7221 = vmatprep.subr.mxu0 0.0
        %7222 = vmatpush1.msra.mxu0 0.0
        %7223 = vmatprep.subr.mxu0 0.0
        %7224 = vmatpush1.msra.mxu0 0.0
        %7225 = vmatprep.subr.mxu0 0.0
        %7226 = vmatpush1.msra.mxu0 0.0
        %7227 = vmatprep.subr.mxu0 0.0
        %7228 = vmatpush1.msra.mxu0 0.0
        %7229 = vmatprep.subr.mxu0 0.0
        %7230 = vmatpush1.msra.mxu0 0.0
        %7231 = vmatprep.subr.mxu0 0.0
        %7232 = vmatpush1.msra.mxu0 0.0
        %7233 = vmatprep.subr.mxu0 0.0
        %7234 = vmatpush1.msra.mxu0 0.0
        %7235 = vmatprep.subr.mxu0 0.0
        %7236 = vmatpush1.msra.mxu0 0.0
        %7237 = vmatprep.subr.mxu0 0.0
        %7238 = vmatpush1.msra.mxu0 0.0
        %7239 = vmatprep.subr.mxu0 0.0
        %7240 = vmatpush1.msra.mxu0 0.0
        %7241 = vmatprep.subr.mxu0 0.0
        %7242 = vmatpush1.msra.mxu0 0.0
        %7243 = vmatprep.subr.mxu0 0.0
        %7244 = vmatpush1.msra.mxu0 0.0
        %7245 = vmatprep.subr.mxu0 0.0
        %7246 = vmatpush1.msra.mxu0 0.0
        %7247 = vmatprep.subr.mxu0 0.0
        %7248 = vmatpush1.msra.mxu0 0.0
        %7249 = vmatprep.subr.mxu0 0.0
        %7250 = vmatpush1.msra.mxu0 0.0
        %7251 = vmatprep.subr.mxu0 0.0
        %7252 = vmatpush1.msra.mxu0 0.0
        %7253 = vmatprep.subr.mxu0 0.0
        %7254 = vmatpush1.msra.mxu0 0.0
        %7255 = vmatprep.subr.mxu0 0.0
        %7256 = vmatpush1.msra.mxu0 0.0
        %7257 = vmatprep.subr.mxu0 0.0
        %7258 = vmatpush1.msra.mxu0 0.0
        %7259 = vmatprep.subr.mxu0 0.0
        %7260 = vmatpush1.msra.mxu0 0.0
        %7261 = vmatprep.subr.mxu0 0.0
        %7262 = vmatpush1.msra.mxu0 0.0
        %7263 = vmatprep.subr.mxu0 0.0
        %7264 = vmatpush1.msra.mxu0 0.0
        %7265 = vmatprep.subr.mxu0 0.0
        %7266 = vmatpush1.msra.mxu0 0.0
        %7267 = vmatprep.subr.mxu0 0.0
        %7268 = vmatpush1.msra.mxu0 0.0
        %7269 = vmatprep.subr.mxu0 0.0
        %7270 = vmatpush1.msra.mxu0 0.0
        %7271 = vmatprep.subr.mxu0 0.0
        %7272 = vmatpush1.msra.mxu0 0.0
        %7273 = vmatprep.subr.mxu0 0.0
        %7274 = vmatpush1.msra.mxu0 0.0
        %7275 = vmatprep.subr.mxu0 0.0
        %7276 = vmatpush1.msra.mxu0 0.0
        %7277 = vmatprep.subr.mxu0 0.0
        %7278 = vmatpush1.msra.mxu0 0.0
        %7279 = vmatprep.subr.mxu0 0.0
        %7280 = vmatpush1.msra.mxu0 0.0
        %7281 = vmatprep.subr.mxu0 0.0
        %7282 = vmatpush1.msra.mxu0 0.0
        %7283 = vmatprep.mubr.f32.mxu0 0.0
        %v7284 = vand.u32 %v7216, 4294901760
        %v7285 = vsub.f32 %v7216, %v7284
        %v7286 = vand.u32 %v7285, 4294901760
        %v7287 = vsub.f32 %v7285, %v7286
        %v7288 = vand.u32 %v7287, 4294901760
        %7289 = vmatmul.mubr.f32.gmra.mrb[0].mxu0 %v7288
        %v7290 = vpop.f32.mrb[0].mxu0
        %v7291 = vadd.f32 0.0, %v7290
        %v7292 = vpop.f32.mrb[0].mxu0
        %7293 = vdwg.mxu0
        %7294 = vmatprep.subr.mxu0 0.0
        %v7295 = vand.u32 %v7213, 4294901760
        %v7296 = vsub.f32 %v7213, %v7295
        %v7297 = vand.u32 %v7296, 4294901760
        %v7298 = vsub.f32 %v7296, %v7297
        %v7299 = vand.u32 %v7298, 4294901760
        %7300 = vmatpush1.msra.mxu0 %v7299
        %7301 = vmatprep.subr.mxu0 0.0
        %7302 = vmatpush1.msra.mxu0 0.0
        %7303 = vmatprep.subr.mxu0 0.0
        %7304 = vmatpush1.msra.mxu0 0.0
        %7305 = vmatprep.subr.mxu0 0.0
        %7306 = vmatpush1.msra.mxu0 0.0
        %7307 = vmatprep.subr.mxu0 0.0
        %7308 = vmatpush1.msra.mxu0 0.0
        %7309 = vmatprep.subr.mxu0 0.0
        %7310 = vmatpush1.msra.mxu0 0.0
        %7311 = vmatprep.subr.mxu0 0.0
        %7312 = vmatpush1.msra.mxu0 0.0
        %7313 = vmatprep.subr.mxu0 0.0
        %7314 = vmatpush1.msra.mxu0 0.0
        %7315 = vmatprep.subr.mxu0 0.0
        %7316 = vmatpush1.msra.mxu0 0.0
        %7317 = vmatprep.subr.mxu0 0.0
        %7318 = vmatpush1.msra.mxu0 0.0
        %7319 = vmatprep.subr.mxu0 0.0
        %7320 = vmatpush1.msra.mxu0 0.0
        %7321 = vmatprep.subr.mxu0 0.0
        %7322 = vmatpush1.msra.mxu0 0.0
        %7323 = vmatprep.subr.mxu0 0.0
        %7324 = vmatpush1.msra.mxu0 0.0
        %7325 = vmatprep.subr.mxu0 0.0
        %7326 = vmatpush1.msra.mxu0 0.0
        %7327 = vmatprep.subr.mxu0 0.0
        %7328 = vmatpush1.msra.mxu0 0.0
        %7329 = vmatprep.subr.mxu0 0.0
        %7330 = vmatpush1.msra.mxu0 0.0
        %7331 = vmatprep.subr.mxu0 0.0
        %7332 = vmatpush1.msra.mxu0 0.0
        %7333 = vmatprep.subr.mxu0 0.0
        %7334 = vmatpush1.msra.mxu0 0.0
        %7335 = vmatprep.subr.mxu0 0.0
        %7336 = vmatpush1.msra.mxu0 0.0
        %7337 = vmatprep.subr.mxu0 0.0
        %7338 = vmatpush1.msra.mxu0 0.0
        %7339 = vmatprep.subr.mxu0 0.0
        %7340 = vmatpush1.msra.mxu0 0.0
        %7341 = vmatprep.subr.mxu0 0.0
        %7342 = vmatpush1.msra.mxu0 0.0
        %7343 = vmatprep.subr.mxu0 0.0
        %7344 = vmatpush1.msra.mxu0 0.0
        %7345 = vmatprep.subr.mxu0 0.0
        %7346 = vmatpush1.msra.mxu0 0.0
        %7347 = vmatprep.subr.mxu0 0.0
        %7348 = vmatpush1.msra.mxu0 0.0
        %7349 = vmatprep.subr.mxu0 0.0
        %7350 = vmatpush1.msra.mxu0 0.0
        %7351 = vmatprep.subr.mxu0 0.0
        %7352 = vmatpush1.msra.mxu0 0.0
        %7353 = vmatprep.subr.mxu0 0.0
        %7354 = vmatpush1.msra.mxu0 0.0
        %7355 = vmatprep.subr.mxu0 0.0
        %7356 = vmatpush1.msra.mxu0 0.0
        %7357 = vmatprep.subr.mxu0 0.0
        %7358 = vmatpush1.msra.mxu0 0.0
        %7359 = vmatprep.subr.mxu0 0.0
        %7360 = vmatpush1.msra.mxu0 0.0
        %7361 = vmatprep.subr.mxu0 0.0
        %7362 = vmatpush1.msra.mxu0 0.0
        %7363 = vmatprep.mubr.f32.mxu0 0.0
        %v7364 = vand.u32 %v7216, 4294901760
        %7365 = vmatmul.mubr.f32.gmra.mrb[0].mxu0 %v7364
        %v7366 = vpop.f32.mrb[0].mxu0
        %v7367 = vadd.f32 %v7291, %v7366
        %v7368 = vpop.f32.mrb[0].mxu0
        %7369 = vdwg.mxu0
        %7370 = vmatprep.subr.mxu0 0.0
        %v7371 = vand.u32 %v7213, 4294901760
        %v7372 = vsub.f32 %v7213, %v7371
        %7373 = vmatpush1.msra.mxu0 %v7372
        %7374 = vmatprep.subr.mxu0 0.0
        %7375 = vmatpush1.msra.mxu0 0.0
        %7376 = vmatprep.subr.mxu0 0.0
        %7377 = vmatpush1.msra.mxu0 0.0
        %7378 = vmatprep.subr.mxu0 0.0
        %7379 = vmatpush1.msra.mxu0 0.0
        %7380 = vmatprep.subr.mxu0 0.0
        %7381 = vmatpush1.msra.mxu0 0.0
        %7382 = vmatprep.subr.mxu0 0.0
        %7383 = vmatpush1.msra.mxu0 0.0
        %7384 = vmatprep.subr.mxu0 0.0
        %7385 = vmatpush1.msra.mxu0 0.0
        %7386 = vmatprep.subr.mxu0 0.0
        %7387 = vmatpush1.msra.mxu0 0.0
        %7388 = vmatprep.subr.mxu0 0.0
        %7389 = vmatpush1.msra.mxu0 0.0
        %7390 = vmatprep.subr.mxu0 0.0
        %7391 = vmatpush1.msra.mxu0 0.0
        %7392 = vmatprep.subr.mxu0 0.0
        %7393 = vmatpush1.msra.mxu0 0.0
        %7394 = vmatprep.subr.mxu0 0.0
        %7395 = vmatpush1.msra.mxu0 0.0
        %7396 = vmatprep.subr.mxu0 0.0
        %7397 = vmatpush1.msra.mxu0 0.0
        %7398 = vmatprep.subr.mxu0 0.0
        %7399 = vmatpush1.msra.mxu0 0.0
        %7400 = vmatprep.subr.mxu0 0.0
        %7401 = vmatpush1.msra.mxu0 0.0
        %7402 = vmatprep.subr.mxu0 0.0
        %7403 = vmatpush1.msra.mxu0 0.0
        %7404 = vmatprep.subr.mxu0 0.0
        %7405 = vmatpush1.msra.mxu0 0.0
        %7406 = vmatprep.subr.mxu0 0.0
        %7407 = vmatpush1.msra.mxu0 0.0
        %7408 = vmatprep.subr.mxu0 0.0
        %7409 = vmatpush1.msra.mxu0 0.0
        %7410 = vmatprep.subr.mxu0 0.0
        %7411 = vmatpush1.msra.mxu0 0.0
        %7412 = vmatprep.subr.mxu0 0.0
        %7413 = vmatpush1.msra.mxu0 0.0
        %7414 = vmatprep.subr.mxu0 0.0
        %7415 = vmatpush1.msra.mxu0 0.0
        %7416 = vmatprep.subr.mxu0 0.0
        %7417 = vmatpush1.msra.mxu0 0.0
        %7418 = vmatprep.subr.mxu0 0.0
        %7419 = vmatpush1.msra.mxu0 0.0
        %7420 = vmatprep.subr.mxu0 0.0
        %7421 = vmatpush1.msra.mxu0 0.0
        %7422 = vmatprep.subr.mxu0 0.0
        %7423 = vmatpush1.msra.mxu0 0.0
        %7424 = vmatprep.subr.mxu0 0.0
        %7425 = vmatpush1.msra.mxu0 0.0
        %7426 = vmatprep.subr.mxu0 0.0
        %7427 = vmatpush1.msra.mxu0 0.0
        %7428 = vmatprep.subr.mxu0 0.0
        %7429 = vmatpush1.msra.mxu0 0.0
        %7430 = vmatprep.subr.mxu0 0.0
        %7431 = vmatpush1.msra.mxu0 0.0
        %7432 = vmatprep.subr.mxu0 0.0
        %7433 = vmatpush1.msra.mxu0 0.0
        %7434 = vmatprep.subr.mxu0 0.0
        %7435 = vmatpush1.msra.mxu0 0.0
        %7436 = vmatprep.mubr.f32.mxu0 0.0
        %v7437 = vand.u32 %v7216, 4294901760
        %v7438 = vsub.f32 %v7216, %v7437
        %7439 = vmatmul.mubr.f32.gmra.mrb[0].mxu0 %v7438
        %v7440 = vpop.f32.mrb[0].mxu0
        %v7441 = vadd.f32 %v7367, %v7440
        %v7442 = vpop.f32.mrb[0].mxu0
        %7443 = vdwg.mxu0
        %7444 = vmatprep.subr.mxu0 0.0
        %v7445 = vand.u32 %v7213, 4294901760
        %7446 = vmatpush1.msra.mxu0 %v7445
        %7447 = vmatprep.subr.mxu0 0.0
        %7448 = vmatpush1.msra.mxu0 0.0
        %7449 = vmatprep.subr.mxu0 0.0
        %7450 = vmatpush1.msra.mxu0 0.0
        %7451 = vmatprep.subr.mxu0 0.0
        %7452 = vmatpush1.msra.mxu0 0.0
        %7453 = vmatprep.subr.mxu0 0.0
        %7454 = vmatpush1.msra.mxu0 0.0
        %7455 = vmatprep.subr.mxu0 0.0
        %7456 = vmatpush1.msra.mxu0 0.0
        %7457 = vmatprep.subr.mxu0 0.0
        %7458 = vmatpush1.msra.mxu0 0.0
        %7459 = vmatprep.subr.mxu0 0.0
        %7460 = vmatpush1.msra.mxu0 0.0
        %7461 = vmatprep.subr.mxu0 0.0
        %7462 = vmatpush1.msra.mxu0 0.0
        %7463 = vmatprep.subr.mxu0 0.0
        %7464 = vmatpush1.msra.mxu0 0.0
        %7465 = vmatprep.subr.mxu0 0.0
        %7466 = vmatpush1.msra.mxu0 0.0
        %7467 = vmatprep.subr.mxu0 0.0
        %7468 = vmatpush1.msra.mxu0 0.0
        %7469 = vmatprep.subr.mxu0 0.0
        %7470 = vmatpush1.msra.mxu0 0.0
        %7471 = vmatprep.subr.mxu0 0.0
        %7472 = vmatpush1.msra.mxu0 0.0
        %7473 = vmatprep.subr.mxu0 0.0
        %7474 = vmatpush1.msra.mxu0 0.0
        %7475 = vmatprep.subr.mxu0 0.0
        %7476 = vmatpush1.msra.mxu0 0.0
        %7477 = vmatprep.subr.mxu0 0.0
        %7478 = vmatpush1.msra.mxu0 0.0
        %7479 = vmatprep.subr.mxu0 0.0
        %7480 = vmatpush1.msra.mxu0 0.0
        %7481 = vmatprep.subr.mxu0 0.0
        %7482 = vmatpush1.msra.mxu0 0.0
        %7483 = vmatprep.subr.mxu0 0.0
        %7484 = vmatpush1.msra.mxu0 0.0
        %7485 = vmatprep.subr.mxu0 0.0
        %7486 = vmatpush1.msra.mxu0 0.0
        %7487 = vmatprep.subr.mxu0 0.0
        %7488 = vmatpush1.msra.mxu0 0.0
        %7489 = vmatprep.subr.mxu0 0.0
        %7490 = vmatpush1.msra.mxu0 0.0
        %7491 = vmatprep.subr.mxu0 0.0
        %7492 = vmatpush1.msra.mxu0 0.0
        %7493 = vmatprep.subr.mxu0 0.0
        %7494 = vmatpush1.msra.mxu0 0.0
        %7495 = vmatprep.subr.mxu0 0.0
        %7496 = vmatpush1.msra.mxu0 0.0
        %7497 = vmatprep.subr.mxu0 0.0
        %7498 = vmatpush1.msra.mxu0 0.0
        %7499 = vmatprep.subr.mxu0 0.0
        %7500 = vmatpush1.msra.mxu0 0.0
        %7501 = vmatprep.subr.mxu0 0.0
        %7502 = vmatpush1.msra.mxu0 0.0
        %7503 = vmatprep.subr.mxu0 0.0
        %7504 = vmatpush1.msra.mxu0 0.0
        %7505 = vmatprep.subr.mxu0 0.0
        %7506 = vmatpush1.msra.mxu0 0.0
        %7507 = vmatprep.subr.mxu0 0.0
        %7508 = vmatpush1.msra.mxu0 0.0
        %7509 = vmatprep.mubr.f32.mxu0 0.0
        %v7510 = vand.u32 %v7216, 4294901760
        %v7511 = vsub.f32 %v7216, %v7510
        %v7512 = vand.u32 %v7511, 4294901760
        %7513 = vmatmul.mubr.f32.gmra.mrb[0].mxu0 %v7512
        %v7514 = vpop.f32.mrb[0].mxu0
        %v7515 = vadd.f32 %v7441, %v7514
        %v7516 = vpop.f32.mrb[0].mxu0
        %7517 = vdwg.mxu0
        %7518 = vmatprep.subr.mxu0 0.0
        %v7519 = vand.u32 %v7213, 4294901760
        %v7520 = vsub.f32 %v7213, %v7519
        %v7521 = vand.u32 %v7520, 4294901760
        %7522 = vmatpush1.msra.mxu0 %v7521
        %7523 = vmatprep.subr.mxu0 0.0
        %7524 = vmatpush1.msra.mxu0 0.0
        %7525 = vmatprep.subr.mxu0 0.0
        %7526 = vmatpush1.msra.mxu0 0.0
        %7527 = vmatprep.subr.mxu0 0.0
        %7528 = vmatpush1.msra.mxu0 0.0
        %7529 = vmatprep.subr.mxu0 0.0
        %7530 = vmatpush1.msra.mxu0 0.0
        %7531 = vmatprep.subr.mxu0 0.0
        %7532 = vmatpush1.msra.mxu0 0.0
        %7533 = vmatprep.subr.mxu0 0.0
        %7534 = vmatpush1.msra.mxu0 0.0
        %7535 = vmatprep.subr.mxu0 0.0
        %7536 = vmatpush1.msra.mxu0 0.0
        %7537 = vmatprep.subr.mxu0 0.0
        %7538 = vmatpush1.msra.mxu0 0.0
        %7539 = vmatprep.subr.mxu0 0.0
        %7540 = vmatpush1.msra.mxu0 0.0
        %7541 = vmatprep.subr.mxu0 0.0
        %7542 = vmatpush1.msra.mxu0 0.0
        %7543 = vmatprep.subr.mxu0 0.0
        %7544 = vmatpush1.msra.mxu0 0.0
        %7545 = vmatprep.subr.mxu0 0.0
        %7546 = vmatpush1.msra.mxu0 0.0
        %7547 = vmatprep.subr.mxu0 0.0
        %7548 = vmatpush1.msra.mxu0 0.0
        %7549 = vmatprep.subr.mxu0 0.0
        %7550 = vmatpush1.msra.mxu0 0.0
        %7551 = vmatprep.subr.mxu0 0.0
        %7552 = vmatpush1.msra.mxu0 0.0
        %7553 = vmatprep.subr.mxu0 0.0
        %7554 = vmatpush1.msra.mxu0 0.0
        %7555 = vmatprep.subr.mxu0 0.0
        %7556 = vmatpush1.msra.mxu0 0.0
        %7557 = vmatprep.subr.mxu0 0.0
        %7558 = vmatpush1.msra.mxu0 0.0
        %7559 = vmatprep.subr.mxu0 0.0
        %7560 = vmatpush1.msra.mxu0 0.0
        %7561 = vmatprep.subr.mxu0 0.0
        %7562 = vmatpush1.msra.mxu0 0.0
        %7563 = vmatprep.subr.mxu0 0.0
        %7564 = vmatpush1.msra.mxu0 0.0
        %7565 = vmatprep.subr.mxu0 0.0
        %7566 = vmatpush1.msra.mxu0 0.0
        %7567 = vmatprep.subr.mxu0 0.0
        %7568 = vmatpush1.msra.mxu0 0.0
        %7569 = vmatprep.subr.mxu0 0.0
        %7570 = vmatpush1.msra.mxu0 0.0
        %7571 = vmatprep.subr.mxu0 0.0
        %7572 = vmatpush1.msra.mxu0 0.0
        %7573 = vmatprep.subr.mxu0 0.0
        %7574 = vmatpush1.msra.mxu0 0.0
        %7575 = vmatprep.subr.mxu0 0.0
        %7576 = vmatpush1.msra.mxu0 0.0
        %7577 = vmatprep.subr.mxu0 0.0
        %7578 = vmatpush1.msra.mxu0 0.0
        %7579 = vmatprep.subr.mxu0 0.0
        %7580 = vmatpush1.msra.mxu0 0.0
        %7581 = vmatprep.subr.mxu0 0.0
        %7582 = vmatpush1.msra.mxu0 0.0
        %7583 = vmatprep.subr.mxu0 0.0
        %7584 = vmatpush1.msra.mxu0 0.0
        %7585 = vmatprep.mubr.f32.mxu0 0.0
        %v7586 = vand.u32 %v7216, 4294901760
        %7587 = vmatmul.mubr.f32.gmra.mrb[0].mxu0 %v7586
        %v7588 = vpop.f32.mrb[0].mxu0
        %v7589 = vadd.f32 %v7515, %v7588
        %v7590 = vpop.f32.mrb[0].mxu0
        %7591 = vdwg.mxu0
        %7592 = vmatprep.subr.mxu0 0.0
        %v7593 = vand.u32 %v7213, 4294901760
        %7594 = vmatpush1.msra.mxu0 %v7593
        %7595 = vmatprep.subr.mxu0 0.0
        %7596 = vmatpush1.msra.mxu0 0.0
        %7597 = vmatprep.subr.mxu0 0.0
        %7598 = vmatpush1.msra.mxu0 0.0
        %7599 = vmatprep.subr.mxu0 0.0
        %7600 = vmatpush1.msra.mxu0 0.0
        %7601 = vmatprep.subr.mxu0 0.0
        %7602 = vmatpush1.msra.mxu0 0.0
        %7603 = vmatprep.subr.mxu0 0.0
        %7604 = vmatpush1.msra.mxu0 0.0
        %7605 = vmatprep.subr.mxu0 0.0
        %7606 = vmatpush1.msra.mxu0 0.0
        %7607 = vmatprep.subr.mxu0 0.0
        %7608 = vmatpush1.msra.mxu0 0.0
        %7609 = vmatprep.subr.mxu0 0.0
        %7610 = vmatpush1.msra.mxu0 0.0
        %7611 = vmatprep.subr.mxu0 0.0
        %7612 = vmatpush1.msra.mxu0 0.0
        %7613 = vmatprep.subr.mxu0 0.0
        %7614 = vmatpush1.msra.mxu0 0.0
        %7615 = vmatprep.subr.mxu0 0.0
        %7616 = vmatpush1.msra.mxu0 0.0
        %7617 = vmatprep.subr.mxu0 0.0
        %7618 = vmatpush1.msra.mxu0 0.0
        %7619 = vmatprep.subr.mxu0 0.0
        %7620 = vmatpush1.msra.mxu0 0.0
        %7621 = vmatprep.subr.mxu0 0.0
        %7622 = vmatpush1.msra.mxu0 0.0
        %7623 = vmatprep.subr.mxu0 0.0
        %7624 = vmatpush1.msra.mxu0 0.0
        %7625 = vmatprep.subr.mxu0 0.0
        %7626 = vmatpush1.msra.mxu0 0.0
        %7627 = vmatprep.subr.mxu0 0.0
        %7628 = vmatpush1.msra.mxu0 0.0
        %7629 = vmatprep.subr.mxu0 0.0
        %7630 = vmatpush1.msra.mxu0 0.0
        %7631 = vmatprep.subr.mxu0 0.0
        %7632 = vmatpush1.msra.mxu0 0.0
        %7633 = vmatprep.subr.mxu0 0.0
        %7634 = vmatpush1.msra.mxu0 0.0
        %7635 = vmatprep.subr.mxu0 0.0
        %7636 = vmatpush1.msra.mxu0 0.0
        %7637 = vmatprep.subr.mxu0 0.0
        %7638 = vmatpush1.msra.mxu0 0.0
        %7639 = vmatprep.subr.mxu0 0.0
        %7640 = vmatpush1.msra.mxu0 0.0
        %7641 = vmatprep.subr.mxu0 0.0
        %7642 = vmatpush1.msra.mxu0 0.0
        %7643 = vmatprep.subr.mxu0 0.0
        %7644 = vmatpush1.msra.mxu0 0.0
        %7645 = vmatprep.subr.mxu0 0.0
        %7646 = vmatpush1.msra.mxu0 0.0
        %7647 = vmatprep.subr.mxu0 0.0
        %7648 = vmatpush1.msra.mxu0 0.0
        %7649 = vmatprep.subr.mxu0 0.0
        %7650 = vmatpush1.msra.mxu0 0.0
        %7651 = vmatprep.subr.mxu0 0.0
        %7652 = vmatpush1.msra.mxu0 0.0
        %7653 = vmatprep.subr.mxu0 0.0
        %7654 = vmatpush1.msra.mxu0 0.0
        %7655 = vmatprep.subr.mxu0 0.0
        %7656 = vmatpush1.msra.mxu0 0.0
        %7657 = vmatprep.mubr.f32.mxu0 0.0
        %v7658 = vand.u32 %v7216, 4294901760
        %7659 = vmatmul.mubr.f32.gmra.mrb[0].mxu0 %v7658
        %v7660 = vpop.f32.mrb[0].mxu0
        %v7661 = vadd.f32 %v7589, %v7660
        %v7662 = vpop.f32.mrb[0].mxu0
        %7663 = vdwg.mxu0
        %7664 = vrot.lane.b32.xlu0 %v777, 64
        %v7665 = vpop.permute.xlu0 %7664
        %v7668 = vsel %vm4395, %v4499, 0
        %7670 = vmatprep.subr.mxu0 0.0
        %v7671 = vand.u32 %v7665, 4294901760
        %7672 = vmatpush1.msra.mxu0 %v7671
        %7673 = vmatprep.subr.mxu0 0.0
        %7674 = vmatpush1.msra.mxu0 0.0
        %7675 = vmatprep.subr.mxu0 0.0
        %7676 = vmatpush1.msra.mxu0 0.0
        %7677 = vmatprep.subr.mxu0 0.0
        %7678 = vmatpush1.msra.mxu0 0.0
        %7679 = vmatprep.subr.mxu0 0.0
        %7680 = vmatpush1.msra.mxu0 0.0
        %7681 = vmatprep.subr.mxu0 0.0
        %7682 = vmatpush1.msra.mxu0 0.0
        %7683 = vmatprep.subr.mxu0 0.0
        %7684 = vmatpush1.msra.mxu0 0.0
        %7685 = vmatprep.subr.mxu0 0.0
        %7686 = vmatpush1.msra.mxu0 0.0
        %7687 = vmatprep.subr.mxu0 0.0
        %7688 = vmatpush1.msra.mxu0 0.0
        %7689 = vmatprep.subr.mxu0 0.0
        %7690 = vmatpush1.msra.mxu0 0.0
        %7691 = vmatprep.subr.mxu0 0.0
        %7692 = vmatpush1.msra.mxu0 0.0
        %7693 = vmatprep.subr.mxu0 0.0
        %7694 = vmatpush1.msra.mxu0 0.0
        %7695 = vmatprep.subr.mxu0 0.0
        %7696 = vmatpush1.msra.mxu0 0.0
        %7697 = vmatprep.subr.mxu0 0.0
        %7698 = vmatpush1.msra.mxu0 0.0
        %7699 = vmatprep.subr.mxu0 0.0
        %7700 = vmatpush1.msra.mxu0 0.0
        %7701 = vmatprep.subr.mxu0 0.0
        %7702 = vmatpush1.msra.mxu0 0.0
        %7703 = vmatprep.subr.mxu0 0.0
        %7704 = vmatpush1.msra.mxu0 0.0
        %7705 = vmatprep.subr.mxu0 0.0
        %7706 = vmatpush1.msra.mxu0 0.0
        %7707 = vmatprep.subr.mxu0 0.0
        %7708 = vmatpush1.msra.mxu0 0.0
        %7709 = vmatprep.subr.mxu0 0.0
        %7710 = vmatpush1.msra.mxu0 0.0
        %7711 = vmatprep.subr.mxu0 0.0
        %7712 = vmatpush1.msra.mxu0 0.0
        %7713 = vmatprep.subr.mxu0 0.0
        %7714 = vmatpush1.msra.mxu0 0.0
        %7715 = vmatprep.subr.mxu0 0.0
        %7716 = vmatpush1.msra.mxu0 0.0
        %7717 = vmatprep.subr.mxu0 0.0
        %7718 = vmatpush1.msra.mxu0 0.0
        %7719 = vmatprep.subr.mxu0 0.0
        %7720 = vmatpush1.msra.mxu0 0.0
        %7721 = vmatprep.subr.mxu0 0.0
        %7722 = vmatpush1.msra.mxu0 0.0
        %7723 = vmatprep.subr.mxu0 0.0
        %7724 = vmatpush1.msra.mxu0 0.0
        %7725 = vmatprep.subr.mxu0 0.0
        %7726 = vmatpush1.msra.mxu0 0.0
        %7727 = vmatprep.subr.mxu0 0.0
        %7728 = vmatpush1.msra.mxu0 0.0
        %7729 = vmatprep.subr.mxu0 0.0
        %7730 = vmatpush1.msra.mxu0 0.0
        %7731 = vmatprep.subr.mxu0 0.0
        %7732 = vmatpush1.msra.mxu0 0.0
        %7733 = vmatprep.subr.mxu0 0.0
        %7734 = vmatpush1.msra.mxu0 0.0
        %7735 = vmatprep.mubr.f32.mxu0 0.0
        %v7736 = vand.u32 %v7668, 4294901760
        %v7737 = vsub.f32 %v7668, %v7736
        %v7738 = vand.u32 %v7737, 4294901760
        %v7739 = vsub.f32 %v7737, %v7738
        %v7740 = vand.u32 %v7739, 4294901760
        %7741 = vmatmul.mubr.f32.gmra.mrb[0].mxu0 %v7740
        %v7742 = vpop.f32.mrb[0].mxu0
        %v7743 = vadd.f32 0.0, %v7742
        %v7744 = vpop.f32.mrb[0].mxu0
        %7745 = vdwg.mxu0
        %7746 = vmatprep.subr.mxu0 0.0
        %v7747 = vand.u32 %v7665, 4294901760
        %v7748 = vsub.f32 %v7665, %v7747
        %v7749 = vand.u32 %v7748, 4294901760
        %v7750 = vsub.f32 %v7748, %v7749
        %v7751 = vand.u32 %v7750, 4294901760
        %7752 = vmatpush1.msra.mxu0 %v7751
        %7753 = vmatprep.subr.mxu0 0.0
        %7754 = vmatpush1.msra.mxu0 0.0
        %7755 = vmatprep.subr.mxu0 0.0
        %7756 = vmatpush1.msra.mxu0 0.0
        %7757 = vmatprep.subr.mxu0 0.0
        %7758 = vmatpush1.msra.mxu0 0.0
        %7759 = vmatprep.subr.mxu0 0.0
        %7760 = vmatpush1.msra.mxu0 0.0
        %7761 = vmatprep.subr.mxu0 0.0
        %7762 = vmatpush1.msra.mxu0 0.0
        %7763 = vmatprep.subr.mxu0 0.0
        %7764 = vmatpush1.msra.mxu0 0.0
        %7765 = vmatprep.subr.mxu0 0.0
        %7766 = vmatpush1.msra.mxu0 0.0
        %7767 = vmatprep.subr.mxu0 0.0
        %7768 = vmatpush1.msra.mxu0 0.0
        %7769 = vmatprep.subr.mxu0 0.0
        %7770 = vmatpush1.msra.mxu0 0.0
        %7771 = vmatprep.subr.mxu0 0.0
        %7772 = vmatpush1.msra.mxu0 0.0
        %7773 = vmatprep.subr.mxu0 0.0
        %7774 = vmatpush1.msra.mxu0 0.0
        %7775 = vmatprep.subr.mxu0 0.0
        %7776 = vmatpush1.msra.mxu0 0.0
        %7777 = vmatprep.subr.mxu0 0.0
        %7778 = vmatpush1.msra.mxu0 0.0
        %7779 = vmatprep.subr.mxu0 0.0
        %7780 = vmatpush1.msra.mxu0 0.0
        %7781 = vmatprep.subr.mxu0 0.0
        %7782 = vmatpush1.msra.mxu0 0.0
        %7783 = vmatprep.subr.mxu0 0.0
        %7784 = vmatpush1.msra.mxu0 0.0
        %7785 = vmatprep.subr.mxu0 0.0
        %7786 = vmatpush1.msra.mxu0 0.0
        %7787 = vmatprep.subr.mxu0 0.0
        %7788 = vmatpush1.msra.mxu0 0.0
        %7789 = vmatprep.subr.mxu0 0.0
        %7790 = vmatpush1.msra.mxu0 0.0
        %7791 = vmatprep.subr.mxu0 0.0
        %7792 = vmatpush1.msra.mxu0 0.0
        %7793 = vmatprep.subr.mxu0 0.0
        %7794 = vmatpush1.msra.mxu0 0.0
        %7795 = vmatprep.subr.mxu0 0.0
        %7796 = vmatpush1.msra.mxu0 0.0
        %7797 = vmatprep.subr.mxu0 0.0
        %7798 = vmatpush1.msra.mxu0 0.0
        %7799 = vmatprep.subr.mxu0 0.0
        %7800 = vmatpush1.msra.mxu0 0.0
        %7801 = vmatprep.subr.mxu0 0.0
        %7802 = vmatpush1.msra.mxu0 0.0
        %7803 = vmatprep.subr.mxu0 0.0
        %7804 = vmatpush1.msra.mxu0 0.0
        %7805 = vmatprep.subr.mxu0 0.0
        %7806 = vmatpush1.msra.mxu0 0.0
        %7807 = vmatprep.subr.mxu0 0.0
        %7808 = vmatpush1.msra.mxu0 0.0
        %7809 = vmatprep.subr.mxu0 0.0
        %7810 = vmatpush1.msra.mxu0 0.0
        %7811 = vmatprep.subr.mxu0 0.0
        %7812 = vmatpush1.msra.mxu0 0.0
        %7813 = vmatprep.subr.mxu0 0.0
        %7814 = vmatpush1.msra.mxu0 0.0
        %7815 = vmatprep.mubr.f32.mxu0 0.0
        %v7816 = vand.u32 %v7668, 4294901760
        %7817 = vmatmul.mubr.f32.gmra.mrb[0].mxu0 %v7816
        %v7818 = vpop.f32.mrb[0].mxu0
        %v7819 = vadd.f32 %v7743, %v7818
        %v7820 = vpop.f32.mrb[0].mxu0
        %7821 = vdwg.mxu0
        %7822 = vmatprep.subr.mxu0 0.0
        %v7823 = vand.u32 %v7665, 4294901760
        %v7824 = vsub.f32 %v7665, %v7823
        %7825 = vmatpush1.msra.mxu0 %v7824
        %7826 = vmatprep.subr.mxu0 0.0
        %7827 = vmatpush1.msra.mxu0 0.0
        %7828 = vmatprep.subr.mxu0 0.0
        %7829 = vmatpush1.msra.mxu0 0.0
        %7830 = vmatprep.subr.mxu0 0.0
        %7831 = vmatpush1.msra.mxu0 0.0
        %7832 = vmatprep.subr.mxu0 0.0
        %7833 = vmatpush1.msra.mxu0 0.0
        %7834 = vmatprep.subr.mxu0 0.0
        %7835 = vmatpush1.msra.mxu0 0.0
        %7836 = vmatprep.subr.mxu0 0.0
        %7837 = vmatpush1.msra.mxu0 0.0
        %7838 = vmatprep.subr.mxu0 0.0
        %7839 = vmatpush1.msra.mxu0 0.0
        %7840 = vmatprep.subr.mxu0 0.0
        %7841 = vmatpush1.msra.mxu0 0.0
        %7842 = vmatprep.subr.mxu0 0.0
        %7843 = vmatpush1.msra.mxu0 0.0
        %7844 = vmatprep.subr.mxu0 0.0
        %7845 = vmatpush1.msra.mxu0 0.0
        %7846 = vmatprep.subr.mxu0 0.0
        %7847 = vmatpush1.msra.mxu0 0.0
        %7848 = vmatprep.subr.mxu0 0.0
        %7849 = vmatpush1.msra.mxu0 0.0
        %7850 = vmatprep.subr.mxu0 0.0
        %7851 = vmatpush1.msra.mxu0 0.0
        %7852 = vmatprep.subr.mxu0 0.0
        %7853 = vmatpush1.msra.mxu0 0.0
        %7854 = vmatprep.subr.mxu0 0.0
        %7855 = vmatpush1.msra.mxu0 0.0
        %7856 = vmatprep.subr.mxu0 0.0
        %7857 = vmatpush1.msra.mxu0 0.0
        %7858 = vmatprep.subr.mxu0 0.0
        %7859 = vmatpush1.msra.mxu0 0.0
        %7860 = vmatprep.subr.mxu0 0.0
        %7861 = vmatpush1.msra.mxu0 0.0
        %7862 = vmatprep.subr.mxu0 0.0
        %7863 = vmatpush1.msra.mxu0 0.0
        %7864 = vmatprep.subr.mxu0 0.0
        %7865 = vmatpush1.msra.mxu0 0.0
        %7866 = vmatprep.subr.mxu0 0.0
        %7867 = vmatpush1.msra.mxu0 0.0
        %7868 = vmatprep.subr.mxu0 0.0
        %7869 = vmatpush1.msra.mxu0 0.0
        %7870 = vmatprep.subr.mxu0 0.0
        %7871 = vmatpush1.msra.mxu0 0.0
        %7872 = vmatprep.subr.mxu0 0.0
        %7873 = vmatpush1.msra.mxu0 0.0
        %7874 = vmatprep.subr.mxu0 0.0
        %7875 = vmatpush1.msra.mxu0 0.0
        %7876 = vmatprep.subr.mxu0 0.0
        %7877 = vmatpush1.msra.mxu0 0.0
        %7878 = vmatprep.subr.mxu0 0.0
        %7879 = vmatpush1.msra.mxu0 0.0
        %7880 = vmatprep.subr.mxu0 0.0
        %7881 = vmatpush1.msra.mxu0 0.0
        %7882 = vmatprep.subr.mxu0 0.0
        %7883 = vmatpush1.msra.mxu0 0.0
        %7884 = vmatprep.subr.mxu0 0.0
        %7885 = vmatpush1.msra.mxu0 0.0
        %7886 = vmatprep.subr.mxu0 0.0
        %7887 = vmatpush1.msra.mxu0 0.0
        %7888 = vmatprep.mubr.f32.mxu0 0.0
        %v7889 = vand.u32 %v7668, 4294901760
        %v7890 = vsub.f32 %v7668, %v7889
        %7891 = vmatmul.mubr.f32.gmra.mrb[0].mxu0 %v7890
        %v7892 = vpop.f32.mrb[0].mxu0
        %v7893 = vadd.f32 %v7819, %v7892
        %v7894 = vpop.f32.mrb[0].mxu0
        %7895 = vdwg.mxu0
        %7896 = vmatprep.subr.mxu0 0.0
        %v7897 = vand.u32 %v7665, 4294901760
        %7898 = vmatpush1.msra.mxu0 %v7897
        %7899 = vmatprep.subr.mxu0 0.0
        %7900 = vmatpush1.msra.mxu0 0.0
        %7901 = vmatprep.subr.mxu0 0.0
        %7902 = vmatpush1.msra.mxu0 0.0
        %7903 = vmatprep.subr.mxu0 0.0
        %7904 = vmatpush1.msra.mxu0 0.0
        %7905 = vmatprep.subr.mxu0 0.0
        %7906 = vmatpush1.msra.mxu0 0.0
        %7907 = vmatprep.subr.mxu0 0.0
        %7908 = vmatpush1.msra.mxu0 0.0
        %7909 = vmatprep.subr.mxu0 0.0
        %7910 = vmatpush1.msra.mxu0 0.0
        %7911 = vmatprep.subr.mxu0 0.0
        %7912 = vmatpush1.msra.mxu0 0.0
        %7913 = vmatprep.subr.mxu0 0.0
        %7914 = vmatpush1.msra.mxu0 0.0
        %7915 = vmatprep.subr.mxu0 0.0
        %7916 = vmatpush1.msra.mxu0 0.0
        %7917 = vmatprep.subr.mxu0 0.0
        %7918 = vmatpush1.msra.mxu0 0.0
        %7919 = vmatprep.subr.mxu0 0.0
        %7920 = vmatpush1.msra.mxu0 0.0
        %7921 = vmatprep.subr.mxu0 0.0
        %7922 = vmatpush1.msra.mxu0 0.0
        %7923 = vmatprep.subr.mxu0 0.0
        %7924 = vmatpush1.msra.mxu0 0.0
        %7925 = vmatprep.subr.mxu0 0.0
        %7926 = vmatpush1.msra.mxu0 0.0
        %7927 = vmatprep.subr.mxu0 0.0
        %7928 = vmatpush1.msra.mxu0 0.0
        %7929 = vmatprep.subr.mxu0 0.0
        %7930 = vmatpush1.msra.mxu0 0.0
        %7931 = vmatprep.subr.mxu0 0.0
        %7932 = vmatpush1.msra.mxu0 0.0
        %7933 = vmatprep.subr.mxu0 0.0
        %7934 = vmatpush1.msra.mxu0 0.0
        %7935 = vmatprep.subr.mxu0 0.0
        %7936 = vmatpush1.msra.mxu0 0.0
        %7937 = vmatprep.subr.mxu0 0.0
        %7938 = vmatpush1.msra.mxu0 0.0
        %7939 = vmatprep.subr.mxu0 0.0
        %7940 = vmatpush1.msra.mxu0 0.0
        %7941 = vmatprep.subr.mxu0 0.0
        %7942 = vmatpush1.msra.mxu0 0.0
        %7943 = vmatprep.subr.mxu0 0.0
        %7944 = vmatpush1.msra.mxu0 0.0
        %7945 = vmatprep.subr.mxu0 0.0
        %7946 = vmatpush1.msra.mxu0 0.0
        %7947 = vmatprep.subr.mxu0 0.0
        %7948 = vmatpush1.msra.mxu0 0.0
        %7949 = vmatprep.subr.mxu0 0.0
        %7950 = vmatpush1.msra.mxu0 0.0
        %7951 = vmatprep.subr.mxu0 0.0
        %7952 = vmatpush1.msra.mxu0 0.0
        %7953 = vmatprep.subr.mxu0 0.0
        %7954 = vmatpush1.msra.mxu0 0.0
        %7955 = vmatprep.subr.mxu0 0.0
        %7956 = vmatpush1.msra.mxu0 0.0
        %7957 = vmatprep.subr.mxu0 0.0
        %7958 = vmatpush1.msra.mxu0 0.0
        %7959 = vmatprep.subr.mxu0 0.0
        %7960 = vmatpush1.msra.mxu0 0.0
        %7961 = vmatprep.mubr.f32.mxu0 0.0
        %v7962 = vand.u32 %v7668, 4294901760
        %v7963 = vsub.f32 %v7668, %v7962
        %v7964 = vand.u32 %v7963, 4294901760
        %7965 = vmatmul.mubr.f32.gmra.mrb[0].mxu0 %v7964
        %v7966 = vpop.f32.mrb[0].mxu0
        %v7967 = vadd.f32 %v7893, %v7966
        %v7968 = vpop.f32.mrb[0].mxu0
        %7969 = vdwg.mxu0
        %7970 = vmatprep.subr.mxu0 0.0
        %v7971 = vand.u32 %v7665, 4294901760
        %v7972 = vsub.f32 %v7665, %v7971
        %v7973 = vand.u32 %v7972, 4294901760
        %7974 = vmatpush1.msra.mxu0 %v7973
        %7975 = vmatprep.subr.mxu0 0.0
        %7976 = vmatpush1.msra.mxu0 0.0
        %7977 = vmatprep.subr.mxu0 0.0
        %7978 = vmatpush1.msra.mxu0 0.0
        %7979 = vmatprep.subr.mxu0 0.0
        %7980 = vmatpush1.msra.mxu0 0.0
        %7981 = vmatprep.subr.mxu0 0.0
        %7982 = vmatpush1.msra.mxu0 0.0
        %7983 = vmatprep.subr.mxu0 0.0
        %7984 = vmatpush1.msra.mxu0 0.0
        %7985 = vmatprep.subr.mxu0 0.0
        %7986 = vmatpush1.msra.mxu0 0.0
        %7987 = vmatprep.subr.mxu0 0.0
        %7988 = vmatpush1.msra.mxu0 0.0
        %7989 = vmatprep.subr.mxu0 0.0
        %7990 = vmatpush1.msra.mxu0 0.0
        %7991 = vmatprep.subr.mxu0 0.0
        %7992 = vmatpush1.msra.mxu0 0.0
        %7993 = vmatprep.subr.mxu0 0.0
        %7994 = vmatpush1.msra.mxu0 0.0
        %7995 = vmatprep.subr.mxu0 0.0
        %7996 = vmatpush1.msra.mxu0 0.0
        %7997 = vmatprep.subr.mxu0 0.0
        %7998 = vmatpush1.msra.mxu0 0.0
        %7999 = vmatprep.subr.mxu0 0.0
        %8000 = vmatpush1.msra.mxu0 0.0
        %8001 = vmatprep.subr.mxu0 0.0
        %8002 = vmatpush1.msra.mxu0 0.0
        %8003 = vmatprep.subr.mxu0 0.0
        %8004 = vmatpush1.msra.mxu0 0.0
        %8005 = vmatprep.subr.mxu0 0.0
        %8006 = vmatpush1.msra.mxu0 0.0
        %8007 = vmatprep.subr.mxu0 0.0
        %8008 = vmatpush1.msra.mxu0 0.0
        %8009 = vmatprep.subr.mxu0 0.0
        %8010 = vmatpush1.msra.mxu0 0.0
        %8011 = vmatprep.subr.mxu0 0.0
        %8012 = vmatpush1.msra.mxu0 0.0
        %8013 = vmatprep.subr.mxu0 0.0
        %8014 = vmatpush1.msra.mxu0 0.0
        %8015 = vmatprep.subr.mxu0 0.0
        %8016 = vmatpush1.msra.mxu0 0.0
        %8017 = vmatprep.subr.mxu0 0.0
        %8018 = vmatpush1.msra.mxu0 0.0
        %8019 = vmatprep.subr.mxu0 0.0
        %8020 = vmatpush1.msra.mxu0 0.0
        %8021 = vmatprep.subr.mxu0 0.0
        %8022 = vmatpush1.msra.mxu0 0.0
        %8023 = vmatprep.subr.mxu0 0.0
        %8024 = vmatpush1.msra.mxu0 0.0
        %8025 = vmatprep.subr.mxu0 0.0
        %8026 = vmatpush1.msra.mxu0 0.0
        %8027 = vmatprep.subr.mxu0 0.0
        %8028 = vmatpush1.msra.mxu0 0.0
        %8029 = vmatprep.subr.mxu0 0.0
        %8030 = vmatpush1.msra.mxu0 0.0
        %8031 = vmatprep.subr.mxu0 0.0
        %8032 = vmatpush1.msra.mxu0 0.0
        %8033 = vmatprep.subr.mxu0 0.0
        %8034 = vmatpush1.msra.mxu0 0.0
        %8035 = vmatprep.subr.mxu0 0.0
        %8036 = vmatpush1.msra.mxu0 0.0
        %8037 = vmatprep.mubr.f32.mxu0 0.0
        %v8038 = vand.u32 %v7668, 4294901760
        %8039 = vmatmul.mubr.f32.gmra.mrb[0].mxu0 %v8038
        %v8040 = vpop.f32.mrb[0].mxu0
        %v8041 = vadd.f32 %v7967, %v8040
        %v8042 = vpop.f32.mrb[0].mxu0
        %8043 = vdwg.mxu0
        %8044 = vmatprep.subr.mxu0 0.0
        %v8045 = vand.u32 %v7665, 4294901760
        %8046 = vmatpush1.msra.mxu0 %v8045
        %8047 = vmatprep.subr.mxu0 0.0
        %8048 = vmatpush1.msra.mxu0 0.0
        %8049 = vmatprep.subr.mxu0 0.0
        %8050 = vmatpush1.msra.mxu0 0.0
        %8051 = vmatprep.subr.mxu0 0.0
        %8052 = vmatpush1.msra.mxu0 0.0
        %8053 = vmatprep.subr.mxu0 0.0
        %8054 = vmatpush1.msra.mxu0 0.0
        %8055 = vmatprep.subr.mxu0 0.0
        %8056 = vmatpush1.msra.mxu0 0.0
        %8057 = vmatprep.subr.mxu0 0.0
        %8058 = vmatpush1.msra.mxu0 0.0
        %8059 = vmatprep.subr.mxu0 0.0
        %8060 = vmatpush1.msra.mxu0 0.0
        %8061 = vmatprep.subr.mxu0 0.0
        %8062 = vmatpush1.msra.mxu0 0.0
        %8063 = vmatprep.subr.mxu0 0.0
        %8064 = vmatpush1.msra.mxu0 0.0
        %8065 = vmatprep.subr.mxu0 0.0
        %8066 = vmatpush1.msra.mxu0 0.0
        %8067 = vmatprep.subr.mxu0 0.0
        %8068 = vmatpush1.msra.mxu0 0.0
        %8069 = vmatprep.subr.mxu0 0.0
        %8070 = vmatpush1.msra.mxu0 0.0
        %8071 = vmatprep.subr.mxu0 0.0
        %8072 = vmatpush1.msra.mxu0 0.0
        %8073 = vmatprep.subr.mxu0 0.0
        %8074 = vmatpush1.msra.mxu0 0.0
        %8075 = vmatprep.subr.mxu0 0.0
        %8076 = vmatpush1.msra.mxu0 0.0
        %8077 = vmatprep.subr.mxu0 0.0
        %8078 = vmatpush1.msra.mxu0 0.0
        %8079 = vmatprep.subr.mxu0 0.0
        %8080 = vmatpush1.msra.mxu0 0.0
        %8081 = vmatprep.subr.mxu0 0.0
        %8082 = vmatpush1.msra.mxu0 0.0
        %8083 = vmatprep.subr.mxu0 0.0
        %8084 = vmatpush1.msra.mxu0 0.0
        %8085 = vmatprep.subr.mxu0 0.0
        %8086 = vmatpush1.msra.mxu0 0.0
        %8087 = vmatprep.subr.mxu0 0.0
        %8088 = vmatpush1.msra.mxu0 0.0
        %8089 = vmatprep.subr.mxu0 0.0
        %8090 = vmatpush1.msra.mxu0 0.0
        %8091 = vmatprep.subr.mxu0 0.0
        %8092 = vmatpush1.msra.mxu0 0.0
        %8093 = vmatprep.subr.mxu0 0.0
        %8094 = vmatpush1.msra.mxu0 0.0
        %8095 = vmatprep.subr.mxu0 0.0
        %8096 = vmatpush1.msra.mxu0 0.0
        %8097 = vmatprep.subr.mxu0 0.0
        %8098 = vmatpush1.msra.mxu0 0.0
        %8099 = vmatprep.subr.mxu0 0.0
        %8100 = vmatpush1.msra.mxu0 0.0
        %8101 = vmatprep.subr.mxu0 0.0
        %8102 = vmatpush1.msra.mxu0 0.0
        %8103 = vmatprep.subr.mxu0 0.0
        %8104 = vmatpush1.msra.mxu0 0.0
        %8105 = vmatprep.subr.mxu0 0.0
        %8106 = vmatpush1.msra.mxu0 0.0
        %8107 = vmatprep.subr.mxu0 0.0
        %8108 = vmatpush1.msra.mxu0 0.0
        %8109 = vmatprep.mubr.f32.mxu0 0.0
        %v8110 = vand.u32 %v7668, 4294901760
        %8111 = vmatmul.mubr.f32.gmra.mrb[0].mxu0 %v8110
        %v8112 = vpop.f32.mrb[0].mxu0
        %v8113 = vadd.f32 %v8041, %v8112
        %v8114 = vpop.f32.mrb[0].mxu0
        %8115 = vdwg.mxu0
        %8117 = vrot.lane.b32.xlu0 %v5401, 4
        %v8118 = vpop.permute.xlu0 %8117
        %8121 = vrot.lane.b32.xlu0 %v5853, 8
        %v8122 = vpop.permute.xlu0 %8121
        %8125 = vrot.lane.b32.xlu0 %v6305, 12
        %v8126 = vpop.permute.xlu0 %8125
        %8129 = vrot.lane.b32.xlu0 %v6757, 16
        %v8130 = vpop.permute.xlu0 %8129
        %8133 = vrot.lane.b32.xlu0 %v7209, 20
        %v8134 = vpop.permute.xlu0 %8133
        %8137 = vrot.lane.b32.xlu0 %v7661, 24
        %v8138 = vpop.permute.xlu0 %8137
        %8141 = vrot.lane.b32.xlu0 %v8113, 28
        %v8142 = vpop.permute.xlu0 %8141
        %v8144 = vsel %vm780, %v4949, %v8118
        %v8145 = vsel %vm4395, %v8144, %v8122
        %vm8146 = vcmask 97280
        %v8147 = vsel %vm8146, %v8145, %v8126
        %vm8148 = vcmask 130048
        %v8149 = vsel %vm8148, %v8147, %v8130
        %vm8150 = vcmask 162816
        %v8151 = vsel %vm8150, %v8149, %v8134
        %vm8152 = vcmask 195584
        %v8153 = vsel %vm8152, %v8151, %v8138
        %vm8154 = vcmask 228352
        %v8155 = vsel %vm8154, %v8153, %v8142
        %v8156 = vsel %vm274, %v8155, 0.0
        %8157 = vadd.xlane.f32.xlu0 %v8156
        %v8158 = vpop.xlane.xlu0 %8157
        %v8159 = vrcp.pop 32.0
        %v8160 = vmul.f32 %v8158, %v8159
        %v8161 = vsub.f32 %v8155, %v8160
        %v8162 = vmul.f32 %v8161, %v8161
        %v8163 = vsel %vm274, %v8162, 0.0
        %8164 = vadd.xlane.f32.xlu0 %v8163
        %v8165 = vpop.xlane.xlu0 %8164
        %v8166 = vmul.f32 %v8165, %v8159
        %v8167 = vadd.f32 %v8166, 1e-05
        %v8168 = vrsqrt.pop %v8167
        %v8169 = vmul.f32 %v8161, %v8168
        %v8170 = vld [vmem:[%s3] sm:$0x1]
        %v8172 = vlaneseq
        %v8173 = vshrl.u32 %v8172, 7
        %v8174 = vsub.s32 0, %v8173
        %v8175 = vrot.slane %v8170, %v8174
        %v8177 = vmul.f32 %v8169, %v8175
        %v8178 = vld [vmem:[%s4] sm:$0x1]
        %v8180 = vlaneseq
        %v8181 = vshrl.u32 %v8180, 7
        %v8182 = vsub.s32 0, %v8181
        %v8183 = vrot.slane %v8178, %v8182
        %v8185 = vadd.f32 %v8177, %v8183
        %8186 = vst.msk [vmem:[%s268] sm:$0xff] %vm274, %v8185
        %s8187 = sand.u32 %s141, 1
        %s8188 = scalar_lea.sflag [#allocation4], %s8187
        %s8189 = sand.u32 %s141, 1
        %s8190 = smul.addr %s8189, 8
        %s8191 = scalar_lea.vmem [#allocation8], %s8190
        // Predicated region
        $region53: #{tpu_custom_call.1} parent=39 // pred_check
          %p8192 = pneg %p151
        $region54: #{tpu_custom_call.1} parent=39 // pred_check_branch
          %8194 = sbr.rel (%p8192) target = $region56
        $region55: #{tpu_custom_call.1} parent=39 // pred_region
          %s8196 = ssub.s32 128, 128
          %8197 = vsyncadd %s8188, %s8196
          %s8198 = smul.addr %s23, 128
          %s8199 = scalar_lea.hbm %s5, %s8198
          %s8201 = sshll.u32 %s8191, 4
          %s8202 = int_to_ptr.vmem [resolvable:$true] %s8201
          %8204 = dma.vmem_to_hbm [thread:$0]  %s8202, 128, %s8199, %s8188
        $region56: #{tpu_custom_call.1} parent=39 // pred_fallthru
          _
      $region40: #{tpu_custom_call.1} parent=5 // pred_fallthru
        _
      %p8205 = scmp.le.s32.totalorder 2, %s18
      // Predicated region
      $region57: #{tpu_custom_call.1} parent=5 // pred_check
        %p8206 = pneg %p8205
      $region58: #{tpu_custom_call.1} parent=5 // pred_check_branch
        %8208 = sbr.rel (%p8206) target = $region60
      $region59: #{tpu_custom_call.1} parent=5 // pred_region
        %s8209 = ssub.s32 %s18, 2
        // Predicated region
        $region61: #{tpu_custom_call.1} parent=59 // pred_check
          %p8210 = pneg %p157
        $region62: #{tpu_custom_call.1} parent=59 // pred_check_branch
          %8212 = sbr.rel (%p8210) target = $region64
        $region63: #{tpu_custom_call.1} parent=59 // pred_region
          %s8213 = sand.u32 %s142, 1
          %s8214 = scalar_lea.sflag [#allocation4], %s8213
          %s8215 = sand.u32 %s142, 1
          %s8216 = smul.addr %s8215, 8
          %s8217 = scalar_lea.vmem [#allocation8], %s8216
          %8218 = dma.done %s8214, 128
        $region64: #{tpu_custom_call.1} parent=59 // pred_fallthru
          _
      $region60: #{tpu_custom_call.1} parent=5 // pred_fallthru
        _
    $region6: #{tpu_custom_call.1} parent=1 // loop_footer
      %s22 = sadd.s32 1, %s18
    $region7: #{tpu_custom_call.1} parent=1 // loop_footer_branch
      %17 = sbr.rel target = $region3
    $region8: #{tpu_custom_call.1} parent=1 // loop_exit
      _
    %8219 = vsyncpa [#allocation3], 1
    %s8220 = scalar_lea.sflag [#allocation3], 1
    %8221 = vsyncpa %s8220, 1
    %8222 = vsyncpa [#allocation6], 1
    %8223 = vsyncpa [#allocation4], 1
    %s8224 = scalar_lea.sflag [#allocation4], 1
    %8225 = vsyncpa %s8224, 1

</llo_original>
